<compile_context>
chip_gen: v5e
topology: v5e:2x2
jax: 0.10.0
libtpu: 0.0.40
codegen_flags: <defaults>
</compile_context>

<pallas_src>
import math
from functools import partial

import jax
import jax.numpy as jnp
from jax.experimental import pallas as pl
from jax.experimental.pallas import tpu as pltpu

LEAKY_SLOPE = 0.3
DENSE1_OUT = 512
UPSAMPLE_LEN = 1024
CONV1_K = 8
CONV1_DIL = 2
CONV1_PAD = 4
# L_out = 1024 + 2*4 - 2*(8-1) = 1018
CONV1_OUT_LEN = UPSAMPLE_LEN + 2 * CONV1_PAD - CONV1_DIL * (CONV1_K - 1)
LINEAR_OUT = 97149

FOLD_K = CONV1_OUT_LEN // 2        # 509 folded contraction taps
FOLD_K_PAD = 512                   # padded to an MXU/lane friendly size
TN = 5120                          # hot-kernel output tile width (97280/5120 = 19)
NP_PAD = ((LINEAR_OUT + TN - 1) // TN) * TN   # 97280


# ---------------------------------------------------------------------------
# Kernel 1 (prologue, tiny): dense1 + upsample + conv1 + ReLU fused.
# The upsample is algebraically folded away; conv1 acts on h (B,512) through a
# precomputed banded (512,512) matrix, so the kernel is just two chained dots.
# Output: relu(c) in bf16, zero in the 3 padded tail columns.
# ---------------------------------------------------------------------------
def _prologue_kernel(x_ref, w1_ref, b1_ref, wc_ref, bc_ref, o_ref):
    h = (
        jnp.dot(x_ref[...], w1_ref[...], preferred_element_type=jnp.float32)
        + b1_ref[...]
    )                                                     # (B, 512)
    c = (
        jnp.dot(h, wc_ref[...], preferred_element_type=jnp.float32)
        + bc_ref[...]
    )                                                     # (B, 512)
    o_ref[...] = jnp.maximum(c, 0.0).astype(o_ref.dtype)


def prologue(x, w1, b1, wc, bc):
    B = x.shape[0]
    return pl.pallas_call(
        _prologue_kernel,
        out_shape=jax.ShapeDtypeStruct((B, FOLD_K_PAD), jnp.bfloat16),
        in_specs=[pl.BlockSpec(memory_space=pltpu.MemorySpace.VMEM)] * 5,
        out_specs=pl.BlockSpec(memory_space=pltpu.MemorySpace.VMEM),
    )(x, w1, b1, wc, bc)


# ---------------------------------------------------------------------------
# Kernel 2 (hot path): folded Linear (512 -> 97280, bf16 weights, f32 acc)
# fused with Conv1d(1, C, k=1) and LeakyReLU(0.3).
# Grid tiles the output-feature axis only (19 parallel steps of width 5120).
# Output is one dense (B*C, tn) slab per step; row r = b*C + c, so the caller
# just reshapes to (B, C, Np).
#   m_ref[r, b]  = w2[r % C] * (b == r // C)     (per-row scale)
#   c2_ref[r, 0] = b2[r % C]                     (per-row bias)
# ---------------------------------------------------------------------------
def _linear_conv2_leaky_kernel(c_ref, w_ref, b_ref, m_ref, c2_ref, o_ref):
    BC, TN_ = o_ref.shape
    B = c_ref.shape[0]
    # bf16 x bf16 MXU matmul, f32 accumulate.
    z = (
        jnp.dot(c_ref[...], w_ref[...], preferred_element_type=jnp.float32)
        + b_ref[...]
    )                                                     # (B, TN) f32
    v = jnp.broadcast_to(c2_ref[...], (BC, TN_))
    for b in range(B):                                     # B is tiny & static
        zb = jnp.broadcast_to(z[b:b + 1, :], (BC, TN_))    # sublane broadcast
        v = v + zb * m_ref[:, b:b + 1]                     # lane broadcast
    o_ref[...] = jnp.where(v >= 0.0, v, LEAKY_SLOPE * v)


def linear_conv2_leaky(c_act, w_fold_bf16, b_pad, m_mat, c2_col, *, tn=TN):
    B, Kf = c_act.shape
    Np = w_fold_bf16.shape[1]
    BC = m_mat.shape[0]
    assert Np % tn == 0 and tn % 128 == 0 and Kf % 8 == 0
    return pl.pallas_call(
        _linear_conv2_leaky_kernel,
        out_shape=jax.ShapeDtypeStruct((BC, Np), jnp.float32),
        grid=(Np // tn,),
        in_specs=[
            pl.BlockSpec((B, Kf), lambda j: (0, 0)),       # activations (resident)
            pl.BlockSpec((Kf, tn), lambda j: (0, j)),      # bf16 weight stream
            pl.BlockSpec((1, tn), lambda j: (0, j)),       # linear bias
            pl.BlockSpec((BC, B), lambda j: (0, 0)),       # conv2 scale matrix
            pl.BlockSpec((BC, 1), lambda j: (0, 0)),       # conv2 bias column
        ],
        out_specs=pl.BlockSpec((BC, tn), lambda j: (0, j)),
        compiler_params=pltpu.CompilerParams(
            dimension_semantics=("parallel",),
            # ~10.5 MB of double-buffered bf16 weight + small slabs; keep well
            # under v7x's 64 MiB physical VMEM.
            vmem_limit_bytes=32 * 1024 * 1024,
        ),
    )(c_act, w_fold_bf16, b_pad, m_mat, c2_col)


# ---------------------------------------------------------------------------
# Parameter init (deterministic, synthetic) + one-time preprocessing.
# Logical parameters match the PyTorch module shapes; derived tensors
# (banded conv matrix, folded/bf16 big weight) are exact algebraic rewrites.
# ---------------------------------------------------------------------------
def _preprocess(p, np_pad=NP_PAD):
    # Fold the upsample-by-2 into the big linear weight:
    #   W_fold[m, :] = W[2m, :] + W[2m+1, :]   (509 rows), then pad to 512/bf16.
    w_fold = p["w_big"][0::2, :] + p["w_big"][1::2, :]             # (509, 97149)
    w_fold = jnp.pad(
        w_fold.astype(jnp.bfloat16),
        ((0, FOLD_K_PAD - FOLD_K), (0, np_pad - LINEAR_OUT)),
    )                                                              # (512, 97280)
    b_pad = jnp.pad(p["b_big"], ((0, 0), (0, np_pad - LINEAR_OUT)))  # (1, 97280)

    # Conv1(k=8, dil=2, pad=4) applied to the upsampled signal collapses to a
    # 509-tap correlation on h:  c[m] = b + sum_k w[k] * h[m + k - 2].
    # Express it as a banded (512, 512) matrix so the prologue is one MXU dot.
    rows = jnp.arange(FOLD_K_PAD)[:, None]        # p (h index)
    cols = jnp.arange(FOLD_K_PAD)[None, :]        # m (output index)
    d = rows - cols + 2
    valid = (d >= 0) & (d < CONV1_K) & (cols < FOLD_K)
    wc = jnp.where(valid, p["w_conv"][jnp.clip(d, 0, CONV1_K - 1)], 0.0)
    bc = jnp.where(jnp.arange(FOLD_K_PAD) < FOLD_K, p["b_conv"][0], 0.0)[None, :]
    return dict(
        w_fold_bf16=w_fold,
        b_big_pad=b_pad,
        w_conv_mat=wc.astype(jnp.float32),
        b_conv_vec=bc.astype(jnp.float32),
    )


def init_params(key, input_size, output_channel):
    ks = jax.random.split(key, 8)
    params = dict(
        w1=jax.random.normal(ks[0], (input_size, DENSE1_OUT), jnp.float32)
        / math.sqrt(input_size),
        b1=jax.random.normal(ks[1], (1, DENSE1_OUT), jnp.float32) * 0.01,
        w_conv=jax.random.normal(ks[2], (CONV1_K,), jnp.float32)
        / math.sqrt(CONV1_K),
        b_conv=jax.random.normal(ks[3], (1,), jnp.float32) * 0.01,
        w_big=jax.random.normal(ks[4], (CONV1_OUT_LEN, LINEAR_OUT), jnp.float32)
        / math.sqrt(CONV1_OUT_LEN),
        b_big=jax.random.normal(ks[5], (1, LINEAR_OUT), jnp.float32) * 0.01,
        w2=jax.random.normal(ks[6], (output_channel,), jnp.float32),
        b2=jax.random.normal(ks[7], (output_channel,), jnp.float32) * 0.01,
    )
    params.update(_preprocess(params))
    return params


# ---------------------------------------------------------------------------
# Forward
# ---------------------------------------------------------------------------
@jax.jit
def decoder_forward(params, x):
    B = x.shape[0]
    C = params["w2"].shape[0]
    # Fused prologue: dense1 + upsample + conv1 + ReLU  -> bf16 (B, 512)
    c_act = prologue(
        x, params["w1"], params["b1"], params["w_conv_mat"], params["b_conv_vec"]
    )
    # conv2 (kernel_size=1) as a per-row scale/bias for the (B*C, N) slab.
    eye = jnp.eye(B, dtype=jnp.float32)
    m_mat = jnp.repeat(eye, C, axis=0) * jnp.tile(params["w2"], B)[:, None]
    c2_col = jnp.tile(params["b2"], B)[:, None]
    out = linear_conv2_leaky(
        c_act, params["w_fold_bf16"], params["b_big_pad"], m_mat, c2_col, tn=TN
    )                                                    # (B*C, 97280)
    # TODO(synk): the final 97280->97149 crop costs ~3 MB of copy; could be
    # removed with a ragged/masked last output tile if it ever matters.
    return out.reshape(B, C, -1)[:, :, :LINEAR_OUT]      # (B, C, 97149)


# ---------------------------------------------------------------------------
# Pure-JAX reference (independent path: explicit upsample + dilated conv +
# full f32 linear), uses only the logical parameters.
# ---------------------------------------------------------------------------
def decoder_reference(params, x):
    hp = jax.lax.Precision.HIGHEST
    h = jnp.dot(x, params["w1"], precision=hp) + params["b1"]
    up = jnp.repeat(h, 2, axis=1)                              # nearest x2
    conv = jax.lax.conv_general_dilated(
        up[:, None, :],
        params["w_conv"].reshape(1, 1, CONV1_K),
        window_strides=(1,),
        padding=[(CONV1_PAD, CONV1_PAD)],
        rhs_dilation=(CONV1_DIL,),
        dimension_numbers=("NCH", "OIH", "NCH"),
    )[:, 0, :] + params["b_conv"][0]
    conv = jnp.maximum(conv, 0.0)                              # (B, 1018)
    lin = jnp.dot(conv, params["w_big"], precision=hp) + params["b_big"]
    v = (
        lin[:, None, :] * params["w2"][None, :, None]
        + params["b2"][None, :, None]
    )
    return jnp.where(v >= 0.0, v, LEAKY_SLOPE * v)


if __name__ == "__main__":
    input_size = 32
    output_channel = 4
    B = 2

    key = jax.random.PRNGKey(0)
    pkey, xkey = jax.random.split(key)
    params = init_params(pkey, input_size, output_channel)
    x = jax.random.normal(xkey, (B, input_size), jnp.float32)

    out = jax.block_until_ready(decoder_forward(params, x))
    assert out.shape == (B, output_channel, LINEAR_OUT), out.shape

    ref = jax.block_until_ready(decoder_reference(params, x))
    max_err = float(jnp.max(jnp.abs(out - ref)))
    assert jnp.allclose(out, ref, atol=2e-2, rtol=2e-2), f"max_err={max_err}"

    print("KERNEL_OK")
</pallas_src>

<mosaic_0001>
module attributes {stable_mosaic.version = 11 : i64} {
  func.func @_prologue_kernel(%arg0: memref<2x32xf32, #tpu.memory_space<vmem>>, %arg1: memref<32x512xf32, #tpu.memory_space<vmem>>, %arg2: memref<1x512xf32, #tpu.memory_space<vmem>>, %arg3: memref<512x512xf32, #tpu.memory_space<vmem>>, %arg4: memref<1x512xf32, #tpu.memory_space<vmem>>, %arg5: memref<2x512xbf16, #tpu.memory_space<vmem>>) attributes {dimension_semantics = [], scalar_prefetch = 0 : i64, scratch_operands = 0 : i64, tpu.core_type = #tpu.core_type<tc>} {
    %c0 = arith.constant 0 : index
    %c0_0 = arith.constant 0 : index
    %0 = vector.load %arg0[%c0, %c0_0] : memref<2x32xf32, #tpu.memory_space<vmem>>, vector<2x32xf32>
    %c0_1 = arith.constant 0 : index
    %c0_2 = arith.constant 0 : index
    %1 = vector.load %arg1[%c0_1, %c0_2] : memref<32x512xf32, #tpu.memory_space<vmem>>, vector<32x512xf32>
    %cst = arith.constant dense<0.000000e+00> : vector<2x512xf32>
    %2 = tpu.matmul %0, %1, %cst {dimension_numbers = #tpu.dot_dimension_numbers<[1], [0], [0], [1], [0, 0, 1, 1], [], []>} : vector<2x32xf32>, vector<32x512xf32>, vector<2x512xf32> -> vector<2x512xf32>
    %c0_3 = arith.constant 0 : index
    %c0_4 = arith.constant 0 : index
    %3 = vector.load %arg2[%c0_3, %c0_4] : memref<1x512xf32, #tpu.memory_space<vmem>>, vector<1x512xf32>
    %4 = vector.broadcast %3 : vector<1x512xf32> to vector<2x512xf32>
    %5 = arith.addf %2, %4 : vector<2x512xf32>
    %c0_5 = arith.constant 0 : index
    %c0_6 = arith.constant 0 : index
    %6 = vector.load %arg3[%c0_5, %c0_6] : memref<512x512xf32, #tpu.memory_space<vmem>>, vector<512x512xf32>
    %cst_7 = arith.constant dense<0.000000e+00> : vector<2x512xf32>
    %7 = tpu.matmul %5, %6, %cst_7 {dimension_numbers = #tpu.dot_dimension_numbers<[1], [0], [0], [1], [0, 0, 1, 1], [], []>} : vector<2x512xf32>, vector<512x512xf32>, vector<2x512xf32> -> vector<2x512xf32>
    %c0_8 = arith.constant 0 : index
    %c0_9 = arith.constant 0 : index
    %8 = vector.load %arg4[%c0_8, %c0_9] : memref<1x512xf32, #tpu.memory_space<vmem>>, vector<1x512xf32>
    %9 = vector.broadcast %8 : vector<1x512xf32> to vector<2x512xf32>
    %10 = arith.addf %7, %9 : vector<2x512xf32>
    %cst_10 = arith.constant 0.000000e+00 : f32
    %11 = vector.broadcast %cst_10 : f32 to vector<2x512xf32>
    %12 = arith.maximumf %10, %11 : vector<2x512xf32>
    %13 = arith.truncf %12 : vector<2x512xf32> to vector<2x512xbf16>
    %c0_11 = arith.constant 0 : index
    %c0_12 = arith.constant 0 : index
    %14 = vector.load %arg5[%c0_11, %c0_12] : memref<2x512xbf16, #tpu.memory_space<vmem>>, vector<2x512xbf16>
    tpu.vector_store %arg5[%c0_11, %c0_12], %13 {strides = array<i32>} : memref<2x512xbf16, #tpu.memory_space<vmem>>, vector<2x512xbf16>,
    return
  }
}

module attributes {stable_mosaic.version = 11 : i64} {
  func.func @_linear_conv2_leaky_kernel(%arg0: i32, %arg1: memref<2x512xbf16, #tpu.memory_space<vmem>>, %arg2: memref<512x5120xbf16, #tpu.memory_space<vmem>>, %arg3: memref<1x5120xf32, #tpu.memory_space<vmem>>, %arg4: memref<8x2xf32, #tpu.memory_space<vmem>>, %arg5: memref<8x1xf32, #tpu.memory_space<vmem>>, %arg6: memref<8x5120xf32, #tpu.memory_space<vmem>>) attributes {dimension_semantics = [#tpu.dimension_semantics<parallel>], iteration_bounds = array<i64: 19>, scalar_prefetch = 0 : i64, scratch_operands = 0 : i64, tpu.core_type = #tpu.core_type<tc>, window_params = [{pipeline_mode = #tpu.pipeline_mode<synchronous>, transform_indices = @transform_0, window_bounds = array<i64: 2, 512>}, {transform_indices = @transform_1, window_bounds = array<i64: 512, 5120>}, {transform_indices = @transform_2, window_bounds = array<i64: 1, 5120>}, {pipeline_mode = #tpu.pipeline_mode<synchronous>, transform_indices = @transform_3, window_bounds = array<i64: 8, 2>}, {pipeline_mode = #tpu.pipeline_mode<synchronous>, transform_indices = @transform_4, window_bounds = array<i64: 8, 1>}, {transform_indices = @transform_5, window_bounds = array<i64: 8, 5120>}]} {
    %c0 = arith.constant 0 : index
    %c0_0 = arith.constant 0 : index
    %0 = vector.load %arg1[%c0, %c0_0] : memref<2x512xbf16, #tpu.memory_space<vmem>>, vector<2x512xbf16>
    %c0_1 = arith.constant 0 : index
    %c0_2 = arith.constant 0 : index
    %1 = vector.load %arg2[%c0_1, %c0_2] : memref<512x5120xbf16, #tpu.memory_space<vmem>>, vector<512x5120xbf16>
    %cst = arith.constant dense<0.000000e+00> : vector<2x5120xf32>
    %2 = tpu.matmul %0, %1, %cst {dimension_numbers = #tpu.dot_dimension_numbers<[1], [0], [0], [1], [0, 0, 1, 1], [], []>} : vector<2x512xbf16>, vector<512x5120xbf16>, vector<2x5120xf32> -> vector<2x5120xf32>
    %c0_3 = arith.constant 0 : index
    %c0_4 = arith.constant 0 : index
    %3 = vector.load %arg3[%c0_3, %c0_4] : memref<1x5120xf32, #tpu.memory_space<vmem>>, vector<1x5120xf32>
    %4 = vector.broadcast %3 : vector<1x5120xf32> to vector<2x5120xf32>
    %5 = arith.addf %2, %4 : vector<2x5120xf32>
    %c0_5 = arith.constant 0 : index
    %c0_6 = arith.constant 0 : index
    %6 = vector.load %arg5[%c0_5, %c0_6] : memref<8x1xf32, #tpu.memory_space<vmem>>, vector<8x1xf32>
    %7 = vector.shape_cast %6 : vector<8x1xf32> to vector<8x1xf32>
    %8 = vector.broadcast %7 : vector<8x1xf32> to vector<8x5120xf32>
    %9 = vector.extract_strided_slice %5 {offsets = [0, 0], sizes = [1, 5120], strides = [1, 1]} : vector<2x5120xf32> to vector<1x5120xf32>
    %10 = vector.shape_cast %9 : vector<1x5120xf32> to vector<1x5120xf32>
    %11 = vector.broadcast %10 : vector<1x5120xf32> to vector<8x5120xf32>
    %c0_7 = arith.constant 0 : index
    %c0_8 = arith.constant 0 : index
    %12 = vector.load %arg4[%c0_7, %c0_8] : memref<8x2xf32, #tpu.memory_space<vmem>>, vector<8x1xf32>
    %13 = vector.broadcast %12 : vector<8x1xf32> to vector<8x5120xf32>
    %14 = arith.mulf %11, %13 : vector<8x5120xf32>
    %15 = arith.addf %8, %14 : vector<8x5120xf32>
    %16 = vector.extract_strided_slice %5 {offsets = [1, 0], sizes = [1, 5120], strides = [1, 1]} : vector<2x5120xf32> to vector<1x5120xf32>
    %17 = vector.shape_cast %16 : vector<1x5120xf32> to vector<1x5120xf32>
    %18 = vector.broadcast %17 : vector<1x5120xf32> to vector<8x5120xf32>
    %c0_9 = arith.constant 0 : index
    %c1 = arith.constant 1 : index
    %19 = vector.load %arg4[%c0_9, %c1] : memref<8x2xf32, #tpu.memory_space<vmem>>, vector<8x1xf32>
    %20 = vector.broadcast %19 : vector<8x1xf32> to vector<8x5120xf32>
    %21 = arith.mulf %18, %20 : vector<8x5120xf32>
    %22 = arith.addf %15, %21 : vector<8x5120xf32>
    %cst_10 = arith.constant 0.000000e+00 : f32
    %23 = vector.broadcast %cst_10 : f32 to vector<8x5120xf32>
    %24 = arith.cmpf oge, %22, %23 : vector<8x5120xf32>
    %cst_11 = arith.constant 3.000000e-01 : f32
    %25 = vector.broadcast %cst_11 : f32 to vector<8x5120xf32>
    %26 = arith.mulf %25, %22 : vector<8x5120xf32>
    %27 = arith.select %24, %22, %26 : vector<8x5120xi1>, vector<8x5120xf32>
    %c0_12 = arith.constant 0 : index
    %c0_13 = arith.constant 0 : index
    %28 = vector.load %arg6[%c0_12, %c0_13] : memref<8x5120xf32, #tpu.memory_space<vmem>>, vector<8x5120xf32>
    tpu.vector_store %arg6[%c0_12, %c0_13], %27 {strides = array<i32>} : memref<8x5120xf32, #tpu.memory_space<vmem>>, vector<8x5120xf32>,
    return
  }
  func.func @transform_0(%arg0: i32) -> (i32, i32) {
    %c0_i32 = arith.constant 0 : i32
    %c0_i32_0 = arith.constant 0 : i32
    %c0_i32_1 = arith.constant 0 : i32
    return %c0_i32, %c0_i32_0 : i32, i32
  }
  func.func @transform_1(%arg0: i32) -> (i32, i32) {
    %c0_i32 = arith.constant 0 : i32
    %c0_i32_0 = arith.constant 0 : i32
    return %c0_i32, %arg0 : i32, i32
  }
  func.func @transform_2(%arg0: i32) -> (i32, i32) {
    %c0_i32 = arith.constant 0 : i32
    %c0_i32_0 = arith.constant 0 : i32
    return %c0_i32, %arg0 : i32, i32
  }
  func.func @transform_3(%arg0: i32) -> (i32, i32) {
    %c0_i32 = arith.constant 0 : i32
    %c0_i32_0 = arith.constant 0 : i32
    %c0_i32_1 = arith.constant 0 : i32
    return %c0_i32, %c0_i32_0 : i32, i32
  }
  func.func @transform_4(%arg0: i32) -> (i32, i32) {
    %c0_i32 = arith.constant 0 : i32
    %c0_i32_0 = arith.constant 0 : i32
    %c0_i32_1 = arith.constant 0 : i32
    return %c0_i32, %c0_i32_0 : i32, i32
  }
  func.func @transform_5(%arg0: i32) -> (i32, i32) {
    %c0_i32 = arith.constant 0 : i32
    %c0_i32_0 = arith.constant 0 : i32
    return %c0_i32, %arg0 : i32, i32
  }
}

</mosaic_0001>

<llo_original>
// kernel: mul.5
$region0: #{mul.5}
  %s0 = inlined_call_operand.vmem [shape: f32[2,4], index: 0, kind: input, shape index: {}]
  %s1 = inlined_call_operand.vmem [shape: f32[8], index: 1, kind: output, shape index: {}]
  $region1: #{mul.5} parent=0
    #allocation0 [shape = 'u8[4096]{0}', space=vmem, size = 0x1000, scoped, tag = 'scoped mem for output reshape']
    #allocation1 [shape = 'u8[4096]{0}', space=vmem, size = 0x1000, scoped, tag = 'scoped mem for input reshape']
    %s3 = ssub.s32 4, 1
    %v4 = vld [vmem:[%s0] sm:%s3]
    %5 = vst [vmem:[#allocation1] sm:%s3] %v4
    %v6 = vld [vmem:[#allocation1] sm:$0x1]
    %vm7 = vcmask 31744
    %8 = vst.msk [vmem:[#allocation0] sm:$0x1] %vm7, %v6
    %s9 = scalar_lea.vmem [#allocation1], 1
    %v10 = vld [vmem:[%s9] sm:$0x1]
    %11 = vrot.lane.b32.xlu0 %v10, 4
    %v12 = vpop.permute.xlu0 %11
    %vm13 = vcmask 64544
    %14 = vst.msk [vmem:[#allocation0] sm:$0x1] %vm13, %v12
    %s16 = ssub.s32 2, 1
    %v17 = vld [vmem:[#allocation0] sm:%s16]
    %s19 = ssub.s32 2, 1
    %20 = vst [vmem:[%s1] sm:%s19] %v17

// kernel: tile.18
$region0: #{tile.18}
  #allocation2 [shape = 's32[1]{0}', space=sflag, size = 0x4, scoped, tag = 'scoped memory for tile.18']
  %s0 = inlined_call_operand.hbm [shape: f32[4], index: 0, kind: input, shape index: {}]
  %s1 = inlined_call_operand.vmem [shape: f32[2,4], index: 1, kind: output, shape index: {}]
  $region1: #{tile.18} parent=0
    #allocation0 [shape = 'u8[512]{0}', space=vmem, size = 0x400, scoped, tag = 'operand span for operand 0']
    #allocation1 [shape = 's32[1]{0}', space=sflag, size = 0x4, scoped, tag = 'scoped memory for tile.18']
    %2 = vsyncpa [#allocation1], 0
    // Predicated region
    $region2: #{tile.18} parent=1 // pred_check
      _
    $region3: #{tile.18} parent=1 // pred_check_branch
      %4 = sbr.rel (0) target = $region5
    $region4: #{tile.18} parent=1 // pred_region
      %6 = vsyncadd [#allocation1], 0
      %s8 = sshll.u32 %s0, 4
      %s9 = int_to_ptr.hbm [resolvable:$true] %s8
      %s10 = sshll.u32 [#allocation0], 4
      %s11 = int_to_ptr.vmem [resolvable:$true] %s10
      %13 = dma.hbm_to_vmem [thread:$0]  %s9, 16, %s11, [#allocation1]
    $region5: #{tile.18} parent=1 // pred_fallthru
      _
    // Predicated region
    $region6: #{tile.18} parent=1 // pred_check
      _
    $region7: #{tile.18} parent=1 // pred_check_branch
      %15 = sbr.rel (0) target = $region9
    $region8: #{tile.18} parent=1 // pred_region
      %17 = dma.done [#allocation1], 16
    $region9: #{tile.18} parent=1 // pred_fallthru
      _
    %v18 = vld [vmem:[#allocation0] ss:$0 sm:$0xff]
    %19 = vst [vmem:[%s1] sm:$0x3] %v18
    %20 = vsyncpa [#allocation1], 1

// kernel: tile.0
$region0: #{tile.0}
  %s0 = inlined_call_operand.vmem [shape: f32[2,4], index: 0, kind: input, shape index: {}]
  %s1 = inlined_call_operand.vmem [shape: f32[8,1], index: 1, kind: output, shape index: {}]
  $region1: #{tile.0} parent=0
    #allocation0 [shape = 'u8[4096]{0}', space=vmem, size = 0x1000, scoped, tag = 'scoped mem for input reshape']
    %s3 = ssub.s32 4, 1
    %v4 = vld [vmem:[%s0] sm:%s3]
    %5 = vst [vmem:[#allocation0] sm:%s3] %v4
    %v6 = vld [vmem:[#allocation0] sm:$0x3]
    %vm7 = vcmask 7168
    %8 = vst.msk [vmem:[%s1] ss:$4 sm:$0x3] %vm7, %v6
    %v9 = vld [vmem:[#allocation0] sm:$0x3]
    %10 = vrot.lane.b32.xlu0 %v9, 127
    %v11 = vpop.permute.xlu0 %10
    %vm12 = vcmask 7168
    %s13 = scalar_lea.vmem %s1, 1
    %14 = vst.msk [vmem:[%s13] ss:$4 sm:$0x3] %vm12, %v11
    %v15 = vld [vmem:[#allocation0] sm:$0x3]
    %16 = vrot.lane.b32.xlu0 %v15, 126
    %v17 = vpop.permute.xlu0 %16
    %vm18 = vcmask 7168
    %s19 = scalar_lea.vmem %s1, 2
    %20 = vst.msk [vmem:[%s19] ss:$4 sm:$0x3] %vm18, %v17
    %v21 = vld [vmem:[#allocation0] sm:$0x3]
    %22 = vrot.lane.b32.xlu0 %v21, 125
    %v23 = vpop.permute.xlu0 %22
    %vm24 = vcmask 7168
    %s25 = scalar_lea.vmem %s1, 3
    %26 = vst.msk [vmem:[%s25] ss:$4 sm:$0x3] %vm24, %v23

// kernel: decoder_forward.2
$region0: #{decoder_forward.2}
  #allocation0 [shape = 'u32[]', space=smem, size = 0x4, offset = 0x4, fixed_abs, tag = 'smem constant byte address 0x4 - core index']
  #allocation1 [shape = 'u32[72,128]{1,0:T(1,128)}', space=vmem, size = 0x9000, scoped, tag = 'internal scratch']
  %s0 = inlined_call_operand.hbm [shape: f32[2,32], index: 0, kind: input, shape index: {}]
  %s1 = inlined_call_operand.hbm [shape: f32[32,512], index: 1, kind: input, shape index: {}]
  %s2 = inlined_call_operand.hbm [shape: f32[1,512], index: 2, kind: input, shape index: {}]
  %s3 = inlined_call_operand.hbm [shape: f32[512,512], index: 3, kind: input, shape index: {}]
  %s4 = inlined_call_operand.hbm [shape: f32[1,512], index: 4, kind: input, shape index: {}]
  %s5 = inlined_call_operand.vmem [shape: bf16[2,512], index: 5, kind: output, shape index: {}]
  %s6 = sld [smem:[#allocation0]]
  $region50: #{decoder_forward.2} parent=0
    _
  %s8 = ssub.s32 1, %s6
  %s9 = scalar_select 0, %s8, %s6
  $region1: #{decoder_forward.2} parent=0
    #allocation2 [shape = 'u8[1024]{0}', space=vmem, size = 0x400, scoped, tag = 'input window, operand 0, single buffered']
    #allocation3 [shape = 's32[1]{0}', space=sflag, size = 0x4, scoped, tag = 'scoped memory for decoder_forward.2']
    #allocation4 [shape = 'u8[65536]{0}', space=vmem, size = 0x10000, scoped, tag = 'input window, operand 1, single buffered']
    #allocation5 [shape = 's32[1]{0}', space=sflag, size = 0x4, scoped, tag = 'scoped memory for decoder_forward.2']
    #allocation6 [shape = 'u8[2048]{0}', space=vmem, size = 0x800, scoped, tag = 'input window, operand 2, single buffered']
    #allocation7 [shape = 'u8[1048576]{0}', space=vmem, size = 0x100000, scoped, tag = 'input window, operand 3, single buffered']
    #allocation8 [shape = 's32[1]{0}', space=sflag, size = 0x4, scoped, tag = 'scoped memory for decoder_forward.2']
    #allocation9 [shape = 'u8[2048]{0}', space=vmem, size = 0x800, scoped, tag = 'input window, operand 4, single buffered']
    %10 = vsyncpa [#allocation3], 0
    %11 = vsyncpa [#allocation5], 0
    %12 = vsyncpa [#allocation8], 0
    // Predicated region
    $region2: #{decoder_forward.2} parent=1 // pred_check
      _
    $region3: #{decoder_forward.2} parent=1 // pred_check_branch
      %14 = sbr.rel (0) target = $region5
    $region4: #{decoder_forward.2} parent=1 // pred_region
      %16 = vsyncadd [#allocation3], 0
      %s18 = sshll.u32 %s0, 4
      %s19 = int_to_ptr.hbm [resolvable:$true] %s18
      %s20 = sshll.u32 [#allocation2], 4
      %s21 = int_to_ptr.vmem [resolvable:$true] %s20
      %23 = dma.hbm_to_vmem [thread:$0]  %s19, 32, %s21, [#allocation3]
    $region5: #{decoder_forward.2} parent=1 // pred_fallthru
      _
    // Predicated region
    $region6: #{decoder_forward.2} parent=1 // pred_check
      _
    $region7: #{decoder_forward.2} parent=1 // pred_check_branch
      %25 = sbr.rel (0) target = $region9
    $region8: #{decoder_forward.2} parent=1 // pred_region
      %27 = vsyncadd [#allocation5], 0
      %s28 = sshll.u32 %s1, 4
      %s29 = int_to_ptr.hbm [resolvable:$true] %s28
      %s30 = sshll.u32 [#allocation4], 4
      %s31 = int_to_ptr.vmem [resolvable:$true] %s30
      %36 = dma.hbm_to_vmem [thread:$0]  %s29, 2048, %s31, [#allocation5], 512, 512, 32
    $region9: #{decoder_forward.2} parent=1 // pred_fallthru
      _
    // Predicated region
    $region10: #{decoder_forward.2} parent=1 // pred_check
      _
    $region11: #{decoder_forward.2} parent=1 // pred_check_branch
      %38 = sbr.rel (0) target = $region13
    $region12: #{decoder_forward.2} parent=1 // pred_region
      %40 = vsyncadd [#allocation5], 0
      %s42 = sshll.u32 %s2, 4
      %s43 = int_to_ptr.hbm [resolvable:$true] %s42
      %s44 = sshll.u32 [#allocation6], 4
      %s45 = int_to_ptr.vmem [resolvable:$true] %s44
      %47 = dma.hbm_to_vmem [thread:$0]  %s43, 64, %s45, [#allocation5]
    $region13: #{decoder_forward.2} parent=1 // pred_fallthru
      _
    // Predicated region
    $region14: #{decoder_forward.2} parent=1 // pred_check
      _
    $region15: #{decoder_forward.2} parent=1 // pred_check_branch
      %49 = sbr.rel (0) target = $region17
    $region16: #{decoder_forward.2} parent=1 // pred_region
      %51 = vsyncadd [#allocation8], 0
      %s52 = sshll.u32 %s3, 4
      %s53 = int_to_ptr.hbm [resolvable:$true] %s52
      %s54 = sshll.u32 [#allocation7], 4
      %s55 = int_to_ptr.vmem [resolvable:$true] %s54
      %60 = dma.hbm_to_vmem [thread:$0]  %s53, 32768, %s55, [#allocation8], 512, 512, 32
    $region17: #{decoder_forward.2} parent=1 // pred_fallthru
      _
    // Predicated region
    $region18: #{decoder_forward.2} parent=1 // pred_check
      _
    $region19: #{decoder_forward.2} parent=1 // pred_check_branch
      %62 = sbr.rel (0) target = $region21
    $region20: #{decoder_forward.2} parent=1 // pred_region
      %64 = vsyncadd [#allocation8], 0
      %s66 = sshll.u32 %s4, 4
      %s67 = int_to_ptr.hbm [resolvable:$true] %s66
      %s68 = sshll.u32 [#allocation9], 4
      %s69 = int_to_ptr.vmem [resolvable:$true] %s68
      %71 = dma.hbm_to_vmem [thread:$0]  %s67, 64, %s69, [#allocation8]
    $region21: #{decoder_forward.2} parent=1 // pred_fallthru
      _
    // Predicated region
    $region22: #{decoder_forward.2} parent=1 // pred_check
      _
    $region23: #{decoder_forward.2} parent=1 // pred_check_branch
      %73 = sbr.rel (0) target = $region25
    $region24: #{decoder_forward.2} parent=1 // pred_region
      %75 = dma.done [#allocation3], 32
    $region25: #{decoder_forward.2} parent=1 // pred_fallthru
      _
    // Predicated region
    $region26: #{decoder_forward.2} parent=1 // pred_check
      _
    $region27: #{decoder_forward.2} parent=1 // pred_check_branch
      %77 = sbr.rel (0) target = $region29
    $region28: #{decoder_forward.2} parent=1 // pred_region
      %79 = dma.done [#allocation5], 2048
    $region29: #{decoder_forward.2} parent=1 // pred_fallthru
      _
    // Predicated region
    $region30: #{decoder_forward.2} parent=1 // pred_check
      _
    $region31: #{decoder_forward.2} parent=1 // pred_check_branch
      %81 = sbr.rel (0) target = $region33
    $region32: #{decoder_forward.2} parent=1 // pred_region
      %83 = dma.done [#allocation5], 64
    $region33: #{decoder_forward.2} parent=1 // pred_fallthru
      _
    // Predicated region
    $region34: #{decoder_forward.2} parent=1 // pred_check
      _
    $region35: #{decoder_forward.2} parent=1 // pred_check_branch
      %85 = sbr.rel (0) target = $region37
    $region36: #{decoder_forward.2} parent=1 // pred_region
      %87 = dma.done [#allocation8], 32768
    $region37: #{decoder_forward.2} parent=1 // pred_fallthru
      _
    // Predicated region
    $region38: #{decoder_forward.2} parent=1 // pred_check
      _
    $region39: #{decoder_forward.2} parent=1 // pred_check_branch
      %89 = sbr.rel (0) target = $region41
    $region40: #{decoder_forward.2} parent=1 // pred_region
      %91 = dma.done [#allocation8], 64
    $region41: #{decoder_forward.2} parent=1 // pred_fallthru
      _
    %v92 = vld [vmem:[#allocation2] sm:$0x3]
    %v93 = vld [vmem:[#allocation4] sm:$0xff]
    %v94 = vld [vmem:[#allocation4 + $0x8] sm:$0xff]
    %v95 = vld [vmem:[#allocation4 + $0x10] sm:$0xff]
    %v96 = vld [vmem:[#allocation4 + $0x18] sm:$0xff]
    %v97 = vld [vmem:[#allocation4 + $0x20] sm:$0xff]
    %v98 = vld [vmem:[#allocation4 + $0x28] sm:$0xff]
    %v99 = vld [vmem:[#allocation4 + $0x30] sm:$0xff]
    %v100 = vld [vmem:[#allocation4 + $0x38] sm:$0xff]
    %v101 = vld [vmem:[#allocation4 + $0x40] sm:$0xff]
    %v102 = vld [vmem:[#allocation4 + $0x48] sm:$0xff]
    %v103 = vld [vmem:[#allocation4 + $0x50] sm:$0xff]
    %v104 = vld [vmem:[#allocation4 + $0x58] sm:$0xff]
    %v105 = vld [vmem:[#allocation4 + $0x60] sm:$0xff]
    %v106 = vld [vmem:[#allocation4 + $0x68] sm:$0xff]
    %v107 = vld [vmem:[#allocation4 + $0x70] sm:$0xff]
    %v108 = vld [vmem:[#allocation4 + $0x78] sm:$0xff]
    %v109 = vld [vmem:[#allocation6] sm:$0xf]
    %v111 = vperm.slane %v109, 0
    %v112 = vperm.slane %v109, 1
    %v113 = vperm.slane %v109, 2
    %v114 = vperm.slane %v109, 3
    %vm119 = vcmask 261120
    %v121 = vsel %vm119, %v92, 0
    %123 = vmatpush.msra.mxu0 0.0
    %124 = vmatpush.msra.mxu0 0.0
    %125 = vmatpush.msra.mxu0 0.0
    %126 = vmatpush.msra.mxu0 0.0
    %127 = vmatpush.msra.mxu0 0.0
    %128 = vmatpush.msra.mxu0 0.0
    %129 = vmatpush.msra.mxu0 0.0
    %130 = vmatpush.msra.mxu0 0.0
    %131 = vmatpush.msra.mxu0 0.0
    %132 = vmatpush.msra.mxu0 0.0
    %133 = vmatpush.msra.mxu0 0.0
    %134 = vmatpush.msra.mxu0 0.0
    %135 = vmatpush.msra.mxu0 %v105
    %136 = vmatpush.msra.mxu0 %v101
    %137 = vmatpush.msra.mxu0 %v97
    %138 = vmatpush.msra.mxu0 %v93
    %139 = vmatmul.f32.gmra.mxu0 %v121
    %v140 = vpop.f32.mrf.mxu0
    %v141 = vadd.f32 %v111, %v140
    %142 = vdwg.mxu0
    %143 = vmatpush.msra.mxu0 0.0
    %144 = vmatpush.msra.mxu0 0.0
    %145 = vmatpush.msra.mxu0 0.0
    %146 = vmatpush.msra.mxu0 0.0
    %147 = vmatpush.msra.mxu0 0.0
    %148 = vmatpush.msra.mxu0 0.0
    %149 = vmatpush.msra.mxu0 0.0
    %150 = vmatpush.msra.mxu0 0.0
    %151 = vmatpush.msra.mxu0 0.0
    %152 = vmatpush.msra.mxu0 0.0
    %153 = vmatpush.msra.mxu0 0.0
    %154 = vmatpush.msra.mxu0 0.0
    %155 = vmatpush.msra.mxu0 %v106
    %156 = vmatpush.msra.mxu0 %v102
    %157 = vmatpush.msra.mxu0 %v98
    %158 = vmatpush.msra.mxu0 %v94
    %159 = vmatmul.f32.gmra.mxu0 %v121
    %v160 = vpop.f32.mrf.mxu0
    %v161 = vadd.f32 %v112, %v160
    %162 = vdwg.mxu0
    %163 = vmatpush.msra.mxu0 0.0
    %164 = vmatpush.msra.mxu0 0.0
    %165 = vmatpush.msra.mxu0 0.0
    %166 = vmatpush.msra.mxu0 0.0
    %167 = vmatpush.msra.mxu0 0.0
    %168 = vmatpush.msra.mxu0 0.0
    %169 = vmatpush.msra.mxu0 0.0
    %170 = vmatpush.msra.mxu0 0.0
    %171 = vmatpush.msra.mxu0 0.0
    %172 = vmatpush.msra.mxu0 0.0
    %173 = vmatpush.msra.mxu0 0.0
    %174 = vmatpush.msra.mxu0 0.0
    %175 = vmatpush.msra.mxu0 %v107
    %176 = vmatpush.msra.mxu0 %v103
    %177 = vmatpush.msra.mxu0 %v99
    %178 = vmatpush.msra.mxu0 %v95
    %179 = vmatmul.f32.gmra.mxu0 %v121
    %v180 = vpop.f32.mrf.mxu0
    %v181 = vadd.f32 %v113, %v180
    %182 = vdwg.mxu0
    %183 = vmatpush.msra.mxu0 0.0
    %184 = vmatpush.msra.mxu0 0.0
    %185 = vmatpush.msra.mxu0 0.0
    %186 = vmatpush.msra.mxu0 0.0
    %187 = vmatpush.msra.mxu0 0.0
    %188 = vmatpush.msra.mxu0 0.0
    %189 = vmatpush.msra.mxu0 0.0
    %190 = vmatpush.msra.mxu0 0.0
    %191 = vmatpush.msra.mxu0 0.0
    %192 = vmatpush.msra.mxu0 0.0
    %193 = vmatpush.msra.mxu0 0.0
    %194 = vmatpush.msra.mxu0 0.0
    %195 = vmatpush.msra.mxu0 %v108
    %196 = vmatpush.msra.mxu0 %v104
    %197 = vmatpush.msra.mxu0 %v100
    %198 = vmatpush.msra.mxu0 %v96
    %199 = vmatmul.f32.gmra.mxu0 %v121
    %v200 = vpop.f32.mrf.mxu0
    %v201 = vadd.f32 %v114, %v200
    %202 = vdwg.mxu0
    %v203 = vld [vmem:[#allocation7] sm:$0xff]
    %v204 = vld [vmem:[#allocation7 + $0x8] sm:$0xff]
    %v205 = vld [vmem:[#allocation7 + $0x10] sm:$0xff]
    %v206 = vld [vmem:[#allocation7 + $0x18] sm:$0xff]
    %v207 = vld [vmem:[#allocation7 + $0x20] sm:$0xff]
    %v208 = vld [vmem:[#allocation7 + $0x28] sm:$0xff]
    %v209 = vld [vmem:[#allocation7 + $0x30] sm:$0xff]
    %v210 = vld [vmem:[#allocation7 + $0x38] sm:$0xff]
    %v211 = vld [vmem:[#allocation7 + $0x40] sm:$0xff]
    %v212 = vld [vmem:[#allocation7 + $0x48] sm:$0xff]
    %v213 = vld [vmem:[#allocation7 + $0x50] sm:$0xff]
    %v214 = vld [vmem:[#allocation7 + $0x58] sm:$0xff]
    %v215 = vld [vmem:[#allocation7 + $0x60] sm:$0xff]
    %v216 = vld [vmem:[#allocation7 + $0x68] sm:$0xff]
    %v217 = vld [vmem:[#allocation7 + $0x70] sm:$0xff]
    %v218 = vld [vmem:[#allocation7 + $0x78] sm:$0xff]
    %v219 = vld [vmem:[#allocation7 + $0x80] sm:$0xff]
    %v220 = vld [vmem:[#allocation7 + $0x88] sm:$0xff]
    %v221 = vld [vmem:[#allocation7 + $0x90] sm:$0xff]
    %v222 = vld [vmem:[#allocation7 + $0x98] sm:$0xff]
    %v223 = vld [vmem:[#allocation7 + $0xa0] sm:$0xff]
    %v224 = vld [vmem:[#allocation7 + $0xa8] sm:$0xff]
    %v225 = vld [vmem:[#allocation7 + $0xb0] sm:$0xff]
    %v226 = vld [vmem:[#allocation7 + $0xb8] sm:$0xff]
    %v227 = vld [vmem:[#allocation7 + $0xc0] sm:$0xff]
    %v228 = vld [vmem:[#allocation7 + $0xc8] sm:$0xff]
    %v229 = vld [vmem:[#allocation7 + $0xd0] sm:$0xff]
    %v230 = vld [vmem:[#allocation7 + $0xd8] sm:$0xff]
    %v231 = vld [vmem:[#allocation7 + $0xe0] sm:$0xff]
    %v232 = vld [vmem:[#allocation7 + $0xe8] sm:$0xff]
    %v233 = vld [vmem:[#allocation7 + $0xf0] sm:$0xff]
    %v234 = vld [vmem:[#allocation7 + $0xf8] sm:$0xff]
    %v235 = vld [vmem:[#allocation7 + $0x100] sm:$0xff]
    %v236 = vld [vmem:[#allocation7 + $0x108] sm:$0xff]
    %v237 = vld [vmem:[#allocation7 + $0x110] sm:$0xff]
    %v238 = vld [vmem:[#allocation7 + $0x118] sm:$0xff]
    %v239 = vld [vmem:[#allocation7 + $0x120] sm:$0xff]
    %v240 = vld [vmem:[#allocation7 + $0x128] sm:$0xff]
    %v241 = vld [vmem:[#allocation7 + $0x130] sm:$0xff]
    %v242 = vld [vmem:[#allocation7 + $0x138] sm:$0xff]
    %v243 = vld [vmem:[#allocation7 + $0x140] sm:$0xff]
    %v244 = vld [vmem:[#allocation7 + $0x148] sm:$0xff]
    %v245 = vld [vmem:[#allocation7 + $0x150] sm:$0xff]
    %v246 = vld [vmem:[#allocation7 + $0x158] sm:$0xff]
    %v247 = vld [vmem:[#allocation7 + $0x160] sm:$0xff]
    %v248 = vld [vmem:[#allocation7 + $0x168] sm:$0xff]
    %v249 = vld [vmem:[#allocation7 + $0x170] sm:$0xff]
    %v250 = vld [vmem:[#allocation7 + $0x178] sm:$0xff]
    %v251 = vld [vmem:[#allocation7 + $0x180] sm:$0xff]
    %v252 = vld [vmem:[#allocation7 + $0x188] sm:$0xff]
    %v253 = vld [vmem:[#allocation7 + $0x190] sm:$0xff]
    %v254 = vld [vmem:[#allocation7 + $0x198] sm:$0xff]
    %v255 = vld [vmem:[#allocation7 + $0x1a0] sm:$0xff]
    %v256 = vld [vmem:[#allocation7 + $0x1a8] sm:$0xff]
    %v257 = vld [vmem:[#allocation7 + $0x1b0] sm:$0xff]
    %v258 = vld [vmem:[#allocation7 + $0x1b8] sm:$0xff]
    %v259 = vld [vmem:[#allocation7 + $0x1c0] sm:$0xff]
    %v260 = vld [vmem:[#allocation7 + $0x1c8] sm:$0xff]
    %v261 = vld [vmem:[#allocation7 + $0x1d0] sm:$0xff]
    %v262 = vld [vmem:[#allocation7 + $0x1d8] sm:$0xff]
    %v263 = vld [vmem:[#allocation7 + $0x1e0] sm:$0xff]
    %v264 = vld [vmem:[#allocation7 + $0x1e8] sm:$0xff]
    %v265 = vld [vmem:[#allocation7 + $0x1f0] sm:$0xff]
    %v266 = vld [vmem:[#allocation7 + $0x1f8] sm:$0xff]
    %v267 = vld [vmem:[#allocation7 + $0x200] sm:$0xff]
    %v268 = vld [vmem:[#allocation7 + $0x208] sm:$0xff]
    %v269 = vld [vmem:[#allocation7 + $0x210] sm:$0xff]
    %v270 = vld [vmem:[#allocation7 + $0x218] sm:$0xff]
    %v271 = vld [vmem:[#allocation7 + $0x220] sm:$0xff]
    %v272 = vld [vmem:[#allocation7 + $0x228] sm:$0xff]
    %v273 = vld [vmem:[#allocation7 + $0x230] sm:$0xff]
    %v274 = vld [vmem:[#allocation7 + $0x238] sm:$0xff]
    %v275 = vld [vmem:[#allocation7 + $0x240] sm:$0xff]
    %v276 = vld [vmem:[#allocation7 + $0x248] sm:$0xff]
    %v277 = vld [vmem:[#allocation7 + $0x250] sm:$0xff]
    %v278 = vld [vmem:[#allocation7 + $0x258] sm:$0xff]
    %v279 = vld [vmem:[#allocation7 + $0x260] sm:$0xff]
    %v280 = vld [vmem:[#allocation7 + $0x268] sm:$0xff]
    %v281 = vld [vmem:[#allocation7 + $0x270] sm:$0xff]
    %v282 = vld [vmem:[#allocation7 + $0x278] sm:$0xff]
    %v283 = vld [vmem:[#allocation7 + $0x280] sm:$0xff]
    %v284 = vld [vmem:[#allocation7 + $0x288] sm:$0xff]
    %v285 = vld [vmem:[#allocation7 + $0x290] sm:$0xff]
    %v286 = vld [vmem:[#allocation7 + $0x298] sm:$0xff]
    %v287 = vld [vmem:[#allocation7 + $0x2a0] sm:$0xff]
    %v288 = vld [vmem:[#allocation7 + $0x2a8] sm:$0xff]
    %v289 = vld [vmem:[#allocation7 + $0x2b0] sm:$0xff]
    %v290 = vld [vmem:[#allocation7 + $0x2b8] sm:$0xff]
    %v291 = vld [vmem:[#allocation7 + $0x2c0] sm:$0xff]
    %v292 = vld [vmem:[#allocation7 + $0x2c8] sm:$0xff]
    %v293 = vld [vmem:[#allocation7 + $0x2d0] sm:$0xff]
    %v294 = vld [vmem:[#allocation7 + $0x2d8] sm:$0xff]
    %v295 = vld [vmem:[#allocation7 + $0x2e0] sm:$0xff]
    %v296 = vld [vmem:[#allocation7 + $0x2e8] sm:$0xff]
    %v297 = vld [vmem:[#allocation7 + $0x2f0] sm:$0xff]
    %v298 = vld [vmem:[#allocation7 + $0x2f8] sm:$0xff]
    %v299 = vld [vmem:[#allocation7 + $0x300] sm:$0xff]
    %v300 = vld [vmem:[#allocation7 + $0x308] sm:$0xff]
    %v301 = vld [vmem:[#allocation7 + $0x310] sm:$0xff]
    %v302 = vld [vmem:[#allocation7 + $0x318] sm:$0xff]
    %v303 = vld [vmem:[#allocation7 + $0x320] sm:$0xff]
    %v304 = vld [vmem:[#allocation7 + $0x328] sm:$0xff]
    %v305 = vld [vmem:[#allocation7 + $0x330] sm:$0xff]
    %v306 = vld [vmem:[#allocation7 + $0x338] sm:$0xff]
    %v307 = vld [vmem:[#allocation7 + $0x340] sm:$0xff]
    %v308 = vld [vmem:[#allocation7 + $0x348] sm:$0xff]
    %v309 = vld [vmem:[#allocation7 + $0x350] sm:$0xff]
    %v310 = vld [vmem:[#allocation7 + $0x358] sm:$0xff]
    %v311 = vld [vmem:[#allocation7 + $0x360] sm:$0xff]
    %v312 = vld [vmem:[#allocation7 + $0x368] sm:$0xff]
    %v313 = vld [vmem:[#allocation7 + $0x370] sm:$0xff]
    %v314 = vld [vmem:[#allocation7 + $0x378] sm:$0xff]
    %v315 = vld [vmem:[#allocation7 + $0x380] sm:$0xff]
    %v316 = vld [vmem:[#allocation7 + $0x388] sm:$0xff]
    %v317 = vld [vmem:[#allocation7 + $0x390] sm:$0xff]
    %v318 = vld [vmem:[#allocation7 + $0x398] sm:$0xff]
    %v319 = vld [vmem:[#allocation7 + $0x3a0] sm:$0xff]
    %v320 = vld [vmem:[#allocation7 + $0x3a8] sm:$0xff]
    %v321 = vld [vmem:[#allocation7 + $0x3b0] sm:$0xff]
    %v322 = vld [vmem:[#allocation7 + $0x3b8] sm:$0xff]
    %v323 = vld [vmem:[#allocation7 + $0x3c0] sm:$0xff]
    %v324 = vld [vmem:[#allocation7 + $0x3c8] sm:$0xff]
    %v325 = vld [vmem:[#allocation7 + $0x3d0] sm:$0xff]
    %v326 = vld [vmem:[#allocation7 + $0x3d8] sm:$0xff]
    %v327 = vld [vmem:[#allocation7 + $0x3e0] sm:$0xff]
    %v328 = vld [vmem:[#allocation7 + $0x3e8] sm:$0xff]
    %v329 = vld [vmem:[#allocation7 + $0x3f0] sm:$0xff]
    %v330 = vld [vmem:[#allocation7 + $0x3f8] sm:$0xff]
    %v331 = vld [vmem:[#allocation7 + $0x400] sm:$0xff]
    %v332 = vld [vmem:[#allocation7 + $0x408] sm:$0xff]
    %v333 = vld [vmem:[#allocation7 + $0x410] sm:$0xff]
    %v334 = vld [vmem:[#allocation7 + $0x418] sm:$0xff]
    %v335 = vld [vmem:[#allocation7 + $0x420] sm:$0xff]
    %v336 = vld [vmem:[#allocation7 + $0x428] sm:$0xff]
    %v337 = vld [vmem:[#allocation7 + $0x430] sm:$0xff]
    %v338 = vld [vmem:[#allocation7 + $0x438] sm:$0xff]
    %v339 = vld [vmem:[#allocation7 + $0x440] sm:$0xff]
    %v340 = vld [vmem:[#allocation7 + $0x448] sm:$0xff]
    %v341 = vld [vmem:[#allocation7 + $0x450] sm:$0xff]
    %v342 = vld [vmem:[#allocation7 + $0x458] sm:$0xff]
    %v343 = vld [vmem:[#allocation7 + $0x460] sm:$0xff]
    %v344 = vld [vmem:[#allocation7 + $0x468] sm:$0xff]
    %v345 = vld [vmem:[#allocation7 + $0x470] sm:$0xff]
    %v346 = vld [vmem:[#allocation7 + $0x478] sm:$0xff]
    %v347 = vld [vmem:[#allocation7 + $0x480] sm:$0xff]
    %v348 = vld [vmem:[#allocation7 + $0x488] sm:$0xff]
    %v349 = vld [vmem:[#allocation7 + $0x490] sm:$0xff]
    %v350 = vld [vmem:[#allocation7 + $0x498] sm:$0xff]
    %v351 = vld [vmem:[#allocation7 + $0x4a0] sm:$0xff]
    %v352 = vld [vmem:[#allocation7 + $0x4a8] sm:$0xff]
    %v353 = vld [vmem:[#allocation7 + $0x4b0] sm:$0xff]
    %v354 = vld [vmem:[#allocation7 + $0x4b8] sm:$0xff]
    %v355 = vld [vmem:[#allocation7 + $0x4c0] sm:$0xff]
    %v356 = vld [vmem:[#allocation7 + $0x4c8] sm:$0xff]
    %v357 = vld [vmem:[#allocation7 + $0x4d0] sm:$0xff]
    %v358 = vld [vmem:[#allocation7 + $0x4d8] sm:$0xff]
    %v359 = vld [vmem:[#allocation7 + $0x4e0] sm:$0xff]
    %v360 = vld [vmem:[#allocation7 + $0x4e8] sm:$0xff]
    %v361 = vld [vmem:[#allocation7 + $0x4f0] sm:$0xff]
    %v362 = vld [vmem:[#allocation7 + $0x4f8] sm:$0xff]
    %v363 = vld [vmem:[#allocation7 + $0x500] sm:$0xff]
    %v364 = vld [vmem:[#allocation7 + $0x508] sm:$0xff]
    %v365 = vld [vmem:[#allocation7 + $0x510] sm:$0xff]
    %v366 = vld [vmem:[#allocation7 + $0x518] sm:$0xff]
    %v367 = vld [vmem:[#allocation7 + $0x520] sm:$0xff]
    %v368 = vld [vmem:[#allocation7 + $0x528] sm:$0xff]
    %v369 = vld [vmem:[#allocation7 + $0x530] sm:$0xff]
    %v370 = vld [vmem:[#allocation7 + $0x538] sm:$0xff]
    %v371 = vld [vmem:[#allocation7 + $0x540] sm:$0xff]
    %v372 = vld [vmem:[#allocation7 + $0x548] sm:$0xff]
    %v373 = vld [vmem:[#allocation7 + $0x550] sm:$0xff]
    %v374 = vld [vmem:[#allocation7 + $0x558] sm:$0xff]
    %v375 = vld [vmem:[#allocation7 + $0x560] sm:$0xff]
    %v376 = vld [vmem:[#allocation7 + $0x568] sm:$0xff]
    %v377 = vld [vmem:[#allocation7 + $0x570] sm:$0xff]
    %v378 = vld [vmem:[#allocation7 + $0x578] sm:$0xff]
    %v379 = vld [vmem:[#allocation7 + $0x580] sm:$0xff]
    %v380 = vld [vmem:[#allocation7 + $0x588] sm:$0xff]
    %v381 = vld [vmem:[#allocation7 + $0x590] sm:$0xff]
    %v382 = vld [vmem:[#allocation7 + $0x598] sm:$0xff]
    %v383 = vld [vmem:[#allocation7 + $0x5a0] sm:$0xff]
    %v384 = vld [vmem:[#allocation7 + $0x5a8] sm:$0xff]
    %v385 = vld [vmem:[#allocation7 + $0x5b0] sm:$0xff]
    %v386 = vld [vmem:[#allocation7 + $0x5b8] sm:$0xff]
    %v387 = vld [vmem:[#allocation7 + $0x5c0] sm:$0xff]
    %v388 = vld [vmem:[#allocation7 + $0x5c8] sm:$0xff]
    %v389 = vld [vmem:[#allocation7 + $0x5d0] sm:$0xff]
    %v390 = vld [vmem:[#allocation7 + $0x5d8] sm:$0xff]
    %v391 = vld [vmem:[#allocation7 + $0x5e0] sm:$0xff]
    %v392 = vld [vmem:[#allocation7 + $0x5e8] sm:$0xff]
    %v393 = vld [vmem:[#allocation7 + $0x5f0] sm:$0xff]
    %v394 = vld [vmem:[#allocation7 + $0x5f8] sm:$0xff]
    %v395 = vld [vmem:[#allocation7 + $0x600] sm:$0xff]
    %v396 = vld [vmem:[#allocation7 + $0x608] sm:$0xff]
    %v397 = vld [vmem:[#allocation7 + $0x610] sm:$0xff]
    %v398 = vld [vmem:[#allocation7 + $0x618] sm:$0xff]
    %v399 = vld [vmem:[#allocation7 + $0x620] sm:$0xff]
    %v400 = vld [vmem:[#allocation7 + $0x628] sm:$0xff]
    %v401 = vld [vmem:[#allocation7 + $0x630] sm:$0xff]
    %v402 = vld [vmem:[#allocation7 + $0x638] sm:$0xff]
    %v403 = vld [vmem:[#allocation7 + $0x640] sm:$0xff]
    %v404 = vld [vmem:[#allocation7 + $0x648] sm:$0xff]
    %v405 = vld [vmem:[#allocation7 + $0x650] sm:$0xff]
    %v406 = vld [vmem:[#allocation7 + $0x658] sm:$0xff]
    %v407 = vld [vmem:[#allocation7 + $0x660] sm:$0xff]
    %v408 = vld [vmem:[#allocation7 + $0x668] sm:$0xff]
    %v409 = vld [vmem:[#allocation7 + $0x670] sm:$0xff]
    %v410 = vld [vmem:[#allocation7 + $0x678] sm:$0xff]
    %v411 = vld [vmem:[#allocation7 + $0x680] sm:$0xff]
    %v412 = vld [vmem:[#allocation7 + $0x688] sm:$0xff]
    %v413 = vld [vmem:[#allocation7 + $0x690] sm:$0xff]
    %v414 = vld [vmem:[#allocation7 + $0x698] sm:$0xff]
    %v415 = vld [vmem:[#allocation7 + $0x6a0] sm:$0xff]
    %v416 = vld [vmem:[#allocation7 + $0x6a8] sm:$0xff]
    %v417 = vld [vmem:[#allocation7 + $0x6b0] sm:$0xff]
    %v418 = vld [vmem:[#allocation7 + $0x6b8] sm:$0xff]
    %v419 = vld [vmem:[#allocation7 + $0x6c0] sm:$0xff]
    %v420 = vld [vmem:[#allocation7 + $0x6c8] sm:$0xff]
    %v421 = vld [vmem:[#allocation7 + $0x6d0] sm:$0xff]
    %v422 = vld [vmem:[#allocation7 + $0x6d8] sm:$0xff]
    %v423 = vld [vmem:[#allocation7 + $0x6e0] sm:$0xff]
    %v424 = vld [vmem:[#allocation7 + $0x6e8] sm:$0xff]
    %v425 = vld [vmem:[#allocation7 + $0x6f0] sm:$0xff]
    %v426 = vld [vmem:[#allocation7 + $0x6f8] sm:$0xff]
    %v427 = vld [vmem:[#allocation7 + $0x700] sm:$0xff]
    %v428 = vld [vmem:[#allocation7 + $0x708] sm:$0xff]
    %v429 = vld [vmem:[#allocation7 + $0x710] sm:$0xff]
    %v430 = vld [vmem:[#allocation7 + $0x718] sm:$0xff]
    %v431 = vld [vmem:[#allocation7 + $0x720] sm:$0xff]
    %v432 = vld [vmem:[#allocation7 + $0x728] sm:$0xff]
    %v433 = vld [vmem:[#allocation7 + $0x730] sm:$0xff]
    %v434 = vld [vmem:[#allocation7 + $0x738] sm:$0xff]
    %v435 = vld [vmem:[#allocation7 + $0x740] sm:$0xff]
    %v436 = vld [vmem:[#allocation7 + $0x748] sm:$0xff]
    %v437 = vld [vmem:[#allocation7 + $0x750] sm:$0xff]
    %v438 = vld [vmem:[#allocation7 + $0x758] sm:$0xff]
    %v439 = vld [vmem:[#allocation7 + $0x760] sm:$0xff]
    %v440 = vld [vmem:[#allocation7 + $0x768] sm:$0xff]
    %v441 = vld [vmem:[#allocation7 + $0x770] sm:$0xff]
    %v442 = vld [vmem:[#allocation7 + $0x778] sm:$0xff]
    %v443 = vld [vmem:[#allocation7 + $0x780] sm:$0xff]
    %v444 = vld [vmem:[#allocation7 + $0x788] sm:$0xff]
    %v445 = vld [vmem:[#allocation7 + $0x790] sm:$0xff]
    %v446 = vld [vmem:[#allocation7 + $0x798] sm:$0xff]
    %v447 = vld [vmem:[#allocation7 + $0x7a0] sm:$0xff]
    %v448 = vld [vmem:[#allocation7 + $0x7a8] sm:$0xff]
    %v449 = vld [vmem:[#allocation7 + $0x7b0] sm:$0xff]
    %v450 = vld [vmem:[#allocation7 + $0x7b8] sm:$0xff]
    %v451 = vld [vmem:[#allocation7 + $0x7c0] sm:$0xff]
    %v452 = vld [vmem:[#allocation7 + $0x7c8] sm:$0xff]
    %v453 = vld [vmem:[#allocation7 + $0x7d0] sm:$0xff]
    %v454 = vld [vmem:[#allocation7 + $0x7d8] sm:$0xff]
    %v455 = vld [vmem:[#allocation7 + $0x7e0] sm:$0xff]
    %v456 = vld [vmem:[#allocation7 + $0x7e8] sm:$0xff]
    %v457 = vld [vmem:[#allocation7 + $0x7f0] sm:$0xff]
    %v458 = vld [vmem:[#allocation7 + $0x7f8] sm:$0xff]
    %v459 = vld [vmem:[#allocation9] sm:$0xf]
    %v461 = vperm.slane %v459, 0
    %v462 = vperm.slane %v459, 1
    %v463 = vperm.slane %v459, 2
    %v464 = vperm.slane %v459, 3
    %469 = vmatpush.msra.mxu0 %v263
    %470 = vmatpush.msra.mxu0 %v259
    %471 = vmatpush.msra.mxu0 %v255
    %472 = vmatpush.msra.mxu0 %v251
    %473 = vmatpush.msra.mxu0 %v247
    %474 = vmatpush.msra.mxu0 %v243
    %475 = vmatpush.msra.mxu0 %v239
    %476 = vmatpush.msra.mxu0 %v235
    %477 = vmatpush.msra.mxu0 %v231
    %478 = vmatpush.msra.mxu0 %v227
    %479 = vmatpush.msra.mxu0 %v223
    %480 = vmatpush.msra.mxu0 %v219
    %481 = vmatpush.msra.mxu0 %v215
    %482 = vmatpush.msra.mxu0 %v211
    %483 = vmatpush.msra.mxu0 %v207
    %484 = vmatpush.msra.mxu0 %v203
    %485 = vmatmul.f32.gmra.mxu0 %v141
    %v486 = vpop.f32.mrf.mxu0
    %v487 = vadd.f32 %v461, %v486
    %488 = vdwg.mxu0
    %489 = vmatpush.msra.mxu0 %v327
    %490 = vmatpush.msra.mxu0 %v323
    %491 = vmatpush.msra.mxu0 %v319
    %492 = vmatpush.msra.mxu0 %v315
    %493 = vmatpush.msra.mxu0 %v311
    %494 = vmatpush.msra.mxu0 %v307
    %495 = vmatpush.msra.mxu0 %v303
    %496 = vmatpush.msra.mxu0 %v299
    %497 = vmatpush.msra.mxu0 %v295
    %498 = vmatpush.msra.mxu0 %v291
    %499 = vmatpush.msra.mxu0 %v287
    %500 = vmatpush.msra.mxu0 %v283
    %501 = vmatpush.msra.mxu0 %v279
    %502 = vmatpush.msra.mxu0 %v275
    %503 = vmatpush.msra.mxu0 %v271
    %504 = vmatpush.msra.mxu0 %v267
    %505 = vmatmul.f32.gmra.mxu0 %v161
    %v506 = vpop.f32.mrf.mxu0
    %v507 = vadd.f32 %v487, %v506
    %508 = vdwg.mxu0
    %509 = vmatpush.msra.mxu0 %v391
    %510 = vmatpush.msra.mxu0 %v387
    %511 = vmatpush.msra.mxu0 %v383
    %512 = vmatpush.msra.mxu0 %v379
    %513 = vmatpush.msra.mxu0 %v375
    %514 = vmatpush.msra.mxu0 %v371
    %515 = vmatpush.msra.mxu0 %v367
    %516 = vmatpush.msra.mxu0 %v363
    %517 = vmatpush.msra.mxu0 %v359
    %518 = vmatpush.msra.mxu0 %v355
    %519 = vmatpush.msra.mxu0 %v351
    %520 = vmatpush.msra.mxu0 %v347
    %521 = vmatpush.msra.mxu0 %v343
    %522 = vmatpush.msra.mxu0 %v339
    %523 = vmatpush.msra.mxu0 %v335
    %524 = vmatpush.msra.mxu0 %v331
    %525 = vmatmul.f32.gmra.mxu0 %v181
    %v526 = vpop.f32.mrf.mxu0
    %v527 = vadd.f32 %v507, %v526
    %528 = vdwg.mxu0
    %529 = vmatpush.msra.mxu0 %v455
    %530 = vmatpush.msra.mxu0 %v451
    %531 = vmatpush.msra.mxu0 %v447
    %532 = vmatpush.msra.mxu0 %v443
    %533 = vmatpush.msra.mxu0 %v439
    %534 = vmatpush.msra.mxu0 %v435
    %535 = vmatpush.msra.mxu0 %v431
    %536 = vmatpush.msra.mxu0 %v427
    %537 = vmatpush.msra.mxu0 %v423
    %538 = vmatpush.msra.mxu0 %v419
    %539 = vmatpush.msra.mxu0 %v415
    %540 = vmatpush.msra.mxu0 %v411
    %541 = vmatpush.msra.mxu0 %v407
    %542 = vmatpush.msra.mxu0 %v403
    %543 = vmatpush.msra.mxu0 %v399
    %544 = vmatpush.msra.mxu0 %v395
    %545 = vmatmul.f32.gmra.mxu0 %v201
    %v546 = vpop.f32.mrf.mxu0
    %v547 = vadd.f32 %v527, %v546
    %548 = vdwg.mxu0
    %549 = vmatpush.msra.mxu0 %v264
    %550 = vmatpush.msra.mxu0 %v260
    %551 = vmatpush.msra.mxu0 %v256
    %552 = vmatpush.msra.mxu0 %v252
    %553 = vmatpush.msra.mxu0 %v248
    %554 = vmatpush.msra.mxu0 %v244
    %555 = vmatpush.msra.mxu0 %v240
    %556 = vmatpush.msra.mxu0 %v236
    %557 = vmatpush.msra.mxu0 %v232
    %558 = vmatpush.msra.mxu0 %v228
    %559 = vmatpush.msra.mxu0 %v224
    %560 = vmatpush.msra.mxu0 %v220
    %561 = vmatpush.msra.mxu0 %v216
    %562 = vmatpush.msra.mxu0 %v212
    %563 = vmatpush.msra.mxu0 %v208
    %564 = vmatpush.msra.mxu0 %v204
    %565 = vmatmul.f32.gmra.mxu0 %v141
    %v566 = vpop.f32.mrf.mxu0
    %v567 = vadd.f32 %v462, %v566
    %568 = vdwg.mxu0
    %569 = vmatpush.msra.mxu0 %v328
    %570 = vmatpush.msra.mxu0 %v324
    %571 = vmatpush.msra.mxu0 %v320
    %572 = vmatpush.msra.mxu0 %v316
    %573 = vmatpush.msra.mxu0 %v312
    %574 = vmatpush.msra.mxu0 %v308
    %575 = vmatpush.msra.mxu0 %v304
    %576 = vmatpush.msra.mxu0 %v300
    %577 = vmatpush.msra.mxu0 %v296
    %578 = vmatpush.msra.mxu0 %v292
    %579 = vmatpush.msra.mxu0 %v288
    %580 = vmatpush.msra.mxu0 %v284
    %581 = vmatpush.msra.mxu0 %v280
    %582 = vmatpush.msra.mxu0 %v276
    %583 = vmatpush.msra.mxu0 %v272
    %584 = vmatpush.msra.mxu0 %v268
    %585 = vmatmul.f32.gmra.mxu0 %v161
    %v586 = vpop.f32.mrf.mxu0
    %v587 = vadd.f32 %v567, %v586
    %588 = vdwg.mxu0
    %589 = vmatpush.msra.mxu0 %v392
    %590 = vmatpush.msra.mxu0 %v388
    %591 = vmatpush.msra.mxu0 %v384
    %592 = vmatpush.msra.mxu0 %v380
    %593 = vmatpush.msra.mxu0 %v376
    %594 = vmatpush.msra.mxu0 %v372
    %595 = vmatpush.msra.mxu0 %v368
    %596 = vmatpush.msra.mxu0 %v364
    %597 = vmatpush.msra.mxu0 %v360
    %598 = vmatpush.msra.mxu0 %v356
    %599 = vmatpush.msra.mxu0 %v352
    %600 = vmatpush.msra.mxu0 %v348
    %601 = vmatpush.msra.mxu0 %v344
    %602 = vmatpush.msra.mxu0 %v340
    %603 = vmatpush.msra.mxu0 %v336
    %604 = vmatpush.msra.mxu0 %v332
    %605 = vmatmul.f32.gmra.mxu0 %v181
    %v606 = vpop.f32.mrf.mxu0
    %v607 = vadd.f32 %v587, %v606
    %608 = vdwg.mxu0
    %609 = vmatpush.msra.mxu0 %v456
    %610 = vmatpush.msra.mxu0 %v452
    %611 = vmatpush.msra.mxu0 %v448
    %612 = vmatpush.msra.mxu0 %v444
    %613 = vmatpush.msra.mxu0 %v440
    %614 = vmatpush.msra.mxu0 %v436
    %615 = vmatpush.msra.mxu0 %v432
    %616 = vmatpush.msra.mxu0 %v428
    %617 = vmatpush.msra.mxu0 %v424
    %618 = vmatpush.msra.mxu0 %v420
    %619 = vmatpush.msra.mxu0 %v416
    %620 = vmatpush.msra.mxu0 %v412
    %621 = vmatpush.msra.mxu0 %v408
    %622 = vmatpush.msra.mxu0 %v404
    %623 = vmatpush.msra.mxu0 %v400
    %624 = vmatpush.msra.mxu0 %v396
    %625 = vmatmul.f32.gmra.mxu0 %v201
    %v626 = vpop.f32.mrf.mxu0
    %v627 = vadd.f32 %v607, %v626
    %628 = vdwg.mxu0
    %629 = vmatpush.msra.mxu0 %v265
    %630 = vmatpush.msra.mxu0 %v261
    %631 = vmatpush.msra.mxu0 %v257
    %632 = vmatpush.msra.mxu0 %v253
    %633 = vmatpush.msra.mxu0 %v249
    %634 = vmatpush.msra.mxu0 %v245
    %635 = vmatpush.msra.mxu0 %v241
    %636 = vmatpush.msra.mxu0 %v237
    %637 = vmatpush.msra.mxu0 %v233
    %638 = vmatpush.msra.mxu0 %v229
    %639 = vmatpush.msra.mxu0 %v225
    %640 = vmatpush.msra.mxu0 %v221
    %641 = vmatpush.msra.mxu0 %v217
    %642 = vmatpush.msra.mxu0 %v213
    %643 = vmatpush.msra.mxu0 %v209
    %644 = vmatpush.msra.mxu0 %v205
    %645 = vmatmul.f32.gmra.mxu0 %v141
    %v646 = vpop.f32.mrf.mxu0
    %v647 = vadd.f32 %v463, %v646
    %648 = vdwg.mxu0
    %649 = vmatpush.msra.mxu0 %v329
    %650 = vmatpush.msra.mxu0 %v325
    %651 = vmatpush.msra.mxu0 %v321
    %652 = vmatpush.msra.mxu0 %v317
    %653 = vmatpush.msra.mxu0 %v313
    %654 = vmatpush.msra.mxu0 %v309
    %655 = vmatpush.msra.mxu0 %v305
    %656 = vmatpush.msra.mxu0 %v301
    %657 = vmatpush.msra.mxu0 %v297
    %658 = vmatpush.msra.mxu0 %v293
    %659 = vmatpush.msra.mxu0 %v289
    %660 = vmatpush.msra.mxu0 %v285
    %661 = vmatpush.msra.mxu0 %v281
    %662 = vmatpush.msra.mxu0 %v277
    %663 = vmatpush.msra.mxu0 %v273
    %664 = vmatpush.msra.mxu0 %v269
    %665 = vmatmul.f32.gmra.mxu0 %v161
    %v666 = vpop.f32.mrf.mxu0
    %v667 = vadd.f32 %v647, %v666
    %668 = vdwg.mxu0
    %669 = vmatpush.msra.mxu0 %v393
    %670 = vmatpush.msra.mxu0 %v389
    %671 = vmatpush.msra.mxu0 %v385
    %672 = vmatpush.msra.mxu0 %v381
    %673 = vmatpush.msra.mxu0 %v377
    %674 = vmatpush.msra.mxu0 %v373
    %675 = vmatpush.msra.mxu0 %v369
    %676 = vmatpush.msra.mxu0 %v365
    %677 = vmatpush.msra.mxu0 %v361
    %678 = vmatpush.msra.mxu0 %v357
    %679 = vmatpush.msra.mxu0 %v353
    %680 = vmatpush.msra.mxu0 %v349
    %681 = vmatpush.msra.mxu0 %v345
    %682 = vmatpush.msra.mxu0 %v341
    %683 = vmatpush.msra.mxu0 %v337
    %684 = vmatpush.msra.mxu0 %v333
    %685 = vmatmul.f32.gmra.mxu0 %v181
    %v686 = vpop.f32.mrf.mxu0
    %v687 = vadd.f32 %v667, %v686
    %688 = vdwg.mxu0
    %689 = vmatpush.msra.mxu0 %v457
    %690 = vmatpush.msra.mxu0 %v453
    %691 = vmatpush.msra.mxu0 %v449
    %692 = vmatpush.msra.mxu0 %v445
    %693 = vmatpush.msra.mxu0 %v441
    %694 = vmatpush.msra.mxu0 %v437
    %695 = vmatpush.msra.mxu0 %v433
    %696 = vmatpush.msra.mxu0 %v429
    %697 = vmatpush.msra.mxu0 %v425
    %698 = vmatpush.msra.mxu0 %v421
    %699 = vmatpush.msra.mxu0 %v417
    %700 = vmatpush.msra.mxu0 %v413
    %701 = vmatpush.msra.mxu0 %v409
    %702 = vmatpush.msra.mxu0 %v405
    %703 = vmatpush.msra.mxu0 %v401
    %704 = vmatpush.msra.mxu0 %v397
    %705 = vmatmul.f32.gmra.mxu0 %v201
    %v706 = vpop.f32.mrf.mxu0
    %v707 = vadd.f32 %v687, %v706
    %708 = vdwg.mxu0
    %709 = vmatpush.msra.mxu0 %v266
    %710 = vmatpush.msra.mxu0 %v262
    %711 = vmatpush.msra.mxu0 %v258
    %712 = vmatpush.msra.mxu0 %v254
    %713 = vmatpush.msra.mxu0 %v250
    %714 = vmatpush.msra.mxu0 %v246
    %715 = vmatpush.msra.mxu0 %v242
    %716 = vmatpush.msra.mxu0 %v238
    %717 = vmatpush.msra.mxu0 %v234
    %718 = vmatpush.msra.mxu0 %v230
    %719 = vmatpush.msra.mxu0 %v226
    %720 = vmatpush.msra.mxu0 %v222
    %721 = vmatpush.msra.mxu0 %v218
    %722 = vmatpush.msra.mxu0 %v214
    %723 = vmatpush.msra.mxu0 %v210
    %724 = vmatpush.msra.mxu0 %v206
    %725 = vmatmul.f32.gmra.mxu0 %v141
    %v726 = vpop.f32.mrf.mxu0
    %v727 = vadd.f32 %v464, %v726
    %728 = vdwg.mxu0
    %729 = vmatpush.msra.mxu0 %v330
    %730 = vmatpush.msra.mxu0 %v326
    %731 = vmatpush.msra.mxu0 %v322
    %732 = vmatpush.msra.mxu0 %v318
    %733 = vmatpush.msra.mxu0 %v314
    %734 = vmatpush.msra.mxu0 %v310
    %735 = vmatpush.msra.mxu0 %v306
    %736 = vmatpush.msra.mxu0 %v302
    %737 = vmatpush.msra.mxu0 %v298
    %738 = vmatpush.msra.mxu0 %v294
    %739 = vmatpush.msra.mxu0 %v290
    %740 = vmatpush.msra.mxu0 %v286
    %741 = vmatpush.msra.mxu0 %v282
    %742 = vmatpush.msra.mxu0 %v278
    %743 = vmatpush.msra.mxu0 %v274
    %744 = vmatpush.msra.mxu0 %v270
    %745 = vmatmul.f32.gmra.mxu0 %v161
    %v746 = vpop.f32.mrf.mxu0
    %v747 = vadd.f32 %v727, %v746
    %748 = vdwg.mxu0
    %749 = vmatpush.msra.mxu0 %v394
    %750 = vmatpush.msra.mxu0 %v390
    %751 = vmatpush.msra.mxu0 %v386
    %752 = vmatpush.msra.mxu0 %v382
    %753 = vmatpush.msra.mxu0 %v378
    %754 = vmatpush.msra.mxu0 %v374
    %755 = vmatpush.msra.mxu0 %v370
    %756 = vmatpush.msra.mxu0 %v366
    %757 = vmatpush.msra.mxu0 %v362
    %758 = vmatpush.msra.mxu0 %v358
    %759 = vmatpush.msra.mxu0 %v354
    %760 = vmatpush.msra.mxu0 %v350
    %761 = vmatpush.msra.mxu0 %v346
    %762 = vmatpush.msra.mxu0 %v342
    %763 = vmatpush.msra.mxu0 %v338
    %764 = vmatpush.msra.mxu0 %v334
    %765 = vmatmul.f32.gmra.mxu0 %v181
    %v766 = vpop.f32.mrf.mxu0
    %v767 = vadd.f32 %v747, %v766
    %768 = vdwg.mxu0
    %769 = vmatpush.msra.mxu0 %v458
    %770 = vmatpush.msra.mxu0 %v454
    %771 = vmatpush.msra.mxu0 %v450
    %772 = vmatpush.msra.mxu0 %v446
    %773 = vmatpush.msra.mxu0 %v442
    %774 = vmatpush.msra.mxu0 %v438
    %775 = vmatpush.msra.mxu0 %v434
    %776 = vmatpush.msra.mxu0 %v430
    %777 = vmatpush.msra.mxu0 %v426
    %778 = vmatpush.msra.mxu0 %v422
    %779 = vmatpush.msra.mxu0 %v418
    %780 = vmatpush.msra.mxu0 %v414
    %781 = vmatpush.msra.mxu0 %v410
    %782 = vmatpush.msra.mxu0 %v406
    %783 = vmatpush.msra.mxu0 %v402
    %784 = vmatpush.msra.mxu0 %v398
    %785 = vmatmul.f32.gmra.mxu0 %v201
    %v786 = vpop.f32.mrf.mxu0
    %v787 = vadd.f32 %v767, %v786
    %788 = vdwg.mxu0
    %v789 = vmax.f32 %v547, 0.0
    %v790 = vmax.f32 %v627, 0.0
    %v791 = vmax.f32 %v707, 0.0
    %v792 = vmax.f32 %v787, 0.0
    %v793 = vpack.c.bf16 %v790, %v789
    %v794 = vpack.c.bf16 %v792, %v791
    %v797 = vrot.slane %v793, 3
    %v798 = vrot.slane %v794, 6
    %v799 = vrot.slane %v794, 1
    %vm800 = vcmask 1040384
    %v803 = vsel %vm800, %v793, %v797
    %vm804 = vcmask 1042434
    %v807 = vsel %vm804, %v798, %v799
    %vm808 = vcmask 1041408
    %v809 = vsel %vm808, %v803, %v807
    %811 = vst [vmem:[%s5] sm:$0xf] %v809
    // Predicated region
    $region42: #{decoder_forward.2} parent=1 // pred_check
      _
    $region43: #{decoder_forward.2} parent=1 // pred_check_branch
      %813 = sbr.rel (0) target = $region45
    $region44: #{decoder_forward.2} parent=1 // pred_region
      _
    $region45: #{decoder_forward.2} parent=1 // pred_fallthru
      _
    // Predicated region
    $region46: #{decoder_forward.2} parent=1 // pred_check
      _
    $region47: #{decoder_forward.2} parent=1 // pred_check_branch
      %815 = sbr.rel (0) target = $region49
    $region48: #{decoder_forward.2} parent=1 // pred_region
      _
    $region49: #{decoder_forward.2} parent=1 // pred_fallthru
      _
    %816 = vsyncpa [#allocation3], 1
    %817 = vsyncpa [#allocation5], 1
    %818 = vsyncpa [#allocation8], 1

// kernel: decoder_forward.3
$region0: #{decoder_forward.3}
  #allocation0 [shape = 'u32[]', space=smem, size = 0x4, offset = 0x4, fixed_abs, tag = 'smem constant byte address 0x4 - core index']
  #allocation1 [shape = 'u32[72,128]{1,0:T(1,128)}', space=vmem, size = 0x9000, scoped, tag = 'internal scratch']
  %s0 = inlined_call_operand.vmem [shape: bf16[2,512], index: 0, kind: input, shape index: {}]
  %s1 = inlined_call_operand.hbm [shape: bf16[512,97280], index: 1, kind: input, shape index: {}]
  %s2 = inlined_call_operand.hbm [shape: f32[1,97280], index: 2, kind: input, shape index: {}]
  %s3 = inlined_call_operand.vmem [shape: f32[8,2], index: 3, kind: input, shape index: {}]
  %s4 = inlined_call_operand.vmem [shape: f32[8,1], index: 4, kind: input, shape index: {}]
  %s5 = inlined_call_operand.vmem [shape: f32[8,97280], index: 5, kind: output, shape index: {}]
  %s6 = sld [smem:[#allocation0]]
  $region61: #{decoder_forward.3} parent=0
    _
  %s8 = ssub.s32 1, %s6
  %s9 = scalar_select 0, %s8, %s6
  $region1: #{decoder_forward.3} parent=0
    #allocation2 [shape = 'u8[10485760]{0}', space=vmem, size = 0xa00000, scoped, tag = 'input window, operand 1']
    #allocation3 [shape = 's32[2]{0}', space=sflag, size = 0x8, scoped, tag = 'scoped memory for decoder_forward.3']
    #allocation4 [shape = 'u8[40960]{0}', space=vmem, size = 0xa000, scoped, tag = 'input window, operand 2']
    #allocation5 [shape = 's32[2]{0}', space=sflag, size = 0x8, scoped, tag = 'scoped memory for decoder_forward.3']
    %10 = vsyncpa [#allocation3], 0
    %s11 = scalar_lea.sflag [#allocation3], 1
    %12 = vsyncpa %s11, 0
    %13 = vsyncpa [#allocation5], 0
    %s14 = scalar_lea.sflag [#allocation5], 1
    %15 = vsyncpa %s14, 0
    loop: start=0, step=1, limit=21
    $region2: #{decoder_forward.3} parent=1 // loop_pre_header
      _
    $region3: #{decoder_forward.3} parent=1 // loop_header
      %s17 = sphi 0, %s21
      %p18 = scmp.ge.s32.totalorder %s17, 21
      %s25 = sphi 0, %s25
      %s27 = sphi 0, %s25
      %s28 = sphi 0, %s27
      %s42 = sphi 0, %s28
      %s48 = sphi 0, %s50
      %s51 = sphi 0, %s48
      %s52 = sphi 0, %s51
      %s68 = sphi 0, %s52
      %s74 = sphi 0, %s76
      %s77 = sphi 0, %s74
      %s78 = sphi 0, %s77
      %s94 = sphi 0, %s78
      %s98 = sphi 0, %s98
      %s100 = sphi 0, %s98
      %s101 = sphi 0, %s100
      %s115 = sphi 0, %s101
      %s119 = sphi 0, %s119
      %s121 = sphi 0, %s119
      %s122 = sphi 0, %s121
      %s136 = sphi 0, %s122
      %s142 = sphi 0, %s144
      %s145 = sphi 0, %s142
      %s146 = sphi 0, %s145
      %s162 = sphi 0, %s146
    $region4: #{decoder_forward.3} parent=1 // loop_header_branch
      %20 = sbr.rel (%p18) target = $region8
    $region5: #{decoder_forward.3} parent=1 // loop_body
      %s22 = ssub.s32 %s17, 1
      %s23 = ssub.s32 %s17, 2
      %s24 = sadd.s32 %s17, 1
      %s26 = sadd.s32 %s25, 1
      %p29 = scmp.eq.s32.totalorder %s17, 18
      %p30 = scmp.ne.s32.totalorder %s25, %s27
      %p31 = scmp.eq.s32.totalorder %s17, 0
      %p32 = por %p30, %p31
      %p33 = scmp.ne.s32.totalorder %s25, %s27
      %p34 = scmp.eq.s32.totalorder %s22, 18
      %p35 = por %p33, %p34
      %p36 = scmp.ne.s32.totalorder %s27, %s28
      %p37 = scmp.eq.s32.totalorder %s22, 0
      %p38 = por %p36, %p37
      %p39 = scmp.ne.s32.totalorder %s27, %s28
      %p40 = scmp.eq.s32.totalorder %s23, 18
      %p41 = por %p39, %p40
      %p43 = scmp.ne.s32.totalorder %s28, %s42
      %p44 = scmp.eq.s32.totalorder %s23, 0
      %p45 = por %p43, %p44
      %s46 = ssub.s32 %s17, %s24
      %p47 = scmp.eq.s32.totalorder %s46, 0
      %s49 = sadd.s32 %s48, 1
      %s50 = scalar_select %p47, %s48, %s49
      %p53 = pneg %p47
      %p54 = scmp.eq.s32.totalorder %s17, 18
      %p55 = por %p53, %p54
      %p56 = scmp.ne.s32.totalorder %s48, %s51
      %p57 = scmp.eq.s32.totalorder %s17, 0
      %p58 = por %p56, %p57
      %p59 = scmp.ne.s32.totalorder %s48, %s51
      %p60 = scmp.eq.s32.totalorder %s22, 18
      %p61 = por %p59, %p60
      %p62 = scmp.ne.s32.totalorder %s51, %s52
      %p63 = scmp.eq.s32.totalorder %s22, 0
      %p64 = por %p62, %p63
      %p65 = scmp.ne.s32.totalorder %s51, %s52
      %p66 = scmp.eq.s32.totalorder %s23, 18
      %p67 = por %p65, %p66
      %p69 = scmp.ne.s32.totalorder %s52, %s68
      %p70 = scmp.eq.s32.totalorder %s23, 0
      %p71 = por %p69, %p70
      %s72 = ssub.s32 %s17, %s24
      %p73 = scmp.eq.s32.totalorder %s72, 0
      %s75 = sadd.s32 %s74, 1
      %s76 = scalar_select %p73, %s74, %s75
      %p79 = pneg %p73
      %p80 = scmp.eq.s32.totalorder %s17, 18
      %p81 = por %p79, %p80
      %p82 = scmp.ne.s32.totalorder %s74, %s77
      %p83 = scmp.eq.s32.totalorder %s17, 0
      %p84 = por %p82, %p83
      %p85 = scmp.ne.s32.totalorder %s74, %s77
      %p86 = scmp.eq.s32.totalorder %s22, 18
      %p87 = por %p85, %p86
      %p88 = scmp.ne.s32.totalorder %s77, %s78
      %p89 = scmp.eq.s32.totalorder %s22, 0
      %p90 = por %p88, %p89
      %p91 = scmp.ne.s32.totalorder %s77, %s78
      %p92 = scmp.eq.s32.totalorder %s23, 18
      %p93 = por %p91, %p92
      %p95 = scmp.ne.s32.totalorder %s78, %s94
      %p96 = scmp.eq.s32.totalorder %s23, 0
      %p97 = por %p95, %p96
      %s99 = sadd.s32 %s98, 1
      %p102 = scmp.eq.s32.totalorder %s17, 18
      %p103 = scmp.ne.s32.totalorder %s98, %s100
      %p104 = scmp.eq.s32.totalorder %s17, 0
      %p105 = por %p103, %p104
      %p106 = scmp.ne.s32.totalorder %s98, %s100
      %p107 = scmp.eq.s32.totalorder %s22, 18
      %p108 = por %p106, %p107
      %p109 = scmp.ne.s32.totalorder %s100, %s101
      %p110 = scmp.eq.s32.totalorder %s22, 0
      %p111 = por %p109, %p110
      %p112 = scmp.ne.s32.totalorder %s100, %s101
      %p113 = scmp.eq.s32.totalorder %s23, 18
      %p114 = por %p112, %p113
      %p116 = scmp.ne.s32.totalorder %s101, %s115
      %p117 = scmp.eq.s32.totalorder %s23, 0
      %p118 = por %p116, %p117
      %s120 = sadd.s32 %s119, 1
      %p123 = scmp.eq.s32.totalorder %s17, 18
      %p124 = scmp.ne.s32.totalorder %s119, %s121
      %p125 = scmp.eq.s32.totalorder %s17, 0
      %p126 = por %p124, %p125
      %p127 = scmp.ne.s32.totalorder %s119, %s121
      %p128 = scmp.eq.s32.totalorder %s22, 18
      %p129 = por %p127, %p128
      %p130 = scmp.ne.s32.totalorder %s121, %s122
      %p131 = scmp.eq.s32.totalorder %s22, 0
      %p132 = por %p130, %p131
      %p133 = scmp.ne.s32.totalorder %s121, %s122
      %p134 = scmp.eq.s32.totalorder %s23, 18
      %p135 = por %p133, %p134
      %p137 = scmp.ne.s32.totalorder %s122, %s136
      %p138 = scmp.eq.s32.totalorder %s23, 0
      %p139 = por %p137, %p138
      %s140 = ssub.s32 %s17, %s24
      %p141 = scmp.eq.s32.totalorder %s140, 0
      %s143 = sadd.s32 %s142, 1
      %s144 = scalar_select %p141, %s142, %s143
      %p147 = pneg %p141
      %p148 = scmp.eq.s32.totalorder %s17, 18
      %p149 = por %p147, %p148
      %p150 = scmp.ne.s32.totalorder %s142, %s145
      %p151 = scmp.eq.s32.totalorder %s17, 0
      %p152 = por %p150, %p151
      %p153 = scmp.ne.s32.totalorder %s142, %s145
      %p154 = scmp.eq.s32.totalorder %s22, 18
      %p155 = por %p153, %p154
      %p156 = scmp.ne.s32.totalorder %s145, %s146
      %p157 = scmp.eq.s32.totalorder %s22, 0
      %p158 = por %p156, %p157
      %p159 = scmp.ne.s32.totalorder %s145, %s146
      %p160 = scmp.eq.s32.totalorder %s23, 18
      %p161 = por %p159, %p160
      %p163 = scmp.ne.s32.totalorder %s146, %s162
      %p164 = scmp.eq.s32.totalorder %s23, 0
      %p165 = por %p163, %p164
      %p166 = scmp.le.s32.totalorder 1, %s17
      %p167 = scmp.lt.s32.totalorder %s17, 20
      %p168 = pnand %p166, %p167
      %p169 = pneg %p168
      // Predicated region
      $region9: #{decoder_forward.3} parent=5 // pred_check
        _
      $region10: #{decoder_forward.3} parent=5 // pred_check_branch
        %171 = sbr.rel (%p168) target = $region12
      $region11: #{decoder_forward.3} parent=5 // pred_region
        %s172 = ssub.s32 %s17, 1
        // Predicated region
        $region13: #{decoder_forward.3} parent=11 // pred_check
          %p173 = pneg %p38
        $region14: #{decoder_forward.3} parent=11 // pred_check_branch
          %175 = sbr.rel (%p173) target = $region16
        $region15: #{decoder_forward.3} parent=11 // pred_region
          _
        $region16: #{decoder_forward.3} parent=11 // pred_fallthru
          _
        // Predicated region
        $region17: #{decoder_forward.3} parent=11 // pred_check
          %p176 = pneg %p111
        $region18: #{decoder_forward.3} parent=11 // pred_check_branch
          %178 = sbr.rel (%p176) target = $region20
        $region19: #{decoder_forward.3} parent=11 // pred_region
          _
        $region20: #{decoder_forward.3} parent=11 // pred_fallthru
          _
        // Predicated region
        $region21: #{decoder_forward.3} parent=11 // pred_check
          %p179 = pneg %p132
        $region22: #{decoder_forward.3} parent=11 // pred_check_branch
          %181 = sbr.rel (%p179) target = $region24
        $region23: #{decoder_forward.3} parent=11 // pred_region
          _
        $region24: #{decoder_forward.3} parent=11 // pred_fallthru
          _
      $region12: #{decoder_forward.3} parent=5 // pred_fallthru
        _
      %p182 = scmp.lt.s32.totalorder %s17, 19
      // Predicated region
      $region25: #{decoder_forward.3} parent=5 // pred_check
        %p183 = pneg %p182
      $region26: #{decoder_forward.3} parent=5 // pred_check_branch
        %185 = sbr.rel (%p183) target = $region28
      $region27: #{decoder_forward.3} parent=5 // pred_region
        // Predicated region
        $region29: #{decoder_forward.3} parent=27 // pred_check
          %p186 = pneg %p58
        $region30: #{decoder_forward.3} parent=27 // pred_check_branch
          %188 = sbr.rel (%p186) target = $region32
        $region31: #{decoder_forward.3} parent=27 // pred_region
          %s189 = sand.u32 %s48, 1
          %s190 = scalar_lea.sflag [#allocation3], %s189
          %s191 = sand.u32 %s48, 1
          %s192 = smul.addr %s191, 10240
          %s193 = scalar_lea.vmem [#allocation2], %s192
          %s194 = smul.u32 40, %s17
          %196 = vsyncadd %s190, 0
          %s197 = smul.addr %s194, 4
          %s198 = scalar_lea.hbm %s1, %s197
          %s199 = sshll.u32 %s198, 4
          %s200 = int_to_ptr.hbm [resolvable:$true] %s199
          %s201 = sshll.u32 %s193, 4
          %s202 = int_to_ptr.vmem [resolvable:$true] %s201
          %207 = dma.hbm_to_vmem [thread:$0]  %s200, 163840, %s202, %s190, 48640, 2560, 160
        $region32: #{decoder_forward.3} parent=27 // pred_fallthru
          _
        // Predicated region
        $region33: #{decoder_forward.3} parent=27 // pred_check
          %p208 = pneg %p84
        $region34: #{decoder_forward.3} parent=27 // pred_check_branch
          %210 = sbr.rel (%p208) target = $region36
        $region35: #{decoder_forward.3} parent=27 // pred_region
          %s211 = sand.u32 %s74, 1
          %s212 = scalar_lea.sflag [#allocation5], %s211
          %s213 = sand.u32 %s74, 1
          %s214 = smul.addr %s213, 40
          %s215 = scalar_lea.vmem [#allocation4], %s214
          %s216 = smul.u32 40, %s17
          %218 = vsyncadd %s212, 0
          %s219 = scalar_lea.hbm %s2, %s216
          %s221 = sshll.u32 %s219, 4
          %s222 = int_to_ptr.hbm [resolvable:$true] %s221
          %s223 = sshll.u32 %s215, 4
          %s224 = int_to_ptr.vmem [resolvable:$true] %s223
          %226 = dma.hbm_to_vmem [thread:$0]  %s222, 640, %s224, %s212
        $region36: #{decoder_forward.3} parent=27 // pred_fallthru
          _
      $region28: #{decoder_forward.3} parent=5 // pred_fallthru
        _
      %p227 = scmp.le.s32.totalorder 1, %s17
      %p228 = scmp.lt.s32.totalorder %s17, 20
      %p229 = pnand %p227, %p228
      %p230 = pneg %p229
      // Predicated region
      $region37: #{decoder_forward.3} parent=5 // pred_check
        _
      $region38: #{decoder_forward.3} parent=5 // pred_check_branch
        %232 = sbr.rel (%p229) target = $region40
      $region39: #{decoder_forward.3} parent=5 // pred_region
        %s233 = ssub.s32 %s17, 1
        %s234 = sand.u32 %s51, 1
        %s235 = scalar_lea.sflag [#allocation3], %s234
        %s236 = sand.u32 %s51, 1
        %s237 = smul.addr %s236, 10240
        %s238 = scalar_lea.vmem [#allocation2], %s237
        // Predicated region
        $region41: #{decoder_forward.3} parent=39 // pred_check
          %p239 = pneg %p64
        $region42: #{decoder_forward.3} parent=39 // pred_check_branch
          %241 = sbr.rel (%p239) target = $region44
        $region43: #{decoder_forward.3} parent=39 // pred_region
          %243 = dma.done %s235, 163840
        $region44: #{decoder_forward.3} parent=39 // pred_fallthru
          _
        %s244 = sand.u32 %s77, 1
        %s245 = scalar_lea.sflag [#allocation5], %s244
        %s246 = sand.u32 %s77, 1
        %s247 = smul.addr %s246, 40
        %s248 = scalar_lea.vmem [#allocation4], %s247
        // Predicated region
        $region45: #{decoder_forward.3} parent=39 // pred_check
          %p249 = pneg %p90
        $region46: #{decoder_forward.3} parent=39 // pred_check_branch
          %251 = sbr.rel (%p249) target = $region48
        $region47: #{decoder_forward.3} parent=39 // pred_region
          %253 = dma.done %s245, 640
        $region48: #{decoder_forward.3} parent=39 // pred_fallthru
          _
        %p254 = pneg %p38
        %p255 = pneg %p35
        %s256 = sand.u32 %s51, 1
        %s257 = scalar_lea.sflag [#allocation3], %s256
        %s258 = sand.u32 %s51, 1
        %s259 = smul.addr %s258, 10240
        %s260 = scalar_lea.vmem [#allocation2], %s259
        %p261 = pneg %p64
        %p262 = pneg %p61
        %s263 = sand.u32 %s77, 1
        %s264 = scalar_lea.sflag [#allocation5], %s263
        %s265 = sand.u32 %s77, 1
        %s266 = smul.addr %s265, 40
        %s267 = scalar_lea.vmem [#allocation4], %s266
        %p268 = pneg %p90
        %p269 = pneg %p87
        %p270 = pneg %p111
        %p271 = pneg %p108
        %p272 = pneg %p132
        %p273 = pneg %p129
        %p274 = pneg %p158
        %p275 = pneg %p155
        %s276 = smul.u32 40, %s22
        %p277 = scmp.lt.s32.totalorder %s276, 759
        %s278 = scalar_select %p277, %s276, 759
        %s279 = smul.addr %s278, 8
        %s280 = scalar_lea.vmem %s5, %s279
        %s281 = smul.u32 40, %s22
        %s282 = smul.u32 40, %s22
        %s283 = smul.u32 40, %s22
        %p284 = scmp.lt.s32.totalorder %s283, 759
        %s285 = scalar_select %p284, %s283, 759
        %s286 = smul.addr %s285, 8
        %s287 = scalar_lea.vmem %s5, %s286
        %s288 = smul.u32 40, %s22
        %v289 = vld [vmem:[%s0] sm:$0xf]
        %v290 = vld [vmem:[%s238] sm:$0xff]
        %v291 = vld [vmem:[%s238 + $0x8] sm:$0xff]
        %v292 = vld [vmem:[%s238 + $0x10] sm:$0xff]
        %v293 = vld [vmem:[%s238 + $0x18] sm:$0xff]
        %v294 = vld [vmem:[%s238 + $0x20] sm:$0xff]
        %v295 = vld [vmem:[%s238 + $0x28] sm:$0xff]
        %v296 = vld [vmem:[%s238 + $0x30] sm:$0xff]
        %v297 = vld [vmem:[%s238 + $0x38] sm:$0xff]
        %v298 = vld [vmem:[%s238 + $0x40] sm:$0xff]
        %v299 = vld [vmem:[%s238 + $0x48] sm:$0xff]
        %v300 = vld [vmem:[%s238 + $0x50] sm:$0xff]
        %v301 = vld [vmem:[%s238 + $0x58] sm:$0xff]
        %v302 = vld [vmem:[%s238 + $0x60] sm:$0xff]
        %v303 = vld [vmem:[%s238 + $0x68] sm:$0xff]
        %v304 = vld [vmem:[%s238 + $0x70] sm:$0xff]
        %v305 = vld [vmem:[%s238 + $0x78] sm:$0xff]
        %v306 = vld [vmem:[%s238 + $0x80] sm:$0xff]
        %v307 = vld [vmem:[%s238 + $0x88] sm:$0xff]
        %v308 = vld [vmem:[%s238 + $0x90] sm:$0xff]
        %v309 = vld [vmem:[%s238 + $0x98] sm:$0xff]
        %v310 = vld [vmem:[%s238 + $0xa0] sm:$0xff]
        %v311 = vld [vmem:[%s238 + $0xa8] sm:$0xff]
        %v312 = vld [vmem:[%s238 + $0xb0] sm:$0xff]
        %v313 = vld [vmem:[%s238 + $0xb8] sm:$0xff]
        %v314 = vld [vmem:[%s238 + $0xc0] sm:$0xff]
        %v315 = vld [vmem:[%s238 + $0xc8] sm:$0xff]
        %v316 = vld [vmem:[%s238 + $0xd0] sm:$0xff]
        %v317 = vld [vmem:[%s238 + $0xd8] sm:$0xff]
        %v318 = vld [vmem:[%s238 + $0xe0] sm:$0xff]
        %v319 = vld [vmem:[%s238 + $0xe8] sm:$0xff]
        %v320 = vld [vmem:[%s238 + $0xf0] sm:$0xff]
        %v321 = vld [vmem:[%s238 + $0xf8] sm:$0xff]
        %v322 = vld [vmem:[%s238 + $0x100] sm:$0xff]
        %v323 = vld [vmem:[%s238 + $0x108] sm:$0xff]
        %v324 = vld [vmem:[%s238 + $0x110] sm:$0xff]
        %v325 = vld [vmem:[%s238 + $0x118] sm:$0xff]
        %v326 = vld [vmem:[%s238 + $0x120] sm:$0xff]
        %v327 = vld [vmem:[%s238 + $0x128] sm:$0xff]
        %v328 = vld [vmem:[%s238 + $0x130] sm:$0xff]
        %v329 = vld [vmem:[%s238 + $0x138] sm:$0xff]
        %v330 = vld [vmem:[%s238 + $0x140] sm:$0xff]
        %v331 = vld [vmem:[%s238 + $0x148] sm:$0xff]
        %v332 = vld [vmem:[%s238 + $0x150] sm:$0xff]
        %v333 = vld [vmem:[%s238 + $0x158] sm:$0xff]
        %v334 = vld [vmem:[%s238 + $0x160] sm:$0xff]
        %v335 = vld [vmem:[%s238 + $0x168] sm:$0xff]
        %v336 = vld [vmem:[%s238 + $0x170] sm:$0xff]
        %v337 = vld [vmem:[%s238 + $0x178] sm:$0xff]
        %v338 = vld [vmem:[%s238 + $0x180] sm:$0xff]
        %v339 = vld [vmem:[%s238 + $0x188] sm:$0xff]
        %v340 = vld [vmem:[%s238 + $0x190] sm:$0xff]
        %v341 = vld [vmem:[%s238 + $0x198] sm:$0xff]
        %v342 = vld [vmem:[%s238 + $0x1a0] sm:$0xff]
        %v343 = vld [vmem:[%s238 + $0x1a8] sm:$0xff]
        %v344 = vld [vmem:[%s238 + $0x1b0] sm:$0xff]
        %v345 = vld [vmem:[%s238 + $0x1b8] sm:$0xff]
        %v346 = vld [vmem:[%s238 + $0x1c0] sm:$0xff]
        %v347 = vld [vmem:[%s238 + $0x1c8] sm:$0xff]
        %v348 = vld [vmem:[%s238 + $0x1d0] sm:$0xff]
        %v349 = vld [vmem:[%s238 + $0x1d8] sm:$0xff]
        %v350 = vld [vmem:[%s238 + $0x1e0] sm:$0xff]
        %v351 = vld [vmem:[%s238 + $0x1e8] sm:$0xff]
        %v352 = vld [vmem:[%s238 + $0x1f0] sm:$0xff]
        %v353 = vld [vmem:[%s238 + $0x1f8] sm:$0xff]
        %v354 = vld [vmem:[%s238 + $0x200] sm:$0xff]
        %v355 = vld [vmem:[%s238 + $0x208] sm:$0xff]
        %v356 = vld [vmem:[%s238 + $0x210] sm:$0xff]
        %v357 = vld [vmem:[%s238 + $0x218] sm:$0xff]
        %v358 = vld [vmem:[%s238 + $0x220] sm:$0xff]
        %v359 = vld [vmem:[%s238 + $0x228] sm:$0xff]
        %v360 = vld [vmem:[%s238 + $0x230] sm:$0xff]
        %v361 = vld [vmem:[%s238 + $0x238] sm:$0xff]
        %v362 = vld [vmem:[%s238 + $0x240] sm:$0xff]
        %v363 = vld [vmem:[%s238 + $0x248] sm:$0xff]
        %v364 = vld [vmem:[%s238 + $0x250] sm:$0xff]
        %v365 = vld [vmem:[%s238 + $0x258] sm:$0xff]
        %v366 = vld [vmem:[%s238 + $0x260] sm:$0xff]
        %v367 = vld [vmem:[%s238 + $0x268] sm:$0xff]
        %v368 = vld [vmem:[%s238 + $0x270] sm:$0xff]
        %v369 = vld [vmem:[%s238 + $0x278] sm:$0xff]
        %v370 = vld [vmem:[%s238 + $0x280] sm:$0xff]
        %v371 = vld [vmem:[%s238 + $0x288] sm:$0xff]
        %v372 = vld [vmem:[%s238 + $0x290] sm:$0xff]
        %v373 = vld [vmem:[%s238 + $0x298] sm:$0xff]
        %v374 = vld [vmem:[%s238 + $0x2a0] sm:$0xff]
        %v375 = vld [vmem:[%s238 + $0x2a8] sm:$0xff]
        %v376 = vld [vmem:[%s238 + $0x2b0] sm:$0xff]
        %v377 = vld [vmem:[%s238 + $0x2b8] sm:$0xff]
        %v378 = vld [vmem:[%s238 + $0x2c0] sm:$0xff]
        %v379 = vld [vmem:[%s238 + $0x2c8] sm:$0xff]
        %v380 = vld [vmem:[%s238 + $0x2d0] sm:$0xff]
        %v381 = vld [vmem:[%s238 + $0x2d8] sm:$0xff]
        %v382 = vld [vmem:[%s238 + $0x2e0] sm:$0xff]
        %v383 = vld [vmem:[%s238 + $0x2e8] sm:$0xff]
        %v384 = vld [vmem:[%s238 + $0x2f0] sm:$0xff]
        %v385 = vld [vmem:[%s238 + $0x2f8] sm:$0xff]
        %v386 = vld [vmem:[%s238 + $0x300] sm:$0xff]
        %v387 = vld [vmem:[%s238 + $0x308] sm:$0xff]
        %v388 = vld [vmem:[%s238 + $0x310] sm:$0xff]
        %v389 = vld [vmem:[%s238 + $0x318] sm:$0xff]
        %v390 = vld [vmem:[%s238 + $0x320] sm:$0xff]
        %v391 = vld [vmem:[%s238 + $0x328] sm:$0xff]
        %v392 = vld [vmem:[%s238 + $0x330] sm:$0xff]
        %v393 = vld [vmem:[%s238 + $0x338] sm:$0xff]
        %v394 = vld [vmem:[%s238 + $0x340] sm:$0xff]
        %v395 = vld [vmem:[%s238 + $0x348] sm:$0xff]
        %v396 = vld [vmem:[%s238 + $0x350] sm:$0xff]
        %v397 = vld [vmem:[%s238 + $0x358] sm:$0xff]
        %v398 = vld [vmem:[%s238 + $0x360] sm:$0xff]
        %v399 = vld [vmem:[%s238 + $0x368] sm:$0xff]
        %v400 = vld [vmem:[%s238 + $0x370] sm:$0xff]
        %v401 = vld [vmem:[%s238 + $0x378] sm:$0xff]
        %v402 = vld [vmem:[%s238 + $0x380] sm:$0xff]
        %v403 = vld [vmem:[%s238 + $0x388] sm:$0xff]
        %v404 = vld [vmem:[%s238 + $0x390] sm:$0xff]
        %v405 = vld [vmem:[%s238 + $0x398] sm:$0xff]
        %v406 = vld [vmem:[%s238 + $0x3a0] sm:$0xff]
        %v407 = vld [vmem:[%s238 + $0x3a8] sm:$0xff]
        %v408 = vld [vmem:[%s238 + $0x3b0] sm:$0xff]
        %v409 = vld [vmem:[%s238 + $0x3b8] sm:$0xff]
        %v410 = vld [vmem:[%s238 + $0x3c0] sm:$0xff]
        %v411 = vld [vmem:[%s238 + $0x3c8] sm:$0xff]
        %v412 = vld [vmem:[%s238 + $0x3d0] sm:$0xff]
        %v413 = vld [vmem:[%s238 + $0x3d8] sm:$0xff]
        %v414 = vld [vmem:[%s238 + $0x3e0] sm:$0xff]
        %v415 = vld [vmem:[%s238 + $0x3e8] sm:$0xff]
        %v416 = vld [vmem:[%s238 + $0x3f0] sm:$0xff]
        %v417 = vld [vmem:[%s238 + $0x3f8] sm:$0xff]
        %v418 = vld [vmem:[%s238 + $0x400] sm:$0xff]
        %v419 = vld [vmem:[%s238 + $0x408] sm:$0xff]
        %v420 = vld [vmem:[%s238 + $0x410] sm:$0xff]
        %v421 = vld [vmem:[%s238 + $0x418] sm:$0xff]
        %v422 = vld [vmem:[%s238 + $0x420] sm:$0xff]
        %v423 = vld [vmem:[%s238 + $0x428] sm:$0xff]
        %v424 = vld [vmem:[%s238 + $0x430] sm:$0xff]
        %v425 = vld [vmem:[%s238 + $0x438] sm:$0xff]
        %v426 = vld [vmem:[%s238 + $0x440] sm:$0xff]
        %v427 = vld [vmem:[%s238 + $0x448] sm:$0xff]
        %v428 = vld [vmem:[%s238 + $0x450] sm:$0xff]
        %v429 = vld [vmem:[%s238 + $0x458] sm:$0xff]
        %v430 = vld [vmem:[%s238 + $0x460] sm:$0xff]
        %v431 = vld [vmem:[%s238 + $0x468] sm:$0xff]
        %v432 = vld [vmem:[%s238 + $0x470] sm:$0xff]
        %v433 = vld [vmem:[%s238 + $0x478] sm:$0xff]
        %v434 = vld [vmem:[%s238 + $0x480] sm:$0xff]
        %v435 = vld [vmem:[%s238 + $0x488] sm:$0xff]
        %v436 = vld [vmem:[%s238 + $0x490] sm:$0xff]
        %v437 = vld [vmem:[%s238 + $0x498] sm:$0xff]
        %v438 = vld [vmem:[%s238 + $0x4a0] sm:$0xff]
        %v439 = vld [vmem:[%s238 + $0x4a8] sm:$0xff]
        %v440 = vld [vmem:[%s238 + $0x4b0] sm:$0xff]
        %v441 = vld [vmem:[%s238 + $0x4b8] sm:$0xff]
        %v442 = vld [vmem:[%s238 + $0x4c0] sm:$0xff]
        %v443 = vld [vmem:[%s238 + $0x4c8] sm:$0xff]
        %v444 = vld [vmem:[%s238 + $0x4d0] sm:$0xff]
        %v445 = vld [vmem:[%s238 + $0x4d8] sm:$0xff]
        %v446 = vld [vmem:[%s238 + $0x4e0] sm:$0xff]
        %v447 = vld [vmem:[%s238 + $0x4e8] sm:$0xff]
        %v448 = vld [vmem:[%s238 + $0x4f0] sm:$0xff]
        %v449 = vld [vmem:[%s238 + $0x4f8] sm:$0xff]
        %v450 = vld [vmem:[%s238 + $0x500] sm:$0xff]
        %v451 = vld [vmem:[%s238 + $0x508] sm:$0xff]
        %v452 = vld [vmem:[%s238 + $0x510] sm:$0xff]
        %v453 = vld [vmem:[%s238 + $0x518] sm:$0xff]
        %v454 = vld [vmem:[%s238 + $0x520] sm:$0xff]
        %v455 = vld [vmem:[%s238 + $0x528] sm:$0xff]
        %v456 = vld [vmem:[%s238 + $0x530] sm:$0xff]
        %v457 = vld [vmem:[%s238 + $0x538] sm:$0xff]
        %v458 = vld [vmem:[%s238 + $0x540] sm:$0xff]
        %v459 = vld [vmem:[%s238 + $0x548] sm:$0xff]
        %v460 = vld [vmem:[%s238 + $0x550] sm:$0xff]
        %v461 = vld [vmem:[%s238 + $0x558] sm:$0xff]
        %v462 = vld [vmem:[%s238 + $0x560] sm:$0xff]
        %v463 = vld [vmem:[%s238 + $0x568] sm:$0xff]
        %v464 = vld [vmem:[%s238 + $0x570] sm:$0xff]
        %v465 = vld [vmem:[%s238 + $0x578] sm:$0xff]
        %v466 = vld [vmem:[%s238 + $0x580] sm:$0xff]
        %v467 = vld [vmem:[%s238 + $0x588] sm:$0xff]
        %v468 = vld [vmem:[%s238 + $0x590] sm:$0xff]
        %v469 = vld [vmem:[%s238 + $0x598] sm:$0xff]
        %v470 = vld [vmem:[%s238 + $0x5a0] sm:$0xff]
        %v471 = vld [vmem:[%s238 + $0x5a8] sm:$0xff]
        %v472 = vld [vmem:[%s238 + $0x5b0] sm:$0xff]
        %v473 = vld [vmem:[%s238 + $0x5b8] sm:$0xff]
        %v474 = vld [vmem:[%s238 + $0x5c0] sm:$0xff]
        %v475 = vld [vmem:[%s238 + $0x5c8] sm:$0xff]
        %v476 = vld [vmem:[%s238 + $0x5d0] sm:$0xff]
        %v477 = vld [vmem:[%s238 + $0x5d8] sm:$0xff]
        %v478 = vld [vmem:[%s238 + $0x5e0] sm:$0xff]
        %v479 = vld [vmem:[%s238 + $0x5e8] sm:$0xff]
        %v480 = vld [vmem:[%s238 + $0x5f0] sm:$0xff]
        %v481 = vld [vmem:[%s238 + $0x5f8] sm:$0xff]
        %v482 = vld [vmem:[%s238 + $0x600] sm:$0xff]
        %v483 = vld [vmem:[%s238 + $0x608] sm:$0xff]
        %v484 = vld [vmem:[%s238 + $0x610] sm:$0xff]
        %v485 = vld [vmem:[%s238 + $0x618] sm:$0xff]
        %v486 = vld [vmem:[%s238 + $0x620] sm:$0xff]
        %v487 = vld [vmem:[%s238 + $0x628] sm:$0xff]
        %v488 = vld [vmem:[%s238 + $0x630] sm:$0xff]
        %v489 = vld [vmem:[%s238 + $0x638] sm:$0xff]
        %v490 = vld [vmem:[%s238 + $0x640] sm:$0xff]
        %v491 = vld [vmem:[%s238 + $0x648] sm:$0xff]
        %v492 = vld [vmem:[%s238 + $0x650] sm:$0xff]
        %v493 = vld [vmem:[%s238 + $0x658] sm:$0xff]
        %v494 = vld [vmem:[%s238 + $0x660] sm:$0xff]
        %v495 = vld [vmem:[%s238 + $0x668] sm:$0xff]
        %v496 = vld [vmem:[%s238 + $0x670] sm:$0xff]
        %v497 = vld [vmem:[%s238 + $0x678] sm:$0xff]
        %v498 = vld [vmem:[%s238 + $0x680] sm:$0xff]
        %v499 = vld [vmem:[%s238 + $0x688] sm:$0xff]
        %v500 = vld [vmem:[%s238 + $0x690] sm:$0xff]
        %v501 = vld [vmem:[%s238 + $0x698] sm:$0xff]
        %v502 = vld [vmem:[%s238 + $0x6a0] sm:$0xff]
        %v503 = vld [vmem:[%s238 + $0x6a8] sm:$0xff]
        %v504 = vld [vmem:[%s238 + $0x6b0] sm:$0xff]
        %v505 = vld [vmem:[%s238 + $0x6b8] sm:$0xff]
        %v506 = vld [vmem:[%s238 + $0x6c0] sm:$0xff]
        %v507 = vld [vmem:[%s238 + $0x6c8] sm:$0xff]
        %v508 = vld [vmem:[%s238 + $0x6d0] sm:$0xff]
        %v509 = vld [vmem:[%s238 + $0x6d8] sm:$0xff]
        %v510 = vld [vmem:[%s238 + $0x6e0] sm:$0xff]
        %v511 = vld [vmem:[%s238 + $0x6e8] sm:$0xff]
        %v512 = vld [vmem:[%s238 + $0x6f0] sm:$0xff]
        %v513 = vld [vmem:[%s238 + $0x6f8] sm:$0xff]
        %v514 = vld [vmem:[%s238 + $0x700] sm:$0xff]
        %v515 = vld [vmem:[%s238 + $0x708] sm:$0xff]
        %v516 = vld [vmem:[%s238 + $0x710] sm:$0xff]
        %v517 = vld [vmem:[%s238 + $0x718] sm:$0xff]
        %v518 = vld [vmem:[%s238 + $0x720] sm:$0xff]
        %v519 = vld [vmem:[%s238 + $0x728] sm:$0xff]
        %v520 = vld [vmem:[%s238 + $0x730] sm:$0xff]
        %v521 = vld [vmem:[%s238 + $0x738] sm:$0xff]
        %v522 = vld [vmem:[%s238 + $0x740] sm:$0xff]
        %v523 = vld [vmem:[%s238 + $0x748] sm:$0xff]
        %v524 = vld [vmem:[%s238 + $0x750] sm:$0xff]
        %v525 = vld [vmem:[%s238 + $0x758] sm:$0xff]
        %v526 = vld [vmem:[%s238 + $0x760] sm:$0xff]
        %v527 = vld [vmem:[%s238 + $0x768] sm:$0xff]
        %v528 = vld [vmem:[%s238 + $0x770] sm:$0xff]
        %v529 = vld [vmem:[%s238 + $0x778] sm:$0xff]
        %v530 = vld [vmem:[%s238 + $0x780] sm:$0xff]
        %v531 = vld [vmem:[%s238 + $0x788] sm:$0xff]
        %v532 = vld [vmem:[%s238 + $0x790] sm:$0xff]
        %v533 = vld [vmem:[%s238 + $0x798] sm:$0xff]
        %v534 = vld [vmem:[%s238 + $0x7a0] sm:$0xff]
        %v535 = vld [vmem:[%s238 + $0x7a8] sm:$0xff]
        %v536 = vld [vmem:[%s238 + $0x7b0] sm:$0xff]
        %v537 = vld [vmem:[%s238 + $0x7b8] sm:$0xff]
        %v538 = vld [vmem:[%s238 + $0x7c0] sm:$0xff]
        %v539 = vld [vmem:[%s238 + $0x7c8] sm:$0xff]
        %v540 = vld [vmem:[%s238 + $0x7d0] sm:$0xff]
        %v541 = vld [vmem:[%s238 + $0x7d8] sm:$0xff]
        %v542 = vld [vmem:[%s238 + $0x7e0] sm:$0xff]
        %v543 = vld [vmem:[%s238 + $0x7e8] sm:$0xff]
        %v544 = vld [vmem:[%s238 + $0x7f0] sm:$0xff]
        %v545 = vld [vmem:[%s238 + $0x7f8] sm:$0xff]
        %v546 = vld [vmem:[%s238 + $0x800] sm:$0xff]
        %v547 = vld [vmem:[%s238 + $0x808] sm:$0xff]
        %v548 = vld [vmem:[%s238 + $0x810] sm:$0xff]
        %v549 = vld [vmem:[%s238 + $0x818] sm:$0xff]
        %v550 = vld [vmem:[%s238 + $0x820] sm:$0xff]
        %v551 = vld [vmem:[%s238 + $0x828] sm:$0xff]
        %v552 = vld [vmem:[%s238 + $0x830] sm:$0xff]
        %v553 = vld [vmem:[%s238 + $0x838] sm:$0xff]
        %v554 = vld [vmem:[%s238 + $0x840] sm:$0xff]
        %v555 = vld [vmem:[%s238 + $0x848] sm:$0xff]
        %v556 = vld [vmem:[%s238 + $0x850] sm:$0xff]
        %v557 = vld [vmem:[%s238 + $0x858] sm:$0xff]
        %v558 = vld [vmem:[%s238 + $0x860] sm:$0xff]
        %v559 = vld [vmem:[%s238 + $0x868] sm:$0xff]
        %v560 = vld [vmem:[%s238 + $0x870] sm:$0xff]
        %v561 = vld [vmem:[%s238 + $0x878] sm:$0xff]
        %v562 = vld [vmem:[%s238 + $0x880] sm:$0xff]
        %v563 = vld [vmem:[%s238 + $0x888] sm:$0xff]
        %v564 = vld [vmem:[%s238 + $0x890] sm:$0xff]
        %v565 = vld [vmem:[%s238 + $0x898] sm:$0xff]
        %v566 = vld [vmem:[%s238 + $0x8a0] sm:$0xff]
        %v567 = vld [vmem:[%s238 + $0x8a8] sm:$0xff]
        %v568 = vld [vmem:[%s238 + $0x8b0] sm:$0xff]
        %v569 = vld [vmem:[%s238 + $0x8b8] sm:$0xff]
        %v570 = vld [vmem:[%s238 + $0x8c0] sm:$0xff]
        %v571 = vld [vmem:[%s238 + $0x8c8] sm:$0xff]
        %v572 = vld [vmem:[%s238 + $0x8d0] sm:$0xff]
        %v573 = vld [vmem:[%s238 + $0x8d8] sm:$0xff]
        %v574 = vld [vmem:[%s238 + $0x8e0] sm:$0xff]
        %v575 = vld [vmem:[%s238 + $0x8e8] sm:$0xff]
        %v576 = vld [vmem:[%s238 + $0x8f0] sm:$0xff]
        %v577 = vld [vmem:[%s238 + $0x8f8] sm:$0xff]
        %v578 = vld [vmem:[%s238 + $0x900] sm:$0xff]
        %v579 = vld [vmem:[%s238 + $0x908] sm:$0xff]
        %v580 = vld [vmem:[%s238 + $0x910] sm:$0xff]
        %v581 = vld [vmem:[%s238 + $0x918] sm:$0xff]
        %v582 = vld [vmem:[%s238 + $0x920] sm:$0xff]
        %v583 = vld [vmem:[%s238 + $0x928] sm:$0xff]
        %v584 = vld [vmem:[%s238 + $0x930] sm:$0xff]
        %v585 = vld [vmem:[%s238 + $0x938] sm:$0xff]
        %v586 = vld [vmem:[%s238 + $0x940] sm:$0xff]
        %v587 = vld [vmem:[%s238 + $0x948] sm:$0xff]
        %v588 = vld [vmem:[%s238 + $0x950] sm:$0xff]
        %v589 = vld [vmem:[%s238 + $0x958] sm:$0xff]
        %v590 = vld [vmem:[%s238 + $0x960] sm:$0xff]
        %v591 = vld [vmem:[%s238 + $0x968] sm:$0xff]
        %v592 = vld [vmem:[%s238 + $0x970] sm:$0xff]
        %v593 = vld [vmem:[%s238 + $0x978] sm:$0xff]
        %v594 = vld [vmem:[%s238 + $0x980] sm:$0xff]
        %v595 = vld [vmem:[%s238 + $0x988] sm:$0xff]
        %v596 = vld [vmem:[%s238 + $0x990] sm:$0xff]
        %v597 = vld [vmem:[%s238 + $0x998] sm:$0xff]
        %v598 = vld [vmem:[%s238 + $0x9a0] sm:$0xff]
        %v599 = vld [vmem:[%s238 + $0x9a8] sm:$0xff]
        %v600 = vld [vmem:[%s238 + $0x9b0] sm:$0xff]
        %v601 = vld [vmem:[%s238 + $0x9b8] sm:$0xff]
        %v602 = vld [vmem:[%s238 + $0x9c0] sm:$0xff]
        %v603 = vld [vmem:[%s238 + $0x9c8] sm:$0xff]
        %v604 = vld [vmem:[%s238 + $0x9d0] sm:$0xff]
        %v605 = vld [vmem:[%s238 + $0x9d8] sm:$0xff]
        %v606 = vld [vmem:[%s238 + $0x9e0] sm:$0xff]
        %v607 = vld [vmem:[%s238 + $0x9e8] sm:$0xff]
        %v608 = vld [vmem:[%s238 + $0x9f0] sm:$0xff]
        %v609 = vld [vmem:[%s238 + $0x9f8] sm:$0xff]
        %v610 = vld [vmem:[%s238 + $0xa00] sm:$0xff]
        %v611 = vld [vmem:[%s238 + $0xa08] sm:$0xff]
        %v612 = vld [vmem:[%s238 + $0xa10] sm:$0xff]
        %v613 = vld [vmem:[%s238 + $0xa18] sm:$0xff]
        %v614 = vld [vmem:[%s238 + $0xa20] sm:$0xff]
        %v615 = vld [vmem:[%s238 + $0xa28] sm:$0xff]
        %v616 = vld [vmem:[%s238 + $0xa30] sm:$0xff]
        %v617 = vld [vmem:[%s238 + $0xa38] sm:$0xff]
        %v618 = vld [vmem:[%s238 + $0xa40] sm:$0xff]
        %v619 = vld [vmem:[%s238 + $0xa48] sm:$0xff]
        %v620 = vld [vmem:[%s238 + $0xa50] sm:$0xff]
        %v621 = vld [vmem:[%s238 + $0xa58] sm:$0xff]
        %v622 = vld [vmem:[%s238 + $0xa60] sm:$0xff]
        %v623 = vld [vmem:[%s238 + $0xa68] sm:$0xff]
        %v624 = vld [vmem:[%s238 + $0xa70] sm:$0xff]
        %v625 = vld [vmem:[%s238 + $0xa78] sm:$0xff]
        %v626 = vld [vmem:[%s238 + $0xa80] sm:$0xff]
        %v627 = vld [vmem:[%s238 + $0xa88] sm:$0xff]
        %v628 = vld [vmem:[%s238 + $0xa90] sm:$0xff]
        %v629 = vld [vmem:[%s238 + $0xa98] sm:$0xff]
        %v630 = vld [vmem:[%s238 + $0xaa0] sm:$0xff]
        %v631 = vld [vmem:[%s238 + $0xaa8] sm:$0xff]
        %v632 = vld [vmem:[%s238 + $0xab0] sm:$0xff]
        %v633 = vld [vmem:[%s238 + $0xab8] sm:$0xff]
        %v634 = vld [vmem:[%s238 + $0xac0] sm:$0xff]
        %v635 = vld [vmem:[%s238 + $0xac8] sm:$0xff]
        %v636 = vld [vmem:[%s238 + $0xad0] sm:$0xff]
        %v637 = vld [vmem:[%s238 + $0xad8] sm:$0xff]
        %v638 = vld [vmem:[%s238 + $0xae0] sm:$0xff]
        %v639 = vld [vmem:[%s238 + $0xae8] sm:$0xff]
        %v640 = vld [vmem:[%s238 + $0xaf0] sm:$0xff]
        %v641 = vld [vmem:[%s238 + $0xaf8] sm:$0xff]
        %v642 = vld [vmem:[%s238 + $0xb00] sm:$0xff]
        %v643 = vld [vmem:[%s238 + $0xb08] sm:$0xff]
        %v644 = vld [vmem:[%s238 + $0xb10] sm:$0xff]
        %v645 = vld [vmem:[%s238 + $0xb18] sm:$0xff]
        %v646 = vld [vmem:[%s238 + $0xb20] sm:$0xff]
        %v647 = vld [vmem:[%s238 + $0xb28] sm:$0xff]
        %v648 = vld [vmem:[%s238 + $0xb30] sm:$0xff]
        %v649 = vld [vmem:[%s238 + $0xb38] sm:$0xff]
        %v650 = vld [vmem:[%s238 + $0xb40] sm:$0xff]
        %v651 = vld [vmem:[%s238 + $0xb48] sm:$0xff]
        %v652 = vld [vmem:[%s238 + $0xb50] sm:$0xff]
        %v653 = vld [vmem:[%s238 + $0xb58] sm:$0xff]
        %v654 = vld [vmem:[%s238 + $0xb60] sm:$0xff]
        %v655 = vld [vmem:[%s238 + $0xb68] sm:$0xff]
        %v656 = vld [vmem:[%s238 + $0xb70] sm:$0xff]
        %v657 = vld [vmem:[%s238 + $0xb78] sm:$0xff]
        %v658 = vld [vmem:[%s238 + $0xb80] sm:$0xff]
        %v659 = vld [vmem:[%s238 + $0xb88] sm:$0xff]
        %v660 = vld [vmem:[%s238 + $0xb90] sm:$0xff]
        %v661 = vld [vmem:[%s238 + $0xb98] sm:$0xff]
        %v662 = vld [vmem:[%s238 + $0xba0] sm:$0xff]
        %v663 = vld [vmem:[%s238 + $0xba8] sm:$0xff]
        %v664 = vld [vmem:[%s238 + $0xbb0] sm:$0xff]
        %v665 = vld [vmem:[%s238 + $0xbb8] sm:$0xff]
        %v666 = vld [vmem:[%s238 + $0xbc0] sm:$0xff]
        %v667 = vld [vmem:[%s238 + $0xbc8] sm:$0xff]
        %v668 = vld [vmem:[%s238 + $0xbd0] sm:$0xff]
        %v669 = vld [vmem:[%s238 + $0xbd8] sm:$0xff]
        %v670 = vld [vmem:[%s238 + $0xbe0] sm:$0xff]
        %v671 = vld [vmem:[%s238 + $0xbe8] sm:$0xff]
        %v672 = vld [vmem:[%s238 + $0xbf0] sm:$0xff]
        %v673 = vld [vmem:[%s238 + $0xbf8] sm:$0xff]
        %v674 = vld [vmem:[%s238 + $0xc00] sm:$0xff]
        %v675 = vld [vmem:[%s238 + $0xc08] sm:$0xff]
        %v676 = vld [vmem:[%s238 + $0xc10] sm:$0xff]
        %v677 = vld [vmem:[%s238 + $0xc18] sm:$0xff]
        %v678 = vld [vmem:[%s238 + $0xc20] sm:$0xff]
        %v679 = vld [vmem:[%s238 + $0xc28] sm:$0xff]
        %v680 = vld [vmem:[%s238 + $0xc30] sm:$0xff]
        %v681 = vld [vmem:[%s238 + $0xc38] sm:$0xff]
        %v682 = vld [vmem:[%s238 + $0xc40] sm:$0xff]
        %v683 = vld [vmem:[%s238 + $0xc48] sm:$0xff]
        %v684 = vld [vmem:[%s238 + $0xc50] sm:$0xff]
        %v685 = vld [vmem:[%s238 + $0xc58] sm:$0xff]
        %v686 = vld [vmem:[%s238 + $0xc60] sm:$0xff]
        %v687 = vld [vmem:[%s238 + $0xc68] sm:$0xff]
        %v688 = vld [vmem:[%s238 + $0xc70] sm:$0xff]
        %v689 = vld [vmem:[%s238 + $0xc78] sm:$0xff]
        %v690 = vld [vmem:[%s238 + $0xc80] sm:$0xff]
        %v691 = vld [vmem:[%s238 + $0xc88] sm:$0xff]
        %v692 = vld [vmem:[%s238 + $0xc90] sm:$0xff]
        %v693 = vld [vmem:[%s238 + $0xc98] sm:$0xff]
        %v694 = vld [vmem:[%s238 + $0xca0] sm:$0xff]
        %v695 = vld [vmem:[%s238 + $0xca8] sm:$0xff]
        %v696 = vld [vmem:[%s238 + $0xcb0] sm:$0xff]
        %v697 = vld [vmem:[%s238 + $0xcb8] sm:$0xff]
        %v698 = vld [vmem:[%s238 + $0xcc0] sm:$0xff]
        %v699 = vld [vmem:[%s238 + $0xcc8] sm:$0xff]
        %v700 = vld [vmem:[%s238 + $0xcd0] sm:$0xff]
        %v701 = vld [vmem:[%s238 + $0xcd8] sm:$0xff]
        %v702 = vld [vmem:[%s238 + $0xce0] sm:$0xff]
        %v703 = vld [vmem:[%s238 + $0xce8] sm:$0xff]
        %v704 = vld [vmem:[%s238 + $0xcf0] sm:$0xff]
        %v705 = vld [vmem:[%s238 + $0xcf8] sm:$0xff]
        %v706 = vld [vmem:[%s238 + $0xd00] sm:$0xff]
        %v707 = vld [vmem:[%s238 + $0xd08] sm:$0xff]
        %v708 = vld [vmem:[%s238 + $0xd10] sm:$0xff]
        %v709 = vld [vmem:[%s238 + $0xd18] sm:$0xff]
        %v710 = vld [vmem:[%s238 + $0xd20] sm:$0xff]
        %v711 = vld [vmem:[%s238 + $0xd28] sm:$0xff]
        %v712 = vld [vmem:[%s238 + $0xd30] sm:$0xff]
        %v713 = vld [vmem:[%s238 + $0xd38] sm:$0xff]
        %v714 = vld [vmem:[%s238 + $0xd40] sm:$0xff]
        %v715 = vld [vmem:[%s238 + $0xd48] sm:$0xff]
        %v716 = vld [vmem:[%s238 + $0xd50] sm:$0xff]
        %v717 = vld [vmem:[%s238 + $0xd58] sm:$0xff]
        %v718 = vld [vmem:[%s238 + $0xd60] sm:$0xff]
        %v719 = vld [vmem:[%s238 + $0xd68] sm:$0xff]
        %v720 = vld [vmem:[%s238 + $0xd70] sm:$0xff]
        %v721 = vld [vmem:[%s238 + $0xd78] sm:$0xff]
        %v722 = vld [vmem:[%s238 + $0xd80] sm:$0xff]
        %v723 = vld [vmem:[%s238 + $0xd88] sm:$0xff]
        %v724 = vld [vmem:[%s238 + $0xd90] sm:$0xff]
        %v725 = vld [vmem:[%s238 + $0xd98] sm:$0xff]
        %v726 = vld [vmem:[%s238 + $0xda0] sm:$0xff]
        %v727 = vld [vmem:[%s238 + $0xda8] sm:$0xff]
        %v728 = vld [vmem:[%s238 + $0xdb0] sm:$0xff]
        %v729 = vld [vmem:[%s238 + $0xdb8] sm:$0xff]
        %v730 = vld [vmem:[%s238 + $0xdc0] sm:$0xff]
        %v731 = vld [vmem:[%s238 + $0xdc8] sm:$0xff]
        %v732 = vld [vmem:[%s238 + $0xdd0] sm:$0xff]
        %v733 = vld [vmem:[%s238 + $0xdd8] sm:$0xff]
        %v734 = vld [vmem:[%s238 + $0xde0] sm:$0xff]
        %v735 = vld [vmem:[%s238 + $0xde8] sm:$0xff]
        %v736 = vld [vmem:[%s238 + $0xdf0] sm:$0xff]
        %v737 = vld [vmem:[%s238 + $0xdf8] sm:$0xff]
        %v738 = vld [vmem:[%s238 + $0xe00] sm:$0xff]
        %v739 = vld [vmem:[%s238 + $0xe08] sm:$0xff]
        %v740 = vld [vmem:[%s238 + $0xe10] sm:$0xff]
        %v741 = vld [vmem:[%s238 + $0xe18] sm:$0xff]
        %v742 = vld [vmem:[%s238 + $0xe20] sm:$0xff]
        %v743 = vld [vmem:[%s238 + $0xe28] sm:$0xff]
        %v744 = vld [vmem:[%s238 + $0xe30] sm:$0xff]
        %v745 = vld [vmem:[%s238 + $0xe38] sm:$0xff]
        %v746 = vld [vmem:[%s238 + $0xe40] sm:$0xff]
        %v747 = vld [vmem:[%s238 + $0xe48] sm:$0xff]
        %v748 = vld [vmem:[%s238 + $0xe50] sm:$0xff]
        %v749 = vld [vmem:[%s238 + $0xe58] sm:$0xff]
        %v750 = vld [vmem:[%s238 + $0xe60] sm:$0xff]
        %v751 = vld [vmem:[%s238 + $0xe68] sm:$0xff]
        %v752 = vld [vmem:[%s238 + $0xe70] sm:$0xff]
        %v753 = vld [vmem:[%s238 + $0xe78] sm:$0xff]
        %v754 = vld [vmem:[%s238 + $0xe80] sm:$0xff]
        %v755 = vld [vmem:[%s238 + $0xe88] sm:$0xff]
        %v756 = vld [vmem:[%s238 + $0xe90] sm:$0xff]
        %v757 = vld [vmem:[%s238 + $0xe98] sm:$0xff]
        %v758 = vld [vmem:[%s238 + $0xea0] sm:$0xff]
        %v759 = vld [vmem:[%s238 + $0xea8] sm:$0xff]
        %v760 = vld [vmem:[%s238 + $0xeb0] sm:$0xff]
        %v761 = vld [vmem:[%s238 + $0xeb8] sm:$0xff]
        %v762 = vld [vmem:[%s238 + $0xec0] sm:$0xff]
        %v763 = vld [vmem:[%s238 + $0xec8] sm:$0xff]
        %v764 = vld [vmem:[%s238 + $0xed0] sm:$0xff]
        %v765 = vld [vmem:[%s238 + $0xed8] sm:$0xff]
        %v766 = vld [vmem:[%s238 + $0xee0] sm:$0xff]
        %v767 = vld [vmem:[%s238 + $0xee8] sm:$0xff]
        %v768 = vld [vmem:[%s238 + $0xef0] sm:$0xff]
        %v769 = vld [vmem:[%s238 + $0xef8] sm:$0xff]
        %v770 = vld [vmem:[%s238 + $0xf00] sm:$0xff]
        %v771 = vld [vmem:[%s238 + $0xf08] sm:$0xff]
        %v772 = vld [vmem:[%s238 + $0xf10] sm:$0xff]
        %v773 = vld [vmem:[%s238 + $0xf18] sm:$0xff]
        %v774 = vld [vmem:[%s238 + $0xf20] sm:$0xff]
        %v775 = vld [vmem:[%s238 + $0xf28] sm:$0xff]
        %v776 = vld [vmem:[%s238 + $0xf30] sm:$0xff]
        %v777 = vld [vmem:[%s238 + $0xf38] sm:$0xff]
        %v778 = vld [vmem:[%s238 + $0xf40] sm:$0xff]
        %v779 = vld [vmem:[%s238 + $0xf48] sm:$0xff]
        %v780 = vld [vmem:[%s238 + $0xf50] sm:$0xff]
        %v781 = vld [vmem:[%s238 + $0xf58] sm:$0xff]
        %v782 = vld [vmem:[%s238 + $0xf60] sm:$0xff]
        %v783 = vld [vmem:[%s238 + $0xf68] sm:$0xff]
        %v784 = vld [vmem:[%s238 + $0xf70] sm:$0xff]
        %v785 = vld [vmem:[%s238 + $0xf78] sm:$0xff]
        %v786 = vld [vmem:[%s238 + $0xf80] sm:$0xff]
        %v787 = vld [vmem:[%s238 + $0xf88] sm:$0xff]
        %v788 = vld [vmem:[%s238 + $0xf90] sm:$0xff]
        %v789 = vld [vmem:[%s238 + $0xf98] sm:$0xff]
        %v790 = vld [vmem:[%s238 + $0xfa0] sm:$0xff]
        %v791 = vld [vmem:[%s238 + $0xfa8] sm:$0xff]
        %v792 = vld [vmem:[%s238 + $0xfb0] sm:$0xff]
        %v793 = vld [vmem:[%s238 + $0xfb8] sm:$0xff]
        %v794 = vld [vmem:[%s238 + $0xfc0] sm:$0xff]
        %v795 = vld [vmem:[%s238 + $0xfc8] sm:$0xff]
        %v796 = vld [vmem:[%s238 + $0xfd0] sm:$0xff]
        %v797 = vld [vmem:[%s238 + $0xfd8] sm:$0xff]
        %v798 = vld [vmem:[%s238 + $0xfe0] sm:$0xff]
        %v799 = vld [vmem:[%s238 + $0xfe8] sm:$0xff]
        %v800 = vld [vmem:[%s238 + $0xff0] sm:$0xff]
        %v801 = vld [vmem:[%s238 + $0xff8] sm:$0xff]
        %v802 = vld [vmem:[%s238 + $0x1000] sm:$0xff]
        %v803 = vld [vmem:[%s238 + $0x1008] sm:$0xff]
        %v804 = vld [vmem:[%s238 + $0x1010] sm:$0xff]
        %v805 = vld [vmem:[%s238 + $0x1018] sm:$0xff]
        %v806 = vld [vmem:[%s238 + $0x1020] sm:$0xff]
        %v807 = vld [vmem:[%s238 + $0x1028] sm:$0xff]
        %v808 = vld [vmem:[%s238 + $0x1030] sm:$0xff]
        %v809 = vld [vmem:[%s238 + $0x1038] sm:$0xff]
        %v810 = vld [vmem:[%s238 + $0x1040] sm:$0xff]
        %v811 = vld [vmem:[%s238 + $0x1048] sm:$0xff]
        %v812 = vld [vmem:[%s238 + $0x1050] sm:$0xff]
        %v813 = vld [vmem:[%s238 + $0x1058] sm:$0xff]
        %v814 = vld [vmem:[%s238 + $0x1060] sm:$0xff]
        %v815 = vld [vmem:[%s238 + $0x1068] sm:$0xff]
        %v816 = vld [vmem:[%s238 + $0x1070] sm:$0xff]
        %v817 = vld [vmem:[%s238 + $0x1078] sm:$0xff]
        %v818 = vld [vmem:[%s238 + $0x1080] sm:$0xff]
        %v819 = vld [vmem:[%s238 + $0x1088] sm:$0xff]
        %v820 = vld [vmem:[%s238 + $0x1090] sm:$0xff]
        %v821 = vld [vmem:[%s238 + $0x1098] sm:$0xff]
        %v822 = vld [vmem:[%s238 + $0x10a0] sm:$0xff]
        %v823 = vld [vmem:[%s238 + $0x10a8] sm:$0xff]
        %v824 = vld [vmem:[%s238 + $0x10b0] sm:$0xff]
        %v825 = vld [vmem:[%s238 + $0x10b8] sm:$0xff]
        %v826 = vld [vmem:[%s238 + $0x10c0] sm:$0xff]
        %v827 = vld [vmem:[%s238 + $0x10c8] sm:$0xff]
        %v828 = vld [vmem:[%s238 + $0x10d0] sm:$0xff]
        %v829 = vld [vmem:[%s238 + $0x10d8] sm:$0xff]
        %v830 = vld [vmem:[%s238 + $0x10e0] sm:$0xff]
        %v831 = vld [vmem:[%s238 + $0x10e8] sm:$0xff]
        %v832 = vld [vmem:[%s238 + $0x10f0] sm:$0xff]
        %v833 = vld [vmem:[%s238 + $0x10f8] sm:$0xff]
        %v834 = vld [vmem:[%s238 + $0x1100] sm:$0xff]
        %v835 = vld [vmem:[%s238 + $0x1108] sm:$0xff]
        %v836 = vld [vmem:[%s238 + $0x1110] sm:$0xff]
        %v837 = vld [vmem:[%s238 + $0x1118] sm:$0xff]
        %v838 = vld [vmem:[%s238 + $0x1120] sm:$0xff]
        %v839 = vld [vmem:[%s238 + $0x1128] sm:$0xff]
        %v840 = vld [vmem:[%s238 + $0x1130] sm:$0xff]
        %v841 = vld [vmem:[%s238 + $0x1138] sm:$0xff]
        %v842 = vld [vmem:[%s238 + $0x1140] sm:$0xff]
        %v843 = vld [vmem:[%s238 + $0x1148] sm:$0xff]
        %v844 = vld [vmem:[%s238 + $0x1150] sm:$0xff]
        %v845 = vld [vmem:[%s238 + $0x1158] sm:$0xff]
        %v846 = vld [vmem:[%s238 + $0x1160] sm:$0xff]
        %v847 = vld [vmem:[%s238 + $0x1168] sm:$0xff]
        %v848 = vld [vmem:[%s238 + $0x1170] sm:$0xff]
        %v849 = vld [vmem:[%s238 + $0x1178] sm:$0xff]
        %v850 = vld [vmem:[%s238 + $0x1180] sm:$0xff]
        %v851 = vld [vmem:[%s238 + $0x1188] sm:$0xff]
        %v852 = vld [vmem:[%s238 + $0x1190] sm:$0xff]
        %v853 = vld [vmem:[%s238 + $0x1198] sm:$0xff]
        %v854 = vld [vmem:[%s238 + $0x11a0] sm:$0xff]
        %v855 = vld [vmem:[%s238 + $0x11a8] sm:$0xff]
        %v856 = vld [vmem:[%s238 + $0x11b0] sm:$0xff]
        %v857 = vld [vmem:[%s238 + $0x11b8] sm:$0xff]
        %v858 = vld [vmem:[%s238 + $0x11c0] sm:$0xff]
        %v859 = vld [vmem:[%s238 + $0x11c8] sm:$0xff]
        %v860 = vld [vmem:[%s238 + $0x11d0] sm:$0xff]
        %v861 = vld [vmem:[%s238 + $0x11d8] sm:$0xff]
        %v862 = vld [vmem:[%s238 + $0x11e0] sm:$0xff]
        %v863 = vld [vmem:[%s238 + $0x11e8] sm:$0xff]
        %v864 = vld [vmem:[%s238 + $0x11f0] sm:$0xff]
        %v865 = vld [vmem:[%s238 + $0x11f8] sm:$0xff]
        %v866 = vld [vmem:[%s238 + $0x1200] sm:$0xff]
        %v867 = vld [vmem:[%s238 + $0x1208] sm:$0xff]
        %v868 = vld [vmem:[%s238 + $0x1210] sm:$0xff]
        %v869 = vld [vmem:[%s238 + $0x1218] sm:$0xff]
        %v870 = vld [vmem:[%s238 + $0x1220] sm:$0xff]
        %v871 = vld [vmem:[%s238 + $0x1228] sm:$0xff]
        %v872 = vld [vmem:[%s238 + $0x1230] sm:$0xff]
        %v873 = vld [vmem:[%s238 + $0x1238] sm:$0xff]
        %v874 = vld [vmem:[%s238 + $0x1240] sm:$0xff]
        %v875 = vld [vmem:[%s238 + $0x1248] sm:$0xff]
        %v876 = vld [vmem:[%s238 + $0x1250] sm:$0xff]
        %v877 = vld [vmem:[%s238 + $0x1258] sm:$0xff]
        %v878 = vld [vmem:[%s238 + $0x1260] sm:$0xff]
        %v879 = vld [vmem:[%s238 + $0x1268] sm:$0xff]
        %v880 = vld [vmem:[%s238 + $0x1270] sm:$0xff]
        %v881 = vld [vmem:[%s238 + $0x1278] sm:$0xff]
        %v882 = vld [vmem:[%s238 + $0x1280] sm:$0xff]
        %v883 = vld [vmem:[%s238 + $0x1288] sm:$0xff]
        %v884 = vld [vmem:[%s238 + $0x1290] sm:$0xff]
        %v885 = vld [vmem:[%s238 + $0x1298] sm:$0xff]
        %v886 = vld [vmem:[%s238 + $0x12a0] sm:$0xff]
        %v887 = vld [vmem:[%s238 + $0x12a8] sm:$0xff]
        %v888 = vld [vmem:[%s238 + $0x12b0] sm:$0xff]
        %v889 = vld [vmem:[%s238 + $0x12b8] sm:$0xff]
        %v890 = vld [vmem:[%s238 + $0x12c0] sm:$0xff]
        %v891 = vld [vmem:[%s238 + $0x12c8] sm:$0xff]
        %v892 = vld [vmem:[%s238 + $0x12d0] sm:$0xff]
        %v893 = vld [vmem:[%s238 + $0x12d8] sm:$0xff]
        %v894 = vld [vmem:[%s238 + $0x12e0] sm:$0xff]
        %v895 = vld [vmem:[%s238 + $0x12e8] sm:$0xff]
        %v896 = vld [vmem:[%s238 + $0x12f0] sm:$0xff]
        %v897 = vld [vmem:[%s238 + $0x12f8] sm:$0xff]
        %v898 = vld [vmem:[%s238 + $0x1300] sm:$0xff]
        %v899 = vld [vmem:[%s238 + $0x1308] sm:$0xff]
        %v900 = vld [vmem:[%s238 + $0x1310] sm:$0xff]
        %v901 = vld [vmem:[%s238 + $0x1318] sm:$0xff]
        %v902 = vld [vmem:[%s238 + $0x1320] sm:$0xff]
        %v903 = vld [vmem:[%s238 + $0x1328] sm:$0xff]
        %v904 = vld [vmem:[%s238 + $0x1330] sm:$0xff]
        %v905 = vld [vmem:[%s238 + $0x1338] sm:$0xff]
        %v906 = vld [vmem:[%s238 + $0x1340] sm:$0xff]
        %v907 = vld [vmem:[%s238 + $0x1348] sm:$0xff]
        %v908 = vld [vmem:[%s238 + $0x1350] sm:$0xff]
        %v909 = vld [vmem:[%s238 + $0x1358] sm:$0xff]
        %v910 = vld [vmem:[%s238 + $0x1360] sm:$0xff]
        %v911 = vld [vmem:[%s238 + $0x1368] sm:$0xff]
        %v912 = vld [vmem:[%s238 + $0x1370] sm:$0xff]
        %v913 = vld [vmem:[%s238 + $0x1378] sm:$0xff]
        %v914 = vld [vmem:[%s238 + $0x1380] sm:$0xff]
        %v915 = vld [vmem:[%s238 + $0x1388] sm:$0xff]
        %v916 = vld [vmem:[%s238 + $0x1390] sm:$0xff]
        %v917 = vld [vmem:[%s238 + $0x1398] sm:$0xff]
        %v918 = vld [vmem:[%s238 + $0x13a0] sm:$0xff]
        %v919 = vld [vmem:[%s238 + $0x13a8] sm:$0xff]
        %v920 = vld [vmem:[%s238 + $0x13b0] sm:$0xff]
        %v921 = vld [vmem:[%s238 + $0x13b8] sm:$0xff]
        %v922 = vld [vmem:[%s238 + $0x13c0] sm:$0xff]
        %v923 = vld [vmem:[%s238 + $0x13c8] sm:$0xff]
        %v924 = vld [vmem:[%s238 + $0x13d0] sm:$0xff]
        %v925 = vld [vmem:[%s238 + $0x13d8] sm:$0xff]
        %v926 = vld [vmem:[%s238 + $0x13e0] sm:$0xff]
        %v927 = vld [vmem:[%s238 + $0x13e8] sm:$0xff]
        %v928 = vld [vmem:[%s238 + $0x13f0] sm:$0xff]
        %v929 = vld [vmem:[%s238 + $0x13f8] sm:$0xff]
        %v930 = vld [vmem:[%s238 + $0x1400] sm:$0xff]
        %v931 = vld [vmem:[%s238 + $0x1408] sm:$0xff]
        %v932 = vld [vmem:[%s238 + $0x1410] sm:$0xff]
        %v933 = vld [vmem:[%s238 + $0x1418] sm:$0xff]
        %v934 = vld [vmem:[%s238 + $0x1420] sm:$0xff]
        %v935 = vld [vmem:[%s238 + $0x1428] sm:$0xff]
        %v936 = vld [vmem:[%s238 + $0x1430] sm:$0xff]
        %v937 = vld [vmem:[%s238 + $0x1438] sm:$0xff]
        %v938 = vld [vmem:[%s238 + $0x1440] sm:$0xff]
        %v939 = vld [vmem:[%s238 + $0x1448] sm:$0xff]
        %v940 = vld [vmem:[%s238 + $0x1450] sm:$0xff]
        %v941 = vld [vmem:[%s238 + $0x1458] sm:$0xff]
        %v942 = vld [vmem:[%s238 + $0x1460] sm:$0xff]
        %v943 = vld [vmem:[%s238 + $0x1468] sm:$0xff]
        %v944 = vld [vmem:[%s238 + $0x1470] sm:$0xff]
        %v945 = vld [vmem:[%s238 + $0x1478] sm:$0xff]
        %v946 = vld [vmem:[%s238 + $0x1480] sm:$0xff]
        %v947 = vld [vmem:[%s238 + $0x1488] sm:$0xff]
        %v948 = vld [vmem:[%s238 + $0x1490] sm:$0xff]
        %v949 = vld [vmem:[%s238 + $0x1498] sm:$0xff]
        %v950 = vld [vmem:[%s238 + $0x14a0] sm:$0xff]
        %v951 = vld [vmem:[%s238 + $0x14a8] sm:$0xff]
        %v952 = vld [vmem:[%s238 + $0x14b0] sm:$0xff]
        %v953 = vld [vmem:[%s238 + $0x14b8] sm:$0xff]
        %v954 = vld [vmem:[%s238 + $0x14c0] sm:$0xff]
        %v955 = vld [vmem:[%s238 + $0x14c8] sm:$0xff]
        %v956 = vld [vmem:[%s238 + $0x14d0] sm:$0xff]
        %v957 = vld [vmem:[%s238 + $0x14d8] sm:$0xff]
        %v958 = vld [vmem:[%s238 + $0x14e0] sm:$0xff]
        %v959 = vld [vmem:[%s238 + $0x14e8] sm:$0xff]
        %v960 = vld [vmem:[%s238 + $0x14f0] sm:$0xff]
        %v961 = vld [vmem:[%s238 + $0x14f8] sm:$0xff]
        %v962 = vld [vmem:[%s238 + $0x1500] sm:$0xff]
        %v963 = vld [vmem:[%s238 + $0x1508] sm:$0xff]
        %v964 = vld [vmem:[%s238 + $0x1510] sm:$0xff]
        %v965 = vld [vmem:[%s238 + $0x1518] sm:$0xff]
        %v966 = vld [vmem:[%s238 + $0x1520] sm:$0xff]
        %v967 = vld [vmem:[%s238 + $0x1528] sm:$0xff]
        %v968 = vld [vmem:[%s238 + $0x1530] sm:$0xff]
        %v969 = vld [vmem:[%s238 + $0x1538] sm:$0xff]
        %v970 = vld [vmem:[%s238 + $0x1540] sm:$0xff]
        %v971 = vld [vmem:[%s238 + $0x1548] sm:$0xff]
        %v972 = vld [vmem:[%s238 + $0x1550] sm:$0xff]
        %v973 = vld [vmem:[%s238 + $0x1558] sm:$0xff]
        %v974 = vld [vmem:[%s238 + $0x1560] sm:$0xff]
        %v975 = vld [vmem:[%s238 + $0x1568] sm:$0xff]
        %v976 = vld [vmem:[%s238 + $0x1570] sm:$0xff]
        %v977 = vld [vmem:[%s238 + $0x1578] sm:$0xff]
        %v978 = vld [vmem:[%s238 + $0x1580] sm:$0xff]
        %v979 = vld [vmem:[%s238 + $0x1588] sm:$0xff]
        %v980 = vld [vmem:[%s238 + $0x1590] sm:$0xff]
        %v981 = vld [vmem:[%s238 + $0x1598] sm:$0xff]
        %v982 = vld [vmem:[%s238 + $0x15a0] sm:$0xff]
        %v983 = vld [vmem:[%s238 + $0x15a8] sm:$0xff]
        %v984 = vld [vmem:[%s238 + $0x15b0] sm:$0xff]
        %v985 = vld [vmem:[%s238 + $0x15b8] sm:$0xff]
        %v986 = vld [vmem:[%s238 + $0x15c0] sm:$0xff]
        %v987 = vld [vmem:[%s238 + $0x15c8] sm:$0xff]
        %v988 = vld [vmem:[%s238 + $0x15d0] sm:$0xff]
        %v989 = vld [vmem:[%s238 + $0x15d8] sm:$0xff]
        %v990 = vld [vmem:[%s238 + $0x15e0] sm:$0xff]
        %v991 = vld [vmem:[%s238 + $0x15e8] sm:$0xff]
        %v992 = vld [vmem:[%s238 + $0x15f0] sm:$0xff]
        %v993 = vld [vmem:[%s238 + $0x15f8] sm:$0xff]
        %v994 = vld [vmem:[%s238 + $0x1600] sm:$0xff]
        %v995 = vld [vmem:[%s238 + $0x1608] sm:$0xff]
        %v996 = vld [vmem:[%s238 + $0x1610] sm:$0xff]
        %v997 = vld [vmem:[%s238 + $0x1618] sm:$0xff]
        %v998 = vld [vmem:[%s238 + $0x1620] sm:$0xff]
        %v999 = vld [vmem:[%s238 + $0x1628] sm:$0xff]
        %v1000 = vld [vmem:[%s238 + $0x1630] sm:$0xff]
        %v1001 = vld [vmem:[%s238 + $0x1638] sm:$0xff]
        %v1002 = vld [vmem:[%s238 + $0x1640] sm:$0xff]
        %v1003 = vld [vmem:[%s238 + $0x1648] sm:$0xff]
        %v1004 = vld [vmem:[%s238 + $0x1650] sm:$0xff]
        %v1005 = vld [vmem:[%s238 + $0x1658] sm:$0xff]
        %v1006 = vld [vmem:[%s238 + $0x1660] sm:$0xff]
        %v1007 = vld [vmem:[%s238 + $0x1668] sm:$0xff]
        %v1008 = vld [vmem:[%s238 + $0x1670] sm:$0xff]
        %v1009 = vld [vmem:[%s238 + $0x1678] sm:$0xff]
        %v1010 = vld [vmem:[%s238 + $0x1680] sm:$0xff]
        %v1011 = vld [vmem:[%s238 + $0x1688] sm:$0xff]
        %v1012 = vld [vmem:[%s238 + $0x1690] sm:$0xff]
        %v1013 = vld [vmem:[%s238 + $0x1698] sm:$0xff]
        %v1014 = vld [vmem:[%s238 + $0x16a0] sm:$0xff]
        %v1015 = vld [vmem:[%s238 + $0x16a8] sm:$0xff]
        %v1016 = vld [vmem:[%s238 + $0x16b0] sm:$0xff]
        %v1017 = vld [vmem:[%s238 + $0x16b8] sm:$0xff]
        %v1018 = vld [vmem:[%s238 + $0x16c0] sm:$0xff]
        %v1019 = vld [vmem:[%s238 + $0x16c8] sm:$0xff]
        %v1020 = vld [vmem:[%s238 + $0x16d0] sm:$0xff]
        %v1021 = vld [vmem:[%s238 + $0x16d8] sm:$0xff]
        %v1022 = vld [vmem:[%s238 + $0x16e0] sm:$0xff]
        %v1023 = vld [vmem:[%s238 + $0x16e8] sm:$0xff]
        %v1024 = vld [vmem:[%s238 + $0x16f0] sm:$0xff]
        %v1025 = vld [vmem:[%s238 + $0x16f8] sm:$0xff]
        %v1026 = vld [vmem:[%s238 + $0x1700] sm:$0xff]
        %v1027 = vld [vmem:[%s238 + $0x1708] sm:$0xff]
        %v1028 = vld [vmem:[%s238 + $0x1710] sm:$0xff]
        %v1029 = vld [vmem:[%s238 + $0x1718] sm:$0xff]
        %v1030 = vld [vmem:[%s238 + $0x1720] sm:$0xff]
        %v1031 = vld [vmem:[%s238 + $0x1728] sm:$0xff]
        %v1032 = vld [vmem:[%s238 + $0x1730] sm:$0xff]
        %v1033 = vld [vmem:[%s238 + $0x1738] sm:$0xff]
        %v1034 = vld [vmem:[%s238 + $0x1740] sm:$0xff]
        %v1035 = vld [vmem:[%s238 + $0x1748] sm:$0xff]
        %v1036 = vld [vmem:[%s238 + $0x1750] sm:$0xff]
        %v1037 = vld [vmem:[%s238 + $0x1758] sm:$0xff]
        %v1038 = vld [vmem:[%s238 + $0x1760] sm:$0xff]
        %v1039 = vld [vmem:[%s238 + $0x1768] sm:$0xff]
        %v1040 = vld [vmem:[%s238 + $0x1770] sm:$0xff]
        %v1041 = vld [vmem:[%s238 + $0x1778] sm:$0xff]
        %v1042 = vld [vmem:[%s238 + $0x1780] sm:$0xff]
        %v1043 = vld [vmem:[%s238 + $0x1788] sm:$0xff]
        %v1044 = vld [vmem:[%s238 + $0x1790] sm:$0xff]
        %v1045 = vld [vmem:[%s238 + $0x1798] sm:$0xff]
        %v1046 = vld [vmem:[%s238 + $0x17a0] sm:$0xff]
        %v1047 = vld [vmem:[%s238 + $0x17a8] sm:$0xff]
        %v1048 = vld [vmem:[%s238 + $0x17b0] sm:$0xff]
        %v1049 = vld [vmem:[%s238 + $0x17b8] sm:$0xff]
        %v1050 = vld [vmem:[%s238 + $0x17c0] sm:$0xff]
        %v1051 = vld [vmem:[%s238 + $0x17c8] sm:$0xff]
        %v1052 = vld [vmem:[%s238 + $0x17d0] sm:$0xff]
        %v1053 = vld [vmem:[%s238 + $0x17d8] sm:$0xff]
        %v1054 = vld [vmem:[%s238 + $0x17e0] sm:$0xff]
        %v1055 = vld [vmem:[%s238 + $0x17e8] sm:$0xff]
        %v1056 = vld [vmem:[%s238 + $0x17f0] sm:$0xff]
        %v1057 = vld [vmem:[%s238 + $0x17f8] sm:$0xff]
        %v1058 = vld [vmem:[%s238 + $0x1800] sm:$0xff]
        %v1059 = vld [vmem:[%s238 + $0x1808] sm:$0xff]
        %v1060 = vld [vmem:[%s238 + $0x1810] sm:$0xff]
        %v1061 = vld [vmem:[%s238 + $0x1818] sm:$0xff]
        %v1062 = vld [vmem:[%s238 + $0x1820] sm:$0xff]
        %v1063 = vld [vmem:[%s238 + $0x1828] sm:$0xff]
        %v1064 = vld [vmem:[%s238 + $0x1830] sm:$0xff]
        %v1065 = vld [vmem:[%s238 + $0x1838] sm:$0xff]
        %v1066 = vld [vmem:[%s238 + $0x1840] sm:$0xff]
        %v1067 = vld [vmem:[%s238 + $0x1848] sm:$0xff]
        %v1068 = vld [vmem:[%s238 + $0x1850] sm:$0xff]
        %v1069 = vld [vmem:[%s238 + $0x1858] sm:$0xff]
        %v1070 = vld [vmem:[%s238 + $0x1860] sm:$0xff]
        %v1071 = vld [vmem:[%s238 + $0x1868] sm:$0xff]
        %v1072 = vld [vmem:[%s238 + $0x1870] sm:$0xff]
        %v1073 = vld [vmem:[%s238 + $0x1878] sm:$0xff]
        %v1074 = vld [vmem:[%s238 + $0x1880] sm:$0xff]
        %v1075 = vld [vmem:[%s238 + $0x1888] sm:$0xff]
        %v1076 = vld [vmem:[%s238 + $0x1890] sm:$0xff]
        %v1077 = vld [vmem:[%s238 + $0x1898] sm:$0xff]
        %v1078 = vld [vmem:[%s238 + $0x18a0] sm:$0xff]
        %v1079 = vld [vmem:[%s238 + $0x18a8] sm:$0xff]
        %v1080 = vld [vmem:[%s238 + $0x18b0] sm:$0xff]
        %v1081 = vld [vmem:[%s238 + $0x18b8] sm:$0xff]
        %v1082 = vld [vmem:[%s238 + $0x18c0] sm:$0xff]
        %v1083 = vld [vmem:[%s238 + $0x18c8] sm:$0xff]
        %v1084 = vld [vmem:[%s238 + $0x18d0] sm:$0xff]
        %v1085 = vld [vmem:[%s238 + $0x18d8] sm:$0xff]
        %v1086 = vld [vmem:[%s238 + $0x18e0] sm:$0xff]
        %v1087 = vld [vmem:[%s238 + $0x18e8] sm:$0xff]
        %v1088 = vld [vmem:[%s238 + $0x18f0] sm:$0xff]
        %v1089 = vld [vmem:[%s238 + $0x18f8] sm:$0xff]
        %v1090 = vld [vmem:[%s238 + $0x1900] sm:$0xff]
        %v1091 = vld [vmem:[%s238 + $0x1908] sm:$0xff]
        %v1092 = vld [vmem:[%s238 + $0x1910] sm:$0xff]
        %v1093 = vld [vmem:[%s238 + $0x1918] sm:$0xff]
        %v1094 = vld [vmem:[%s238 + $0x1920] sm:$0xff]
        %v1095 = vld [vmem:[%s238 + $0x1928] sm:$0xff]
        %v1096 = vld [vmem:[%s238 + $0x1930] sm:$0xff]
        %v1097 = vld [vmem:[%s238 + $0x1938] sm:$0xff]
        %v1098 = vld [vmem:[%s238 + $0x1940] sm:$0xff]
        %v1099 = vld [vmem:[%s238 + $0x1948] sm:$0xff]
        %v1100 = vld [vmem:[%s238 + $0x1950] sm:$0xff]
        %v1101 = vld [vmem:[%s238 + $0x1958] sm:$0xff]
        %v1102 = vld [vmem:[%s238 + $0x1960] sm:$0xff]
        %v1103 = vld [vmem:[%s238 + $0x1968] sm:$0xff]
        %v1104 = vld [vmem:[%s238 + $0x1970] sm:$0xff]
        %v1105 = vld [vmem:[%s238 + $0x1978] sm:$0xff]
        %v1106 = vld [vmem:[%s238 + $0x1980] sm:$0xff]
        %v1107 = vld [vmem:[%s238 + $0x1988] sm:$0xff]
        %v1108 = vld [vmem:[%s238 + $0x1990] sm:$0xff]
        %v1109 = vld [vmem:[%s238 + $0x1998] sm:$0xff]
        %v1110 = vld [vmem:[%s238 + $0x19a0] sm:$0xff]
        %v1111 = vld [vmem:[%s238 + $0x19a8] sm:$0xff]
        %v1112 = vld [vmem:[%s238 + $0x19b0] sm:$0xff]
        %v1113 = vld [vmem:[%s238 + $0x19b8] sm:$0xff]
        %v1114 = vld [vmem:[%s238 + $0x19c0] sm:$0xff]
        %v1115 = vld [vmem:[%s238 + $0x19c8] sm:$0xff]
        %v1116 = vld [vmem:[%s238 + $0x19d0] sm:$0xff]
        %v1117 = vld [vmem:[%s238 + $0x19d8] sm:$0xff]
        %v1118 = vld [vmem:[%s238 + $0x19e0] sm:$0xff]
        %v1119 = vld [vmem:[%s238 + $0x19e8] sm:$0xff]
        %v1120 = vld [vmem:[%s238 + $0x19f0] sm:$0xff]
        %v1121 = vld [vmem:[%s238 + $0x19f8] sm:$0xff]
        %v1122 = vld [vmem:[%s238 + $0x1a00] sm:$0xff]
        %v1123 = vld [vmem:[%s238 + $0x1a08] sm:$0xff]
        %v1124 = vld [vmem:[%s238 + $0x1a10] sm:$0xff]
        %v1125 = vld [vmem:[%s238 + $0x1a18] sm:$0xff]
        %v1126 = vld [vmem:[%s238 + $0x1a20] sm:$0xff]
        %v1127 = vld [vmem:[%s238 + $0x1a28] sm:$0xff]
        %v1128 = vld [vmem:[%s238 + $0x1a30] sm:$0xff]
        %v1129 = vld [vmem:[%s238 + $0x1a38] sm:$0xff]
        %v1130 = vld [vmem:[%s238 + $0x1a40] sm:$0xff]
        %v1131 = vld [vmem:[%s238 + $0x1a48] sm:$0xff]
        %v1132 = vld [vmem:[%s238 + $0x1a50] sm:$0xff]
        %v1133 = vld [vmem:[%s238 + $0x1a58] sm:$0xff]
        %v1134 = vld [vmem:[%s238 + $0x1a60] sm:$0xff]
        %v1135 = vld [vmem:[%s238 + $0x1a68] sm:$0xff]
        %v1136 = vld [vmem:[%s238 + $0x1a70] sm:$0xff]
        %v1137 = vld [vmem:[%s238 + $0x1a78] sm:$0xff]
        %v1138 = vld [vmem:[%s238 + $0x1a80] sm:$0xff]
        %v1139 = vld [vmem:[%s238 + $0x1a88] sm:$0xff]
        %v1140 = vld [vmem:[%s238 + $0x1a90] sm:$0xff]
        %v1141 = vld [vmem:[%s238 + $0x1a98] sm:$0xff]
        %v1142 = vld [vmem:[%s238 + $0x1aa0] sm:$0xff]
        %v1143 = vld [vmem:[%s238 + $0x1aa8] sm:$0xff]
        %v1144 = vld [vmem:[%s238 + $0x1ab0] sm:$0xff]
        %v1145 = vld [vmem:[%s238 + $0x1ab8] sm:$0xff]
        %v1146 = vld [vmem:[%s238 + $0x1ac0] sm:$0xff]
        %v1147 = vld [vmem:[%s238 + $0x1ac8] sm:$0xff]
        %v1148 = vld [vmem:[%s238 + $0x1ad0] sm:$0xff]
        %v1149 = vld [vmem:[%s238 + $0x1ad8] sm:$0xff]
        %v1150 = vld [vmem:[%s238 + $0x1ae0] sm:$0xff]
        %v1151 = vld [vmem:[%s238 + $0x1ae8] sm:$0xff]
        %v1152 = vld [vmem:[%s238 + $0x1af0] sm:$0xff]
        %v1153 = vld [vmem:[%s238 + $0x1af8] sm:$0xff]
        %v1154 = vld [vmem:[%s238 + $0x1b00] sm:$0xff]
        %v1155 = vld [vmem:[%s238 + $0x1b08] sm:$0xff]
        %v1156 = vld [vmem:[%s238 + $0x1b10] sm:$0xff]
        %v1157 = vld [vmem:[%s238 + $0x1b18] sm:$0xff]
        %v1158 = vld [vmem:[%s238 + $0x1b20] sm:$0xff]
        %v1159 = vld [vmem:[%s238 + $0x1b28] sm:$0xff]
        %v1160 = vld [vmem:[%s238 + $0x1b30] sm:$0xff]
        %v1161 = vld [vmem:[%s238 + $0x1b38] sm:$0xff]
        %v1162 = vld [vmem:[%s238 + $0x1b40] sm:$0xff]
        %v1163 = vld [vmem:[%s238 + $0x1b48] sm:$0xff]
        %v1164 = vld [vmem:[%s238 + $0x1b50] sm:$0xff]
        %v1165 = vld [vmem:[%s238 + $0x1b58] sm:$0xff]
        %v1166 = vld [vmem:[%s238 + $0x1b60] sm:$0xff]
        %v1167 = vld [vmem:[%s238 + $0x1b68] sm:$0xff]
        %v1168 = vld [vmem:[%s238 + $0x1b70] sm:$0xff]
        %v1169 = vld [vmem:[%s238 + $0x1b78] sm:$0xff]
        %v1170 = vld [vmem:[%s238 + $0x1b80] sm:$0xff]
        %v1171 = vld [vmem:[%s238 + $0x1b88] sm:$0xff]
        %v1172 = vld [vmem:[%s238 + $0x1b90] sm:$0xff]
        %v1173 = vld [vmem:[%s238 + $0x1b98] sm:$0xff]
        %v1174 = vld [vmem:[%s238 + $0x1ba0] sm:$0xff]
        %v1175 = vld [vmem:[%s238 + $0x1ba8] sm:$0xff]
        %v1176 = vld [vmem:[%s238 + $0x1bb0] sm:$0xff]
        %v1177 = vld [vmem:[%s238 + $0x1bb8] sm:$0xff]
        %v1178 = vld [vmem:[%s238 + $0x1bc0] sm:$0xff]
        %v1179 = vld [vmem:[%s238 + $0x1bc8] sm:$0xff]
        %v1180 = vld [vmem:[%s238 + $0x1bd0] sm:$0xff]
        %v1181 = vld [vmem:[%s238 + $0x1bd8] sm:$0xff]
        %v1182 = vld [vmem:[%s238 + $0x1be0] sm:$0xff]
        %v1183 = vld [vmem:[%s238 + $0x1be8] sm:$0xff]
        %v1184 = vld [vmem:[%s238 + $0x1bf0] sm:$0xff]
        %v1185 = vld [vmem:[%s238 + $0x1bf8] sm:$0xff]
        %v1186 = vld [vmem:[%s238 + $0x1c00] sm:$0xff]
        %v1187 = vld [vmem:[%s238 + $0x1c08] sm:$0xff]
        %v1188 = vld [vmem:[%s238 + $0x1c10] sm:$0xff]
        %v1189 = vld [vmem:[%s238 + $0x1c18] sm:$0xff]
        %v1190 = vld [vmem:[%s238 + $0x1c20] sm:$0xff]
        %v1191 = vld [vmem:[%s238 + $0x1c28] sm:$0xff]
        %v1192 = vld [vmem:[%s238 + $0x1c30] sm:$0xff]
        %v1193 = vld [vmem:[%s238 + $0x1c38] sm:$0xff]
        %v1194 = vld [vmem:[%s238 + $0x1c40] sm:$0xff]
        %v1195 = vld [vmem:[%s238 + $0x1c48] sm:$0xff]
        %v1196 = vld [vmem:[%s238 + $0x1c50] sm:$0xff]
        %v1197 = vld [vmem:[%s238 + $0x1c58] sm:$0xff]
        %v1198 = vld [vmem:[%s238 + $0x1c60] sm:$0xff]
        %v1199 = vld [vmem:[%s238 + $0x1c68] sm:$0xff]
        %v1200 = vld [vmem:[%s238 + $0x1c70] sm:$0xff]
        %v1201 = vld [vmem:[%s238 + $0x1c78] sm:$0xff]
        %v1202 = vld [vmem:[%s238 + $0x1c80] sm:$0xff]
        %v1203 = vld [vmem:[%s238 + $0x1c88] sm:$0xff]
        %v1204 = vld [vmem:[%s238 + $0x1c90] sm:$0xff]
        %v1205 = vld [vmem:[%s238 + $0x1c98] sm:$0xff]
        %v1206 = vld [vmem:[%s238 + $0x1ca0] sm:$0xff]
        %v1207 = vld [vmem:[%s238 + $0x1ca8] sm:$0xff]
        %v1208 = vld [vmem:[%s238 + $0x1cb0] sm:$0xff]
        %v1209 = vld [vmem:[%s238 + $0x1cb8] sm:$0xff]
        %v1210 = vld [vmem:[%s238 + $0x1cc0] sm:$0xff]
        %v1211 = vld [vmem:[%s238 + $0x1cc8] sm:$0xff]
        %v1212 = vld [vmem:[%s238 + $0x1cd0] sm:$0xff]
        %v1213 = vld [vmem:[%s238 + $0x1cd8] sm:$0xff]
        %v1214 = vld [vmem:[%s238 + $0x1ce0] sm:$0xff]
        %v1215 = vld [vmem:[%s238 + $0x1ce8] sm:$0xff]
        %v1216 = vld [vmem:[%s238 + $0x1cf0] sm:$0xff]
        %v1217 = vld [vmem:[%s238 + $0x1cf8] sm:$0xff]
        %v1218 = vld [vmem:[%s238 + $0x1d00] sm:$0xff]
        %v1219 = vld [vmem:[%s238 + $0x1d08] sm:$0xff]
        %v1220 = vld [vmem:[%s238 + $0x1d10] sm:$0xff]
        %v1221 = vld [vmem:[%s238 + $0x1d18] sm:$0xff]
        %v1222 = vld [vmem:[%s238 + $0x1d20] sm:$0xff]
        %v1223 = vld [vmem:[%s238 + $0x1d28] sm:$0xff]
        %v1224 = vld [vmem:[%s238 + $0x1d30] sm:$0xff]
        %v1225 = vld [vmem:[%s238 + $0x1d38] sm:$0xff]
        %v1226 = vld [vmem:[%s238 + $0x1d40] sm:$0xff]
        %v1227 = vld [vmem:[%s238 + $0x1d48] sm:$0xff]
        %v1228 = vld [vmem:[%s238 + $0x1d50] sm:$0xff]
        %v1229 = vld [vmem:[%s238 + $0x1d58] sm:$0xff]
        %v1230 = vld [vmem:[%s238 + $0x1d60] sm:$0xff]
        %v1231 = vld [vmem:[%s238 + $0x1d68] sm:$0xff]
        %v1232 = vld [vmem:[%s238 + $0x1d70] sm:$0xff]
        %v1233 = vld [vmem:[%s238 + $0x1d78] sm:$0xff]
        %v1234 = vld [vmem:[%s238 + $0x1d80] sm:$0xff]
        %v1235 = vld [vmem:[%s238 + $0x1d88] sm:$0xff]
        %v1236 = vld [vmem:[%s238 + $0x1d90] sm:$0xff]
        %v1237 = vld [vmem:[%s238 + $0x1d98] sm:$0xff]
        %v1238 = vld [vmem:[%s238 + $0x1da0] sm:$0xff]
        %v1239 = vld [vmem:[%s238 + $0x1da8] sm:$0xff]
        %v1240 = vld [vmem:[%s238 + $0x1db0] sm:$0xff]
        %v1241 = vld [vmem:[%s238 + $0x1db8] sm:$0xff]
        %v1242 = vld [vmem:[%s238 + $0x1dc0] sm:$0xff]
        %v1243 = vld [vmem:[%s238 + $0x1dc8] sm:$0xff]
        %v1244 = vld [vmem:[%s238 + $0x1dd0] sm:$0xff]
        %v1245 = vld [vmem:[%s238 + $0x1dd8] sm:$0xff]
        %v1246 = vld [vmem:[%s238 + $0x1de0] sm:$0xff]
        %v1247 = vld [vmem:[%s238 + $0x1de8] sm:$0xff]
        %v1248 = vld [vmem:[%s238 + $0x1df0] sm:$0xff]
        %v1249 = vld [vmem:[%s238 + $0x1df8] sm:$0xff]
        %v1250 = vld [vmem:[%s238 + $0x1e00] sm:$0xff]
        %v1251 = vld [vmem:[%s238 + $0x1e08] sm:$0xff]
        %v1252 = vld [vmem:[%s238 + $0x1e10] sm:$0xff]
        %v1253 = vld [vmem:[%s238 + $0x1e18] sm:$0xff]
        %v1254 = vld [vmem:[%s238 + $0x1e20] sm:$0xff]
        %v1255 = vld [vmem:[%s238 + $0x1e28] sm:$0xff]
        %v1256 = vld [vmem:[%s238 + $0x1e30] sm:$0xff]
        %v1257 = vld [vmem:[%s238 + $0x1e38] sm:$0xff]
        %v1258 = vld [vmem:[%s238 + $0x1e40] sm:$0xff]
        %v1259 = vld [vmem:[%s238 + $0x1e48] sm:$0xff]
        %v1260 = vld [vmem:[%s238 + $0x1e50] sm:$0xff]
        %v1261 = vld [vmem:[%s238 + $0x1e58] sm:$0xff]
        %v1262 = vld [vmem:[%s238 + $0x1e60] sm:$0xff]
        %v1263 = vld [vmem:[%s238 + $0x1e68] sm:$0xff]
        %v1264 = vld [vmem:[%s238 + $0x1e70] sm:$0xff]
        %v1265 = vld [vmem:[%s238 + $0x1e78] sm:$0xff]
        %v1266 = vld [vmem:[%s238 + $0x1e80] sm:$0xff]
        %v1267 = vld [vmem:[%s238 + $0x1e88] sm:$0xff]
        %v1268 = vld [vmem:[%s238 + $0x1e90] sm:$0xff]
        %v1269 = vld [vmem:[%s238 + $0x1e98] sm:$0xff]
        %v1270 = vld [vmem:[%s238 + $0x1ea0] sm:$0xff]
        %v1271 = vld [vmem:[%s238 + $0x1ea8] sm:$0xff]
        %v1272 = vld [vmem:[%s238 + $0x1eb0] sm:$0xff]
        %v1273 = vld [vmem:[%s238 + $0x1eb8] sm:$0xff]
        %v1274 = vld [vmem:[%s238 + $0x1ec0] sm:$0xff]
        %v1275 = vld [vmem:[%s238 + $0x1ec8] sm:$0xff]
        %v1276 = vld [vmem:[%s238 + $0x1ed0] sm:$0xff]
        %v1277 = vld [vmem:[%s238 + $0x1ed8] sm:$0xff]
        %v1278 = vld [vmem:[%s238 + $0x1ee0] sm:$0xff]
        %v1279 = vld [vmem:[%s238 + $0x1ee8] sm:$0xff]
        %v1280 = vld [vmem:[%s238 + $0x1ef0] sm:$0xff]
        %v1281 = vld [vmem:[%s238 + $0x1ef8] sm:$0xff]
        %v1282 = vld [vmem:[%s238 + $0x1f00] sm:$0xff]
        %v1283 = vld [vmem:[%s238 + $0x1f08] sm:$0xff]
        %v1284 = vld [vmem:[%s238 + $0x1f10] sm:$0xff]
        %v1285 = vld [vmem:[%s238 + $0x1f18] sm:$0xff]
        %v1286 = vld [vmem:[%s238 + $0x1f20] sm:$0xff]
        %v1287 = vld [vmem:[%s238 + $0x1f28] sm:$0xff]
        %v1288 = vld [vmem:[%s238 + $0x1f30] sm:$0xff]
        %v1289 = vld [vmem:[%s238 + $0x1f38] sm:$0xff]
        %v1290 = vld [vmem:[%s238 + $0x1f40] sm:$0xff]
        %v1291 = vld [vmem:[%s238 + $0x1f48] sm:$0xff]
        %v1292 = vld [vmem:[%s238 + $0x1f50] sm:$0xff]
        %v1293 = vld [vmem:[%s238 + $0x1f58] sm:$0xff]
        %v1294 = vld [vmem:[%s238 + $0x1f60] sm:$0xff]
        %v1295 = vld [vmem:[%s238 + $0x1f68] sm:$0xff]
        %v1296 = vld [vmem:[%s238 + $0x1f70] sm:$0xff]
        %v1297 = vld [vmem:[%s238 + $0x1f78] sm:$0xff]
        %v1298 = vld [vmem:[%s238 + $0x1f80] sm:$0xff]
        %v1299 = vld [vmem:[%s238 + $0x1f88] sm:$0xff]
        %v1300 = vld [vmem:[%s238 + $0x1f90] sm:$0xff]
        %v1301 = vld [vmem:[%s238 + $0x1f98] sm:$0xff]
        %v1302 = vld [vmem:[%s238 + $0x1fa0] sm:$0xff]
        %v1303 = vld [vmem:[%s238 + $0x1fa8] sm:$0xff]
        %v1304 = vld [vmem:[%s238 + $0x1fb0] sm:$0xff]
        %v1305 = vld [vmem:[%s238 + $0x1fb8] sm:$0xff]
        %v1306 = vld [vmem:[%s238 + $0x1fc0] sm:$0xff]
        %v1307 = vld [vmem:[%s238 + $0x1fc8] sm:$0xff]
        %v1308 = vld [vmem:[%s238 + $0x1fd0] sm:$0xff]
        %v1309 = vld [vmem:[%s238 + $0x1fd8] sm:$0xff]
        %v1310 = vld [vmem:[%s238 + $0x1fe0] sm:$0xff]
        %v1311 = vld [vmem:[%s238 + $0x1fe8] sm:$0xff]
        %v1312 = vld [vmem:[%s238 + $0x1ff0] sm:$0xff]
        %v1313 = vld [vmem:[%s238 + $0x1ff8] sm:$0xff]
        %v1314 = vld [vmem:[%s238 + $0x2000] sm:$0xff]
        %v1315 = vld [vmem:[%s238 + $0x2008] sm:$0xff]
        %v1316 = vld [vmem:[%s238 + $0x2010] sm:$0xff]
        %v1317 = vld [vmem:[%s238 + $0x2018] sm:$0xff]
        %v1318 = vld [vmem:[%s238 + $0x2020] sm:$0xff]
        %v1319 = vld [vmem:[%s238 + $0x2028] sm:$0xff]
        %v1320 = vld [vmem:[%s238 + $0x2030] sm:$0xff]
        %v1321 = vld [vmem:[%s238 + $0x2038] sm:$0xff]
        %v1322 = vld [vmem:[%s238 + $0x2040] sm:$0xff]
        %v1323 = vld [vmem:[%s238 + $0x2048] sm:$0xff]
        %v1324 = vld [vmem:[%s238 + $0x2050] sm:$0xff]
        %v1325 = vld [vmem:[%s238 + $0x2058] sm:$0xff]
        %v1326 = vld [vmem:[%s238 + $0x2060] sm:$0xff]
        %v1327 = vld [vmem:[%s238 + $0x2068] sm:$0xff]
        %v1328 = vld [vmem:[%s238 + $0x2070] sm:$0xff]
        %v1329 = vld [vmem:[%s238 + $0x2078] sm:$0xff]
        %v1330 = vld [vmem:[%s238 + $0x2080] sm:$0xff]
        %v1331 = vld [vmem:[%s238 + $0x2088] sm:$0xff]
        %v1332 = vld [vmem:[%s238 + $0x2090] sm:$0xff]
        %v1333 = vld [vmem:[%s238 + $0x2098] sm:$0xff]
        %v1334 = vld [vmem:[%s238 + $0x20a0] sm:$0xff]
        %v1335 = vld [vmem:[%s238 + $0x20a8] sm:$0xff]
        %v1336 = vld [vmem:[%s238 + $0x20b0] sm:$0xff]
        %v1337 = vld [vmem:[%s238 + $0x20b8] sm:$0xff]
        %v1338 = vld [vmem:[%s238 + $0x20c0] sm:$0xff]
        %v1339 = vld [vmem:[%s238 + $0x20c8] sm:$0xff]
        %v1340 = vld [vmem:[%s238 + $0x20d0] sm:$0xff]
        %v1341 = vld [vmem:[%s238 + $0x20d8] sm:$0xff]
        %v1342 = vld [vmem:[%s238 + $0x20e0] sm:$0xff]
        %v1343 = vld [vmem:[%s238 + $0x20e8] sm:$0xff]
        %v1344 = vld [vmem:[%s238 + $0x20f0] sm:$0xff]
        %v1345 = vld [vmem:[%s238 + $0x20f8] sm:$0xff]
        %v1346 = vld [vmem:[%s238 + $0x2100] sm:$0xff]
        %v1347 = vld [vmem:[%s238 + $0x2108] sm:$0xff]
        %v1348 = vld [vmem:[%s238 + $0x2110] sm:$0xff]
        %v1349 = vld [vmem:[%s238 + $0x2118] sm:$0xff]
        %v1350 = vld [vmem:[%s238 + $0x2120] sm:$0xff]
        %v1351 = vld [vmem:[%s238 + $0x2128] sm:$0xff]
        %v1352 = vld [vmem:[%s238 + $0x2130] sm:$0xff]
        %v1353 = vld [vmem:[%s238 + $0x2138] sm:$0xff]
        %v1354 = vld [vmem:[%s238 + $0x2140] sm:$0xff]
        %v1355 = vld [vmem:[%s238 + $0x2148] sm:$0xff]
        %v1356 = vld [vmem:[%s238 + $0x2150] sm:$0xff]
        %v1357 = vld [vmem:[%s238 + $0x2158] sm:$0xff]
        %v1358 = vld [vmem:[%s238 + $0x2160] sm:$0xff]
        %v1359 = vld [vmem:[%s238 + $0x2168] sm:$0xff]
        %v1360 = vld [vmem:[%s238 + $0x2170] sm:$0xff]
        %v1361 = vld [vmem:[%s238 + $0x2178] sm:$0xff]
        %v1362 = vld [vmem:[%s238 + $0x2180] sm:$0xff]
        %v1363 = vld [vmem:[%s238 + $0x2188] sm:$0xff]
        %v1364 = vld [vmem:[%s238 + $0x2190] sm:$0xff]
        %v1365 = vld [vmem:[%s238 + $0x2198] sm:$0xff]
        %v1366 = vld [vmem:[%s238 + $0x21a0] sm:$0xff]
        %v1367 = vld [vmem:[%s238 + $0x21a8] sm:$0xff]
        %v1368 = vld [vmem:[%s238 + $0x21b0] sm:$0xff]
        %v1369 = vld [vmem:[%s238 + $0x21b8] sm:$0xff]
        %v1370 = vld [vmem:[%s238 + $0x21c0] sm:$0xff]
        %v1371 = vld [vmem:[%s238 + $0x21c8] sm:$0xff]
        %v1372 = vld [vmem:[%s238 + $0x21d0] sm:$0xff]
        %v1373 = vld [vmem:[%s238 + $0x21d8] sm:$0xff]
        %v1374 = vld [vmem:[%s238 + $0x21e0] sm:$0xff]
        %v1375 = vld [vmem:[%s238 + $0x21e8] sm:$0xff]
        %v1376 = vld [vmem:[%s238 + $0x21f0] sm:$0xff]
        %v1377 = vld [vmem:[%s238 + $0x21f8] sm:$0xff]
        %v1378 = vld [vmem:[%s238 + $0x2200] sm:$0xff]
        %v1379 = vld [vmem:[%s238 + $0x2208] sm:$0xff]
        %v1380 = vld [vmem:[%s238 + $0x2210] sm:$0xff]
        %v1381 = vld [vmem:[%s238 + $0x2218] sm:$0xff]
        %v1382 = vld [vmem:[%s238 + $0x2220] sm:$0xff]
        %v1383 = vld [vmem:[%s238 + $0x2228] sm:$0xff]
        %v1384 = vld [vmem:[%s238 + $0x2230] sm:$0xff]
        %v1385 = vld [vmem:[%s238 + $0x2238] sm:$0xff]
        %v1386 = vld [vmem:[%s238 + $0x2240] sm:$0xff]
        %v1387 = vld [vmem:[%s238 + $0x2248] sm:$0xff]
        %v1388 = vld [vmem:[%s238 + $0x2250] sm:$0xff]
        %v1389 = vld [vmem:[%s238 + $0x2258] sm:$0xff]
        %v1390 = vld [vmem:[%s238 + $0x2260] sm:$0xff]
        %v1391 = vld [vmem:[%s238 + $0x2268] sm:$0xff]
        %v1392 = vld [vmem:[%s238 + $0x2270] sm:$0xff]
        %v1393 = vld [vmem:[%s238 + $0x2278] sm:$0xff]
        %v1394 = vld [vmem:[%s238 + $0x2280] sm:$0xff]
        %v1395 = vld [vmem:[%s238 + $0x2288] sm:$0xff]
        %v1396 = vld [vmem:[%s238 + $0x2290] sm:$0xff]
        %v1397 = vld [vmem:[%s238 + $0x2298] sm:$0xff]
        %v1398 = vld [vmem:[%s238 + $0x22a0] sm:$0xff]
        %v1399 = vld [vmem:[%s238 + $0x22a8] sm:$0xff]
        %v1400 = vld [vmem:[%s238 + $0x22b0] sm:$0xff]
        %v1401 = vld [vmem:[%s238 + $0x22b8] sm:$0xff]
        %v1402 = vld [vmem:[%s238 + $0x22c0] sm:$0xff]
        %v1403 = vld [vmem:[%s238 + $0x22c8] sm:$0xff]
        %v1404 = vld [vmem:[%s238 + $0x22d0] sm:$0xff]
        %v1405 = vld [vmem:[%s238 + $0x22d8] sm:$0xff]
        %v1406 = vld [vmem:[%s238 + $0x22e0] sm:$0xff]
        %v1407 = vld [vmem:[%s238 + $0x22e8] sm:$0xff]
        %v1408 = vld [vmem:[%s238 + $0x22f0] sm:$0xff]
        %v1409 = vld [vmem:[%s238 + $0x22f8] sm:$0xff]
        %v1410 = vld [vmem:[%s238 + $0x2300] sm:$0xff]
        %v1411 = vld [vmem:[%s238 + $0x2308] sm:$0xff]
        %v1412 = vld [vmem:[%s238 + $0x2310] sm:$0xff]
        %v1413 = vld [vmem:[%s238 + $0x2318] sm:$0xff]
        %v1414 = vld [vmem:[%s238 + $0x2320] sm:$0xff]
        %v1415 = vld [vmem:[%s238 + $0x2328] sm:$0xff]
        %v1416 = vld [vmem:[%s238 + $0x2330] sm:$0xff]
        %v1417 = vld [vmem:[%s238 + $0x2338] sm:$0xff]
        %v1418 = vld [vmem:[%s238 + $0x2340] sm:$0xff]
        %v1419 = vld [vmem:[%s238 + $0x2348] sm:$0xff]
        %v1420 = vld [vmem:[%s238 + $0x2350] sm:$0xff]
        %v1421 = vld [vmem:[%s238 + $0x2358] sm:$0xff]
        %v1422 = vld [vmem:[%s238 + $0x2360] sm:$0xff]
        %v1423 = vld [vmem:[%s238 + $0x2368] sm:$0xff]
        %v1424 = vld [vmem:[%s238 + $0x2370] sm:$0xff]
        %v1425 = vld [vmem:[%s238 + $0x2378] sm:$0xff]
        %v1426 = vld [vmem:[%s238 + $0x2380] sm:$0xff]
        %v1427 = vld [vmem:[%s238 + $0x2388] sm:$0xff]
        %v1428 = vld [vmem:[%s238 + $0x2390] sm:$0xff]
        %v1429 = vld [vmem:[%s238 + $0x2398] sm:$0xff]
        %v1430 = vld [vmem:[%s238 + $0x23a0] sm:$0xff]
        %v1431 = vld [vmem:[%s238 + $0x23a8] sm:$0xff]
        %v1432 = vld [vmem:[%s238 + $0x23b0] sm:$0xff]
        %v1433 = vld [vmem:[%s238 + $0x23b8] sm:$0xff]
        %v1434 = vld [vmem:[%s238 + $0x23c0] sm:$0xff]
        %v1435 = vld [vmem:[%s238 + $0x23c8] sm:$0xff]
        %v1436 = vld [vmem:[%s238 + $0x23d0] sm:$0xff]
        %v1437 = vld [vmem:[%s238 + $0x23d8] sm:$0xff]
        %v1438 = vld [vmem:[%s238 + $0x23e0] sm:$0xff]
        %v1439 = vld [vmem:[%s238 + $0x23e8] sm:$0xff]
        %v1440 = vld [vmem:[%s238 + $0x23f0] sm:$0xff]
        %v1441 = vld [vmem:[%s238 + $0x23f8] sm:$0xff]
        %v1442 = vld [vmem:[%s238 + $0x2400] sm:$0xff]
        %v1443 = vld [vmem:[%s238 + $0x2408] sm:$0xff]
        %v1444 = vld [vmem:[%s238 + $0x2410] sm:$0xff]
        %v1445 = vld [vmem:[%s238 + $0x2418] sm:$0xff]
        %v1446 = vld [vmem:[%s238 + $0x2420] sm:$0xff]
        %v1447 = vld [vmem:[%s238 + $0x2428] sm:$0xff]
        %v1448 = vld [vmem:[%s238 + $0x2430] sm:$0xff]
        %v1449 = vld [vmem:[%s238 + $0x2438] sm:$0xff]
        %v1450 = vld [vmem:[%s238 + $0x2440] sm:$0xff]
        %v1451 = vld [vmem:[%s238 + $0x2448] sm:$0xff]
        %v1452 = vld [vmem:[%s238 + $0x2450] sm:$0xff]
        %v1453 = vld [vmem:[%s238 + $0x2458] sm:$0xff]
        %v1454 = vld [vmem:[%s238 + $0x2460] sm:$0xff]
        %v1455 = vld [vmem:[%s238 + $0x2468] sm:$0xff]
        %v1456 = vld [vmem:[%s238 + $0x2470] sm:$0xff]
        %v1457 = vld [vmem:[%s238 + $0x2478] sm:$0xff]
        %v1458 = vld [vmem:[%s238 + $0x2480] sm:$0xff]
        %v1459 = vld [vmem:[%s238 + $0x2488] sm:$0xff]
        %v1460 = vld [vmem:[%s238 + $0x2490] sm:$0xff]
        %v1461 = vld [vmem:[%s238 + $0x2498] sm:$0xff]
        %v1462 = vld [vmem:[%s238 + $0x24a0] sm:$0xff]
        %v1463 = vld [vmem:[%s238 + $0x24a8] sm:$0xff]
        %v1464 = vld [vmem:[%s238 + $0x24b0] sm:$0xff]
        %v1465 = vld [vmem:[%s238 + $0x24b8] sm:$0xff]
        %v1466 = vld [vmem:[%s238 + $0x24c0] sm:$0xff]
        %v1467 = vld [vmem:[%s238 + $0x24c8] sm:$0xff]
        %v1468 = vld [vmem:[%s238 + $0x24d0] sm:$0xff]
        %v1469 = vld [vmem:[%s238 + $0x24d8] sm:$0xff]
        %v1470 = vld [vmem:[%s238 + $0x24e0] sm:$0xff]
        %v1471 = vld [vmem:[%s238 + $0x24e8] sm:$0xff]
        %v1472 = vld [vmem:[%s238 + $0x24f0] sm:$0xff]
        %v1473 = vld [vmem:[%s238 + $0x24f8] sm:$0xff]
        %v1474 = vld [vmem:[%s238 + $0x2500] sm:$0xff]
        %v1475 = vld [vmem:[%s238 + $0x2508] sm:$0xff]
        %v1476 = vld [vmem:[%s238 + $0x2510] sm:$0xff]
        %v1477 = vld [vmem:[%s238 + $0x2518] sm:$0xff]
        %v1478 = vld [vmem:[%s238 + $0x2520] sm:$0xff]
        %v1479 = vld [vmem:[%s238 + $0x2528] sm:$0xff]
        %v1480 = vld [vmem:[%s238 + $0x2530] sm:$0xff]
        %v1481 = vld [vmem:[%s238 + $0x2538] sm:$0xff]
        %v1482 = vld [vmem:[%s238 + $0x2540] sm:$0xff]
        %v1483 = vld [vmem:[%s238 + $0x2548] sm:$0xff]
        %v1484 = vld [vmem:[%s238 + $0x2550] sm:$0xff]
        %v1485 = vld [vmem:[%s238 + $0x2558] sm:$0xff]
        %v1486 = vld [vmem:[%s238 + $0x2560] sm:$0xff]
        %v1487 = vld [vmem:[%s238 + $0x2568] sm:$0xff]
        %v1488 = vld [vmem:[%s238 + $0x2570] sm:$0xff]
        %v1489 = vld [vmem:[%s238 + $0x2578] sm:$0xff]
        %v1490 = vld [vmem:[%s238 + $0x2580] sm:$0xff]
        %v1491 = vld [vmem:[%s238 + $0x2588] sm:$0xff]
        %v1492 = vld [vmem:[%s238 + $0x2590] sm:$0xff]
        %v1493 = vld [vmem:[%s238 + $0x2598] sm:$0xff]
        %v1494 = vld [vmem:[%s238 + $0x25a0] sm:$0xff]
        %v1495 = vld [vmem:[%s238 + $0x25a8] sm:$0xff]
        %v1496 = vld [vmem:[%s238 + $0x25b0] sm:$0xff]
        %v1497 = vld [vmem:[%s238 + $0x25b8] sm:$0xff]
        %v1498 = vld [vmem:[%s238 + $0x25c0] sm:$0xff]
        %v1499 = vld [vmem:[%s238 + $0x25c8] sm:$0xff]
        %v1500 = vld [vmem:[%s238 + $0x25d0] sm:$0xff]
        %v1501 = vld [vmem:[%s238 + $0x25d8] sm:$0xff]
        %v1502 = vld [vmem:[%s238 + $0x25e0] sm:$0xff]
        %v1503 = vld [vmem:[%s238 + $0x25e8] sm:$0xff]
        %v1504 = vld [vmem:[%s238 + $0x25f0] sm:$0xff]
        %v1505 = vld [vmem:[%s238 + $0x25f8] sm:$0xff]
        %v1506 = vld [vmem:[%s238 + $0x2600] sm:$0xff]
        %v1507 = vld [vmem:[%s238 + $0x2608] sm:$0xff]
        %v1508 = vld [vmem:[%s238 + $0x2610] sm:$0xff]
        %v1509 = vld [vmem:[%s238 + $0x2618] sm:$0xff]
        %v1510 = vld [vmem:[%s238 + $0x2620] sm:$0xff]
        %v1511 = vld [vmem:[%s238 + $0x2628] sm:$0xff]
        %v1512 = vld [vmem:[%s238 + $0x2630] sm:$0xff]
        %v1513 = vld [vmem:[%s238 + $0x2638] sm:$0xff]
        %v1514 = vld [vmem:[%s238 + $0x2640] sm:$0xff]
        %v1515 = vld [vmem:[%s238 + $0x2648] sm:$0xff]
        %v1516 = vld [vmem:[%s238 + $0x2650] sm:$0xff]
        %v1517 = vld [vmem:[%s238 + $0x2658] sm:$0xff]
        %v1518 = vld [vmem:[%s238 + $0x2660] sm:$0xff]
        %v1519 = vld [vmem:[%s238 + $0x2668] sm:$0xff]
        %v1520 = vld [vmem:[%s238 + $0x2670] sm:$0xff]
        %v1521 = vld [vmem:[%s238 + $0x2678] sm:$0xff]
        %v1522 = vld [vmem:[%s238 + $0x2680] sm:$0xff]
        %v1523 = vld [vmem:[%s238 + $0x2688] sm:$0xff]
        %v1524 = vld [vmem:[%s238 + $0x2690] sm:$0xff]
        %v1525 = vld [vmem:[%s238 + $0x2698] sm:$0xff]
        %v1526 = vld [vmem:[%s238 + $0x26a0] sm:$0xff]
        %v1527 = vld [vmem:[%s238 + $0x26a8] sm:$0xff]
        %v1528 = vld [vmem:[%s238 + $0x26b0] sm:$0xff]
        %v1529 = vld [vmem:[%s238 + $0x26b8] sm:$0xff]
        %v1530 = vld [vmem:[%s238 + $0x26c0] sm:$0xff]
        %v1531 = vld [vmem:[%s238 + $0x26c8] sm:$0xff]
        %v1532 = vld [vmem:[%s238 + $0x26d0] sm:$0xff]
        %v1533 = vld [vmem:[%s238 + $0x26d8] sm:$0xff]
        %v1534 = vld [vmem:[%s238 + $0x26e0] sm:$0xff]
        %v1535 = vld [vmem:[%s238 + $0x26e8] sm:$0xff]
        %v1536 = vld [vmem:[%s238 + $0x26f0] sm:$0xff]
        %v1537 = vld [vmem:[%s238 + $0x26f8] sm:$0xff]
        %v1538 = vld [vmem:[%s238 + $0x2700] sm:$0xff]
        %v1539 = vld [vmem:[%s238 + $0x2708] sm:$0xff]
        %v1540 = vld [vmem:[%s238 + $0x2710] sm:$0xff]
        %v1541 = vld [vmem:[%s238 + $0x2718] sm:$0xff]
        %v1542 = vld [vmem:[%s238 + $0x2720] sm:$0xff]
        %v1543 = vld [vmem:[%s238 + $0x2728] sm:$0xff]
        %v1544 = vld [vmem:[%s238 + $0x2730] sm:$0xff]
        %v1545 = vld [vmem:[%s238 + $0x2738] sm:$0xff]
        %v1546 = vld [vmem:[%s238 + $0x2740] sm:$0xff]
        %v1547 = vld [vmem:[%s238 + $0x2748] sm:$0xff]
        %v1548 = vld [vmem:[%s238 + $0x2750] sm:$0xff]
        %v1549 = vld [vmem:[%s238 + $0x2758] sm:$0xff]
        %v1550 = vld [vmem:[%s238 + $0x2760] sm:$0xff]
        %v1551 = vld [vmem:[%s238 + $0x2768] sm:$0xff]
        %v1552 = vld [vmem:[%s238 + $0x2770] sm:$0xff]
        %v1553 = vld [vmem:[%s238 + $0x2778] sm:$0xff]
        %v1554 = vld [vmem:[%s238 + $0x2780] sm:$0xff]
        %v1555 = vld [vmem:[%s238 + $0x2788] sm:$0xff]
        %v1556 = vld [vmem:[%s238 + $0x2790] sm:$0xff]
        %v1557 = vld [vmem:[%s238 + $0x2798] sm:$0xff]
        %v1558 = vld [vmem:[%s238 + $0x27a0] sm:$0xff]
        %v1559 = vld [vmem:[%s238 + $0x27a8] sm:$0xff]
        %v1560 = vld [vmem:[%s238 + $0x27b0] sm:$0xff]
        %v1561 = vld [vmem:[%s238 + $0x27b8] sm:$0xff]
        %v1562 = vld [vmem:[%s238 + $0x27c0] sm:$0xff]
        %v1563 = vld [vmem:[%s238 + $0x27c8] sm:$0xff]
        %v1564 = vld [vmem:[%s238 + $0x27d0] sm:$0xff]
        %v1565 = vld [vmem:[%s238 + $0x27d8] sm:$0xff]
        %v1566 = vld [vmem:[%s238 + $0x27e0] sm:$0xff]
        %v1567 = vld [vmem:[%s238 + $0x27e8] sm:$0xff]
        %v1568 = vld [vmem:[%s238 + $0x27f0] sm:$0xff]
        %v1569 = vld [vmem:[%s238 + $0x27f8] sm:$0xff]
        %v1570 = vld [vmem:[%s248] sm:$0xff]
        %v1571 = vld [vmem:[%s248 + $0x8] sm:$0xff]
        %v1572 = vld [vmem:[%s248 + $0x10] sm:$0xff]
        %v1573 = vld [vmem:[%s248 + $0x18] sm:$0xff]
        %v1574 = vld [vmem:[%s248 + $0x20] sm:$0xff]
        %v1580 = vperm.slane %v1570, 0
        %v1581 = vperm.slane %v1570, 1
        %v1582 = vperm.slane %v1570, 2
        %v1583 = vperm.slane %v1570, 3
        %v1584 = vperm.slane %v1570, 4
        %v1585 = vperm.slane %v1570, 5
        %v1586 = vperm.slane %v1570, 6
        %v1587 = vperm.slane %v1570, 7
        %v1588 = vperm.slane %v1571, 0
        %v1589 = vperm.slane %v1571, 1
        %v1590 = vperm.slane %v1571, 2
        %v1591 = vperm.slane %v1571, 3
        %v1592 = vperm.slane %v1571, 4
        %v1593 = vperm.slane %v1571, 5
        %v1594 = vperm.slane %v1571, 6
        %v1595 = vperm.slane %v1571, 7
        %v1596 = vperm.slane %v1572, 0
        %v1597 = vperm.slane %v1572, 1
        %v1598 = vperm.slane %v1572, 2
        %v1599 = vperm.slane %v1572, 3
        %v1600 = vperm.slane %v1572, 4
        %v1601 = vperm.slane %v1572, 5
        %v1602 = vperm.slane %v1572, 6
        %v1603 = vperm.slane %v1572, 7
        %v1604 = vperm.slane %v1573, 0
        %v1605 = vperm.slane %v1573, 1
        %v1606 = vperm.slane %v1573, 2
        %v1607 = vperm.slane %v1573, 3
        %v1608 = vperm.slane %v1573, 4
        %v1609 = vperm.slane %v1573, 5
        %v1610 = vperm.slane %v1573, 6
        %v1611 = vperm.slane %v1573, 7
        %v1612 = vperm.slane %v1574, 0
        %v1613 = vperm.slane %v1574, 1
        %v1614 = vperm.slane %v1574, 2
        %v1615 = vperm.slane %v1574, 3
        %v1616 = vperm.slane %v1574, 4
        %v1617 = vperm.slane %v1574, 5
        %v1618 = vperm.slane %v1574, 6
        %v1619 = vperm.slane %v1574, 7
        %1661 = vst [vmem:[#allocation1] ss:$9 sm:$0xff] %v289
        %v1662 = vld [vmem:[#allocation1] sm:$0xff]
        %v1663 = vld [vmem:[#allocation1 + $0x9] sm:$0xff]
        %v1664 = vld [vmem:[#allocation1 + $0x12] sm:$0xff]
        %v1665 = vld [vmem:[#allocation1 + $0x1b] sm:$0xff]
        %v2950 = vunpack.c.l.b16 %v290
        %v2951 = vunpack.c.h.b16 %v290
        %v2952 = vunpack.c.l.b16 %v291
        %v2953 = vunpack.c.h.b16 %v291
        %v2954 = vunpack.c.l.b16 %v292
        %v2955 = vunpack.c.h.b16 %v292
        %v2956 = vunpack.c.l.b16 %v293
        %v2957 = vunpack.c.h.b16 %v293
        %v2958 = vunpack.c.l.b16 %v294
        %v2959 = vunpack.c.h.b16 %v294
        %v2960 = vunpack.c.l.b16 %v295
        %v2961 = vunpack.c.h.b16 %v295
        %v2962 = vunpack.c.l.b16 %v296
        %v2963 = vunpack.c.h.b16 %v296
        %v2964 = vunpack.c.l.b16 %v297
        %v2965 = vunpack.c.h.b16 %v297
        %v2966 = vunpack.c.l.b16 %v298
        %v2967 = vunpack.c.h.b16 %v298
        %v2968 = vunpack.c.l.b16 %v299
        %v2969 = vunpack.c.h.b16 %v299
        %v2970 = vunpack.c.l.b16 %v300
        %v2971 = vunpack.c.h.b16 %v300
        %v2972 = vunpack.c.l.b16 %v301
        %v2973 = vunpack.c.h.b16 %v301
        %v2974 = vunpack.c.l.b16 %v302
        %v2975 = vunpack.c.h.b16 %v302
        %v2976 = vunpack.c.l.b16 %v303
        %v2977 = vunpack.c.h.b16 %v303
        %v2978 = vunpack.c.l.b16 %v304
        %v2979 = vunpack.c.h.b16 %v304
        %v2980 = vunpack.c.l.b16 %v305
        %v2981 = vunpack.c.h.b16 %v305
        %v2982 = vunpack.c.l.b16 %v306
        %v2983 = vunpack.c.h.b16 %v306
        %v2984 = vunpack.c.l.b16 %v307
        %v2985 = vunpack.c.h.b16 %v307
        %v2986 = vunpack.c.l.b16 %v308
        %v2987 = vunpack.c.h.b16 %v308
        %v2988 = vunpack.c.l.b16 %v309
        %v2989 = vunpack.c.h.b16 %v309
        %v2990 = vunpack.c.l.b16 %v310
        %v2991 = vunpack.c.h.b16 %v310
        %v2992 = vunpack.c.l.b16 %v311
        %v2993 = vunpack.c.h.b16 %v311
        %v2994 = vunpack.c.l.b16 %v312
        %v2995 = vunpack.c.h.b16 %v312
        %v2996 = vunpack.c.l.b16 %v313
        %v2997 = vunpack.c.h.b16 %v313
        %v2998 = vunpack.c.l.b16 %v314
        %v2999 = vunpack.c.h.b16 %v314
        %v3000 = vunpack.c.l.b16 %v315
        %v3001 = vunpack.c.h.b16 %v315
        %v3002 = vunpack.c.l.b16 %v316
        %v3003 = vunpack.c.h.b16 %v316
        %v3004 = vunpack.c.l.b16 %v317
        %v3005 = vunpack.c.h.b16 %v317
        %v3006 = vunpack.c.l.b16 %v318
        %v3007 = vunpack.c.h.b16 %v318
        %v3008 = vunpack.c.l.b16 %v319
        %v3009 = vunpack.c.h.b16 %v319
        %v3010 = vunpack.c.l.b16 %v320
        %v3011 = vunpack.c.h.b16 %v320
        %v3012 = vunpack.c.l.b16 %v321
        %v3013 = vunpack.c.h.b16 %v321
        %v3014 = vunpack.c.l.b16 %v322
        %v3015 = vunpack.c.h.b16 %v322
        %v3016 = vunpack.c.l.b16 %v323
        %v3017 = vunpack.c.h.b16 %v323
        %v3018 = vunpack.c.l.b16 %v324
        %v3019 = vunpack.c.h.b16 %v324
        %v3020 = vunpack.c.l.b16 %v325
        %v3021 = vunpack.c.h.b16 %v325
        %v3022 = vunpack.c.l.b16 %v326
        %v3023 = vunpack.c.h.b16 %v326
        %v3024 = vunpack.c.l.b16 %v327
        %v3025 = vunpack.c.h.b16 %v327
        %v3026 = vunpack.c.l.b16 %v328
        %v3027 = vunpack.c.h.b16 %v328
        %v3028 = vunpack.c.l.b16 %v329
        %v3029 = vunpack.c.h.b16 %v329
        %v3030 = vunpack.c.l.b16 %v330
        %v3031 = vunpack.c.h.b16 %v330
        %v3032 = vunpack.c.l.b16 %v331
        %v3033 = vunpack.c.h.b16 %v331
        %v3034 = vunpack.c.l.b16 %v332
        %v3035 = vunpack.c.h.b16 %v332
        %v3036 = vunpack.c.l.b16 %v333
        %v3037 = vunpack.c.h.b16 %v333
        %v3038 = vunpack.c.l.b16 %v334
        %v3039 = vunpack.c.h.b16 %v334
        %v3040 = vunpack.c.l.b16 %v335
        %v3041 = vunpack.c.h.b16 %v335
        %v3042 = vunpack.c.l.b16 %v336
        %v3043 = vunpack.c.h.b16 %v336
        %v3044 = vunpack.c.l.b16 %v337
        %v3045 = vunpack.c.h.b16 %v337
        %v3046 = vunpack.c.l.b16 %v338
        %v3047 = vunpack.c.h.b16 %v338
        %v3048 = vunpack.c.l.b16 %v339
        %v3049 = vunpack.c.h.b16 %v339
        %v3050 = vunpack.c.l.b16 %v340
        %v3051 = vunpack.c.h.b16 %v340
        %v3052 = vunpack.c.l.b16 %v341
        %v3053 = vunpack.c.h.b16 %v341
        %v3054 = vunpack.c.l.b16 %v342
        %v3055 = vunpack.c.h.b16 %v342
        %v3056 = vunpack.c.l.b16 %v343
        %v3057 = vunpack.c.h.b16 %v343
        %v3058 = vunpack.c.l.b16 %v344
        %v3059 = vunpack.c.h.b16 %v344
        %v3060 = vunpack.c.l.b16 %v345
        %v3061 = vunpack.c.h.b16 %v345
        %v3062 = vunpack.c.l.b16 %v346
        %v3063 = vunpack.c.h.b16 %v346
        %v3064 = vunpack.c.l.b16 %v347
        %v3065 = vunpack.c.h.b16 %v347
        %v3066 = vunpack.c.l.b16 %v348
        %v3067 = vunpack.c.h.b16 %v348
        %v3068 = vunpack.c.l.b16 %v349
        %v3069 = vunpack.c.h.b16 %v349
        %v3070 = vunpack.c.l.b16 %v350
        %v3071 = vunpack.c.h.b16 %v350
        %v3072 = vunpack.c.l.b16 %v351
        %v3073 = vunpack.c.h.b16 %v351
        %v3074 = vunpack.c.l.b16 %v352
        %v3075 = vunpack.c.h.b16 %v352
        %v3076 = vunpack.c.l.b16 %v353
        %v3077 = vunpack.c.h.b16 %v353
        %v3078 = vunpack.c.l.b16 %v354
        %v3079 = vunpack.c.h.b16 %v354
        %v3080 = vunpack.c.l.b16 %v355
        %v3081 = vunpack.c.h.b16 %v355
        %v3082 = vunpack.c.l.b16 %v356
        %v3083 = vunpack.c.h.b16 %v356
        %v3084 = vunpack.c.l.b16 %v357
        %v3085 = vunpack.c.h.b16 %v357
        %v3086 = vunpack.c.l.b16 %v358
        %v3087 = vunpack.c.h.b16 %v358
        %v3088 = vunpack.c.l.b16 %v359
        %v3089 = vunpack.c.h.b16 %v359
        %v3090 = vunpack.c.l.b16 %v360
        %v3091 = vunpack.c.h.b16 %v360
        %v3092 = vunpack.c.l.b16 %v361
        %v3093 = vunpack.c.h.b16 %v361
        %v3094 = vunpack.c.l.b16 %v362
        %v3095 = vunpack.c.h.b16 %v362
        %v3096 = vunpack.c.l.b16 %v363
        %v3097 = vunpack.c.h.b16 %v363
        %v3098 = vunpack.c.l.b16 %v364
        %v3099 = vunpack.c.h.b16 %v364
        %v3100 = vunpack.c.l.b16 %v365
        %v3101 = vunpack.c.h.b16 %v365
        %v3102 = vunpack.c.l.b16 %v366
        %v3103 = vunpack.c.h.b16 %v366
        %v3104 = vunpack.c.l.b16 %v367
        %v3105 = vunpack.c.h.b16 %v367
        %v3106 = vunpack.c.l.b16 %v368
        %v3107 = vunpack.c.h.b16 %v368
        %v3108 = vunpack.c.l.b16 %v369
        %v3109 = vunpack.c.h.b16 %v369
        %v3110 = vunpack.c.l.b16 %v370
        %v3111 = vunpack.c.h.b16 %v370
        %v3112 = vunpack.c.l.b16 %v371
        %v3113 = vunpack.c.h.b16 %v371
        %v3114 = vunpack.c.l.b16 %v372
        %v3115 = vunpack.c.h.b16 %v372
        %v3116 = vunpack.c.l.b16 %v373
        %v3117 = vunpack.c.h.b16 %v373
        %v3118 = vunpack.c.l.b16 %v374
        %v3119 = vunpack.c.h.b16 %v374
        %v3120 = vunpack.c.l.b16 %v375
        %v3121 = vunpack.c.h.b16 %v375
        %v3122 = vunpack.c.l.b16 %v376
        %v3123 = vunpack.c.h.b16 %v376
        %v3124 = vunpack.c.l.b16 %v377
        %v3125 = vunpack.c.h.b16 %v377
        %v3126 = vunpack.c.l.b16 %v378
        %v3127 = vunpack.c.h.b16 %v378
        %v3128 = vunpack.c.l.b16 %v379
        %v3129 = vunpack.c.h.b16 %v379
        %v3130 = vunpack.c.l.b16 %v380
        %v3131 = vunpack.c.h.b16 %v380
        %v3132 = vunpack.c.l.b16 %v381
        %v3133 = vunpack.c.h.b16 %v381
        %v3134 = vunpack.c.l.b16 %v382
        %v3135 = vunpack.c.h.b16 %v382
        %v3136 = vunpack.c.l.b16 %v383
        %v3137 = vunpack.c.h.b16 %v383
        %v3138 = vunpack.c.l.b16 %v384
        %v3139 = vunpack.c.h.b16 %v384
        %v3140 = vunpack.c.l.b16 %v385
        %v3141 = vunpack.c.h.b16 %v385
        %v3142 = vunpack.c.l.b16 %v386
        %v3143 = vunpack.c.h.b16 %v386
        %v3144 = vunpack.c.l.b16 %v387
        %v3145 = vunpack.c.h.b16 %v387
        %v3146 = vunpack.c.l.b16 %v388
        %v3147 = vunpack.c.h.b16 %v388
        %v3148 = vunpack.c.l.b16 %v389
        %v3149 = vunpack.c.h.b16 %v389
        %v3150 = vunpack.c.l.b16 %v390
        %v3151 = vunpack.c.h.b16 %v390
        %v3152 = vunpack.c.l.b16 %v391
        %v3153 = vunpack.c.h.b16 %v391
        %v3154 = vunpack.c.l.b16 %v392
        %v3155 = vunpack.c.h.b16 %v392
        %v3156 = vunpack.c.l.b16 %v393
        %v3157 = vunpack.c.h.b16 %v393
        %v3158 = vunpack.c.l.b16 %v394
        %v3159 = vunpack.c.h.b16 %v394
        %v3160 = vunpack.c.l.b16 %v395
        %v3161 = vunpack.c.h.b16 %v395
        %v3162 = vunpack.c.l.b16 %v396
        %v3163 = vunpack.c.h.b16 %v396
        %v3164 = vunpack.c.l.b16 %v397
        %v3165 = vunpack.c.h.b16 %v397
        %v3166 = vunpack.c.l.b16 %v398
        %v3167 = vunpack.c.h.b16 %v398
        %v3168 = vunpack.c.l.b16 %v399
        %v3169 = vunpack.c.h.b16 %v399
        %v3170 = vunpack.c.l.b16 %v400
        %v3171 = vunpack.c.h.b16 %v400
        %v3172 = vunpack.c.l.b16 %v401
        %v3173 = vunpack.c.h.b16 %v401
        %v3174 = vunpack.c.l.b16 %v402
        %v3175 = vunpack.c.h.b16 %v402
        %v3176 = vunpack.c.l.b16 %v403
        %v3177 = vunpack.c.h.b16 %v403
        %v3178 = vunpack.c.l.b16 %v404
        %v3179 = vunpack.c.h.b16 %v404
        %v3180 = vunpack.c.l.b16 %v405
        %v3181 = vunpack.c.h.b16 %v405
        %v3182 = vunpack.c.l.b16 %v406
        %v3183 = vunpack.c.h.b16 %v406
        %v3184 = vunpack.c.l.b16 %v407
        %v3185 = vunpack.c.h.b16 %v407
        %v3186 = vunpack.c.l.b16 %v408
        %v3187 = vunpack.c.h.b16 %v408
        %v3188 = vunpack.c.l.b16 %v409
        %v3189 = vunpack.c.h.b16 %v409
        %v3190 = vunpack.c.l.b16 %v410
        %v3191 = vunpack.c.h.b16 %v410
        %v3192 = vunpack.c.l.b16 %v411
        %v3193 = vunpack.c.h.b16 %v411
        %v3194 = vunpack.c.l.b16 %v412
        %v3195 = vunpack.c.h.b16 %v412
        %v3196 = vunpack.c.l.b16 %v413
        %v3197 = vunpack.c.h.b16 %v413
        %v3198 = vunpack.c.l.b16 %v414
        %v3199 = vunpack.c.h.b16 %v414
        %v3200 = vunpack.c.l.b16 %v415
        %v3201 = vunpack.c.h.b16 %v415
        %v3202 = vunpack.c.l.b16 %v416
        %v3203 = vunpack.c.h.b16 %v416
        %v3204 = vunpack.c.l.b16 %v417
        %v3205 = vunpack.c.h.b16 %v417
        %v3206 = vunpack.c.l.b16 %v418
        %v3207 = vunpack.c.h.b16 %v418
        %v3208 = vunpack.c.l.b16 %v419
        %v3209 = vunpack.c.h.b16 %v419
        %v3210 = vunpack.c.l.b16 %v420
        %v3211 = vunpack.c.h.b16 %v420
        %v3212 = vunpack.c.l.b16 %v421
        %v3213 = vunpack.c.h.b16 %v421
        %v3214 = vunpack.c.l.b16 %v422
        %v3215 = vunpack.c.h.b16 %v422
        %v3216 = vunpack.c.l.b16 %v423
        %v3217 = vunpack.c.h.b16 %v423
        %v3218 = vunpack.c.l.b16 %v424
        %v3219 = vunpack.c.h.b16 %v424
        %v3220 = vunpack.c.l.b16 %v425
        %v3221 = vunpack.c.h.b16 %v425
        %v3222 = vunpack.c.l.b16 %v426
        %v3223 = vunpack.c.h.b16 %v426
        %v3224 = vunpack.c.l.b16 %v427
        %v3225 = vunpack.c.h.b16 %v427
        %v3226 = vunpack.c.l.b16 %v428
        %v3227 = vunpack.c.h.b16 %v428
        %v3228 = vunpack.c.l.b16 %v429
        %v3229 = vunpack.c.h.b16 %v429
        %v3230 = vunpack.c.l.b16 %v430
        %v3231 = vunpack.c.h.b16 %v430
        %v3232 = vunpack.c.l.b16 %v431
        %v3233 = vunpack.c.h.b16 %v431
        %v3234 = vunpack.c.l.b16 %v432
        %v3235 = vunpack.c.h.b16 %v432
        %v3236 = vunpack.c.l.b16 %v433
        %v3237 = vunpack.c.h.b16 %v433
        %v3238 = vunpack.c.l.b16 %v434
        %v3239 = vunpack.c.h.b16 %v434
        %v3240 = vunpack.c.l.b16 %v435
        %v3241 = vunpack.c.h.b16 %v435
        %v3242 = vunpack.c.l.b16 %v436
        %v3243 = vunpack.c.h.b16 %v436
        %v3244 = vunpack.c.l.b16 %v437
        %v3245 = vunpack.c.h.b16 %v437
        %v3246 = vunpack.c.l.b16 %v438
        %v3247 = vunpack.c.h.b16 %v438
        %v3248 = vunpack.c.l.b16 %v439
        %v3249 = vunpack.c.h.b16 %v439
        %v3250 = vunpack.c.l.b16 %v440
        %v3251 = vunpack.c.h.b16 %v440
        %v3252 = vunpack.c.l.b16 %v441
        %v3253 = vunpack.c.h.b16 %v441
        %v3254 = vunpack.c.l.b16 %v442
        %v3255 = vunpack.c.h.b16 %v442
        %v3256 = vunpack.c.l.b16 %v443
        %v3257 = vunpack.c.h.b16 %v443
        %v3258 = vunpack.c.l.b16 %v444
        %v3259 = vunpack.c.h.b16 %v444
        %v3260 = vunpack.c.l.b16 %v445
        %v3261 = vunpack.c.h.b16 %v445
        %v3262 = vunpack.c.l.b16 %v446
        %v3263 = vunpack.c.h.b16 %v446
        %v3264 = vunpack.c.l.b16 %v447
        %v3265 = vunpack.c.h.b16 %v447
        %v3266 = vunpack.c.l.b16 %v448
        %v3267 = vunpack.c.h.b16 %v448
        %v3268 = vunpack.c.l.b16 %v449
        %v3269 = vunpack.c.h.b16 %v449
        %v3270 = vunpack.c.l.b16 %v450
        %v3271 = vunpack.c.h.b16 %v450
        %v3272 = vunpack.c.l.b16 %v451
        %v3273 = vunpack.c.h.b16 %v451
        %v3274 = vunpack.c.l.b16 %v452
        %v3275 = vunpack.c.h.b16 %v452
        %v3276 = vunpack.c.l.b16 %v453
        %v3277 = vunpack.c.h.b16 %v453
        %v3278 = vunpack.c.l.b16 %v454
        %v3279 = vunpack.c.h.b16 %v454
        %v3280 = vunpack.c.l.b16 %v455
        %v3281 = vunpack.c.h.b16 %v455
        %v3282 = vunpack.c.l.b16 %v456
        %v3283 = vunpack.c.h.b16 %v456
        %v3284 = vunpack.c.l.b16 %v457
        %v3285 = vunpack.c.h.b16 %v457
        %v3286 = vunpack.c.l.b16 %v458
        %v3287 = vunpack.c.h.b16 %v458
        %v3288 = vunpack.c.l.b16 %v459
        %v3289 = vunpack.c.h.b16 %v459
        %v3290 = vunpack.c.l.b16 %v460
        %v3291 = vunpack.c.h.b16 %v460
        %v3292 = vunpack.c.l.b16 %v461
        %v3293 = vunpack.c.h.b16 %v461
        %v3294 = vunpack.c.l.b16 %v462
        %v3295 = vunpack.c.h.b16 %v462
        %v3296 = vunpack.c.l.b16 %v463
        %v3297 = vunpack.c.h.b16 %v463
        %v3298 = vunpack.c.l.b16 %v464
        %v3299 = vunpack.c.h.b16 %v464
        %v3300 = vunpack.c.l.b16 %v465
        %v3301 = vunpack.c.h.b16 %v465
        %v3302 = vunpack.c.l.b16 %v466
        %v3303 = vunpack.c.h.b16 %v466
        %v3304 = vunpack.c.l.b16 %v467
        %v3305 = vunpack.c.h.b16 %v467
        %v3306 = vunpack.c.l.b16 %v468
        %v3307 = vunpack.c.h.b16 %v468
        %v3308 = vunpack.c.l.b16 %v469
        %v3309 = vunpack.c.h.b16 %v469
        %v3310 = vunpack.c.l.b16 %v470
        %v3311 = vunpack.c.h.b16 %v470
        %v3312 = vunpack.c.l.b16 %v471
        %v3313 = vunpack.c.h.b16 %v471
        %v3314 = vunpack.c.l.b16 %v472
        %v3315 = vunpack.c.h.b16 %v472
        %v3316 = vunpack.c.l.b16 %v473
        %v3317 = vunpack.c.h.b16 %v473
        %v3318 = vunpack.c.l.b16 %v474
        %v3319 = vunpack.c.h.b16 %v474
        %v3320 = vunpack.c.l.b16 %v475
        %v3321 = vunpack.c.h.b16 %v475
        %v3322 = vunpack.c.l.b16 %v476
        %v3323 = vunpack.c.h.b16 %v476
        %v3324 = vunpack.c.l.b16 %v477
        %v3325 = vunpack.c.h.b16 %v477
        %v3326 = vunpack.c.l.b16 %v478
        %v3327 = vunpack.c.h.b16 %v478
        %v3328 = vunpack.c.l.b16 %v479
        %v3329 = vunpack.c.h.b16 %v479
        %v3330 = vunpack.c.l.b16 %v480
        %v3331 = vunpack.c.h.b16 %v480
        %v3332 = vunpack.c.l.b16 %v481
        %v3333 = vunpack.c.h.b16 %v481
        %v3334 = vunpack.c.l.b16 %v482
        %v3335 = vunpack.c.h.b16 %v482
        %v3336 = vunpack.c.l.b16 %v483
        %v3337 = vunpack.c.h.b16 %v483
        %v3338 = vunpack.c.l.b16 %v484
        %v3339 = vunpack.c.h.b16 %v484
        %v3340 = vunpack.c.l.b16 %v485
        %v3341 = vunpack.c.h.b16 %v485
        %v3342 = vunpack.c.l.b16 %v486
        %v3343 = vunpack.c.h.b16 %v486
        %v3344 = vunpack.c.l.b16 %v487
        %v3345 = vunpack.c.h.b16 %v487
        %v3346 = vunpack.c.l.b16 %v488
        %v3347 = vunpack.c.h.b16 %v488
        %v3348 = vunpack.c.l.b16 %v489
        %v3349 = vunpack.c.h.b16 %v489
        %v3350 = vunpack.c.l.b16 %v490
        %v3351 = vunpack.c.h.b16 %v490
        %v3352 = vunpack.c.l.b16 %v491
        %v3353 = vunpack.c.h.b16 %v491
        %v3354 = vunpack.c.l.b16 %v492
        %v3355 = vunpack.c.h.b16 %v492
        %v3356 = vunpack.c.l.b16 %v493
        %v3357 = vunpack.c.h.b16 %v493
        %v3358 = vunpack.c.l.b16 %v494
        %v3359 = vunpack.c.h.b16 %v494
        %v3360 = vunpack.c.l.b16 %v495
        %v3361 = vunpack.c.h.b16 %v495
        %v3362 = vunpack.c.l.b16 %v496
        %v3363 = vunpack.c.h.b16 %v496
        %v3364 = vunpack.c.l.b16 %v497
        %v3365 = vunpack.c.h.b16 %v497
        %v3366 = vunpack.c.l.b16 %v498
        %v3367 = vunpack.c.h.b16 %v498
        %v3368 = vunpack.c.l.b16 %v499
        %v3369 = vunpack.c.h.b16 %v499
        %v3370 = vunpack.c.l.b16 %v500
        %v3371 = vunpack.c.h.b16 %v500
        %v3372 = vunpack.c.l.b16 %v501
        %v3373 = vunpack.c.h.b16 %v501
        %v3374 = vunpack.c.l.b16 %v502
        %v3375 = vunpack.c.h.b16 %v502
        %v3376 = vunpack.c.l.b16 %v503
        %v3377 = vunpack.c.h.b16 %v503
        %v3378 = vunpack.c.l.b16 %v504
        %v3379 = vunpack.c.h.b16 %v504
        %v3380 = vunpack.c.l.b16 %v505
        %v3381 = vunpack.c.h.b16 %v505
        %v3382 = vunpack.c.l.b16 %v506
        %v3383 = vunpack.c.h.b16 %v506
        %v3384 = vunpack.c.l.b16 %v507
        %v3385 = vunpack.c.h.b16 %v507
        %v3386 = vunpack.c.l.b16 %v508
        %v3387 = vunpack.c.h.b16 %v508
        %v3388 = vunpack.c.l.b16 %v509
        %v3389 = vunpack.c.h.b16 %v509
        %v3390 = vunpack.c.l.b16 %v510
        %v3391 = vunpack.c.h.b16 %v510
        %v3392 = vunpack.c.l.b16 %v511
        %v3393 = vunpack.c.h.b16 %v511
        %v3394 = vunpack.c.l.b16 %v512
        %v3395 = vunpack.c.h.b16 %v512
        %v3396 = vunpack.c.l.b16 %v513
        %v3397 = vunpack.c.h.b16 %v513
        %v3398 = vunpack.c.l.b16 %v514
        %v3399 = vunpack.c.h.b16 %v514
        %v3400 = vunpack.c.l.b16 %v515
        %v3401 = vunpack.c.h.b16 %v515
        %v3402 = vunpack.c.l.b16 %v516
        %v3403 = vunpack.c.h.b16 %v516
        %v3404 = vunpack.c.l.b16 %v517
        %v3405 = vunpack.c.h.b16 %v517
        %v3406 = vunpack.c.l.b16 %v518
        %v3407 = vunpack.c.h.b16 %v518
        %v3408 = vunpack.c.l.b16 %v519
        %v3409 = vunpack.c.h.b16 %v519
        %v3410 = vunpack.c.l.b16 %v520
        %v3411 = vunpack.c.h.b16 %v520
        %v3412 = vunpack.c.l.b16 %v521
        %v3413 = vunpack.c.h.b16 %v521
        %v3414 = vunpack.c.l.b16 %v522
        %v3415 = vunpack.c.h.b16 %v522
        %v3416 = vunpack.c.l.b16 %v523
        %v3417 = vunpack.c.h.b16 %v523
        %v3418 = vunpack.c.l.b16 %v524
        %v3419 = vunpack.c.h.b16 %v524
        %v3420 = vunpack.c.l.b16 %v525
        %v3421 = vunpack.c.h.b16 %v525
        %v3422 = vunpack.c.l.b16 %v526
        %v3423 = vunpack.c.h.b16 %v526
        %v3424 = vunpack.c.l.b16 %v527
        %v3425 = vunpack.c.h.b16 %v527
        %v3426 = vunpack.c.l.b16 %v528
        %v3427 = vunpack.c.h.b16 %v528
        %v3428 = vunpack.c.l.b16 %v529
        %v3429 = vunpack.c.h.b16 %v529
        %v3430 = vunpack.c.l.b16 %v530
        %v3431 = vunpack.c.h.b16 %v530
        %v3432 = vunpack.c.l.b16 %v531
        %v3433 = vunpack.c.h.b16 %v531
        %v3434 = vunpack.c.l.b16 %v532
        %v3435 = vunpack.c.h.b16 %v532
        %v3436 = vunpack.c.l.b16 %v533
        %v3437 = vunpack.c.h.b16 %v533
        %v3438 = vunpack.c.l.b16 %v534
        %v3439 = vunpack.c.h.b16 %v534
        %v3440 = vunpack.c.l.b16 %v535
        %v3441 = vunpack.c.h.b16 %v535
        %v3442 = vunpack.c.l.b16 %v536
        %v3443 = vunpack.c.h.b16 %v536
        %v3444 = vunpack.c.l.b16 %v537
        %v3445 = vunpack.c.h.b16 %v537
        %v3446 = vunpack.c.l.b16 %v538
        %v3447 = vunpack.c.h.b16 %v538
        %v3448 = vunpack.c.l.b16 %v539
        %v3449 = vunpack.c.h.b16 %v539
        %v3450 = vunpack.c.l.b16 %v540
        %v3451 = vunpack.c.h.b16 %v540
        %v3452 = vunpack.c.l.b16 %v541
        %v3453 = vunpack.c.h.b16 %v541
        %v3454 = vunpack.c.l.b16 %v542
        %v3455 = vunpack.c.h.b16 %v542
        %v3456 = vunpack.c.l.b16 %v543
        %v3457 = vunpack.c.h.b16 %v543
        %v3458 = vunpack.c.l.b16 %v544
        %v3459 = vunpack.c.h.b16 %v544
        %v3460 = vunpack.c.l.b16 %v545
        %v3461 = vunpack.c.h.b16 %v545
        %v3462 = vunpack.c.l.b16 %v546
        %v3463 = vunpack.c.h.b16 %v546
        %v3464 = vunpack.c.l.b16 %v547
        %v3465 = vunpack.c.h.b16 %v547
        %v3466 = vunpack.c.l.b16 %v548
        %v3467 = vunpack.c.h.b16 %v548
        %v3468 = vunpack.c.l.b16 %v549
        %v3469 = vunpack.c.h.b16 %v549
        %v3470 = vunpack.c.l.b16 %v550
        %v3471 = vunpack.c.h.b16 %v550
        %v3472 = vunpack.c.l.b16 %v551
        %v3473 = vunpack.c.h.b16 %v551
        %v3474 = vunpack.c.l.b16 %v552
        %v3475 = vunpack.c.h.b16 %v552
        %v3476 = vunpack.c.l.b16 %v553
        %v3477 = vunpack.c.h.b16 %v553
        %v3478 = vunpack.c.l.b16 %v554
        %v3479 = vunpack.c.h.b16 %v554
        %v3480 = vunpack.c.l.b16 %v555
        %v3481 = vunpack.c.h.b16 %v555
        %v3482 = vunpack.c.l.b16 %v556
        %v3483 = vunpack.c.h.b16 %v556
        %v3484 = vunpack.c.l.b16 %v557
        %v3485 = vunpack.c.h.b16 %v557
        %v3486 = vunpack.c.l.b16 %v558
        %v3487 = vunpack.c.h.b16 %v558
        %v3488 = vunpack.c.l.b16 %v559
        %v3489 = vunpack.c.h.b16 %v559
        %v3490 = vunpack.c.l.b16 %v560
        %v3491 = vunpack.c.h.b16 %v560
        %v3492 = vunpack.c.l.b16 %v561
        %v3493 = vunpack.c.h.b16 %v561
        %v3494 = vunpack.c.l.b16 %v562
        %v3495 = vunpack.c.h.b16 %v562
        %v3496 = vunpack.c.l.b16 %v563
        %v3497 = vunpack.c.h.b16 %v563
        %v3498 = vunpack.c.l.b16 %v564
        %v3499 = vunpack.c.h.b16 %v564
        %v3500 = vunpack.c.l.b16 %v565
        %v3501 = vunpack.c.h.b16 %v565
        %v3502 = vunpack.c.l.b16 %v566
        %v3503 = vunpack.c.h.b16 %v566
        %v3504 = vunpack.c.l.b16 %v567
        %v3505 = vunpack.c.h.b16 %v567
        %v3506 = vunpack.c.l.b16 %v568
        %v3507 = vunpack.c.h.b16 %v568
        %v3508 = vunpack.c.l.b16 %v569
        %v3509 = vunpack.c.h.b16 %v569
        %v3510 = vunpack.c.l.b16 %v570
        %v3511 = vunpack.c.h.b16 %v570
        %v3512 = vunpack.c.l.b16 %v571
        %v3513 = vunpack.c.h.b16 %v571
        %v3514 = vunpack.c.l.b16 %v572
        %v3515 = vunpack.c.h.b16 %v572
        %v3516 = vunpack.c.l.b16 %v573
        %v3517 = vunpack.c.h.b16 %v573
        %v3518 = vunpack.c.l.b16 %v574
        %v3519 = vunpack.c.h.b16 %v574
        %v3520 = vunpack.c.l.b16 %v575
        %v3521 = vunpack.c.h.b16 %v575
        %v3522 = vunpack.c.l.b16 %v576
        %v3523 = vunpack.c.h.b16 %v576
        %v3524 = vunpack.c.l.b16 %v577
        %v3525 = vunpack.c.h.b16 %v577
        %v3526 = vunpack.c.l.b16 %v578
        %v3527 = vunpack.c.h.b16 %v578
        %v3528 = vunpack.c.l.b16 %v579
        %v3529 = vunpack.c.h.b16 %v579
        %v3530 = vunpack.c.l.b16 %v580
        %v3531 = vunpack.c.h.b16 %v580
        %v3532 = vunpack.c.l.b16 %v581
        %v3533 = vunpack.c.h.b16 %v581
        %v3534 = vunpack.c.l.b16 %v582
        %v3535 = vunpack.c.h.b16 %v582
        %v3536 = vunpack.c.l.b16 %v583
        %v3537 = vunpack.c.h.b16 %v583
        %v3538 = vunpack.c.l.b16 %v584
        %v3539 = vunpack.c.h.b16 %v584
        %v3540 = vunpack.c.l.b16 %v585
        %v3541 = vunpack.c.h.b16 %v585
        %v3542 = vunpack.c.l.b16 %v586
        %v3543 = vunpack.c.h.b16 %v586
        %v3544 = vunpack.c.l.b16 %v587
        %v3545 = vunpack.c.h.b16 %v587
        %v3546 = vunpack.c.l.b16 %v588
        %v3547 = vunpack.c.h.b16 %v588
        %v3548 = vunpack.c.l.b16 %v589
        %v3549 = vunpack.c.h.b16 %v589
        %v3550 = vunpack.c.l.b16 %v590
        %v3551 = vunpack.c.h.b16 %v590
        %v3552 = vunpack.c.l.b16 %v591
        %v3553 = vunpack.c.h.b16 %v591
        %v3554 = vunpack.c.l.b16 %v592
        %v3555 = vunpack.c.h.b16 %v592
        %v3556 = vunpack.c.l.b16 %v593
        %v3557 = vunpack.c.h.b16 %v593
        %v3558 = vunpack.c.l.b16 %v594
        %v3559 = vunpack.c.h.b16 %v594
        %v3560 = vunpack.c.l.b16 %v595
        %v3561 = vunpack.c.h.b16 %v595
        %v3562 = vunpack.c.l.b16 %v596
        %v3563 = vunpack.c.h.b16 %v596
        %v3564 = vunpack.c.l.b16 %v597
        %v3565 = vunpack.c.h.b16 %v597
        %v3566 = vunpack.c.l.b16 %v598
        %v3567 = vunpack.c.h.b16 %v598
        %v3568 = vunpack.c.l.b16 %v599
        %v3569 = vunpack.c.h.b16 %v599
        %v3570 = vunpack.c.l.b16 %v600
        %v3571 = vunpack.c.h.b16 %v600
        %v3572 = vunpack.c.l.b16 %v601
        %v3573 = vunpack.c.h.b16 %v601
        %v3574 = vunpack.c.l.b16 %v602
        %v3575 = vunpack.c.h.b16 %v602
        %v3576 = vunpack.c.l.b16 %v603
        %v3577 = vunpack.c.h.b16 %v603
        %v3578 = vunpack.c.l.b16 %v604
        %v3579 = vunpack.c.h.b16 %v604
        %v3580 = vunpack.c.l.b16 %v605
        %v3581 = vunpack.c.h.b16 %v605
        %v3582 = vunpack.c.l.b16 %v606
        %v3583 = vunpack.c.h.b16 %v606
        %v3584 = vunpack.c.l.b16 %v607
        %v3585 = vunpack.c.h.b16 %v607
        %v3586 = vunpack.c.l.b16 %v608
        %v3587 = vunpack.c.h.b16 %v608
        %v3588 = vunpack.c.l.b16 %v609
        %v3589 = vunpack.c.h.b16 %v609
        %v3590 = vunpack.c.l.b16 %v610
        %v3591 = vunpack.c.h.b16 %v610
        %v3592 = vunpack.c.l.b16 %v611
        %v3593 = vunpack.c.h.b16 %v611
        %v3594 = vunpack.c.l.b16 %v612
        %v3595 = vunpack.c.h.b16 %v612
        %v3596 = vunpack.c.l.b16 %v613
        %v3597 = vunpack.c.h.b16 %v613
        %v3598 = vunpack.c.l.b16 %v614
        %v3599 = vunpack.c.h.b16 %v614
        %v3600 = vunpack.c.l.b16 %v615
        %v3601 = vunpack.c.h.b16 %v615
        %v3602 = vunpack.c.l.b16 %v616
        %v3603 = vunpack.c.h.b16 %v616
        %v3604 = vunpack.c.l.b16 %v617
        %v3605 = vunpack.c.h.b16 %v617
        %v3606 = vunpack.c.l.b16 %v618
        %v3607 = vunpack.c.h.b16 %v618
        %v3608 = vunpack.c.l.b16 %v619
        %v3609 = vunpack.c.h.b16 %v619
        %v3610 = vunpack.c.l.b16 %v620
        %v3611 = vunpack.c.h.b16 %v620
        %v3612 = vunpack.c.l.b16 %v621
        %v3613 = vunpack.c.h.b16 %v621
        %v3614 = vunpack.c.l.b16 %v622
        %v3615 = vunpack.c.h.b16 %v622
        %v3616 = vunpack.c.l.b16 %v623
        %v3617 = vunpack.c.h.b16 %v623
        %v3618 = vunpack.c.l.b16 %v624
        %v3619 = vunpack.c.h.b16 %v624
        %v3620 = vunpack.c.l.b16 %v625
        %v3621 = vunpack.c.h.b16 %v625
        %v3622 = vunpack.c.l.b16 %v626
        %v3623 = vunpack.c.h.b16 %v626
        %v3624 = vunpack.c.l.b16 %v627
        %v3625 = vunpack.c.h.b16 %v627
        %v3626 = vunpack.c.l.b16 %v628
        %v3627 = vunpack.c.h.b16 %v628
        %v3628 = vunpack.c.l.b16 %v629
        %v3629 = vunpack.c.h.b16 %v629
        %v3630 = vunpack.c.l.b16 %v630
        %v3631 = vunpack.c.h.b16 %v630
        %v3632 = vunpack.c.l.b16 %v631
        %v3633 = vunpack.c.h.b16 %v631
        %v3634 = vunpack.c.l.b16 %v632
        %v3635 = vunpack.c.h.b16 %v632
        %v3636 = vunpack.c.l.b16 %v633
        %v3637 = vunpack.c.h.b16 %v633
        %v3638 = vunpack.c.l.b16 %v634
        %v3639 = vunpack.c.h.b16 %v634
        %v3640 = vunpack.c.l.b16 %v635
        %v3641 = vunpack.c.h.b16 %v635
        %v3642 = vunpack.c.l.b16 %v636
        %v3643 = vunpack.c.h.b16 %v636
        %v3644 = vunpack.c.l.b16 %v637
        %v3645 = vunpack.c.h.b16 %v637
        %v3646 = vunpack.c.l.b16 %v638
        %v3647 = vunpack.c.h.b16 %v638
        %v3648 = vunpack.c.l.b16 %v639
        %v3649 = vunpack.c.h.b16 %v639
        %v3650 = vunpack.c.l.b16 %v640
        %v3651 = vunpack.c.h.b16 %v640
        %v3652 = vunpack.c.l.b16 %v641
        %v3653 = vunpack.c.h.b16 %v641
        %v3654 = vunpack.c.l.b16 %v642
        %v3655 = vunpack.c.h.b16 %v642
        %v3656 = vunpack.c.l.b16 %v643
        %v3657 = vunpack.c.h.b16 %v643
        %v3658 = vunpack.c.l.b16 %v644
        %v3659 = vunpack.c.h.b16 %v644
        %v3660 = vunpack.c.l.b16 %v645
        %v3661 = vunpack.c.h.b16 %v645
        %v3662 = vunpack.c.l.b16 %v646
        %v3663 = vunpack.c.h.b16 %v646
        %v3664 = vunpack.c.l.b16 %v647
        %v3665 = vunpack.c.h.b16 %v647
        %v3666 = vunpack.c.l.b16 %v648
        %v3667 = vunpack.c.h.b16 %v648
        %v3668 = vunpack.c.l.b16 %v649
        %v3669 = vunpack.c.h.b16 %v649
        %v3670 = vunpack.c.l.b16 %v650
        %v3671 = vunpack.c.h.b16 %v650
        %v3672 = vunpack.c.l.b16 %v651
        %v3673 = vunpack.c.h.b16 %v651
        %v3674 = vunpack.c.l.b16 %v652
        %v3675 = vunpack.c.h.b16 %v652
        %v3676 = vunpack.c.l.b16 %v653
        %v3677 = vunpack.c.h.b16 %v653
        %v3678 = vunpack.c.l.b16 %v654
        %v3679 = vunpack.c.h.b16 %v654
        %v3680 = vunpack.c.l.b16 %v655
        %v3681 = vunpack.c.h.b16 %v655
        %v3682 = vunpack.c.l.b16 %v656
        %v3683 = vunpack.c.h.b16 %v656
        %v3684 = vunpack.c.l.b16 %v657
        %v3685 = vunpack.c.h.b16 %v657
        %v3686 = vunpack.c.l.b16 %v658
        %v3687 = vunpack.c.h.b16 %v658
        %v3688 = vunpack.c.l.b16 %v659
        %v3689 = vunpack.c.h.b16 %v659
        %v3690 = vunpack.c.l.b16 %v660
        %v3691 = vunpack.c.h.b16 %v660
        %v3692 = vunpack.c.l.b16 %v661
        %v3693 = vunpack.c.h.b16 %v661
        %v3694 = vunpack.c.l.b16 %v662
        %v3695 = vunpack.c.h.b16 %v662
        %v3696 = vunpack.c.l.b16 %v663
        %v3697 = vunpack.c.h.b16 %v663
        %v3698 = vunpack.c.l.b16 %v664
        %v3699 = vunpack.c.h.b16 %v664
        %v3700 = vunpack.c.l.b16 %v665
        %v3701 = vunpack.c.h.b16 %v665
        %v3702 = vunpack.c.l.b16 %v666
        %v3703 = vunpack.c.h.b16 %v666
        %v3704 = vunpack.c.l.b16 %v667
        %v3705 = vunpack.c.h.b16 %v667
        %v3706 = vunpack.c.l.b16 %v668
        %v3707 = vunpack.c.h.b16 %v668
        %v3708 = vunpack.c.l.b16 %v669
        %v3709 = vunpack.c.h.b16 %v669
        %v3710 = vunpack.c.l.b16 %v670
        %v3711 = vunpack.c.h.b16 %v670
        %v3712 = vunpack.c.l.b16 %v671
        %v3713 = vunpack.c.h.b16 %v671
        %v3714 = vunpack.c.l.b16 %v672
        %v3715 = vunpack.c.h.b16 %v672
        %v3716 = vunpack.c.l.b16 %v673
        %v3717 = vunpack.c.h.b16 %v673
        %v3718 = vunpack.c.l.b16 %v674
        %v3719 = vunpack.c.h.b16 %v674
        %v3720 = vunpack.c.l.b16 %v675
        %v3721 = vunpack.c.h.b16 %v675
        %v3722 = vunpack.c.l.b16 %v676
        %v3723 = vunpack.c.h.b16 %v676
        %v3724 = vunpack.c.l.b16 %v677
        %v3725 = vunpack.c.h.b16 %v677
        %v3726 = vunpack.c.l.b16 %v678
        %v3727 = vunpack.c.h.b16 %v678
        %v3728 = vunpack.c.l.b16 %v679
        %v3729 = vunpack.c.h.b16 %v679
        %v3730 = vunpack.c.l.b16 %v680
        %v3731 = vunpack.c.h.b16 %v680
        %v3732 = vunpack.c.l.b16 %v681
        %v3733 = vunpack.c.h.b16 %v681
        %v3734 = vunpack.c.l.b16 %v682
        %v3735 = vunpack.c.h.b16 %v682
        %v3736 = vunpack.c.l.b16 %v683
        %v3737 = vunpack.c.h.b16 %v683
        %v3738 = vunpack.c.l.b16 %v684
        %v3739 = vunpack.c.h.b16 %v684
        %v3740 = vunpack.c.l.b16 %v685
        %v3741 = vunpack.c.h.b16 %v685
        %v3742 = vunpack.c.l.b16 %v686
        %v3743 = vunpack.c.h.b16 %v686
        %v3744 = vunpack.c.l.b16 %v687
        %v3745 = vunpack.c.h.b16 %v687
        %v3746 = vunpack.c.l.b16 %v688
        %v3747 = vunpack.c.h.b16 %v688
        %v3748 = vunpack.c.l.b16 %v689
        %v3749 = vunpack.c.h.b16 %v689
        %v3750 = vunpack.c.l.b16 %v690
        %v3751 = vunpack.c.h.b16 %v690
        %v3752 = vunpack.c.l.b16 %v691
        %v3753 = vunpack.c.h.b16 %v691
        %v3754 = vunpack.c.l.b16 %v692
        %v3755 = vunpack.c.h.b16 %v692
        %v3756 = vunpack.c.l.b16 %v693
        %v3757 = vunpack.c.h.b16 %v693
        %v3758 = vunpack.c.l.b16 %v694
        %v3759 = vunpack.c.h.b16 %v694
        %v3760 = vunpack.c.l.b16 %v695
        %v3761 = vunpack.c.h.b16 %v695
        %v3762 = vunpack.c.l.b16 %v696
        %v3763 = vunpack.c.h.b16 %v696
        %v3764 = vunpack.c.l.b16 %v697
        %v3765 = vunpack.c.h.b16 %v697
        %v3766 = vunpack.c.l.b16 %v698
        %v3767 = vunpack.c.h.b16 %v698
        %v3768 = vunpack.c.l.b16 %v699
        %v3769 = vunpack.c.h.b16 %v699
        %v3770 = vunpack.c.l.b16 %v700
        %v3771 = vunpack.c.h.b16 %v700
        %v3772 = vunpack.c.l.b16 %v701
        %v3773 = vunpack.c.h.b16 %v701
        %v3774 = vunpack.c.l.b16 %v702
        %v3775 = vunpack.c.h.b16 %v702
        %v3776 = vunpack.c.l.b16 %v703
        %v3777 = vunpack.c.h.b16 %v703
        %v3778 = vunpack.c.l.b16 %v704
        %v3779 = vunpack.c.h.b16 %v704
        %v3780 = vunpack.c.l.b16 %v705
        %v3781 = vunpack.c.h.b16 %v705
        %v3782 = vunpack.c.l.b16 %v706
        %v3783 = vunpack.c.h.b16 %v706
        %v3784 = vunpack.c.l.b16 %v707
        %v3785 = vunpack.c.h.b16 %v707
        %v3786 = vunpack.c.l.b16 %v708
        %v3787 = vunpack.c.h.b16 %v708
        %v3788 = vunpack.c.l.b16 %v709
        %v3789 = vunpack.c.h.b16 %v709
        %v3790 = vunpack.c.l.b16 %v710
        %v3791 = vunpack.c.h.b16 %v710
        %v3792 = vunpack.c.l.b16 %v711
        %v3793 = vunpack.c.h.b16 %v711
        %v3794 = vunpack.c.l.b16 %v712
        %v3795 = vunpack.c.h.b16 %v712
        %v3796 = vunpack.c.l.b16 %v713
        %v3797 = vunpack.c.h.b16 %v713
        %v3798 = vunpack.c.l.b16 %v714
        %v3799 = vunpack.c.h.b16 %v714
        %v3800 = vunpack.c.l.b16 %v715
        %v3801 = vunpack.c.h.b16 %v715
        %v3802 = vunpack.c.l.b16 %v716
        %v3803 = vunpack.c.h.b16 %v716
        %v3804 = vunpack.c.l.b16 %v717
        %v3805 = vunpack.c.h.b16 %v717
        %v3806 = vunpack.c.l.b16 %v718
        %v3807 = vunpack.c.h.b16 %v718
        %v3808 = vunpack.c.l.b16 %v719
        %v3809 = vunpack.c.h.b16 %v719
        %v3810 = vunpack.c.l.b16 %v720
        %v3811 = vunpack.c.h.b16 %v720
        %v3812 = vunpack.c.l.b16 %v721
        %v3813 = vunpack.c.h.b16 %v721
        %v3814 = vunpack.c.l.b16 %v722
        %v3815 = vunpack.c.h.b16 %v722
        %v3816 = vunpack.c.l.b16 %v723
        %v3817 = vunpack.c.h.b16 %v723
        %v3818 = vunpack.c.l.b16 %v724
        %v3819 = vunpack.c.h.b16 %v724
        %v3820 = vunpack.c.l.b16 %v725
        %v3821 = vunpack.c.h.b16 %v725
        %v3822 = vunpack.c.l.b16 %v726
        %v3823 = vunpack.c.h.b16 %v726
        %v3824 = vunpack.c.l.b16 %v727
        %v3825 = vunpack.c.h.b16 %v727
        %v3826 = vunpack.c.l.b16 %v728
        %v3827 = vunpack.c.h.b16 %v728
        %v3828 = vunpack.c.l.b16 %v729
        %v3829 = vunpack.c.h.b16 %v729
        %v3830 = vunpack.c.l.b16 %v730
        %v3831 = vunpack.c.h.b16 %v730
        %v3832 = vunpack.c.l.b16 %v731
        %v3833 = vunpack.c.h.b16 %v731
        %v3834 = vunpack.c.l.b16 %v732
        %v3835 = vunpack.c.h.b16 %v732
        %v3836 = vunpack.c.l.b16 %v733
        %v3837 = vunpack.c.h.b16 %v733
        %v3838 = vunpack.c.l.b16 %v734
        %v3839 = vunpack.c.h.b16 %v734
        %v3840 = vunpack.c.l.b16 %v735
        %v3841 = vunpack.c.h.b16 %v735
        %v3842 = vunpack.c.l.b16 %v736
        %v3843 = vunpack.c.h.b16 %v736
        %v3844 = vunpack.c.l.b16 %v737
        %v3845 = vunpack.c.h.b16 %v737
        %v3846 = vunpack.c.l.b16 %v738
        %v3847 = vunpack.c.h.b16 %v738
        %v3848 = vunpack.c.l.b16 %v739
        %v3849 = vunpack.c.h.b16 %v739
        %v3850 = vunpack.c.l.b16 %v740
        %v3851 = vunpack.c.h.b16 %v740
        %v3852 = vunpack.c.l.b16 %v741
        %v3853 = vunpack.c.h.b16 %v741
        %v3854 = vunpack.c.l.b16 %v742
        %v3855 = vunpack.c.h.b16 %v742
        %v3856 = vunpack.c.l.b16 %v743
        %v3857 = vunpack.c.h.b16 %v743
        %v3858 = vunpack.c.l.b16 %v744
        %v3859 = vunpack.c.h.b16 %v744
        %v3860 = vunpack.c.l.b16 %v745
        %v3861 = vunpack.c.h.b16 %v745
        %v3862 = vunpack.c.l.b16 %v746
        %v3863 = vunpack.c.h.b16 %v746
        %v3864 = vunpack.c.l.b16 %v747
        %v3865 = vunpack.c.h.b16 %v747
        %v3866 = vunpack.c.l.b16 %v748
        %v3867 = vunpack.c.h.b16 %v748
        %v3868 = vunpack.c.l.b16 %v749
        %v3869 = vunpack.c.h.b16 %v749
        %v3870 = vunpack.c.l.b16 %v750
        %v3871 = vunpack.c.h.b16 %v750
        %v3872 = vunpack.c.l.b16 %v751
        %v3873 = vunpack.c.h.b16 %v751
        %v3874 = vunpack.c.l.b16 %v752
        %v3875 = vunpack.c.h.b16 %v752
        %v3876 = vunpack.c.l.b16 %v753
        %v3877 = vunpack.c.h.b16 %v753
        %v3878 = vunpack.c.l.b16 %v754
        %v3879 = vunpack.c.h.b16 %v754
        %v3880 = vunpack.c.l.b16 %v755
        %v3881 = vunpack.c.h.b16 %v755
        %v3882 = vunpack.c.l.b16 %v756
        %v3883 = vunpack.c.h.b16 %v756
        %v3884 = vunpack.c.l.b16 %v757
        %v3885 = vunpack.c.h.b16 %v757
        %v3886 = vunpack.c.l.b16 %v758
        %v3887 = vunpack.c.h.b16 %v758
        %v3888 = vunpack.c.l.b16 %v759
        %v3889 = vunpack.c.h.b16 %v759
        %v3890 = vunpack.c.l.b16 %v760
        %v3891 = vunpack.c.h.b16 %v760
        %v3892 = vunpack.c.l.b16 %v761
        %v3893 = vunpack.c.h.b16 %v761
        %v3894 = vunpack.c.l.b16 %v762
        %v3895 = vunpack.c.h.b16 %v762
        %v3896 = vunpack.c.l.b16 %v763
        %v3897 = vunpack.c.h.b16 %v763
        %v3898 = vunpack.c.l.b16 %v764
        %v3899 = vunpack.c.h.b16 %v764
        %v3900 = vunpack.c.l.b16 %v765
        %v3901 = vunpack.c.h.b16 %v765
        %v3902 = vunpack.c.l.b16 %v766
        %v3903 = vunpack.c.h.b16 %v766
        %v3904 = vunpack.c.l.b16 %v767
        %v3905 = vunpack.c.h.b16 %v767
        %v3906 = vunpack.c.l.b16 %v768
        %v3907 = vunpack.c.h.b16 %v768
        %v3908 = vunpack.c.l.b16 %v769
        %v3909 = vunpack.c.h.b16 %v769
        %v3910 = vunpack.c.l.b16 %v770
        %v3911 = vunpack.c.h.b16 %v770
        %v3912 = vunpack.c.l.b16 %v771
        %v3913 = vunpack.c.h.b16 %v771
        %v3914 = vunpack.c.l.b16 %v772
        %v3915 = vunpack.c.h.b16 %v772
        %v3916 = vunpack.c.l.b16 %v773
        %v3917 = vunpack.c.h.b16 %v773
        %v3918 = vunpack.c.l.b16 %v774
        %v3919 = vunpack.c.h.b16 %v774
        %v3920 = vunpack.c.l.b16 %v775
        %v3921 = vunpack.c.h.b16 %v775
        %v3922 = vunpack.c.l.b16 %v776
        %v3923 = vunpack.c.h.b16 %v776
        %v3924 = vunpack.c.l.b16 %v777
        %v3925 = vunpack.c.h.b16 %v777
        %v3926 = vunpack.c.l.b16 %v778
        %v3927 = vunpack.c.h.b16 %v778
        %v3928 = vunpack.c.l.b16 %v779
        %v3929 = vunpack.c.h.b16 %v779
        %v3930 = vunpack.c.l.b16 %v780
        %v3931 = vunpack.c.h.b16 %v780
        %v3932 = vunpack.c.l.b16 %v781
        %v3933 = vunpack.c.h.b16 %v781
        %v3934 = vunpack.c.l.b16 %v782
        %v3935 = vunpack.c.h.b16 %v782
        %v3936 = vunpack.c.l.b16 %v783
        %v3937 = vunpack.c.h.b16 %v783
        %v3938 = vunpack.c.l.b16 %v784
        %v3939 = vunpack.c.h.b16 %v784
        %v3940 = vunpack.c.l.b16 %v785
        %v3941 = vunpack.c.h.b16 %v785
        %v3942 = vunpack.c.l.b16 %v786
        %v3943 = vunpack.c.h.b16 %v786
        %v3944 = vunpack.c.l.b16 %v787
        %v3945 = vunpack.c.h.b16 %v787
        %v3946 = vunpack.c.l.b16 %v788
        %v3947 = vunpack.c.h.b16 %v788
        %v3948 = vunpack.c.l.b16 %v789
        %v3949 = vunpack.c.h.b16 %v789
        %v3950 = vunpack.c.l.b16 %v790
        %v3951 = vunpack.c.h.b16 %v790
        %v3952 = vunpack.c.l.b16 %v791
        %v3953 = vunpack.c.h.b16 %v791
        %v3954 = vunpack.c.l.b16 %v792
        %v3955 = vunpack.c.h.b16 %v792
        %v3956 = vunpack.c.l.b16 %v793
        %v3957 = vunpack.c.h.b16 %v793
        %v3958 = vunpack.c.l.b16 %v794
        %v3959 = vunpack.c.h.b16 %v794
        %v3960 = vunpack.c.l.b16 %v795
        %v3961 = vunpack.c.h.b16 %v795
        %v3962 = vunpack.c.l.b16 %v796
        %v3963 = vunpack.c.h.b16 %v796
        %v3964 = vunpack.c.l.b16 %v797
        %v3965 = vunpack.c.h.b16 %v797
        %v3966 = vunpack.c.l.b16 %v798
        %v3967 = vunpack.c.h.b16 %v798
        %v3968 = vunpack.c.l.b16 %v799
        %v3969 = vunpack.c.h.b16 %v799
        %v3970 = vunpack.c.l.b16 %v800
        %v3971 = vunpack.c.h.b16 %v800
        %v3972 = vunpack.c.l.b16 %v801
        %v3973 = vunpack.c.h.b16 %v801
        %v3974 = vunpack.c.l.b16 %v802
        %v3975 = vunpack.c.h.b16 %v802
        %v3976 = vunpack.c.l.b16 %v803
        %v3977 = vunpack.c.h.b16 %v803
        %v3978 = vunpack.c.l.b16 %v804
        %v3979 = vunpack.c.h.b16 %v804
        %v3980 = vunpack.c.l.b16 %v805
        %v3981 = vunpack.c.h.b16 %v805
        %v3982 = vunpack.c.l.b16 %v806
        %v3983 = vunpack.c.h.b16 %v806
        %v3984 = vunpack.c.l.b16 %v807
        %v3985 = vunpack.c.h.b16 %v807
        %v3986 = vunpack.c.l.b16 %v808
        %v3987 = vunpack.c.h.b16 %v808
        %v3988 = vunpack.c.l.b16 %v809
        %v3989 = vunpack.c.h.b16 %v809
        %v3990 = vunpack.c.l.b16 %v810
        %v3991 = vunpack.c.h.b16 %v810
        %v3992 = vunpack.c.l.b16 %v811
        %v3993 = vunpack.c.h.b16 %v811
        %v3994 = vunpack.c.l.b16 %v812
        %v3995 = vunpack.c.h.b16 %v812
        %v3996 = vunpack.c.l.b16 %v813
        %v3997 = vunpack.c.h.b16 %v813
        %v3998 = vunpack.c.l.b16 %v814
        %v3999 = vunpack.c.h.b16 %v814
        %v4000 = vunpack.c.l.b16 %v815
        %v4001 = vunpack.c.h.b16 %v815
        %v4002 = vunpack.c.l.b16 %v816
        %v4003 = vunpack.c.h.b16 %v816
        %v4004 = vunpack.c.l.b16 %v817
        %v4005 = vunpack.c.h.b16 %v817
        %v4006 = vunpack.c.l.b16 %v818
        %v4007 = vunpack.c.h.b16 %v818
        %v4008 = vunpack.c.l.b16 %v819
        %v4009 = vunpack.c.h.b16 %v819
        %v4010 = vunpack.c.l.b16 %v820
        %v4011 = vunpack.c.h.b16 %v820
        %v4012 = vunpack.c.l.b16 %v821
        %v4013 = vunpack.c.h.b16 %v821
        %v4014 = vunpack.c.l.b16 %v822
        %v4015 = vunpack.c.h.b16 %v822
        %v4016 = vunpack.c.l.b16 %v823
        %v4017 = vunpack.c.h.b16 %v823
        %v4018 = vunpack.c.l.b16 %v824
        %v4019 = vunpack.c.h.b16 %v824
        %v4020 = vunpack.c.l.b16 %v825
        %v4021 = vunpack.c.h.b16 %v825
        %v4022 = vunpack.c.l.b16 %v826
        %v4023 = vunpack.c.h.b16 %v826
        %v4024 = vunpack.c.l.b16 %v827
        %v4025 = vunpack.c.h.b16 %v827
        %v4026 = vunpack.c.l.b16 %v828
        %v4027 = vunpack.c.h.b16 %v828
        %v4028 = vunpack.c.l.b16 %v829
        %v4029 = vunpack.c.h.b16 %v829
        %v4030 = vunpack.c.l.b16 %v830
        %v4031 = vunpack.c.h.b16 %v830
        %v4032 = vunpack.c.l.b16 %v831
        %v4033 = vunpack.c.h.b16 %v831
        %v4034 = vunpack.c.l.b16 %v832
        %v4035 = vunpack.c.h.b16 %v832
        %v4036 = vunpack.c.l.b16 %v833
        %v4037 = vunpack.c.h.b16 %v833
        %v4038 = vunpack.c.l.b16 %v834
        %v4039 = vunpack.c.h.b16 %v834
        %v4040 = vunpack.c.l.b16 %v835
        %v4041 = vunpack.c.h.b16 %v835
        %v4042 = vunpack.c.l.b16 %v836
        %v4043 = vunpack.c.h.b16 %v836
        %v4044 = vunpack.c.l.b16 %v837
        %v4045 = vunpack.c.h.b16 %v837
        %v4046 = vunpack.c.l.b16 %v838
        %v4047 = vunpack.c.h.b16 %v838
        %v4048 = vunpack.c.l.b16 %v839
        %v4049 = vunpack.c.h.b16 %v839
        %v4050 = vunpack.c.l.b16 %v840
        %v4051 = vunpack.c.h.b16 %v840
        %v4052 = vunpack.c.l.b16 %v841
        %v4053 = vunpack.c.h.b16 %v841
        %v4054 = vunpack.c.l.b16 %v842
        %v4055 = vunpack.c.h.b16 %v842
        %v4056 = vunpack.c.l.b16 %v843
        %v4057 = vunpack.c.h.b16 %v843
        %v4058 = vunpack.c.l.b16 %v844
        %v4059 = vunpack.c.h.b16 %v844
        %v4060 = vunpack.c.l.b16 %v845
        %v4061 = vunpack.c.h.b16 %v845
        %v4062 = vunpack.c.l.b16 %v846
        %v4063 = vunpack.c.h.b16 %v846
        %v4064 = vunpack.c.l.b16 %v847
        %v4065 = vunpack.c.h.b16 %v847
        %v4066 = vunpack.c.l.b16 %v848
        %v4067 = vunpack.c.h.b16 %v848
        %v4068 = vunpack.c.l.b16 %v849
        %v4069 = vunpack.c.h.b16 %v849
        %v4070 = vunpack.c.l.b16 %v850
        %v4071 = vunpack.c.h.b16 %v850
        %v4072 = vunpack.c.l.b16 %v851
        %v4073 = vunpack.c.h.b16 %v851
        %v4074 = vunpack.c.l.b16 %v852
        %v4075 = vunpack.c.h.b16 %v852
        %v4076 = vunpack.c.l.b16 %v853
        %v4077 = vunpack.c.h.b16 %v853
        %v4078 = vunpack.c.l.b16 %v854
        %v4079 = vunpack.c.h.b16 %v854
        %v4080 = vunpack.c.l.b16 %v855
        %v4081 = vunpack.c.h.b16 %v855
        %v4082 = vunpack.c.l.b16 %v856
        %v4083 = vunpack.c.h.b16 %v856
        %v4084 = vunpack.c.l.b16 %v857
        %v4085 = vunpack.c.h.b16 %v857
        %v4086 = vunpack.c.l.b16 %v858
        %v4087 = vunpack.c.h.b16 %v858
        %v4088 = vunpack.c.l.b16 %v859
        %v4089 = vunpack.c.h.b16 %v859
        %v4090 = vunpack.c.l.b16 %v860
        %v4091 = vunpack.c.h.b16 %v860
        %v4092 = vunpack.c.l.b16 %v861
        %v4093 = vunpack.c.h.b16 %v861
        %v4094 = vunpack.c.l.b16 %v862
        %v4095 = vunpack.c.h.b16 %v862
        %v4096 = vunpack.c.l.b16 %v863
        %v4097 = vunpack.c.h.b16 %v863
        %v4098 = vunpack.c.l.b16 %v864
        %v4099 = vunpack.c.h.b16 %v864
        %v4100 = vunpack.c.l.b16 %v865
        %v4101 = vunpack.c.h.b16 %v865
        %v4102 = vunpack.c.l.b16 %v866
        %v4103 = vunpack.c.h.b16 %v866
        %v4104 = vunpack.c.l.b16 %v867
        %v4105 = vunpack.c.h.b16 %v867
        %v4106 = vunpack.c.l.b16 %v868
        %v4107 = vunpack.c.h.b16 %v868
        %v4108 = vunpack.c.l.b16 %v869
        %v4109 = vunpack.c.h.b16 %v869
        %v4110 = vunpack.c.l.b16 %v870
        %v4111 = vunpack.c.h.b16 %v870
        %v4112 = vunpack.c.l.b16 %v871
        %v4113 = vunpack.c.h.b16 %v871
        %v4114 = vunpack.c.l.b16 %v872
        %v4115 = vunpack.c.h.b16 %v872
        %v4116 = vunpack.c.l.b16 %v873
        %v4117 = vunpack.c.h.b16 %v873
        %v4118 = vunpack.c.l.b16 %v874
        %v4119 = vunpack.c.h.b16 %v874
        %v4120 = vunpack.c.l.b16 %v875
        %v4121 = vunpack.c.h.b16 %v875
        %v4122 = vunpack.c.l.b16 %v876
        %v4123 = vunpack.c.h.b16 %v876
        %v4124 = vunpack.c.l.b16 %v877
        %v4125 = vunpack.c.h.b16 %v877
        %v4126 = vunpack.c.l.b16 %v878
        %v4127 = vunpack.c.h.b16 %v878
        %v4128 = vunpack.c.l.b16 %v879
        %v4129 = vunpack.c.h.b16 %v879
        %v4130 = vunpack.c.l.b16 %v880
        %v4131 = vunpack.c.h.b16 %v880
        %v4132 = vunpack.c.l.b16 %v881
        %v4133 = vunpack.c.h.b16 %v881
        %v4134 = vunpack.c.l.b16 %v882
        %v4135 = vunpack.c.h.b16 %v882
        %v4136 = vunpack.c.l.b16 %v883
        %v4137 = vunpack.c.h.b16 %v883
        %v4138 = vunpack.c.l.b16 %v884
        %v4139 = vunpack.c.h.b16 %v884
        %v4140 = vunpack.c.l.b16 %v885
        %v4141 = vunpack.c.h.b16 %v885
        %v4142 = vunpack.c.l.b16 %v886
        %v4143 = vunpack.c.h.b16 %v886
        %v4144 = vunpack.c.l.b16 %v887
        %v4145 = vunpack.c.h.b16 %v887
        %v4146 = vunpack.c.l.b16 %v888
        %v4147 = vunpack.c.h.b16 %v888
        %v4148 = vunpack.c.l.b16 %v889
        %v4149 = vunpack.c.h.b16 %v889
        %v4150 = vunpack.c.l.b16 %v890
        %v4151 = vunpack.c.h.b16 %v890
        %v4152 = vunpack.c.l.b16 %v891
        %v4153 = vunpack.c.h.b16 %v891
        %v4154 = vunpack.c.l.b16 %v892
        %v4155 = vunpack.c.h.b16 %v892
        %v4156 = vunpack.c.l.b16 %v893
        %v4157 = vunpack.c.h.b16 %v893
        %v4158 = vunpack.c.l.b16 %v894
        %v4159 = vunpack.c.h.b16 %v894
        %v4160 = vunpack.c.l.b16 %v895
        %v4161 = vunpack.c.h.b16 %v895
        %v4162 = vunpack.c.l.b16 %v896
        %v4163 = vunpack.c.h.b16 %v896
        %v4164 = vunpack.c.l.b16 %v897
        %v4165 = vunpack.c.h.b16 %v897
        %v4166 = vunpack.c.l.b16 %v898
        %v4167 = vunpack.c.h.b16 %v898
        %v4168 = vunpack.c.l.b16 %v899
        %v4169 = vunpack.c.h.b16 %v899
        %v4170 = vunpack.c.l.b16 %v900
        %v4171 = vunpack.c.h.b16 %v900
        %v4172 = vunpack.c.l.b16 %v901
        %v4173 = vunpack.c.h.b16 %v901
        %v4174 = vunpack.c.l.b16 %v902
        %v4175 = vunpack.c.h.b16 %v902
        %v4176 = vunpack.c.l.b16 %v903
        %v4177 = vunpack.c.h.b16 %v903
        %v4178 = vunpack.c.l.b16 %v904
        %v4179 = vunpack.c.h.b16 %v904
        %v4180 = vunpack.c.l.b16 %v905
        %v4181 = vunpack.c.h.b16 %v905
        %v4182 = vunpack.c.l.b16 %v906
        %v4183 = vunpack.c.h.b16 %v906
        %v4184 = vunpack.c.l.b16 %v907
        %v4185 = vunpack.c.h.b16 %v907
        %v4186 = vunpack.c.l.b16 %v908
        %v4187 = vunpack.c.h.b16 %v908
        %v4188 = vunpack.c.l.b16 %v909
        %v4189 = vunpack.c.h.b16 %v909
        %v4190 = vunpack.c.l.b16 %v910
        %v4191 = vunpack.c.h.b16 %v910
        %v4192 = vunpack.c.l.b16 %v911
        %v4193 = vunpack.c.h.b16 %v911
        %v4194 = vunpack.c.l.b16 %v912
        %v4195 = vunpack.c.h.b16 %v912
        %v4196 = vunpack.c.l.b16 %v913
        %v4197 = vunpack.c.h.b16 %v913
        %v4198 = vunpack.c.l.b16 %v914
        %v4199 = vunpack.c.h.b16 %v914
        %v4200 = vunpack.c.l.b16 %v915
        %v4201 = vunpack.c.h.b16 %v915
        %v4202 = vunpack.c.l.b16 %v916
        %v4203 = vunpack.c.h.b16 %v916
        %v4204 = vunpack.c.l.b16 %v917
        %v4205 = vunpack.c.h.b16 %v917
        %v4206 = vunpack.c.l.b16 %v918
        %v4207 = vunpack.c.h.b16 %v918
        %v4208 = vunpack.c.l.b16 %v919
        %v4209 = vunpack.c.h.b16 %v919
        %v4210 = vunpack.c.l.b16 %v920
        %v4211 = vunpack.c.h.b16 %v920
        %v4212 = vunpack.c.l.b16 %v921
        %v4213 = vunpack.c.h.b16 %v921
        %v4214 = vunpack.c.l.b16 %v922
        %v4215 = vunpack.c.h.b16 %v922
        %v4216 = vunpack.c.l.b16 %v923
        %v4217 = vunpack.c.h.b16 %v923
        %v4218 = vunpack.c.l.b16 %v924
        %v4219 = vunpack.c.h.b16 %v924
        %v4220 = vunpack.c.l.b16 %v925
        %v4221 = vunpack.c.h.b16 %v925
        %v4222 = vunpack.c.l.b16 %v926
        %v4223 = vunpack.c.h.b16 %v926
        %v4224 = vunpack.c.l.b16 %v927
        %v4225 = vunpack.c.h.b16 %v927
        %v4226 = vunpack.c.l.b16 %v928
        %v4227 = vunpack.c.h.b16 %v928
        %v4228 = vunpack.c.l.b16 %v929
        %v4229 = vunpack.c.h.b16 %v929
        %v4230 = vunpack.c.l.b16 %v930
        %v4231 = vunpack.c.h.b16 %v930
        %v4232 = vunpack.c.l.b16 %v931
        %v4233 = vunpack.c.h.b16 %v931
        %v4234 = vunpack.c.l.b16 %v932
        %v4235 = vunpack.c.h.b16 %v932
        %v4236 = vunpack.c.l.b16 %v933
        %v4237 = vunpack.c.h.b16 %v933
        %v4238 = vunpack.c.l.b16 %v934
        %v4239 = vunpack.c.h.b16 %v934
        %v4240 = vunpack.c.l.b16 %v935
        %v4241 = vunpack.c.h.b16 %v935
        %v4242 = vunpack.c.l.b16 %v936
        %v4243 = vunpack.c.h.b16 %v936
        %v4244 = vunpack.c.l.b16 %v937
        %v4245 = vunpack.c.h.b16 %v937
        %v4246 = vunpack.c.l.b16 %v938
        %v4247 = vunpack.c.h.b16 %v938
        %v4248 = vunpack.c.l.b16 %v939
        %v4249 = vunpack.c.h.b16 %v939
        %v4250 = vunpack.c.l.b16 %v940
        %v4251 = vunpack.c.h.b16 %v940
        %v4252 = vunpack.c.l.b16 %v941
        %v4253 = vunpack.c.h.b16 %v941
        %v4254 = vunpack.c.l.b16 %v942
        %v4255 = vunpack.c.h.b16 %v942
        %v4256 = vunpack.c.l.b16 %v943
        %v4257 = vunpack.c.h.b16 %v943
        %v4258 = vunpack.c.l.b16 %v944
        %v4259 = vunpack.c.h.b16 %v944
        %v4260 = vunpack.c.l.b16 %v945
        %v4261 = vunpack.c.h.b16 %v945
        %v4262 = vunpack.c.l.b16 %v946
        %v4263 = vunpack.c.h.b16 %v946
        %v4264 = vunpack.c.l.b16 %v947
        %v4265 = vunpack.c.h.b16 %v947
        %v4266 = vunpack.c.l.b16 %v948
        %v4267 = vunpack.c.h.b16 %v948
        %v4268 = vunpack.c.l.b16 %v949
        %v4269 = vunpack.c.h.b16 %v949
        %v4270 = vunpack.c.l.b16 %v950
        %v4271 = vunpack.c.h.b16 %v950
        %v4272 = vunpack.c.l.b16 %v951
        %v4273 = vunpack.c.h.b16 %v951
        %v4274 = vunpack.c.l.b16 %v952
        %v4275 = vunpack.c.h.b16 %v952
        %v4276 = vunpack.c.l.b16 %v953
        %v4277 = vunpack.c.h.b16 %v953
        %v4278 = vunpack.c.l.b16 %v954
        %v4279 = vunpack.c.h.b16 %v954
        %v4280 = vunpack.c.l.b16 %v955
        %v4281 = vunpack.c.h.b16 %v955
        %v4282 = vunpack.c.l.b16 %v956
        %v4283 = vunpack.c.h.b16 %v956
        %v4284 = vunpack.c.l.b16 %v957
        %v4285 = vunpack.c.h.b16 %v957
        %v4286 = vunpack.c.l.b16 %v958
        %v4287 = vunpack.c.h.b16 %v958
        %v4288 = vunpack.c.l.b16 %v959
        %v4289 = vunpack.c.h.b16 %v959
        %v4290 = vunpack.c.l.b16 %v960
        %v4291 = vunpack.c.h.b16 %v960
        %v4292 = vunpack.c.l.b16 %v961
        %v4293 = vunpack.c.h.b16 %v961
        %v4294 = vunpack.c.l.b16 %v962
        %v4295 = vunpack.c.h.b16 %v962
        %v4296 = vunpack.c.l.b16 %v963
        %v4297 = vunpack.c.h.b16 %v963
        %v4298 = vunpack.c.l.b16 %v964
        %v4299 = vunpack.c.h.b16 %v964
        %v4300 = vunpack.c.l.b16 %v965
        %v4301 = vunpack.c.h.b16 %v965
        %v4302 = vunpack.c.l.b16 %v966
        %v4303 = vunpack.c.h.b16 %v966
        %v4304 = vunpack.c.l.b16 %v967
        %v4305 = vunpack.c.h.b16 %v967
        %v4306 = vunpack.c.l.b16 %v968
        %v4307 = vunpack.c.h.b16 %v968
        %v4308 = vunpack.c.l.b16 %v969
        %v4309 = vunpack.c.h.b16 %v969
        %v4310 = vunpack.c.l.b16 %v970
        %v4311 = vunpack.c.h.b16 %v970
        %v4312 = vunpack.c.l.b16 %v971
        %v4313 = vunpack.c.h.b16 %v971
        %v4314 = vunpack.c.l.b16 %v972
        %v4315 = vunpack.c.h.b16 %v972
        %v4316 = vunpack.c.l.b16 %v973
        %v4317 = vunpack.c.h.b16 %v973
        %v4318 = vunpack.c.l.b16 %v974
        %v4319 = vunpack.c.h.b16 %v974
        %v4320 = vunpack.c.l.b16 %v975
        %v4321 = vunpack.c.h.b16 %v975
        %v4322 = vunpack.c.l.b16 %v976
        %v4323 = vunpack.c.h.b16 %v976
        %v4324 = vunpack.c.l.b16 %v977
        %v4325 = vunpack.c.h.b16 %v977
        %v4326 = vunpack.c.l.b16 %v978
        %v4327 = vunpack.c.h.b16 %v978
        %v4328 = vunpack.c.l.b16 %v979
        %v4329 = vunpack.c.h.b16 %v979
        %v4330 = vunpack.c.l.b16 %v980
        %v4331 = vunpack.c.h.b16 %v980
        %v4332 = vunpack.c.l.b16 %v981
        %v4333 = vunpack.c.h.b16 %v981
        %v4334 = vunpack.c.l.b16 %v982
        %v4335 = vunpack.c.h.b16 %v982
        %v4336 = vunpack.c.l.b16 %v983
        %v4337 = vunpack.c.h.b16 %v983
        %v4338 = vunpack.c.l.b16 %v984
        %v4339 = vunpack.c.h.b16 %v984
        %v4340 = vunpack.c.l.b16 %v985
        %v4341 = vunpack.c.h.b16 %v985
        %v4342 = vunpack.c.l.b16 %v986
        %v4343 = vunpack.c.h.b16 %v986
        %v4344 = vunpack.c.l.b16 %v987
        %v4345 = vunpack.c.h.b16 %v987
        %v4346 = vunpack.c.l.b16 %v988
        %v4347 = vunpack.c.h.b16 %v988
        %v4348 = vunpack.c.l.b16 %v989
        %v4349 = vunpack.c.h.b16 %v989
        %v4350 = vunpack.c.l.b16 %v990
        %v4351 = vunpack.c.h.b16 %v990
        %v4352 = vunpack.c.l.b16 %v991
        %v4353 = vunpack.c.h.b16 %v991
        %v4354 = vunpack.c.l.b16 %v992
        %v4355 = vunpack.c.h.b16 %v992
        %v4356 = vunpack.c.l.b16 %v993
        %v4357 = vunpack.c.h.b16 %v993
        %v4358 = vunpack.c.l.b16 %v994
        %v4359 = vunpack.c.h.b16 %v994
        %v4360 = vunpack.c.l.b16 %v995
        %v4361 = vunpack.c.h.b16 %v995
        %v4362 = vunpack.c.l.b16 %v996
        %v4363 = vunpack.c.h.b16 %v996
        %v4364 = vunpack.c.l.b16 %v997
        %v4365 = vunpack.c.h.b16 %v997
        %v4366 = vunpack.c.l.b16 %v998
        %v4367 = vunpack.c.h.b16 %v998
        %v4368 = vunpack.c.l.b16 %v999
        %v4369 = vunpack.c.h.b16 %v999
        %v4370 = vunpack.c.l.b16 %v1000
        %v4371 = vunpack.c.h.b16 %v1000
        %v4372 = vunpack.c.l.b16 %v1001
        %v4373 = vunpack.c.h.b16 %v1001
        %v4374 = vunpack.c.l.b16 %v1002
        %v4375 = vunpack.c.h.b16 %v1002
        %v4376 = vunpack.c.l.b16 %v1003
        %v4377 = vunpack.c.h.b16 %v1003
        %v4378 = vunpack.c.l.b16 %v1004
        %v4379 = vunpack.c.h.b16 %v1004
        %v4380 = vunpack.c.l.b16 %v1005
        %v4381 = vunpack.c.h.b16 %v1005
        %v4382 = vunpack.c.l.b16 %v1006
        %v4383 = vunpack.c.h.b16 %v1006
        %v4384 = vunpack.c.l.b16 %v1007
        %v4385 = vunpack.c.h.b16 %v1007
        %v4386 = vunpack.c.l.b16 %v1008
        %v4387 = vunpack.c.h.b16 %v1008
        %v4388 = vunpack.c.l.b16 %v1009
        %v4389 = vunpack.c.h.b16 %v1009
        %v4390 = vunpack.c.l.b16 %v1010
        %v4391 = vunpack.c.h.b16 %v1010
        %v4392 = vunpack.c.l.b16 %v1011
        %v4393 = vunpack.c.h.b16 %v1011
        %v4394 = vunpack.c.l.b16 %v1012
        %v4395 = vunpack.c.h.b16 %v1012
        %v4396 = vunpack.c.l.b16 %v1013
        %v4397 = vunpack.c.h.b16 %v1013
        %v4398 = vunpack.c.l.b16 %v1014
        %v4399 = vunpack.c.h.b16 %v1014
        %v4400 = vunpack.c.l.b16 %v1015
        %v4401 = vunpack.c.h.b16 %v1015
        %v4402 = vunpack.c.l.b16 %v1016
        %v4403 = vunpack.c.h.b16 %v1016
        %v4404 = vunpack.c.l.b16 %v1017
        %v4405 = vunpack.c.h.b16 %v1017
        %v4406 = vunpack.c.l.b16 %v1018
        %v4407 = vunpack.c.h.b16 %v1018
        %v4408 = vunpack.c.l.b16 %v1019
        %v4409 = vunpack.c.h.b16 %v1019
        %v4410 = vunpack.c.l.b16 %v1020
        %v4411 = vunpack.c.h.b16 %v1020
        %v4412 = vunpack.c.l.b16 %v1021
        %v4413 = vunpack.c.h.b16 %v1021
        %v4414 = vunpack.c.l.b16 %v1022
        %v4415 = vunpack.c.h.b16 %v1022
        %v4416 = vunpack.c.l.b16 %v1023
        %v4417 = vunpack.c.h.b16 %v1023
        %v4418 = vunpack.c.l.b16 %v1024
        %v4419 = vunpack.c.h.b16 %v1024
        %v4420 = vunpack.c.l.b16 %v1025
        %v4421 = vunpack.c.h.b16 %v1025
        %v4422 = vunpack.c.l.b16 %v1026
        %v4423 = vunpack.c.h.b16 %v1026
        %v4424 = vunpack.c.l.b16 %v1027
        %v4425 = vunpack.c.h.b16 %v1027
        %v4426 = vunpack.c.l.b16 %v1028
        %v4427 = vunpack.c.h.b16 %v1028
        %v4428 = vunpack.c.l.b16 %v1029
        %v4429 = vunpack.c.h.b16 %v1029
        %v4430 = vunpack.c.l.b16 %v1030
        %v4431 = vunpack.c.h.b16 %v1030
        %v4432 = vunpack.c.l.b16 %v1031
        %v4433 = vunpack.c.h.b16 %v1031
        %v4434 = vunpack.c.l.b16 %v1032
        %v4435 = vunpack.c.h.b16 %v1032
        %v4436 = vunpack.c.l.b16 %v1033
        %v4437 = vunpack.c.h.b16 %v1033
        %v4438 = vunpack.c.l.b16 %v1034
        %v4439 = vunpack.c.h.b16 %v1034
        %v4440 = vunpack.c.l.b16 %v1035
        %v4441 = vunpack.c.h.b16 %v1035
        %v4442 = vunpack.c.l.b16 %v1036
        %v4443 = vunpack.c.h.b16 %v1036
        %v4444 = vunpack.c.l.b16 %v1037
        %v4445 = vunpack.c.h.b16 %v1037
        %v4446 = vunpack.c.l.b16 %v1038
        %v4447 = vunpack.c.h.b16 %v1038
        %v4448 = vunpack.c.l.b16 %v1039
        %v4449 = vunpack.c.h.b16 %v1039
        %v4450 = vunpack.c.l.b16 %v1040
        %v4451 = vunpack.c.h.b16 %v1040
        %v4452 = vunpack.c.l.b16 %v1041
        %v4453 = vunpack.c.h.b16 %v1041
        %v4454 = vunpack.c.l.b16 %v1042
        %v4455 = vunpack.c.h.b16 %v1042
        %v4456 = vunpack.c.l.b16 %v1043
        %v4457 = vunpack.c.h.b16 %v1043
        %v4458 = vunpack.c.l.b16 %v1044
        %v4459 = vunpack.c.h.b16 %v1044
        %v4460 = vunpack.c.l.b16 %v1045
        %v4461 = vunpack.c.h.b16 %v1045
        %v4462 = vunpack.c.l.b16 %v1046
        %v4463 = vunpack.c.h.b16 %v1046
        %v4464 = vunpack.c.l.b16 %v1047
        %v4465 = vunpack.c.h.b16 %v1047
        %v4466 = vunpack.c.l.b16 %v1048
        %v4467 = vunpack.c.h.b16 %v1048
        %v4468 = vunpack.c.l.b16 %v1049
        %v4469 = vunpack.c.h.b16 %v1049
        %v4470 = vunpack.c.l.b16 %v1050
        %v4471 = vunpack.c.h.b16 %v1050
        %v4472 = vunpack.c.l.b16 %v1051
        %v4473 = vunpack.c.h.b16 %v1051
        %v4474 = vunpack.c.l.b16 %v1052
        %v4475 = vunpack.c.h.b16 %v1052
        %v4476 = vunpack.c.l.b16 %v1053
        %v4477 = vunpack.c.h.b16 %v1053
        %v4478 = vunpack.c.l.b16 %v1054
        %v4479 = vunpack.c.h.b16 %v1054
        %v4480 = vunpack.c.l.b16 %v1055
        %v4481 = vunpack.c.h.b16 %v1055
        %v4482 = vunpack.c.l.b16 %v1056
        %v4483 = vunpack.c.h.b16 %v1056
        %v4484 = vunpack.c.l.b16 %v1057
        %v4485 = vunpack.c.h.b16 %v1057
        %v4486 = vunpack.c.l.b16 %v1058
        %v4487 = vunpack.c.h.b16 %v1058
        %v4488 = vunpack.c.l.b16 %v1059
        %v4489 = vunpack.c.h.b16 %v1059
        %v4490 = vunpack.c.l.b16 %v1060
        %v4491 = vunpack.c.h.b16 %v1060
        %v4492 = vunpack.c.l.b16 %v1061
        %v4493 = vunpack.c.h.b16 %v1061
        %v4494 = vunpack.c.l.b16 %v1062
        %v4495 = vunpack.c.h.b16 %v1062
        %v4496 = vunpack.c.l.b16 %v1063
        %v4497 = vunpack.c.h.b16 %v1063
        %v4498 = vunpack.c.l.b16 %v1064
        %v4499 = vunpack.c.h.b16 %v1064
        %v4500 = vunpack.c.l.b16 %v1065
        %v4501 = vunpack.c.h.b16 %v1065
        %v4502 = vunpack.c.l.b16 %v1066
        %v4503 = vunpack.c.h.b16 %v1066
        %v4504 = vunpack.c.l.b16 %v1067
        %v4505 = vunpack.c.h.b16 %v1067
        %v4506 = vunpack.c.l.b16 %v1068
        %v4507 = vunpack.c.h.b16 %v1068
        %v4508 = vunpack.c.l.b16 %v1069
        %v4509 = vunpack.c.h.b16 %v1069
        %v4510 = vunpack.c.l.b16 %v1070
        %v4511 = vunpack.c.h.b16 %v1070
        %v4512 = vunpack.c.l.b16 %v1071
        %v4513 = vunpack.c.h.b16 %v1071
        %v4514 = vunpack.c.l.b16 %v1072
        %v4515 = vunpack.c.h.b16 %v1072
        %v4516 = vunpack.c.l.b16 %v1073
        %v4517 = vunpack.c.h.b16 %v1073
        %v4518 = vunpack.c.l.b16 %v1074
        %v4519 = vunpack.c.h.b16 %v1074
        %v4520 = vunpack.c.l.b16 %v1075
        %v4521 = vunpack.c.h.b16 %v1075
        %v4522 = vunpack.c.l.b16 %v1076
        %v4523 = vunpack.c.h.b16 %v1076
        %v4524 = vunpack.c.l.b16 %v1077
        %v4525 = vunpack.c.h.b16 %v1077
        %v4526 = vunpack.c.l.b16 %v1078
        %v4527 = vunpack.c.h.b16 %v1078
        %v4528 = vunpack.c.l.b16 %v1079
        %v4529 = vunpack.c.h.b16 %v1079
        %v4530 = vunpack.c.l.b16 %v1080
        %v4531 = vunpack.c.h.b16 %v1080
        %v4532 = vunpack.c.l.b16 %v1081
        %v4533 = vunpack.c.h.b16 %v1081
        %v4534 = vunpack.c.l.b16 %v1082
        %v4535 = vunpack.c.h.b16 %v1082
        %v4536 = vunpack.c.l.b16 %v1083
        %v4537 = vunpack.c.h.b16 %v1083
        %v4538 = vunpack.c.l.b16 %v1084
        %v4539 = vunpack.c.h.b16 %v1084
        %v4540 = vunpack.c.l.b16 %v1085
        %v4541 = vunpack.c.h.b16 %v1085
        %v4542 = vunpack.c.l.b16 %v1086
        %v4543 = vunpack.c.h.b16 %v1086
        %v4544 = vunpack.c.l.b16 %v1087
        %v4545 = vunpack.c.h.b16 %v1087
        %v4546 = vunpack.c.l.b16 %v1088
        %v4547 = vunpack.c.h.b16 %v1088
        %v4548 = vunpack.c.l.b16 %v1089
        %v4549 = vunpack.c.h.b16 %v1089
        %v4550 = vunpack.c.l.b16 %v1090
        %v4551 = vunpack.c.h.b16 %v1090
        %v4552 = vunpack.c.l.b16 %v1091
        %v4553 = vunpack.c.h.b16 %v1091
        %v4554 = vunpack.c.l.b16 %v1092
        %v4555 = vunpack.c.h.b16 %v1092
        %v4556 = vunpack.c.l.b16 %v1093
        %v4557 = vunpack.c.h.b16 %v1093
        %v4558 = vunpack.c.l.b16 %v1094
        %v4559 = vunpack.c.h.b16 %v1094
        %v4560 = vunpack.c.l.b16 %v1095
        %v4561 = vunpack.c.h.b16 %v1095
        %v4562 = vunpack.c.l.b16 %v1096
        %v4563 = vunpack.c.h.b16 %v1096
        %v4564 = vunpack.c.l.b16 %v1097
        %v4565 = vunpack.c.h.b16 %v1097
        %v4566 = vunpack.c.l.b16 %v1098
        %v4567 = vunpack.c.h.b16 %v1098
        %v4568 = vunpack.c.l.b16 %v1099
        %v4569 = vunpack.c.h.b16 %v1099
        %v4570 = vunpack.c.l.b16 %v1100
        %v4571 = vunpack.c.h.b16 %v1100
        %v4572 = vunpack.c.l.b16 %v1101
        %v4573 = vunpack.c.h.b16 %v1101
        %v4574 = vunpack.c.l.b16 %v1102
        %v4575 = vunpack.c.h.b16 %v1102
        %v4576 = vunpack.c.l.b16 %v1103
        %v4577 = vunpack.c.h.b16 %v1103
        %v4578 = vunpack.c.l.b16 %v1104
        %v4579 = vunpack.c.h.b16 %v1104
        %v4580 = vunpack.c.l.b16 %v1105
        %v4581 = vunpack.c.h.b16 %v1105
        %v4582 = vunpack.c.l.b16 %v1106
        %v4583 = vunpack.c.h.b16 %v1106
        %v4584 = vunpack.c.l.b16 %v1107
        %v4585 = vunpack.c.h.b16 %v1107
        %v4586 = vunpack.c.l.b16 %v1108
        %v4587 = vunpack.c.h.b16 %v1108
        %v4588 = vunpack.c.l.b16 %v1109
        %v4589 = vunpack.c.h.b16 %v1109
        %v4590 = vunpack.c.l.b16 %v1110
        %v4591 = vunpack.c.h.b16 %v1110
        %v4592 = vunpack.c.l.b16 %v1111
        %v4593 = vunpack.c.h.b16 %v1111
        %v4594 = vunpack.c.l.b16 %v1112
        %v4595 = vunpack.c.h.b16 %v1112
        %v4596 = vunpack.c.l.b16 %v1113
        %v4597 = vunpack.c.h.b16 %v1113
        %v4598 = vunpack.c.l.b16 %v1114
        %v4599 = vunpack.c.h.b16 %v1114
        %v4600 = vunpack.c.l.b16 %v1115
        %v4601 = vunpack.c.h.b16 %v1115
        %v4602 = vunpack.c.l.b16 %v1116
        %v4603 = vunpack.c.h.b16 %v1116
        %v4604 = vunpack.c.l.b16 %v1117
        %v4605 = vunpack.c.h.b16 %v1117
        %v4606 = vunpack.c.l.b16 %v1118
        %v4607 = vunpack.c.h.b16 %v1118
        %v4608 = vunpack.c.l.b16 %v1119
        %v4609 = vunpack.c.h.b16 %v1119
        %v4610 = vunpack.c.l.b16 %v1120
        %v4611 = vunpack.c.h.b16 %v1120
        %v4612 = vunpack.c.l.b16 %v1121
        %v4613 = vunpack.c.h.b16 %v1121
        %v4614 = vunpack.c.l.b16 %v1122
        %v4615 = vunpack.c.h.b16 %v1122
        %v4616 = vunpack.c.l.b16 %v1123
        %v4617 = vunpack.c.h.b16 %v1123
        %v4618 = vunpack.c.l.b16 %v1124
        %v4619 = vunpack.c.h.b16 %v1124
        %v4620 = vunpack.c.l.b16 %v1125
        %v4621 = vunpack.c.h.b16 %v1125
        %v4622 = vunpack.c.l.b16 %v1126
        %v4623 = vunpack.c.h.b16 %v1126
        %v4624 = vunpack.c.l.b16 %v1127
        %v4625 = vunpack.c.h.b16 %v1127
        %v4626 = vunpack.c.l.b16 %v1128
        %v4627 = vunpack.c.h.b16 %v1128
        %v4628 = vunpack.c.l.b16 %v1129
        %v4629 = vunpack.c.h.b16 %v1129
        %v4630 = vunpack.c.l.b16 %v1130
        %v4631 = vunpack.c.h.b16 %v1130
        %v4632 = vunpack.c.l.b16 %v1131
        %v4633 = vunpack.c.h.b16 %v1131
        %v4634 = vunpack.c.l.b16 %v1132
        %v4635 = vunpack.c.h.b16 %v1132
        %v4636 = vunpack.c.l.b16 %v1133
        %v4637 = vunpack.c.h.b16 %v1133
        %v4638 = vunpack.c.l.b16 %v1134
        %v4639 = vunpack.c.h.b16 %v1134
        %v4640 = vunpack.c.l.b16 %v1135
        %v4641 = vunpack.c.h.b16 %v1135
        %v4642 = vunpack.c.l.b16 %v1136
        %v4643 = vunpack.c.h.b16 %v1136
        %v4644 = vunpack.c.l.b16 %v1137
        %v4645 = vunpack.c.h.b16 %v1137
        %v4646 = vunpack.c.l.b16 %v1138
        %v4647 = vunpack.c.h.b16 %v1138
        %v4648 = vunpack.c.l.b16 %v1139
        %v4649 = vunpack.c.h.b16 %v1139
        %v4650 = vunpack.c.l.b16 %v1140
        %v4651 = vunpack.c.h.b16 %v1140
        %v4652 = vunpack.c.l.b16 %v1141
        %v4653 = vunpack.c.h.b16 %v1141
        %v4654 = vunpack.c.l.b16 %v1142
        %v4655 = vunpack.c.h.b16 %v1142
        %v4656 = vunpack.c.l.b16 %v1143
        %v4657 = vunpack.c.h.b16 %v1143
        %v4658 = vunpack.c.l.b16 %v1144
        %v4659 = vunpack.c.h.b16 %v1144
        %v4660 = vunpack.c.l.b16 %v1145
        %v4661 = vunpack.c.h.b16 %v1145
        %v4662 = vunpack.c.l.b16 %v1146
        %v4663 = vunpack.c.h.b16 %v1146
        %v4664 = vunpack.c.l.b16 %v1147
        %v4665 = vunpack.c.h.b16 %v1147
        %v4666 = vunpack.c.l.b16 %v1148
        %v4667 = vunpack.c.h.b16 %v1148
        %v4668 = vunpack.c.l.b16 %v1149
        %v4669 = vunpack.c.h.b16 %v1149
        %v4670 = vunpack.c.l.b16 %v1150
        %v4671 = vunpack.c.h.b16 %v1150
        %v4672 = vunpack.c.l.b16 %v1151
        %v4673 = vunpack.c.h.b16 %v1151
        %v4674 = vunpack.c.l.b16 %v1152
        %v4675 = vunpack.c.h.b16 %v1152
        %v4676 = vunpack.c.l.b16 %v1153
        %v4677 = vunpack.c.h.b16 %v1153
        %v4678 = vunpack.c.l.b16 %v1154
        %v4679 = vunpack.c.h.b16 %v1154
        %v4680 = vunpack.c.l.b16 %v1155
        %v4681 = vunpack.c.h.b16 %v1155
        %v4682 = vunpack.c.l.b16 %v1156
        %v4683 = vunpack.c.h.b16 %v1156
        %v4684 = vunpack.c.l.b16 %v1157
        %v4685 = vunpack.c.h.b16 %v1157
        %v4686 = vunpack.c.l.b16 %v1158
        %v4687 = vunpack.c.h.b16 %v1158
        %v4688 = vunpack.c.l.b16 %v1159
        %v4689 = vunpack.c.h.b16 %v1159
        %v4690 = vunpack.c.l.b16 %v1160
        %v4691 = vunpack.c.h.b16 %v1160
        %v4692 = vunpack.c.l.b16 %v1161
        %v4693 = vunpack.c.h.b16 %v1161
        %v4694 = vunpack.c.l.b16 %v1162
        %v4695 = vunpack.c.h.b16 %v1162
        %v4696 = vunpack.c.l.b16 %v1163
        %v4697 = vunpack.c.h.b16 %v1163
        %v4698 = vunpack.c.l.b16 %v1164
        %v4699 = vunpack.c.h.b16 %v1164
        %v4700 = vunpack.c.l.b16 %v1165
        %v4701 = vunpack.c.h.b16 %v1165
        %v4702 = vunpack.c.l.b16 %v1166
        %v4703 = vunpack.c.h.b16 %v1166
        %v4704 = vunpack.c.l.b16 %v1167
        %v4705 = vunpack.c.h.b16 %v1167
        %v4706 = vunpack.c.l.b16 %v1168
        %v4707 = vunpack.c.h.b16 %v1168
        %v4708 = vunpack.c.l.b16 %v1169
        %v4709 = vunpack.c.h.b16 %v1169
        %v4710 = vunpack.c.l.b16 %v1170
        %v4711 = vunpack.c.h.b16 %v1170
        %v4712 = vunpack.c.l.b16 %v1171
        %v4713 = vunpack.c.h.b16 %v1171
        %v4714 = vunpack.c.l.b16 %v1172
        %v4715 = vunpack.c.h.b16 %v1172
        %v4716 = vunpack.c.l.b16 %v1173
        %v4717 = vunpack.c.h.b16 %v1173
        %v4718 = vunpack.c.l.b16 %v1174
        %v4719 = vunpack.c.h.b16 %v1174
        %v4720 = vunpack.c.l.b16 %v1175
        %v4721 = vunpack.c.h.b16 %v1175
        %v4722 = vunpack.c.l.b16 %v1176
        %v4723 = vunpack.c.h.b16 %v1176
        %v4724 = vunpack.c.l.b16 %v1177
        %v4725 = vunpack.c.h.b16 %v1177
        %v4726 = vunpack.c.l.b16 %v1178
        %v4727 = vunpack.c.h.b16 %v1178
        %v4728 = vunpack.c.l.b16 %v1179
        %v4729 = vunpack.c.h.b16 %v1179
        %v4730 = vunpack.c.l.b16 %v1180
        %v4731 = vunpack.c.h.b16 %v1180
        %v4732 = vunpack.c.l.b16 %v1181
        %v4733 = vunpack.c.h.b16 %v1181
        %v4734 = vunpack.c.l.b16 %v1182
        %v4735 = vunpack.c.h.b16 %v1182
        %v4736 = vunpack.c.l.b16 %v1183
        %v4737 = vunpack.c.h.b16 %v1183
        %v4738 = vunpack.c.l.b16 %v1184
        %v4739 = vunpack.c.h.b16 %v1184
        %v4740 = vunpack.c.l.b16 %v1185
        %v4741 = vunpack.c.h.b16 %v1185
        %v4742 = vunpack.c.l.b16 %v1186
        %v4743 = vunpack.c.h.b16 %v1186
        %v4744 = vunpack.c.l.b16 %v1187
        %v4745 = vunpack.c.h.b16 %v1187
        %v4746 = vunpack.c.l.b16 %v1188
        %v4747 = vunpack.c.h.b16 %v1188
        %v4748 = vunpack.c.l.b16 %v1189
        %v4749 = vunpack.c.h.b16 %v1189
        %v4750 = vunpack.c.l.b16 %v1190
        %v4751 = vunpack.c.h.b16 %v1190
        %v4752 = vunpack.c.l.b16 %v1191
        %v4753 = vunpack.c.h.b16 %v1191
        %v4754 = vunpack.c.l.b16 %v1192
        %v4755 = vunpack.c.h.b16 %v1192
        %v4756 = vunpack.c.l.b16 %v1193
        %v4757 = vunpack.c.h.b16 %v1193
        %v4758 = vunpack.c.l.b16 %v1194
        %v4759 = vunpack.c.h.b16 %v1194
        %v4760 = vunpack.c.l.b16 %v1195
        %v4761 = vunpack.c.h.b16 %v1195
        %v4762 = vunpack.c.l.b16 %v1196
        %v4763 = vunpack.c.h.b16 %v1196
        %v4764 = vunpack.c.l.b16 %v1197
        %v4765 = vunpack.c.h.b16 %v1197
        %v4766 = vunpack.c.l.b16 %v1198
        %v4767 = vunpack.c.h.b16 %v1198
        %v4768 = vunpack.c.l.b16 %v1199
        %v4769 = vunpack.c.h.b16 %v1199
        %v4770 = vunpack.c.l.b16 %v1200
        %v4771 = vunpack.c.h.b16 %v1200
        %v4772 = vunpack.c.l.b16 %v1201
        %v4773 = vunpack.c.h.b16 %v1201
        %v4774 = vunpack.c.l.b16 %v1202
        %v4775 = vunpack.c.h.b16 %v1202
        %v4776 = vunpack.c.l.b16 %v1203
        %v4777 = vunpack.c.h.b16 %v1203
        %v4778 = vunpack.c.l.b16 %v1204
        %v4779 = vunpack.c.h.b16 %v1204
        %v4780 = vunpack.c.l.b16 %v1205
        %v4781 = vunpack.c.h.b16 %v1205
        %v4782 = vunpack.c.l.b16 %v1206
        %v4783 = vunpack.c.h.b16 %v1206
        %v4784 = vunpack.c.l.b16 %v1207
        %v4785 = vunpack.c.h.b16 %v1207
        %v4786 = vunpack.c.l.b16 %v1208
        %v4787 = vunpack.c.h.b16 %v1208
        %v4788 = vunpack.c.l.b16 %v1209
        %v4789 = vunpack.c.h.b16 %v1209
        %v4790 = vunpack.c.l.b16 %v1210
        %v4791 = vunpack.c.h.b16 %v1210
        %v4792 = vunpack.c.l.b16 %v1211
        %v4793 = vunpack.c.h.b16 %v1211
        %v4794 = vunpack.c.l.b16 %v1212
        %v4795 = vunpack.c.h.b16 %v1212
        %v4796 = vunpack.c.l.b16 %v1213
        %v4797 = vunpack.c.h.b16 %v1213
        %v4798 = vunpack.c.l.b16 %v1214
        %v4799 = vunpack.c.h.b16 %v1214
        %v4800 = vunpack.c.l.b16 %v1215
        %v4801 = vunpack.c.h.b16 %v1215
        %v4802 = vunpack.c.l.b16 %v1216
        %v4803 = vunpack.c.h.b16 %v1216
        %v4804 = vunpack.c.l.b16 %v1217
        %v4805 = vunpack.c.h.b16 %v1217
        %v4806 = vunpack.c.l.b16 %v1218
        %v4807 = vunpack.c.h.b16 %v1218
        %v4808 = vunpack.c.l.b16 %v1219
        %v4809 = vunpack.c.h.b16 %v1219
        %v4810 = vunpack.c.l.b16 %v1220
        %v4811 = vunpack.c.h.b16 %v1220
        %v4812 = vunpack.c.l.b16 %v1221
        %v4813 = vunpack.c.h.b16 %v1221
        %v4814 = vunpack.c.l.b16 %v1222
        %v4815 = vunpack.c.h.b16 %v1222
        %v4816 = vunpack.c.l.b16 %v1223
        %v4817 = vunpack.c.h.b16 %v1223
        %v4818 = vunpack.c.l.b16 %v1224
        %v4819 = vunpack.c.h.b16 %v1224
        %v4820 = vunpack.c.l.b16 %v1225
        %v4821 = vunpack.c.h.b16 %v1225
        %v4822 = vunpack.c.l.b16 %v1226
        %v4823 = vunpack.c.h.b16 %v1226
        %v4824 = vunpack.c.l.b16 %v1227
        %v4825 = vunpack.c.h.b16 %v1227
        %v4826 = vunpack.c.l.b16 %v1228
        %v4827 = vunpack.c.h.b16 %v1228
        %v4828 = vunpack.c.l.b16 %v1229
        %v4829 = vunpack.c.h.b16 %v1229
        %v4830 = vunpack.c.l.b16 %v1230
        %v4831 = vunpack.c.h.b16 %v1230
        %v4832 = vunpack.c.l.b16 %v1231
        %v4833 = vunpack.c.h.b16 %v1231
        %v4834 = vunpack.c.l.b16 %v1232
        %v4835 = vunpack.c.h.b16 %v1232
        %v4836 = vunpack.c.l.b16 %v1233
        %v4837 = vunpack.c.h.b16 %v1233
        %v4838 = vunpack.c.l.b16 %v1234
        %v4839 = vunpack.c.h.b16 %v1234
        %v4840 = vunpack.c.l.b16 %v1235
        %v4841 = vunpack.c.h.b16 %v1235
        %v4842 = vunpack.c.l.b16 %v1236
        %v4843 = vunpack.c.h.b16 %v1236
        %v4844 = vunpack.c.l.b16 %v1237
        %v4845 = vunpack.c.h.b16 %v1237
        %v4846 = vunpack.c.l.b16 %v1238
        %v4847 = vunpack.c.h.b16 %v1238
        %v4848 = vunpack.c.l.b16 %v1239
        %v4849 = vunpack.c.h.b16 %v1239
        %v4850 = vunpack.c.l.b16 %v1240
        %v4851 = vunpack.c.h.b16 %v1240
        %v4852 = vunpack.c.l.b16 %v1241
        %v4853 = vunpack.c.h.b16 %v1241
        %v4854 = vunpack.c.l.b16 %v1242
        %v4855 = vunpack.c.h.b16 %v1242
        %v4856 = vunpack.c.l.b16 %v1243
        %v4857 = vunpack.c.h.b16 %v1243
        %v4858 = vunpack.c.l.b16 %v1244
        %v4859 = vunpack.c.h.b16 %v1244
        %v4860 = vunpack.c.l.b16 %v1245
        %v4861 = vunpack.c.h.b16 %v1245
        %v4862 = vunpack.c.l.b16 %v1246
        %v4863 = vunpack.c.h.b16 %v1246
        %v4864 = vunpack.c.l.b16 %v1247
        %v4865 = vunpack.c.h.b16 %v1247
        %v4866 = vunpack.c.l.b16 %v1248
        %v4867 = vunpack.c.h.b16 %v1248
        %v4868 = vunpack.c.l.b16 %v1249
        %v4869 = vunpack.c.h.b16 %v1249
        %v4870 = vunpack.c.l.b16 %v1250
        %v4871 = vunpack.c.h.b16 %v1250
        %v4872 = vunpack.c.l.b16 %v1251
        %v4873 = vunpack.c.h.b16 %v1251
        %v4874 = vunpack.c.l.b16 %v1252
        %v4875 = vunpack.c.h.b16 %v1252
        %v4876 = vunpack.c.l.b16 %v1253
        %v4877 = vunpack.c.h.b16 %v1253
        %v4878 = vunpack.c.l.b16 %v1254
        %v4879 = vunpack.c.h.b16 %v1254
        %v4880 = vunpack.c.l.b16 %v1255
        %v4881 = vunpack.c.h.b16 %v1255
        %v4882 = vunpack.c.l.b16 %v1256
        %v4883 = vunpack.c.h.b16 %v1256
        %v4884 = vunpack.c.l.b16 %v1257
        %v4885 = vunpack.c.h.b16 %v1257
        %v4886 = vunpack.c.l.b16 %v1258
        %v4887 = vunpack.c.h.b16 %v1258
        %v4888 = vunpack.c.l.b16 %v1259
        %v4889 = vunpack.c.h.b16 %v1259
        %v4890 = vunpack.c.l.b16 %v1260
        %v4891 = vunpack.c.h.b16 %v1260
        %v4892 = vunpack.c.l.b16 %v1261
        %v4893 = vunpack.c.h.b16 %v1261
        %v4894 = vunpack.c.l.b16 %v1262
        %v4895 = vunpack.c.h.b16 %v1262
        %v4896 = vunpack.c.l.b16 %v1263
        %v4897 = vunpack.c.h.b16 %v1263
        %v4898 = vunpack.c.l.b16 %v1264
        %v4899 = vunpack.c.h.b16 %v1264
        %v4900 = vunpack.c.l.b16 %v1265
        %v4901 = vunpack.c.h.b16 %v1265
        %v4902 = vunpack.c.l.b16 %v1266
        %v4903 = vunpack.c.h.b16 %v1266
        %v4904 = vunpack.c.l.b16 %v1267
        %v4905 = vunpack.c.h.b16 %v1267
        %v4906 = vunpack.c.l.b16 %v1268
        %v4907 = vunpack.c.h.b16 %v1268
        %v4908 = vunpack.c.l.b16 %v1269
        %v4909 = vunpack.c.h.b16 %v1269
        %v4910 = vunpack.c.l.b16 %v1270
        %v4911 = vunpack.c.h.b16 %v1270
        %v4912 = vunpack.c.l.b16 %v1271
        %v4913 = vunpack.c.h.b16 %v1271
        %v4914 = vunpack.c.l.b16 %v1272
        %v4915 = vunpack.c.h.b16 %v1272
        %v4916 = vunpack.c.l.b16 %v1273
        %v4917 = vunpack.c.h.b16 %v1273
        %v4918 = vunpack.c.l.b16 %v1274
        %v4919 = vunpack.c.h.b16 %v1274
        %v4920 = vunpack.c.l.b16 %v1275
        %v4921 = vunpack.c.h.b16 %v1275
        %v4922 = vunpack.c.l.b16 %v1276
        %v4923 = vunpack.c.h.b16 %v1276
        %v4924 = vunpack.c.l.b16 %v1277
        %v4925 = vunpack.c.h.b16 %v1277
        %v4926 = vunpack.c.l.b16 %v1278
        %v4927 = vunpack.c.h.b16 %v1278
        %v4928 = vunpack.c.l.b16 %v1279
        %v4929 = vunpack.c.h.b16 %v1279
        %v4930 = vunpack.c.l.b16 %v1280
        %v4931 = vunpack.c.h.b16 %v1280
        %v4932 = vunpack.c.l.b16 %v1281
        %v4933 = vunpack.c.h.b16 %v1281
        %v4934 = vunpack.c.l.b16 %v1282
        %v4935 = vunpack.c.h.b16 %v1282
        %v4936 = vunpack.c.l.b16 %v1283
        %v4937 = vunpack.c.h.b16 %v1283
        %v4938 = vunpack.c.l.b16 %v1284
        %v4939 = vunpack.c.h.b16 %v1284
        %v4940 = vunpack.c.l.b16 %v1285
        %v4941 = vunpack.c.h.b16 %v1285
        %v4942 = vunpack.c.l.b16 %v1286
        %v4943 = vunpack.c.h.b16 %v1286
        %v4944 = vunpack.c.l.b16 %v1287
        %v4945 = vunpack.c.h.b16 %v1287
        %v4946 = vunpack.c.l.b16 %v1288
        %v4947 = vunpack.c.h.b16 %v1288
        %v4948 = vunpack.c.l.b16 %v1289
        %v4949 = vunpack.c.h.b16 %v1289
        %v4950 = vunpack.c.l.b16 %v1290
        %v4951 = vunpack.c.h.b16 %v1290
        %v4952 = vunpack.c.l.b16 %v1291
        %v4953 = vunpack.c.h.b16 %v1291
        %v4954 = vunpack.c.l.b16 %v1292
        %v4955 = vunpack.c.h.b16 %v1292
        %v4956 = vunpack.c.l.b16 %v1293
        %v4957 = vunpack.c.h.b16 %v1293
        %v4958 = vunpack.c.l.b16 %v1294
        %v4959 = vunpack.c.h.b16 %v1294
        %v4960 = vunpack.c.l.b16 %v1295
        %v4961 = vunpack.c.h.b16 %v1295
        %v4962 = vunpack.c.l.b16 %v1296
        %v4963 = vunpack.c.h.b16 %v1296
        %v4964 = vunpack.c.l.b16 %v1297
        %v4965 = vunpack.c.h.b16 %v1297
        %v4966 = vunpack.c.l.b16 %v1298
        %v4967 = vunpack.c.h.b16 %v1298
        %v4968 = vunpack.c.l.b16 %v1299
        %v4969 = vunpack.c.h.b16 %v1299
        %v4970 = vunpack.c.l.b16 %v1300
        %v4971 = vunpack.c.h.b16 %v1300
        %v4972 = vunpack.c.l.b16 %v1301
        %v4973 = vunpack.c.h.b16 %v1301
        %v4974 = vunpack.c.l.b16 %v1302
        %v4975 = vunpack.c.h.b16 %v1302
        %v4976 = vunpack.c.l.b16 %v1303
        %v4977 = vunpack.c.h.b16 %v1303
        %v4978 = vunpack.c.l.b16 %v1304
        %v4979 = vunpack.c.h.b16 %v1304
        %v4980 = vunpack.c.l.b16 %v1305
        %v4981 = vunpack.c.h.b16 %v1305
        %v4982 = vunpack.c.l.b16 %v1306
        %v4983 = vunpack.c.h.b16 %v1306
        %v4984 = vunpack.c.l.b16 %v1307
        %v4985 = vunpack.c.h.b16 %v1307
        %v4986 = vunpack.c.l.b16 %v1308
        %v4987 = vunpack.c.h.b16 %v1308
        %v4988 = vunpack.c.l.b16 %v1309
        %v4989 = vunpack.c.h.b16 %v1309
        %v4990 = vunpack.c.l.b16 %v1310
        %v4991 = vunpack.c.h.b16 %v1310
        %v4992 = vunpack.c.l.b16 %v1311
        %v4993 = vunpack.c.h.b16 %v1311
        %v4994 = vunpack.c.l.b16 %v1312
        %v4995 = vunpack.c.h.b16 %v1312
        %v4996 = vunpack.c.l.b16 %v1313
        %v4997 = vunpack.c.h.b16 %v1313
        %v4998 = vunpack.c.l.b16 %v1314
        %v4999 = vunpack.c.h.b16 %v1314
        %v5000 = vunpack.c.l.b16 %v1315
        %v5001 = vunpack.c.h.b16 %v1315
        %v5002 = vunpack.c.l.b16 %v1316
        %v5003 = vunpack.c.h.b16 %v1316
        %v5004 = vunpack.c.l.b16 %v1317
        %v5005 = vunpack.c.h.b16 %v1317
        %v5006 = vunpack.c.l.b16 %v1318
        %v5007 = vunpack.c.h.b16 %v1318
        %v5008 = vunpack.c.l.b16 %v1319
        %v5009 = vunpack.c.h.b16 %v1319
        %v5010 = vunpack.c.l.b16 %v1320
        %v5011 = vunpack.c.h.b16 %v1320
        %v5012 = vunpack.c.l.b16 %v1321
        %v5013 = vunpack.c.h.b16 %v1321
        %v5014 = vunpack.c.l.b16 %v1322
        %v5015 = vunpack.c.h.b16 %v1322
        %v5016 = vunpack.c.l.b16 %v1323
        %v5017 = vunpack.c.h.b16 %v1323
        %v5018 = vunpack.c.l.b16 %v1324
        %v5019 = vunpack.c.h.b16 %v1324
        %v5020 = vunpack.c.l.b16 %v1325
        %v5021 = vunpack.c.h.b16 %v1325
        %v5022 = vunpack.c.l.b16 %v1326
        %v5023 = vunpack.c.h.b16 %v1326
        %v5024 = vunpack.c.l.b16 %v1327
        %v5025 = vunpack.c.h.b16 %v1327
        %v5026 = vunpack.c.l.b16 %v1328
        %v5027 = vunpack.c.h.b16 %v1328
        %v5028 = vunpack.c.l.b16 %v1329
        %v5029 = vunpack.c.h.b16 %v1329
        %v5030 = vunpack.c.l.b16 %v1330
        %v5031 = vunpack.c.h.b16 %v1330
        %v5032 = vunpack.c.l.b16 %v1331
        %v5033 = vunpack.c.h.b16 %v1331
        %v5034 = vunpack.c.l.b16 %v1332
        %v5035 = vunpack.c.h.b16 %v1332
        %v5036 = vunpack.c.l.b16 %v1333
        %v5037 = vunpack.c.h.b16 %v1333
        %v5038 = vunpack.c.l.b16 %v1334
        %v5039 = vunpack.c.h.b16 %v1334
        %v5040 = vunpack.c.l.b16 %v1335
        %v5041 = vunpack.c.h.b16 %v1335
        %v5042 = vunpack.c.l.b16 %v1336
        %v5043 = vunpack.c.h.b16 %v1336
        %v5044 = vunpack.c.l.b16 %v1337
        %v5045 = vunpack.c.h.b16 %v1337
        %v5046 = vunpack.c.l.b16 %v1338
        %v5047 = vunpack.c.h.b16 %v1338
        %v5048 = vunpack.c.l.b16 %v1339
        %v5049 = vunpack.c.h.b16 %v1339
        %v5050 = vunpack.c.l.b16 %v1340
        %v5051 = vunpack.c.h.b16 %v1340
        %v5052 = vunpack.c.l.b16 %v1341
        %v5053 = vunpack.c.h.b16 %v1341
        %v5054 = vunpack.c.l.b16 %v1342
        %v5055 = vunpack.c.h.b16 %v1342
        %v5056 = vunpack.c.l.b16 %v1343
        %v5057 = vunpack.c.h.b16 %v1343
        %v5058 = vunpack.c.l.b16 %v1344
        %v5059 = vunpack.c.h.b16 %v1344
        %v5060 = vunpack.c.l.b16 %v1345
        %v5061 = vunpack.c.h.b16 %v1345
        %v5062 = vunpack.c.l.b16 %v1346
        %v5063 = vunpack.c.h.b16 %v1346
        %v5064 = vunpack.c.l.b16 %v1347
        %v5065 = vunpack.c.h.b16 %v1347
        %v5066 = vunpack.c.l.b16 %v1348
        %v5067 = vunpack.c.h.b16 %v1348
        %v5068 = vunpack.c.l.b16 %v1349
        %v5069 = vunpack.c.h.b16 %v1349
        %v5070 = vunpack.c.l.b16 %v1350
        %v5071 = vunpack.c.h.b16 %v1350
        %v5072 = vunpack.c.l.b16 %v1351
        %v5073 = vunpack.c.h.b16 %v1351
        %v5074 = vunpack.c.l.b16 %v1352
        %v5075 = vunpack.c.h.b16 %v1352
        %v5076 = vunpack.c.l.b16 %v1353
        %v5077 = vunpack.c.h.b16 %v1353
        %v5078 = vunpack.c.l.b16 %v1354
        %v5079 = vunpack.c.h.b16 %v1354
        %v5080 = vunpack.c.l.b16 %v1355
        %v5081 = vunpack.c.h.b16 %v1355
        %v5082 = vunpack.c.l.b16 %v1356
        %v5083 = vunpack.c.h.b16 %v1356
        %v5084 = vunpack.c.l.b16 %v1357
        %v5085 = vunpack.c.h.b16 %v1357
        %v5086 = vunpack.c.l.b16 %v1358
        %v5087 = vunpack.c.h.b16 %v1358
        %v5088 = vunpack.c.l.b16 %v1359
        %v5089 = vunpack.c.h.b16 %v1359
        %v5090 = vunpack.c.l.b16 %v1360
        %v5091 = vunpack.c.h.b16 %v1360
        %v5092 = vunpack.c.l.b16 %v1361
        %v5093 = vunpack.c.h.b16 %v1361
        %v5094 = vunpack.c.l.b16 %v1362
        %v5095 = vunpack.c.h.b16 %v1362
        %v5096 = vunpack.c.l.b16 %v1363
        %v5097 = vunpack.c.h.b16 %v1363
        %v5098 = vunpack.c.l.b16 %v1364
        %v5099 = vunpack.c.h.b16 %v1364
        %v5100 = vunpack.c.l.b16 %v1365
        %v5101 = vunpack.c.h.b16 %v1365
        %v5102 = vunpack.c.l.b16 %v1366
        %v5103 = vunpack.c.h.b16 %v1366
        %v5104 = vunpack.c.l.b16 %v1367
        %v5105 = vunpack.c.h.b16 %v1367
        %v5106 = vunpack.c.l.b16 %v1368
        %v5107 = vunpack.c.h.b16 %v1368
        %v5108 = vunpack.c.l.b16 %v1369
        %v5109 = vunpack.c.h.b16 %v1369
        %v5110 = vunpack.c.l.b16 %v1370
        %v5111 = vunpack.c.h.b16 %v1370
        %v5112 = vunpack.c.l.b16 %v1371
        %v5113 = vunpack.c.h.b16 %v1371
        %v5114 = vunpack.c.l.b16 %v1372
        %v5115 = vunpack.c.h.b16 %v1372
        %v5116 = vunpack.c.l.b16 %v1373
        %v5117 = vunpack.c.h.b16 %v1373
        %v5118 = vunpack.c.l.b16 %v1374
        %v5119 = vunpack.c.h.b16 %v1374
        %v5120 = vunpack.c.l.b16 %v1375
        %v5121 = vunpack.c.h.b16 %v1375
        %v5122 = vunpack.c.l.b16 %v1376
        %v5123 = vunpack.c.h.b16 %v1376
        %v5124 = vunpack.c.l.b16 %v1377
        %v5125 = vunpack.c.h.b16 %v1377
        %v5126 = vunpack.c.l.b16 %v1378
        %v5127 = vunpack.c.h.b16 %v1378
        %v5128 = vunpack.c.l.b16 %v1379
        %v5129 = vunpack.c.h.b16 %v1379
        %v5130 = vunpack.c.l.b16 %v1380
        %v5131 = vunpack.c.h.b16 %v1380
        %v5132 = vunpack.c.l.b16 %v1381
        %v5133 = vunpack.c.h.b16 %v1381
        %v5134 = vunpack.c.l.b16 %v1382
        %v5135 = vunpack.c.h.b16 %v1382
        %v5136 = vunpack.c.l.b16 %v1383
        %v5137 = vunpack.c.h.b16 %v1383
        %v5138 = vunpack.c.l.b16 %v1384
        %v5139 = vunpack.c.h.b16 %v1384
        %v5140 = vunpack.c.l.b16 %v1385
        %v5141 = vunpack.c.h.b16 %v1385
        %v5142 = vunpack.c.l.b16 %v1386
        %v5143 = vunpack.c.h.b16 %v1386
        %v5144 = vunpack.c.l.b16 %v1387
        %v5145 = vunpack.c.h.b16 %v1387
        %v5146 = vunpack.c.l.b16 %v1388
        %v5147 = vunpack.c.h.b16 %v1388
        %v5148 = vunpack.c.l.b16 %v1389
        %v5149 = vunpack.c.h.b16 %v1389
        %v5150 = vunpack.c.l.b16 %v1390
        %v5151 = vunpack.c.h.b16 %v1390
        %v5152 = vunpack.c.l.b16 %v1391
        %v5153 = vunpack.c.h.b16 %v1391
        %v5154 = vunpack.c.l.b16 %v1392
        %v5155 = vunpack.c.h.b16 %v1392
        %v5156 = vunpack.c.l.b16 %v1393
        %v5157 = vunpack.c.h.b16 %v1393
        %v5158 = vunpack.c.l.b16 %v1394
        %v5159 = vunpack.c.h.b16 %v1394
        %v5160 = vunpack.c.l.b16 %v1395
        %v5161 = vunpack.c.h.b16 %v1395
        %v5162 = vunpack.c.l.b16 %v1396
        %v5163 = vunpack.c.h.b16 %v1396
        %v5164 = vunpack.c.l.b16 %v1397
        %v5165 = vunpack.c.h.b16 %v1397
        %v5166 = vunpack.c.l.b16 %v1398
        %v5167 = vunpack.c.h.b16 %v1398
        %v5168 = vunpack.c.l.b16 %v1399
        %v5169 = vunpack.c.h.b16 %v1399
        %v5170 = vunpack.c.l.b16 %v1400
        %v5171 = vunpack.c.h.b16 %v1400
        %v5172 = vunpack.c.l.b16 %v1401
        %v5173 = vunpack.c.h.b16 %v1401
        %v5174 = vunpack.c.l.b16 %v1402
        %v5175 = vunpack.c.h.b16 %v1402
        %v5176 = vunpack.c.l.b16 %v1403
        %v5177 = vunpack.c.h.b16 %v1403
        %v5178 = vunpack.c.l.b16 %v1404
        %v5179 = vunpack.c.h.b16 %v1404
        %v5180 = vunpack.c.l.b16 %v1405
        %v5181 = vunpack.c.h.b16 %v1405
        %v5182 = vunpack.c.l.b16 %v1406
        %v5183 = vunpack.c.h.b16 %v1406
        %v5184 = vunpack.c.l.b16 %v1407
        %v5185 = vunpack.c.h.b16 %v1407
        %v5186 = vunpack.c.l.b16 %v1408
        %v5187 = vunpack.c.h.b16 %v1408
        %v5188 = vunpack.c.l.b16 %v1409
        %v5189 = vunpack.c.h.b16 %v1409
        %v5190 = vunpack.c.l.b16 %v1410
        %v5191 = vunpack.c.h.b16 %v1410
        %v5192 = vunpack.c.l.b16 %v1411
        %v5193 = vunpack.c.h.b16 %v1411
        %v5194 = vunpack.c.l.b16 %v1412
        %v5195 = vunpack.c.h.b16 %v1412
        %v5196 = vunpack.c.l.b16 %v1413
        %v5197 = vunpack.c.h.b16 %v1413
        %v5198 = vunpack.c.l.b16 %v1414
        %v5199 = vunpack.c.h.b16 %v1414
        %v5200 = vunpack.c.l.b16 %v1415
        %v5201 = vunpack.c.h.b16 %v1415
        %v5202 = vunpack.c.l.b16 %v1416
        %v5203 = vunpack.c.h.b16 %v1416
        %v5204 = vunpack.c.l.b16 %v1417
        %v5205 = vunpack.c.h.b16 %v1417
        %v5206 = vunpack.c.l.b16 %v1418
        %v5207 = vunpack.c.h.b16 %v1418
        %v5208 = vunpack.c.l.b16 %v1419
        %v5209 = vunpack.c.h.b16 %v1419
        %v5210 = vunpack.c.l.b16 %v1420
        %v5211 = vunpack.c.h.b16 %v1420
        %v5212 = vunpack.c.l.b16 %v1421
        %v5213 = vunpack.c.h.b16 %v1421
        %v5214 = vunpack.c.l.b16 %v1422
        %v5215 = vunpack.c.h.b16 %v1422
        %v5216 = vunpack.c.l.b16 %v1423
        %v5217 = vunpack.c.h.b16 %v1423
        %v5218 = vunpack.c.l.b16 %v1424
        %v5219 = vunpack.c.h.b16 %v1424
        %v5220 = vunpack.c.l.b16 %v1425
        %v5221 = vunpack.c.h.b16 %v1425
        %v5222 = vunpack.c.l.b16 %v1426
        %v5223 = vunpack.c.h.b16 %v1426
        %v5224 = vunpack.c.l.b16 %v1427
        %v5225 = vunpack.c.h.b16 %v1427
        %v5226 = vunpack.c.l.b16 %v1428
        %v5227 = vunpack.c.h.b16 %v1428
        %v5228 = vunpack.c.l.b16 %v1429
        %v5229 = vunpack.c.h.b16 %v1429
        %v5230 = vunpack.c.l.b16 %v1430
        %v5231 = vunpack.c.h.b16 %v1430
        %v5232 = vunpack.c.l.b16 %v1431
        %v5233 = vunpack.c.h.b16 %v1431
        %v5234 = vunpack.c.l.b16 %v1432
        %v5235 = vunpack.c.h.b16 %v1432
        %v5236 = vunpack.c.l.b16 %v1433
        %v5237 = vunpack.c.h.b16 %v1433
        %v5238 = vunpack.c.l.b16 %v1434
        %v5239 = vunpack.c.h.b16 %v1434
        %v5240 = vunpack.c.l.b16 %v1435
        %v5241 = vunpack.c.h.b16 %v1435
        %v5242 = vunpack.c.l.b16 %v1436
        %v5243 = vunpack.c.h.b16 %v1436
        %v5244 = vunpack.c.l.b16 %v1437
        %v5245 = vunpack.c.h.b16 %v1437
        %v5246 = vunpack.c.l.b16 %v1438
        %v5247 = vunpack.c.h.b16 %v1438
        %v5248 = vunpack.c.l.b16 %v1439
        %v5249 = vunpack.c.h.b16 %v1439
        %v5250 = vunpack.c.l.b16 %v1440
        %v5251 = vunpack.c.h.b16 %v1440
        %v5252 = vunpack.c.l.b16 %v1441
        %v5253 = vunpack.c.h.b16 %v1441
        %v5254 = vunpack.c.l.b16 %v1442
        %v5255 = vunpack.c.h.b16 %v1442
        %v5256 = vunpack.c.l.b16 %v1443
        %v5257 = vunpack.c.h.b16 %v1443
        %v5258 = vunpack.c.l.b16 %v1444
        %v5259 = vunpack.c.h.b16 %v1444
        %v5260 = vunpack.c.l.b16 %v1445
        %v5261 = vunpack.c.h.b16 %v1445
        %v5262 = vunpack.c.l.b16 %v1446
        %v5263 = vunpack.c.h.b16 %v1446
        %v5264 = vunpack.c.l.b16 %v1447
        %v5265 = vunpack.c.h.b16 %v1447
        %v5266 = vunpack.c.l.b16 %v1448
        %v5267 = vunpack.c.h.b16 %v1448
        %v5268 = vunpack.c.l.b16 %v1449
        %v5269 = vunpack.c.h.b16 %v1449
        %v5270 = vunpack.c.l.b16 %v1450
        %v5271 = vunpack.c.h.b16 %v1450
        %v5272 = vunpack.c.l.b16 %v1451
        %v5273 = vunpack.c.h.b16 %v1451
        %v5274 = vunpack.c.l.b16 %v1452
        %v5275 = vunpack.c.h.b16 %v1452
        %v5276 = vunpack.c.l.b16 %v1453
        %v5277 = vunpack.c.h.b16 %v1453
        %v5278 = vunpack.c.l.b16 %v1454
        %v5279 = vunpack.c.h.b16 %v1454
        %v5280 = vunpack.c.l.b16 %v1455
        %v5281 = vunpack.c.h.b16 %v1455
        %v5282 = vunpack.c.l.b16 %v1456
        %v5283 = vunpack.c.h.b16 %v1456
        %v5284 = vunpack.c.l.b16 %v1457
        %v5285 = vunpack.c.h.b16 %v1457
        %v5286 = vunpack.c.l.b16 %v1458
        %v5287 = vunpack.c.h.b16 %v1458
        %v5288 = vunpack.c.l.b16 %v1459
        %v5289 = vunpack.c.h.b16 %v1459
        %v5290 = vunpack.c.l.b16 %v1460
        %v5291 = vunpack.c.h.b16 %v1460
        %v5292 = vunpack.c.l.b16 %v1461
        %v5293 = vunpack.c.h.b16 %v1461
        %v5294 = vunpack.c.l.b16 %v1462
        %v5295 = vunpack.c.h.b16 %v1462
        %v5296 = vunpack.c.l.b16 %v1463
        %v5297 = vunpack.c.h.b16 %v1463
        %v5298 = vunpack.c.l.b16 %v1464
        %v5299 = vunpack.c.h.b16 %v1464
        %v5300 = vunpack.c.l.b16 %v1465
        %v5301 = vunpack.c.h.b16 %v1465
        %v5302 = vunpack.c.l.b16 %v1466
        %v5303 = vunpack.c.h.b16 %v1466
        %v5304 = vunpack.c.l.b16 %v1467
        %v5305 = vunpack.c.h.b16 %v1467
        %v5306 = vunpack.c.l.b16 %v1468
        %v5307 = vunpack.c.h.b16 %v1468
        %v5308 = vunpack.c.l.b16 %v1469
        %v5309 = vunpack.c.h.b16 %v1469
        %v5310 = vunpack.c.l.b16 %v1470
        %v5311 = vunpack.c.h.b16 %v1470
        %v5312 = vunpack.c.l.b16 %v1471
        %v5313 = vunpack.c.h.b16 %v1471
        %v5314 = vunpack.c.l.b16 %v1472
        %v5315 = vunpack.c.h.b16 %v1472
        %v5316 = vunpack.c.l.b16 %v1473
        %v5317 = vunpack.c.h.b16 %v1473
        %v5318 = vunpack.c.l.b16 %v1474
        %v5319 = vunpack.c.h.b16 %v1474
        %v5320 = vunpack.c.l.b16 %v1475
        %v5321 = vunpack.c.h.b16 %v1475
        %v5322 = vunpack.c.l.b16 %v1476
        %v5323 = vunpack.c.h.b16 %v1476
        %v5324 = vunpack.c.l.b16 %v1477
        %v5325 = vunpack.c.h.b16 %v1477
        %v5326 = vunpack.c.l.b16 %v1478
        %v5327 = vunpack.c.h.b16 %v1478
        %v5328 = vunpack.c.l.b16 %v1479
        %v5329 = vunpack.c.h.b16 %v1479
        %v5330 = vunpack.c.l.b16 %v1480
        %v5331 = vunpack.c.h.b16 %v1480
        %v5332 = vunpack.c.l.b16 %v1481
        %v5333 = vunpack.c.h.b16 %v1481
        %v5334 = vunpack.c.l.b16 %v1482
        %v5335 = vunpack.c.h.b16 %v1482
        %v5336 = vunpack.c.l.b16 %v1483
        %v5337 = vunpack.c.h.b16 %v1483
        %v5338 = vunpack.c.l.b16 %v1484
        %v5339 = vunpack.c.h.b16 %v1484
        %v5340 = vunpack.c.l.b16 %v1485
        %v5341 = vunpack.c.h.b16 %v1485
        %v5342 = vunpack.c.l.b16 %v1486
        %v5343 = vunpack.c.h.b16 %v1486
        %v5344 = vunpack.c.l.b16 %v1487
        %v5345 = vunpack.c.h.b16 %v1487
        %v5346 = vunpack.c.l.b16 %v1488
        %v5347 = vunpack.c.h.b16 %v1488
        %v5348 = vunpack.c.l.b16 %v1489
        %v5349 = vunpack.c.h.b16 %v1489
        %v5350 = vunpack.c.l.b16 %v1490
        %v5351 = vunpack.c.h.b16 %v1490
        %v5352 = vunpack.c.l.b16 %v1491
        %v5353 = vunpack.c.h.b16 %v1491
        %v5354 = vunpack.c.l.b16 %v1492
        %v5355 = vunpack.c.h.b16 %v1492
        %v5356 = vunpack.c.l.b16 %v1493
        %v5357 = vunpack.c.h.b16 %v1493
        %v5358 = vunpack.c.l.b16 %v1494
        %v5359 = vunpack.c.h.b16 %v1494
        %v5360 = vunpack.c.l.b16 %v1495
        %v5361 = vunpack.c.h.b16 %v1495
        %v5362 = vunpack.c.l.b16 %v1496
        %v5363 = vunpack.c.h.b16 %v1496
        %v5364 = vunpack.c.l.b16 %v1497
        %v5365 = vunpack.c.h.b16 %v1497
        %v5366 = vunpack.c.l.b16 %v1498
        %v5367 = vunpack.c.h.b16 %v1498
        %v5368 = vunpack.c.l.b16 %v1499
        %v5369 = vunpack.c.h.b16 %v1499
        %v5370 = vunpack.c.l.b16 %v1500
        %v5371 = vunpack.c.h.b16 %v1500
        %v5372 = vunpack.c.l.b16 %v1501
        %v5373 = vunpack.c.h.b16 %v1501
        %v5374 = vunpack.c.l.b16 %v1502
        %v5375 = vunpack.c.h.b16 %v1502
        %v5376 = vunpack.c.l.b16 %v1503
        %v5377 = vunpack.c.h.b16 %v1503
        %v5378 = vunpack.c.l.b16 %v1504
        %v5379 = vunpack.c.h.b16 %v1504
        %v5380 = vunpack.c.l.b16 %v1505
        %v5381 = vunpack.c.h.b16 %v1505
        %v5382 = vunpack.c.l.b16 %v1506
        %v5383 = vunpack.c.h.b16 %v1506
        %v5384 = vunpack.c.l.b16 %v1507
        %v5385 = vunpack.c.h.b16 %v1507
        %v5386 = vunpack.c.l.b16 %v1508
        %v5387 = vunpack.c.h.b16 %v1508
        %v5388 = vunpack.c.l.b16 %v1509
        %v5389 = vunpack.c.h.b16 %v1509
        %v5390 = vunpack.c.l.b16 %v1510
        %v5391 = vunpack.c.h.b16 %v1510
        %v5392 = vunpack.c.l.b16 %v1511
        %v5393 = vunpack.c.h.b16 %v1511
        %v5394 = vunpack.c.l.b16 %v1512
        %v5395 = vunpack.c.h.b16 %v1512
        %v5396 = vunpack.c.l.b16 %v1513
        %v5397 = vunpack.c.h.b16 %v1513
        %v5398 = vunpack.c.l.b16 %v1514
        %v5399 = vunpack.c.h.b16 %v1514
        %v5400 = vunpack.c.l.b16 %v1515
        %v5401 = vunpack.c.h.b16 %v1515
        %v5402 = vunpack.c.l.b16 %v1516
        %v5403 = vunpack.c.h.b16 %v1516
        %v5404 = vunpack.c.l.b16 %v1517
        %v5405 = vunpack.c.h.b16 %v1517
        %v5406 = vunpack.c.l.b16 %v1518
        %v5407 = vunpack.c.h.b16 %v1518
        %v5408 = vunpack.c.l.b16 %v1519
        %v5409 = vunpack.c.h.b16 %v1519
        %v5410 = vunpack.c.l.b16 %v1520
        %v5411 = vunpack.c.h.b16 %v1520
        %v5412 = vunpack.c.l.b16 %v1521
        %v5413 = vunpack.c.h.b16 %v1521
        %v5414 = vunpack.c.l.b16 %v1522
        %v5415 = vunpack.c.h.b16 %v1522
        %v5416 = vunpack.c.l.b16 %v1523
        %v5417 = vunpack.c.h.b16 %v1523
        %v5418 = vunpack.c.l.b16 %v1524
        %v5419 = vunpack.c.h.b16 %v1524
        %v5420 = vunpack.c.l.b16 %v1525
        %v5421 = vunpack.c.h.b16 %v1525
        %v5422 = vunpack.c.l.b16 %v1526
        %v5423 = vunpack.c.h.b16 %v1526
        %v5424 = vunpack.c.l.b16 %v1527
        %v5425 = vunpack.c.h.b16 %v1527
        %v5426 = vunpack.c.l.b16 %v1528
        %v5427 = vunpack.c.h.b16 %v1528
        %v5428 = vunpack.c.l.b16 %v1529
        %v5429 = vunpack.c.h.b16 %v1529
        %v5430 = vunpack.c.l.b16 %v1530
        %v5431 = vunpack.c.h.b16 %v1530
        %v5432 = vunpack.c.l.b16 %v1531
        %v5433 = vunpack.c.h.b16 %v1531
        %v5434 = vunpack.c.l.b16 %v1532
        %v5435 = vunpack.c.h.b16 %v1532
        %v5436 = vunpack.c.l.b16 %v1533
        %v5437 = vunpack.c.h.b16 %v1533
        %v5438 = vunpack.c.l.b16 %v1534
        %v5439 = vunpack.c.h.b16 %v1534
        %v5440 = vunpack.c.l.b16 %v1535
        %v5441 = vunpack.c.h.b16 %v1535
        %v5442 = vunpack.c.l.b16 %v1536
        %v5443 = vunpack.c.h.b16 %v1536
        %v5444 = vunpack.c.l.b16 %v1537
        %v5445 = vunpack.c.h.b16 %v1537
        %v5446 = vunpack.c.l.b16 %v1538
        %v5447 = vunpack.c.h.b16 %v1538
        %v5448 = vunpack.c.l.b16 %v1539
        %v5449 = vunpack.c.h.b16 %v1539
        %v5450 = vunpack.c.l.b16 %v1540
        %v5451 = vunpack.c.h.b16 %v1540
        %v5452 = vunpack.c.l.b16 %v1541
        %v5453 = vunpack.c.h.b16 %v1541
        %v5454 = vunpack.c.l.b16 %v1542
        %v5455 = vunpack.c.h.b16 %v1542
        %v5456 = vunpack.c.l.b16 %v1543
        %v5457 = vunpack.c.h.b16 %v1543
        %v5458 = vunpack.c.l.b16 %v1544
        %v5459 = vunpack.c.h.b16 %v1544
        %v5460 = vunpack.c.l.b16 %v1545
        %v5461 = vunpack.c.h.b16 %v1545
        %v5462 = vunpack.c.l.b16 %v1546
        %v5463 = vunpack.c.h.b16 %v1546
        %v5464 = vunpack.c.l.b16 %v1547
        %v5465 = vunpack.c.h.b16 %v1547
        %v5466 = vunpack.c.l.b16 %v1548
        %v5467 = vunpack.c.h.b16 %v1548
        %v5468 = vunpack.c.l.b16 %v1549
        %v5469 = vunpack.c.h.b16 %v1549
        %v5470 = vunpack.c.l.b16 %v1550
        %v5471 = vunpack.c.h.b16 %v1550
        %v5472 = vunpack.c.l.b16 %v1551
        %v5473 = vunpack.c.h.b16 %v1551
        %v5474 = vunpack.c.l.b16 %v1552
        %v5475 = vunpack.c.h.b16 %v1552
        %v5476 = vunpack.c.l.b16 %v1553
        %v5477 = vunpack.c.h.b16 %v1553
        %v5478 = vunpack.c.l.b16 %v1554
        %v5479 = vunpack.c.h.b16 %v1554
        %v5480 = vunpack.c.l.b16 %v1555
        %v5481 = vunpack.c.h.b16 %v1555
        %v5482 = vunpack.c.l.b16 %v1556
        %v5483 = vunpack.c.h.b16 %v1556
        %v5484 = vunpack.c.l.b16 %v1557
        %v5485 = vunpack.c.h.b16 %v1557
        %v5486 = vunpack.c.l.b16 %v1558
        %v5487 = vunpack.c.h.b16 %v1558
        %v5488 = vunpack.c.l.b16 %v1559
        %v5489 = vunpack.c.h.b16 %v1559
        %v5490 = vunpack.c.l.b16 %v1560
        %v5491 = vunpack.c.h.b16 %v1560
        %v5492 = vunpack.c.l.b16 %v1561
        %v5493 = vunpack.c.h.b16 %v1561
        %v5494 = vunpack.c.l.b16 %v1562
        %v5495 = vunpack.c.h.b16 %v1562
        %v5496 = vunpack.c.l.b16 %v1563
        %v5497 = vunpack.c.h.b16 %v1563
        %v5498 = vunpack.c.l.b16 %v1564
        %v5499 = vunpack.c.h.b16 %v1564
        %v5500 = vunpack.c.l.b16 %v1565
        %v5501 = vunpack.c.h.b16 %v1565
        %v5502 = vunpack.c.l.b16 %v1566
        %v5503 = vunpack.c.h.b16 %v1566
        %v5504 = vunpack.c.l.b16 %v1567
        %v5505 = vunpack.c.h.b16 %v1567
        %v5506 = vunpack.c.l.b16 %v1568
        %v5507 = vunpack.c.h.b16 %v1568
        %v5508 = vunpack.c.l.b16 %v1569
        %v5509 = vunpack.c.h.b16 %v1569
        %v5510 = vpack.c.b16 %v2990, %v2950
        %v5511 = vpack.c.b16 %v2991, %v2951
        %v5512 = vpack.c.b16 %v2992, %v2952
        %v5513 = vpack.c.b16 %v2993, %v2953
        %v5514 = vpack.c.b16 %v2994, %v2954
        %v5515 = vpack.c.b16 %v2995, %v2955
        %v5516 = vpack.c.b16 %v2996, %v2956
        %v5517 = vpack.c.b16 %v2997, %v2957
        %v5518 = vpack.c.b16 %v2998, %v2958
        %v5519 = vpack.c.b16 %v2999, %v2959
        %v5520 = vpack.c.b16 %v3000, %v2960
        %v5521 = vpack.c.b16 %v3001, %v2961
        %v5522 = vpack.c.b16 %v3002, %v2962
        %v5523 = vpack.c.b16 %v3003, %v2963
        %v5524 = vpack.c.b16 %v3004, %v2964
        %v5525 = vpack.c.b16 %v3005, %v2965
        %v5526 = vpack.c.b16 %v3006, %v2966
        %v5527 = vpack.c.b16 %v3007, %v2967
        %v5528 = vpack.c.b16 %v3008, %v2968
        %v5529 = vpack.c.b16 %v3009, %v2969
        %v5530 = vpack.c.b16 %v3010, %v2970
        %v5531 = vpack.c.b16 %v3011, %v2971
        %v5532 = vpack.c.b16 %v3012, %v2972
        %v5533 = vpack.c.b16 %v3013, %v2973
        %v5534 = vpack.c.b16 %v3014, %v2974
        %v5535 = vpack.c.b16 %v3015, %v2975
        %v5536 = vpack.c.b16 %v3016, %v2976
        %v5537 = vpack.c.b16 %v3017, %v2977
        %v5538 = vpack.c.b16 %v3018, %v2978
        %v5539 = vpack.c.b16 %v3019, %v2979
        %v5540 = vpack.c.b16 %v3020, %v2980
        %v5541 = vpack.c.b16 %v3021, %v2981
        %v5542 = vpack.c.b16 %v3022, %v2982
        %v5543 = vpack.c.b16 %v3023, %v2983
        %v5544 = vpack.c.b16 %v3024, %v2984
        %v5545 = vpack.c.b16 %v3025, %v2985
        %v5546 = vpack.c.b16 %v3026, %v2986
        %v5547 = vpack.c.b16 %v3027, %v2987
        %v5548 = vpack.c.b16 %v3028, %v2988
        %v5549 = vpack.c.b16 %v3029, %v2989
        %v5550 = vpack.c.b16 %v3070, %v3030
        %v5551 = vpack.c.b16 %v3071, %v3031
        %v5552 = vpack.c.b16 %v3072, %v3032
        %v5553 = vpack.c.b16 %v3073, %v3033
        %v5554 = vpack.c.b16 %v3074, %v3034
        %v5555 = vpack.c.b16 %v3075, %v3035
        %v5556 = vpack.c.b16 %v3076, %v3036
        %v5557 = vpack.c.b16 %v3077, %v3037
        %v5558 = vpack.c.b16 %v3078, %v3038
        %v5559 = vpack.c.b16 %v3079, %v3039
        %v5560 = vpack.c.b16 %v3080, %v3040
        %v5561 = vpack.c.b16 %v3081, %v3041
        %v5562 = vpack.c.b16 %v3082, %v3042
        %v5563 = vpack.c.b16 %v3083, %v3043
        %v5564 = vpack.c.b16 %v3084, %v3044
        %v5565 = vpack.c.b16 %v3085, %v3045
        %v5566 = vpack.c.b16 %v3086, %v3046
        %v5567 = vpack.c.b16 %v3087, %v3047
        %v5568 = vpack.c.b16 %v3088, %v3048
        %v5569 = vpack.c.b16 %v3089, %v3049
        %v5570 = vpack.c.b16 %v3090, %v3050
        %v5571 = vpack.c.b16 %v3091, %v3051
        %v5572 = vpack.c.b16 %v3092, %v3052
        %v5573 = vpack.c.b16 %v3093, %v3053
        %v5574 = vpack.c.b16 %v3094, %v3054
        %v5575 = vpack.c.b16 %v3095, %v3055
        %v5576 = vpack.c.b16 %v3096, %v3056
        %v5577 = vpack.c.b16 %v3097, %v3057
        %v5578 = vpack.c.b16 %v3098, %v3058
        %v5579 = vpack.c.b16 %v3099, %v3059
        %v5580 = vpack.c.b16 %v3100, %v3060
        %v5581 = vpack.c.b16 %v3101, %v3061
        %v5582 = vpack.c.b16 %v3102, %v3062
        %v5583 = vpack.c.b16 %v3103, %v3063
        %v5584 = vpack.c.b16 %v3104, %v3064
        %v5585 = vpack.c.b16 %v3105, %v3065
        %v5586 = vpack.c.b16 %v3106, %v3066
        %v5587 = vpack.c.b16 %v3107, %v3067
        %v5588 = vpack.c.b16 %v3108, %v3068
        %v5589 = vpack.c.b16 %v3109, %v3069
        %v5590 = vpack.c.b16 %v3150, %v3110
        %v5591 = vpack.c.b16 %v3151, %v3111
        %v5592 = vpack.c.b16 %v3152, %v3112
        %v5593 = vpack.c.b16 %v3153, %v3113
        %v5594 = vpack.c.b16 %v3154, %v3114
        %v5595 = vpack.c.b16 %v3155, %v3115
        %v5596 = vpack.c.b16 %v3156, %v3116
        %v5597 = vpack.c.b16 %v3157, %v3117
        %v5598 = vpack.c.b16 %v3158, %v3118
        %v5599 = vpack.c.b16 %v3159, %v3119
        %v5600 = vpack.c.b16 %v3160, %v3120
        %v5601 = vpack.c.b16 %v3161, %v3121
        %v5602 = vpack.c.b16 %v3162, %v3122
        %v5603 = vpack.c.b16 %v3163, %v3123
        %v5604 = vpack.c.b16 %v3164, %v3124
        %v5605 = vpack.c.b16 %v3165, %v3125
        %v5606 = vpack.c.b16 %v3166, %v3126
        %v5607 = vpack.c.b16 %v3167, %v3127
        %v5608 = vpack.c.b16 %v3168, %v3128
        %v5609 = vpack.c.b16 %v3169, %v3129
        %v5610 = vpack.c.b16 %v3170, %v3130
        %v5611 = vpack.c.b16 %v3171, %v3131
        %v5612 = vpack.c.b16 %v3172, %v3132
        %v5613 = vpack.c.b16 %v3173, %v3133
        %v5614 = vpack.c.b16 %v3174, %v3134
        %v5615 = vpack.c.b16 %v3175, %v3135
        %v5616 = vpack.c.b16 %v3176, %v3136
        %v5617 = vpack.c.b16 %v3177, %v3137
        %v5618 = vpack.c.b16 %v3178, %v3138
        %v5619 = vpack.c.b16 %v3179, %v3139
        %v5620 = vpack.c.b16 %v3180, %v3140
        %v5621 = vpack.c.b16 %v3181, %v3141
        %v5622 = vpack.c.b16 %v3182, %v3142
        %v5623 = vpack.c.b16 %v3183, %v3143
        %v5624 = vpack.c.b16 %v3184, %v3144
        %v5625 = vpack.c.b16 %v3185, %v3145
        %v5626 = vpack.c.b16 %v3186, %v3146
        %v5627 = vpack.c.b16 %v3187, %v3147
        %v5628 = vpack.c.b16 %v3188, %v3148
        %v5629 = vpack.c.b16 %v3189, %v3149
        %v5630 = vpack.c.b16 %v3230, %v3190
        %v5631 = vpack.c.b16 %v3231, %v3191
        %v5632 = vpack.c.b16 %v3232, %v3192
        %v5633 = vpack.c.b16 %v3233, %v3193
        %v5634 = vpack.c.b16 %v3234, %v3194
        %v5635 = vpack.c.b16 %v3235, %v3195
        %v5636 = vpack.c.b16 %v3236, %v3196
        %v5637 = vpack.c.b16 %v3237, %v3197
        %v5638 = vpack.c.b16 %v3238, %v3198
        %v5639 = vpack.c.b16 %v3239, %v3199
        %v5640 = vpack.c.b16 %v3240, %v3200
        %v5641 = vpack.c.b16 %v3241, %v3201
        %v5642 = vpack.c.b16 %v3242, %v3202
        %v5643 = vpack.c.b16 %v3243, %v3203
        %v5644 = vpack.c.b16 %v3244, %v3204
        %v5645 = vpack.c.b16 %v3245, %v3205
        %v5646 = vpack.c.b16 %v3246, %v3206
        %v5647 = vpack.c.b16 %v3247, %v3207
        %v5648 = vpack.c.b16 %v3248, %v3208
        %v5649 = vpack.c.b16 %v3249, %v3209
        %v5650 = vpack.c.b16 %v3250, %v3210
        %v5651 = vpack.c.b16 %v3251, %v3211
        %v5652 = vpack.c.b16 %v3252, %v3212
        %v5653 = vpack.c.b16 %v3253, %v3213
        %v5654 = vpack.c.b16 %v3254, %v3214
        %v5655 = vpack.c.b16 %v3255, %v3215
        %v5656 = vpack.c.b16 %v3256, %v3216
        %v5657 = vpack.c.b16 %v3257, %v3217
        %v5658 = vpack.c.b16 %v3258, %v3218
        %v5659 = vpack.c.b16 %v3259, %v3219
        %v5660 = vpack.c.b16 %v3260, %v3220
        %v5661 = vpack.c.b16 %v3261, %v3221
        %v5662 = vpack.c.b16 %v3262, %v3222
        %v5663 = vpack.c.b16 %v3263, %v3223
        %v5664 = vpack.c.b16 %v3264, %v3224
        %v5665 = vpack.c.b16 %v3265, %v3225
        %v5666 = vpack.c.b16 %v3266, %v3226
        %v5667 = vpack.c.b16 %v3267, %v3227
        %v5668 = vpack.c.b16 %v3268, %v3228
        %v5669 = vpack.c.b16 %v3269, %v3229
        %v5670 = vpack.c.b16 %v3310, %v3270
        %v5671 = vpack.c.b16 %v3311, %v3271
        %v5672 = vpack.c.b16 %v3312, %v3272
        %v5673 = vpack.c.b16 %v3313, %v3273
        %v5674 = vpack.c.b16 %v3314, %v3274
        %v5675 = vpack.c.b16 %v3315, %v3275
        %v5676 = vpack.c.b16 %v3316, %v3276
        %v5677 = vpack.c.b16 %v3317, %v3277
        %v5678 = vpack.c.b16 %v3318, %v3278
        %v5679 = vpack.c.b16 %v3319, %v3279
        %v5680 = vpack.c.b16 %v3320, %v3280
        %v5681 = vpack.c.b16 %v3321, %v3281
        %v5682 = vpack.c.b16 %v3322, %v3282
        %v5683 = vpack.c.b16 %v3323, %v3283
        %v5684 = vpack.c.b16 %v3324, %v3284
        %v5685 = vpack.c.b16 %v3325, %v3285
        %v5686 = vpack.c.b16 %v3326, %v3286
        %v5687 = vpack.c.b16 %v3327, %v3287
        %v5688 = vpack.c.b16 %v3328, %v3288
        %v5689 = vpack.c.b16 %v3329, %v3289
        %v5690 = vpack.c.b16 %v3330, %v3290
        %v5691 = vpack.c.b16 %v3331, %v3291
        %v5692 = vpack.c.b16 %v3332, %v3292
        %v5693 = vpack.c.b16 %v3333, %v3293
        %v5694 = vpack.c.b16 %v3334, %v3294
        %v5695 = vpack.c.b16 %v3335, %v3295
        %v5696 = vpack.c.b16 %v3336, %v3296
        %v5697 = vpack.c.b16 %v3337, %v3297
        %v5698 = vpack.c.b16 %v3338, %v3298
        %v5699 = vpack.c.b16 %v3339, %v3299
        %v5700 = vpack.c.b16 %v3340, %v3300
        %v5701 = vpack.c.b16 %v3341, %v3301
        %v5702 = vpack.c.b16 %v3342, %v3302
        %v5703 = vpack.c.b16 %v3343, %v3303
        %v5704 = vpack.c.b16 %v3344, %v3304
        %v5705 = vpack.c.b16 %v3345, %v3305
        %v5706 = vpack.c.b16 %v3346, %v3306
        %v5707 = vpack.c.b16 %v3347, %v3307
        %v5708 = vpack.c.b16 %v3348, %v3308
        %v5709 = vpack.c.b16 %v3349, %v3309
        %v5710 = vpack.c.b16 %v3390, %v3350
        %v5711 = vpack.c.b16 %v3391, %v3351
        %v5712 = vpack.c.b16 %v3392, %v3352
        %v5713 = vpack.c.b16 %v3393, %v3353
        %v5714 = vpack.c.b16 %v3394, %v3354
        %v5715 = vpack.c.b16 %v3395, %v3355
        %v5716 = vpack.c.b16 %v3396, %v3356
        %v5717 = vpack.c.b16 %v3397, %v3357
        %v5718 = vpack.c.b16 %v3398, %v3358
        %v5719 = vpack.c.b16 %v3399, %v3359
        %v5720 = vpack.c.b16 %v3400, %v3360
        %v5721 = vpack.c.b16 %v3401, %v3361
        %v5722 = vpack.c.b16 %v3402, %v3362
        %v5723 = vpack.c.b16 %v3403, %v3363
        %v5724 = vpack.c.b16 %v3404, %v3364
        %v5725 = vpack.c.b16 %v3405, %v3365
        %v5726 = vpack.c.b16 %v3406, %v3366
        %v5727 = vpack.c.b16 %v3407, %v3367
        %v5728 = vpack.c.b16 %v3408, %v3368
        %v5729 = vpack.c.b16 %v3409, %v3369
        %v5730 = vpack.c.b16 %v3410, %v3370
        %v5731 = vpack.c.b16 %v3411, %v3371
        %v5732 = vpack.c.b16 %v3412, %v3372
        %v5733 = vpack.c.b16 %v3413, %v3373
        %v5734 = vpack.c.b16 %v3414, %v3374
        %v5735 = vpack.c.b16 %v3415, %v3375
        %v5736 = vpack.c.b16 %v3416, %v3376
        %v5737 = vpack.c.b16 %v3417, %v3377
        %v5738 = vpack.c.b16 %v3418, %v3378
        %v5739 = vpack.c.b16 %v3419, %v3379
        %v5740 = vpack.c.b16 %v3420, %v3380
        %v5741 = vpack.c.b16 %v3421, %v3381
        %v5742 = vpack.c.b16 %v3422, %v3382
        %v5743 = vpack.c.b16 %v3423, %v3383
        %v5744 = vpack.c.b16 %v3424, %v3384
        %v5745 = vpack.c.b16 %v3425, %v3385
        %v5746 = vpack.c.b16 %v3426, %v3386
        %v5747 = vpack.c.b16 %v3427, %v3387
        %v5748 = vpack.c.b16 %v3428, %v3388
        %v5749 = vpack.c.b16 %v3429, %v3389
        %v5750 = vpack.c.b16 %v3470, %v3430
        %v5751 = vpack.c.b16 %v3471, %v3431
        %v5752 = vpack.c.b16 %v3472, %v3432
        %v5753 = vpack.c.b16 %v3473, %v3433
        %v5754 = vpack.c.b16 %v3474, %v3434
        %v5755 = vpack.c.b16 %v3475, %v3435
        %v5756 = vpack.c.b16 %v3476, %v3436
        %v5757 = vpack.c.b16 %v3477, %v3437
        %v5758 = vpack.c.b16 %v3478, %v3438
        %v5759 = vpack.c.b16 %v3479, %v3439
        %v5760 = vpack.c.b16 %v3480, %v3440
        %v5761 = vpack.c.b16 %v3481, %v3441
        %v5762 = vpack.c.b16 %v3482, %v3442
        %v5763 = vpack.c.b16 %v3483, %v3443
        %v5764 = vpack.c.b16 %v3484, %v3444
        %v5765 = vpack.c.b16 %v3485, %v3445
        %v5766 = vpack.c.b16 %v3486, %v3446
        %v5767 = vpack.c.b16 %v3487, %v3447
        %v5768 = vpack.c.b16 %v3488, %v3448
        %v5769 = vpack.c.b16 %v3489, %v3449
        %v5770 = vpack.c.b16 %v3490, %v3450
        %v5771 = vpack.c.b16 %v3491, %v3451
        %v5772 = vpack.c.b16 %v3492, %v3452
        %v5773 = vpack.c.b16 %v3493, %v3453
        %v5774 = vpack.c.b16 %v3494, %v3454
        %v5775 = vpack.c.b16 %v3495, %v3455
        %v5776 = vpack.c.b16 %v3496, %v3456
        %v5777 = vpack.c.b16 %v3497, %v3457
        %v5778 = vpack.c.b16 %v3498, %v3458
        %v5779 = vpack.c.b16 %v3499, %v3459
        %v5780 = vpack.c.b16 %v3500, %v3460
        %v5781 = vpack.c.b16 %v3501, %v3461
        %v5782 = vpack.c.b16 %v3502, %v3462
        %v5783 = vpack.c.b16 %v3503, %v3463
        %v5784 = vpack.c.b16 %v3504, %v3464
        %v5785 = vpack.c.b16 %v3505, %v3465
        %v5786 = vpack.c.b16 %v3506, %v3466
        %v5787 = vpack.c.b16 %v3507, %v3467
        %v5788 = vpack.c.b16 %v3508, %v3468
        %v5789 = vpack.c.b16 %v3509, %v3469
        %v5790 = vpack.c.b16 %v3550, %v3510
        %v5791 = vpack.c.b16 %v3551, %v3511
        %v5792 = vpack.c.b16 %v3552, %v3512
        %v5793 = vpack.c.b16 %v3553, %v3513
        %v5794 = vpack.c.b16 %v3554, %v3514
        %v5795 = vpack.c.b16 %v3555, %v3515
        %v5796 = vpack.c.b16 %v3556, %v3516
        %v5797 = vpack.c.b16 %v3557, %v3517
        %v5798 = vpack.c.b16 %v3558, %v3518
        %v5799 = vpack.c.b16 %v3559, %v3519
        %v5800 = vpack.c.b16 %v3560, %v3520
        %v5801 = vpack.c.b16 %v3561, %v3521
        %v5802 = vpack.c.b16 %v3562, %v3522
        %v5803 = vpack.c.b16 %v3563, %v3523
        %v5804 = vpack.c.b16 %v3564, %v3524
        %v5805 = vpack.c.b16 %v3565, %v3525
        %v5806 = vpack.c.b16 %v3566, %v3526
        %v5807 = vpack.c.b16 %v3567, %v3527
        %v5808 = vpack.c.b16 %v3568, %v3528
        %v5809 = vpack.c.b16 %v3569, %v3529
        %v5810 = vpack.c.b16 %v3570, %v3530
        %v5811 = vpack.c.b16 %v3571, %v3531
        %v5812 = vpack.c.b16 %v3572, %v3532
        %v5813 = vpack.c.b16 %v3573, %v3533
        %v5814 = vpack.c.b16 %v3574, %v3534
        %v5815 = vpack.c.b16 %v3575, %v3535
        %v5816 = vpack.c.b16 %v3576, %v3536
        %v5817 = vpack.c.b16 %v3577, %v3537
        %v5818 = vpack.c.b16 %v3578, %v3538
        %v5819 = vpack.c.b16 %v3579, %v3539
        %v5820 = vpack.c.b16 %v3580, %v3540
        %v5821 = vpack.c.b16 %v3581, %v3541
        %v5822 = vpack.c.b16 %v3582, %v3542
        %v5823 = vpack.c.b16 %v3583, %v3543
        %v5824 = vpack.c.b16 %v3584, %v3544
        %v5825 = vpack.c.b16 %v3585, %v3545
        %v5826 = vpack.c.b16 %v3586, %v3546
        %v5827 = vpack.c.b16 %v3587, %v3547
        %v5828 = vpack.c.b16 %v3588, %v3548
        %v5829 = vpack.c.b16 %v3589, %v3549
        %v5830 = vpack.c.b16 %v3630, %v3590
        %v5831 = vpack.c.b16 %v3631, %v3591
        %v5832 = vpack.c.b16 %v3632, %v3592
        %v5833 = vpack.c.b16 %v3633, %v3593
        %v5834 = vpack.c.b16 %v3634, %v3594
        %v5835 = vpack.c.b16 %v3635, %v3595
        %v5836 = vpack.c.b16 %v3636, %v3596
        %v5837 = vpack.c.b16 %v3637, %v3597
        %v5838 = vpack.c.b16 %v3638, %v3598
        %v5839 = vpack.c.b16 %v3639, %v3599
        %v5840 = vpack.c.b16 %v3640, %v3600
        %v5841 = vpack.c.b16 %v3641, %v3601
        %v5842 = vpack.c.b16 %v3642, %v3602
        %v5843 = vpack.c.b16 %v3643, %v3603
        %v5844 = vpack.c.b16 %v3644, %v3604
        %v5845 = vpack.c.b16 %v3645, %v3605
        %v5846 = vpack.c.b16 %v3646, %v3606
        %v5847 = vpack.c.b16 %v3647, %v3607
        %v5848 = vpack.c.b16 %v3648, %v3608
        %v5849 = vpack.c.b16 %v3649, %v3609
        %v5850 = vpack.c.b16 %v3650, %v3610
        %v5851 = vpack.c.b16 %v3651, %v3611
        %v5852 = vpack.c.b16 %v3652, %v3612
        %v5853 = vpack.c.b16 %v3653, %v3613
        %v5854 = vpack.c.b16 %v3654, %v3614
        %v5855 = vpack.c.b16 %v3655, %v3615
        %v5856 = vpack.c.b16 %v3656, %v3616
        %v5857 = vpack.c.b16 %v3657, %v3617
        %v5858 = vpack.c.b16 %v3658, %v3618
        %v5859 = vpack.c.b16 %v3659, %v3619
        %v5860 = vpack.c.b16 %v3660, %v3620
        %v5861 = vpack.c.b16 %v3661, %v3621
        %v5862 = vpack.c.b16 %v3662, %v3622
        %v5863 = vpack.c.b16 %v3663, %v3623
        %v5864 = vpack.c.b16 %v3664, %v3624
        %v5865 = vpack.c.b16 %v3665, %v3625
        %v5866 = vpack.c.b16 %v3666, %v3626
        %v5867 = vpack.c.b16 %v3667, %v3627
        %v5868 = vpack.c.b16 %v3668, %v3628
        %v5869 = vpack.c.b16 %v3669, %v3629
        %v5870 = vpack.c.b16 %v3710, %v3670
        %v5871 = vpack.c.b16 %v3711, %v3671
        %v5872 = vpack.c.b16 %v3712, %v3672
        %v5873 = vpack.c.b16 %v3713, %v3673
        %v5874 = vpack.c.b16 %v3714, %v3674
        %v5875 = vpack.c.b16 %v3715, %v3675
        %v5876 = vpack.c.b16 %v3716, %v3676
        %v5877 = vpack.c.b16 %v3717, %v3677
        %v5878 = vpack.c.b16 %v3718, %v3678
        %v5879 = vpack.c.b16 %v3719, %v3679
        %v5880 = vpack.c.b16 %v3720, %v3680
        %v5881 = vpack.c.b16 %v3721, %v3681
        %v5882 = vpack.c.b16 %v3722, %v3682
        %v5883 = vpack.c.b16 %v3723, %v3683
        %v5884 = vpack.c.b16 %v3724, %v3684
        %v5885 = vpack.c.b16 %v3725, %v3685
        %v5886 = vpack.c.b16 %v3726, %v3686
        %v5887 = vpack.c.b16 %v3727, %v3687
        %v5888 = vpack.c.b16 %v3728, %v3688
        %v5889 = vpack.c.b16 %v3729, %v3689
        %v5890 = vpack.c.b16 %v3730, %v3690
        %v5891 = vpack.c.b16 %v3731, %v3691
        %v5892 = vpack.c.b16 %v3732, %v3692
        %v5893 = vpack.c.b16 %v3733, %v3693
        %v5894 = vpack.c.b16 %v3734, %v3694
        %v5895 = vpack.c.b16 %v3735, %v3695
        %v5896 = vpack.c.b16 %v3736, %v3696
        %v5897 = vpack.c.b16 %v3737, %v3697
        %v5898 = vpack.c.b16 %v3738, %v3698
        %v5899 = vpack.c.b16 %v3739, %v3699
        %v5900 = vpack.c.b16 %v3740, %v3700
        %v5901 = vpack.c.b16 %v3741, %v3701
        %v5902 = vpack.c.b16 %v3742, %v3702
        %v5903 = vpack.c.b16 %v3743, %v3703
        %v5904 = vpack.c.b16 %v3744, %v3704
        %v5905 = vpack.c.b16 %v3745, %v3705
        %v5906 = vpack.c.b16 %v3746, %v3706
        %v5907 = vpack.c.b16 %v3747, %v3707
        %v5908 = vpack.c.b16 %v3748, %v3708
        %v5909 = vpack.c.b16 %v3749, %v3709
        %v5910 = vpack.c.b16 %v3790, %v3750
        %v5911 = vpack.c.b16 %v3791, %v3751
        %v5912 = vpack.c.b16 %v3792, %v3752
        %v5913 = vpack.c.b16 %v3793, %v3753
        %v5914 = vpack.c.b16 %v3794, %v3754
        %v5915 = vpack.c.b16 %v3795, %v3755
        %v5916 = vpack.c.b16 %v3796, %v3756
        %v5917 = vpack.c.b16 %v3797, %v3757
        %v5918 = vpack.c.b16 %v3798, %v3758
        %v5919 = vpack.c.b16 %v3799, %v3759
        %v5920 = vpack.c.b16 %v3800, %v3760
        %v5921 = vpack.c.b16 %v3801, %v3761
        %v5922 = vpack.c.b16 %v3802, %v3762
        %v5923 = vpack.c.b16 %v3803, %v3763
        %v5924 = vpack.c.b16 %v3804, %v3764
        %v5925 = vpack.c.b16 %v3805, %v3765
        %v5926 = vpack.c.b16 %v3806, %v3766
        %v5927 = vpack.c.b16 %v3807, %v3767
        %v5928 = vpack.c.b16 %v3808, %v3768
        %v5929 = vpack.c.b16 %v3809, %v3769
        %v5930 = vpack.c.b16 %v3810, %v3770
        %v5931 = vpack.c.b16 %v3811, %v3771
        %v5932 = vpack.c.b16 %v3812, %v3772
        %v5933 = vpack.c.b16 %v3813, %v3773
        %v5934 = vpack.c.b16 %v3814, %v3774
        %v5935 = vpack.c.b16 %v3815, %v3775
        %v5936 = vpack.c.b16 %v3816, %v3776
        %v5937 = vpack.c.b16 %v3817, %v3777
        %v5938 = vpack.c.b16 %v3818, %v3778
        %v5939 = vpack.c.b16 %v3819, %v3779
        %v5940 = vpack.c.b16 %v3820, %v3780
        %v5941 = vpack.c.b16 %v3821, %v3781
        %v5942 = vpack.c.b16 %v3822, %v3782
        %v5943 = vpack.c.b16 %v3823, %v3783
        %v5944 = vpack.c.b16 %v3824, %v3784
        %v5945 = vpack.c.b16 %v3825, %v3785
        %v5946 = vpack.c.b16 %v3826, %v3786
        %v5947 = vpack.c.b16 %v3827, %v3787
        %v5948 = vpack.c.b16 %v3828, %v3788
        %v5949 = vpack.c.b16 %v3829, %v3789
        %v5950 = vpack.c.b16 %v3870, %v3830
        %v5951 = vpack.c.b16 %v3871, %v3831
        %v5952 = vpack.c.b16 %v3872, %v3832
        %v5953 = vpack.c.b16 %v3873, %v3833
        %v5954 = vpack.c.b16 %v3874, %v3834
        %v5955 = vpack.c.b16 %v3875, %v3835
        %v5956 = vpack.c.b16 %v3876, %v3836
        %v5957 = vpack.c.b16 %v3877, %v3837
        %v5958 = vpack.c.b16 %v3878, %v3838
        %v5959 = vpack.c.b16 %v3879, %v3839
        %v5960 = vpack.c.b16 %v3880, %v3840
        %v5961 = vpack.c.b16 %v3881, %v3841
        %v5962 = vpack.c.b16 %v3882, %v3842
        %v5963 = vpack.c.b16 %v3883, %v3843
        %v5964 = vpack.c.b16 %v3884, %v3844
        %v5965 = vpack.c.b16 %v3885, %v3845
        %v5966 = vpack.c.b16 %v3886, %v3846
        %v5967 = vpack.c.b16 %v3887, %v3847
        %v5968 = vpack.c.b16 %v3888, %v3848
        %v5969 = vpack.c.b16 %v3889, %v3849
        %v5970 = vpack.c.b16 %v3890, %v3850
        %v5971 = vpack.c.b16 %v3891, %v3851
        %v5972 = vpack.c.b16 %v3892, %v3852
        %v5973 = vpack.c.b16 %v3893, %v3853
        %v5974 = vpack.c.b16 %v3894, %v3854
        %v5975 = vpack.c.b16 %v3895, %v3855
        %v5976 = vpack.c.b16 %v3896, %v3856
        %v5977 = vpack.c.b16 %v3897, %v3857
        %v5978 = vpack.c.b16 %v3898, %v3858
        %v5979 = vpack.c.b16 %v3899, %v3859
        %v5980 = vpack.c.b16 %v3900, %v3860
        %v5981 = vpack.c.b16 %v3901, %v3861
        %v5982 = vpack.c.b16 %v3902, %v3862
        %v5983 = vpack.c.b16 %v3903, %v3863
        %v5984 = vpack.c.b16 %v3904, %v3864
        %v5985 = vpack.c.b16 %v3905, %v3865
        %v5986 = vpack.c.b16 %v3906, %v3866
        %v5987 = vpack.c.b16 %v3907, %v3867
        %v5988 = vpack.c.b16 %v3908, %v3868
        %v5989 = vpack.c.b16 %v3909, %v3869
        %v5990 = vpack.c.b16 %v3950, %v3910
        %v5991 = vpack.c.b16 %v3951, %v3911
        %v5992 = vpack.c.b16 %v3952, %v3912
        %v5993 = vpack.c.b16 %v3953, %v3913
        %v5994 = vpack.c.b16 %v3954, %v3914
        %v5995 = vpack.c.b16 %v3955, %v3915
        %v5996 = vpack.c.b16 %v3956, %v3916
        %v5997 = vpack.c.b16 %v3957, %v3917
        %v5998 = vpack.c.b16 %v3958, %v3918
        %v5999 = vpack.c.b16 %v3959, %v3919
        %v6000 = vpack.c.b16 %v3960, %v3920
        %v6001 = vpack.c.b16 %v3961, %v3921
        %v6002 = vpack.c.b16 %v3962, %v3922
        %v6003 = vpack.c.b16 %v3963, %v3923
        %v6004 = vpack.c.b16 %v3964, %v3924
        %v6005 = vpack.c.b16 %v3965, %v3925
        %v6006 = vpack.c.b16 %v3966, %v3926
        %v6007 = vpack.c.b16 %v3967, %v3927
        %v6008 = vpack.c.b16 %v3968, %v3928
        %v6009 = vpack.c.b16 %v3969, %v3929
        %v6010 = vpack.c.b16 %v3970, %v3930
        %v6011 = vpack.c.b16 %v3971, %v3931
        %v6012 = vpack.c.b16 %v3972, %v3932
        %v6013 = vpack.c.b16 %v3973, %v3933
        %v6014 = vpack.c.b16 %v3974, %v3934
        %v6015 = vpack.c.b16 %v3975, %v3935
        %v6016 = vpack.c.b16 %v3976, %v3936
        %v6017 = vpack.c.b16 %v3977, %v3937
        %v6018 = vpack.c.b16 %v3978, %v3938
        %v6019 = vpack.c.b16 %v3979, %v3939
        %v6020 = vpack.c.b16 %v3980, %v3940
        %v6021 = vpack.c.b16 %v3981, %v3941
        %v6022 = vpack.c.b16 %v3982, %v3942
        %v6023 = vpack.c.b16 %v3983, %v3943
        %v6024 = vpack.c.b16 %v3984, %v3944
        %v6025 = vpack.c.b16 %v3985, %v3945
        %v6026 = vpack.c.b16 %v3986, %v3946
        %v6027 = vpack.c.b16 %v3987, %v3947
        %v6028 = vpack.c.b16 %v3988, %v3948
        %v6029 = vpack.c.b16 %v3989, %v3949
        %v6030 = vpack.c.b16 %v4030, %v3990
        %v6031 = vpack.c.b16 %v4031, %v3991
        %v6032 = vpack.c.b16 %v4032, %v3992
        %v6033 = vpack.c.b16 %v4033, %v3993
        %v6034 = vpack.c.b16 %v4034, %v3994
        %v6035 = vpack.c.b16 %v4035, %v3995
        %v6036 = vpack.c.b16 %v4036, %v3996
        %v6037 = vpack.c.b16 %v4037, %v3997
        %v6038 = vpack.c.b16 %v4038, %v3998
        %v6039 = vpack.c.b16 %v4039, %v3999
        %v6040 = vpack.c.b16 %v4040, %v4000
        %v6041 = vpack.c.b16 %v4041, %v4001
        %v6042 = vpack.c.b16 %v4042, %v4002
        %v6043 = vpack.c.b16 %v4043, %v4003
        %v6044 = vpack.c.b16 %v4044, %v4004
        %v6045 = vpack.c.b16 %v4045, %v4005
        %v6046 = vpack.c.b16 %v4046, %v4006
        %v6047 = vpack.c.b16 %v4047, %v4007
        %v6048 = vpack.c.b16 %v4048, %v4008
        %v6049 = vpack.c.b16 %v4049, %v4009
        %v6050 = vpack.c.b16 %v4050, %v4010
        %v6051 = vpack.c.b16 %v4051, %v4011
        %v6052 = vpack.c.b16 %v4052, %v4012
        %v6053 = vpack.c.b16 %v4053, %v4013
        %v6054 = vpack.c.b16 %v4054, %v4014
        %v6055 = vpack.c.b16 %v4055, %v4015
        %v6056 = vpack.c.b16 %v4056, %v4016
        %v6057 = vpack.c.b16 %v4057, %v4017
        %v6058 = vpack.c.b16 %v4058, %v4018
        %v6059 = vpack.c.b16 %v4059, %v4019
        %v6060 = vpack.c.b16 %v4060, %v4020
        %v6061 = vpack.c.b16 %v4061, %v4021
        %v6062 = vpack.c.b16 %v4062, %v4022
        %v6063 = vpack.c.b16 %v4063, %v4023
        %v6064 = vpack.c.b16 %v4064, %v4024
        %v6065 = vpack.c.b16 %v4065, %v4025
        %v6066 = vpack.c.b16 %v4066, %v4026
        %v6067 = vpack.c.b16 %v4067, %v4027
        %v6068 = vpack.c.b16 %v4068, %v4028
        %v6069 = vpack.c.b16 %v4069, %v4029
        %v6070 = vpack.c.b16 %v4110, %v4070
        %v6071 = vpack.c.b16 %v4111, %v4071
        %v6072 = vpack.c.b16 %v4112, %v4072
        %v6073 = vpack.c.b16 %v4113, %v4073
        %v6074 = vpack.c.b16 %v4114, %v4074
        %v6075 = vpack.c.b16 %v4115, %v4075
        %v6076 = vpack.c.b16 %v4116, %v4076
        %v6077 = vpack.c.b16 %v4117, %v4077
        %v6078 = vpack.c.b16 %v4118, %v4078
        %v6079 = vpack.c.b16 %v4119, %v4079
        %v6080 = vpack.c.b16 %v4120, %v4080
        %v6081 = vpack.c.b16 %v4121, %v4081
        %v6082 = vpack.c.b16 %v4122, %v4082
        %v6083 = vpack.c.b16 %v4123, %v4083
        %v6084 = vpack.c.b16 %v4124, %v4084
        %v6085 = vpack.c.b16 %v4125, %v4085
        %v6086 = vpack.c.b16 %v4126, %v4086
        %v6087 = vpack.c.b16 %v4127, %v4087
        %v6088 = vpack.c.b16 %v4128, %v4088
        %v6089 = vpack.c.b16 %v4129, %v4089
        %v6090 = vpack.c.b16 %v4130, %v4090
        %v6091 = vpack.c.b16 %v4131, %v4091
        %v6092 = vpack.c.b16 %v4132, %v4092
        %v6093 = vpack.c.b16 %v4133, %v4093
        %v6094 = vpack.c.b16 %v4134, %v4094
        %v6095 = vpack.c.b16 %v4135, %v4095
        %v6096 = vpack.c.b16 %v4136, %v4096
        %v6097 = vpack.c.b16 %v4137, %v4097
        %v6098 = vpack.c.b16 %v4138, %v4098
        %v6099 = vpack.c.b16 %v4139, %v4099
        %v6100 = vpack.c.b16 %v4140, %v4100
        %v6101 = vpack.c.b16 %v4141, %v4101
        %v6102 = vpack.c.b16 %v4142, %v4102
        %v6103 = vpack.c.b16 %v4143, %v4103
        %v6104 = vpack.c.b16 %v4144, %v4104
        %v6105 = vpack.c.b16 %v4145, %v4105
        %v6106 = vpack.c.b16 %v4146, %v4106
        %v6107 = vpack.c.b16 %v4147, %v4107
        %v6108 = vpack.c.b16 %v4148, %v4108
        %v6109 = vpack.c.b16 %v4149, %v4109
        %v6110 = vpack.c.b16 %v4190, %v4150
        %v6111 = vpack.c.b16 %v4191, %v4151
        %v6112 = vpack.c.b16 %v4192, %v4152
        %v6113 = vpack.c.b16 %v4193, %v4153
        %v6114 = vpack.c.b16 %v4194, %v4154
        %v6115 = vpack.c.b16 %v4195, %v4155
        %v6116 = vpack.c.b16 %v4196, %v4156
        %v6117 = vpack.c.b16 %v4197, %v4157
        %v6118 = vpack.c.b16 %v4198, %v4158
        %v6119 = vpack.c.b16 %v4199, %v4159
        %v6120 = vpack.c.b16 %v4200, %v4160
        %v6121 = vpack.c.b16 %v4201, %v4161
        %v6122 = vpack.c.b16 %v4202, %v4162
        %v6123 = vpack.c.b16 %v4203, %v4163
        %v6124 = vpack.c.b16 %v4204, %v4164
        %v6125 = vpack.c.b16 %v4205, %v4165
        %v6126 = vpack.c.b16 %v4206, %v4166
        %v6127 = vpack.c.b16 %v4207, %v4167
        %v6128 = vpack.c.b16 %v4208, %v4168
        %v6129 = vpack.c.b16 %v4209, %v4169
        %v6130 = vpack.c.b16 %v4210, %v4170
        %v6131 = vpack.c.b16 %v4211, %v4171
        %v6132 = vpack.c.b16 %v4212, %v4172
        %v6133 = vpack.c.b16 %v4213, %v4173
        %v6134 = vpack.c.b16 %v4214, %v4174
        %v6135 = vpack.c.b16 %v4215, %v4175
        %v6136 = vpack.c.b16 %v4216, %v4176
        %v6137 = vpack.c.b16 %v4217, %v4177
        %v6138 = vpack.c.b16 %v4218, %v4178
        %v6139 = vpack.c.b16 %v4219, %v4179
        %v6140 = vpack.c.b16 %v4220, %v4180
        %v6141 = vpack.c.b16 %v4221, %v4181
        %v6142 = vpack.c.b16 %v4222, %v4182
        %v6143 = vpack.c.b16 %v4223, %v4183
        %v6144 = vpack.c.b16 %v4224, %v4184
        %v6145 = vpack.c.b16 %v4225, %v4185
        %v6146 = vpack.c.b16 %v4226, %v4186
        %v6147 = vpack.c.b16 %v4227, %v4187
        %v6148 = vpack.c.b16 %v4228, %v4188
        %v6149 = vpack.c.b16 %v4229, %v4189
        %v6150 = vpack.c.b16 %v4270, %v4230
        %v6151 = vpack.c.b16 %v4271, %v4231
        %v6152 = vpack.c.b16 %v4272, %v4232
        %v6153 = vpack.c.b16 %v4273, %v4233
        %v6154 = vpack.c.b16 %v4274, %v4234
        %v6155 = vpack.c.b16 %v4275, %v4235
        %v6156 = vpack.c.b16 %v4276, %v4236
        %v6157 = vpack.c.b16 %v4277, %v4237
        %v6158 = vpack.c.b16 %v4278, %v4238
        %v6159 = vpack.c.b16 %v4279, %v4239
        %v6160 = vpack.c.b16 %v4280, %v4240
        %v6161 = vpack.c.b16 %v4281, %v4241
        %v6162 = vpack.c.b16 %v4282, %v4242
        %v6163 = vpack.c.b16 %v4283, %v4243
        %v6164 = vpack.c.b16 %v4284, %v4244
        %v6165 = vpack.c.b16 %v4285, %v4245
        %v6166 = vpack.c.b16 %v4286, %v4246
        %v6167 = vpack.c.b16 %v4287, %v4247
        %v6168 = vpack.c.b16 %v4288, %v4248
        %v6169 = vpack.c.b16 %v4289, %v4249
        %v6170 = vpack.c.b16 %v4290, %v4250
        %v6171 = vpack.c.b16 %v4291, %v4251
        %v6172 = vpack.c.b16 %v4292, %v4252
        %v6173 = vpack.c.b16 %v4293, %v4253
        %v6174 = vpack.c.b16 %v4294, %v4254
        %v6175 = vpack.c.b16 %v4295, %v4255
        %v6176 = vpack.c.b16 %v4296, %v4256
        %v6177 = vpack.c.b16 %v4297, %v4257
        %v6178 = vpack.c.b16 %v4298, %v4258
        %v6179 = vpack.c.b16 %v4299, %v4259
        %v6180 = vpack.c.b16 %v4300, %v4260
        %v6181 = vpack.c.b16 %v4301, %v4261
        %v6182 = vpack.c.b16 %v4302, %v4262
        %v6183 = vpack.c.b16 %v4303, %v4263
        %v6184 = vpack.c.b16 %v4304, %v4264
        %v6185 = vpack.c.b16 %v4305, %v4265
        %v6186 = vpack.c.b16 %v4306, %v4266
        %v6187 = vpack.c.b16 %v4307, %v4267
        %v6188 = vpack.c.b16 %v4308, %v4268
        %v6189 = vpack.c.b16 %v4309, %v4269
        %v6190 = vpack.c.b16 %v4350, %v4310
        %v6191 = vpack.c.b16 %v4351, %v4311
        %v6192 = vpack.c.b16 %v4352, %v4312
        %v6193 = vpack.c.b16 %v4353, %v4313
        %v6194 = vpack.c.b16 %v4354, %v4314
        %v6195 = vpack.c.b16 %v4355, %v4315
        %v6196 = vpack.c.b16 %v4356, %v4316
        %v6197 = vpack.c.b16 %v4357, %v4317
        %v6198 = vpack.c.b16 %v4358, %v4318
        %v6199 = vpack.c.b16 %v4359, %v4319
        %v6200 = vpack.c.b16 %v4360, %v4320
        %v6201 = vpack.c.b16 %v4361, %v4321
        %v6202 = vpack.c.b16 %v4362, %v4322
        %v6203 = vpack.c.b16 %v4363, %v4323
        %v6204 = vpack.c.b16 %v4364, %v4324
        %v6205 = vpack.c.b16 %v4365, %v4325
        %v6206 = vpack.c.b16 %v4366, %v4326
        %v6207 = vpack.c.b16 %v4367, %v4327
        %v6208 = vpack.c.b16 %v4368, %v4328
        %v6209 = vpack.c.b16 %v4369, %v4329
        %v6210 = vpack.c.b16 %v4370, %v4330
        %v6211 = vpack.c.b16 %v4371, %v4331
        %v6212 = vpack.c.b16 %v4372, %v4332
        %v6213 = vpack.c.b16 %v4373, %v4333
        %v6214 = vpack.c.b16 %v4374, %v4334
        %v6215 = vpack.c.b16 %v4375, %v4335
        %v6216 = vpack.c.b16 %v4376, %v4336
        %v6217 = vpack.c.b16 %v4377, %v4337
        %v6218 = vpack.c.b16 %v4378, %v4338
        %v6219 = vpack.c.b16 %v4379, %v4339
        %v6220 = vpack.c.b16 %v4380, %v4340
        %v6221 = vpack.c.b16 %v4381, %v4341
        %v6222 = vpack.c.b16 %v4382, %v4342
        %v6223 = vpack.c.b16 %v4383, %v4343
        %v6224 = vpack.c.b16 %v4384, %v4344
        %v6225 = vpack.c.b16 %v4385, %v4345
        %v6226 = vpack.c.b16 %v4386, %v4346
        %v6227 = vpack.c.b16 %v4387, %v4347
        %v6228 = vpack.c.b16 %v4388, %v4348
        %v6229 = vpack.c.b16 %v4389, %v4349
        %v6230 = vpack.c.b16 %v4430, %v4390
        %v6231 = vpack.c.b16 %v4431, %v4391
        %v6232 = vpack.c.b16 %v4432, %v4392
        %v6233 = vpack.c.b16 %v4433, %v4393
        %v6234 = vpack.c.b16 %v4434, %v4394
        %v6235 = vpack.c.b16 %v4435, %v4395
        %v6236 = vpack.c.b16 %v4436, %v4396
        %v6237 = vpack.c.b16 %v4437, %v4397
        %v6238 = vpack.c.b16 %v4438, %v4398
        %v6239 = vpack.c.b16 %v4439, %v4399
        %v6240 = vpack.c.b16 %v4440, %v4400
        %v6241 = vpack.c.b16 %v4441, %v4401
        %v6242 = vpack.c.b16 %v4442, %v4402
        %v6243 = vpack.c.b16 %v4443, %v4403
        %v6244 = vpack.c.b16 %v4444, %v4404
        %v6245 = vpack.c.b16 %v4445, %v4405
        %v6246 = vpack.c.b16 %v4446, %v4406
        %v6247 = vpack.c.b16 %v4447, %v4407
        %v6248 = vpack.c.b16 %v4448, %v4408
        %v6249 = vpack.c.b16 %v4449, %v4409
        %v6250 = vpack.c.b16 %v4450, %v4410
        %v6251 = vpack.c.b16 %v4451, %v4411
        %v6252 = vpack.c.b16 %v4452, %v4412
        %v6253 = vpack.c.b16 %v4453, %v4413
        %v6254 = vpack.c.b16 %v4454, %v4414
        %v6255 = vpack.c.b16 %v4455, %v4415
        %v6256 = vpack.c.b16 %v4456, %v4416
        %v6257 = vpack.c.b16 %v4457, %v4417
        %v6258 = vpack.c.b16 %v4458, %v4418
        %v6259 = vpack.c.b16 %v4459, %v4419
        %v6260 = vpack.c.b16 %v4460, %v4420
        %v6261 = vpack.c.b16 %v4461, %v4421
        %v6262 = vpack.c.b16 %v4462, %v4422
        %v6263 = vpack.c.b16 %v4463, %v4423
        %v6264 = vpack.c.b16 %v4464, %v4424
        %v6265 = vpack.c.b16 %v4465, %v4425
        %v6266 = vpack.c.b16 %v4466, %v4426
        %v6267 = vpack.c.b16 %v4467, %v4427
        %v6268 = vpack.c.b16 %v4468, %v4428
        %v6269 = vpack.c.b16 %v4469, %v4429
        %v6270 = vpack.c.b16 %v4510, %v4470
        %v6271 = vpack.c.b16 %v4511, %v4471
        %v6272 = vpack.c.b16 %v4512, %v4472
        %v6273 = vpack.c.b16 %v4513, %v4473
        %v6274 = vpack.c.b16 %v4514, %v4474
        %v6275 = vpack.c.b16 %v4515, %v4475
        %v6276 = vpack.c.b16 %v4516, %v4476
        %v6277 = vpack.c.b16 %v4517, %v4477
        %v6278 = vpack.c.b16 %v4518, %v4478
        %v6279 = vpack.c.b16 %v4519, %v4479
        %v6280 = vpack.c.b16 %v4520, %v4480
        %v6281 = vpack.c.b16 %v4521, %v4481
        %v6282 = vpack.c.b16 %v4522, %v4482
        %v6283 = vpack.c.b16 %v4523, %v4483
        %v6284 = vpack.c.b16 %v4524, %v4484
        %v6285 = vpack.c.b16 %v4525, %v4485
        %v6286 = vpack.c.b16 %v4526, %v4486
        %v6287 = vpack.c.b16 %v4527, %v4487
        %v6288 = vpack.c.b16 %v4528, %v4488
        %v6289 = vpack.c.b16 %v4529, %v4489
        %v6290 = vpack.c.b16 %v4530, %v4490
        %v6291 = vpack.c.b16 %v4531, %v4491
        %v6292 = vpack.c.b16 %v4532, %v4492
        %v6293 = vpack.c.b16 %v4533, %v4493
        %v6294 = vpack.c.b16 %v4534, %v4494
        %v6295 = vpack.c.b16 %v4535, %v4495
        %v6296 = vpack.c.b16 %v4536, %v4496
        %v6297 = vpack.c.b16 %v4537, %v4497
        %v6298 = vpack.c.b16 %v4538, %v4498
        %v6299 = vpack.c.b16 %v4539, %v4499
        %v6300 = vpack.c.b16 %v4540, %v4500
        %v6301 = vpack.c.b16 %v4541, %v4501
        %v6302 = vpack.c.b16 %v4542, %v4502
        %v6303 = vpack.c.b16 %v4543, %v4503
        %v6304 = vpack.c.b16 %v4544, %v4504
        %v6305 = vpack.c.b16 %v4545, %v4505
        %v6306 = vpack.c.b16 %v4546, %v4506
        %v6307 = vpack.c.b16 %v4547, %v4507
        %v6308 = vpack.c.b16 %v4548, %v4508
        %v6309 = vpack.c.b16 %v4549, %v4509
        %v6310 = vpack.c.b16 %v4590, %v4550
        %v6311 = vpack.c.b16 %v4591, %v4551
        %v6312 = vpack.c.b16 %v4592, %v4552
        %v6313 = vpack.c.b16 %v4593, %v4553
        %v6314 = vpack.c.b16 %v4594, %v4554
        %v6315 = vpack.c.b16 %v4595, %v4555
        %v6316 = vpack.c.b16 %v4596, %v4556
        %v6317 = vpack.c.b16 %v4597, %v4557
        %v6318 = vpack.c.b16 %v4598, %v4558
        %v6319 = vpack.c.b16 %v4599, %v4559
        %v6320 = vpack.c.b16 %v4600, %v4560
        %v6321 = vpack.c.b16 %v4601, %v4561
        %v6322 = vpack.c.b16 %v4602, %v4562
        %v6323 = vpack.c.b16 %v4603, %v4563
        %v6324 = vpack.c.b16 %v4604, %v4564
        %v6325 = vpack.c.b16 %v4605, %v4565
        %v6326 = vpack.c.b16 %v4606, %v4566
        %v6327 = vpack.c.b16 %v4607, %v4567
        %v6328 = vpack.c.b16 %v4608, %v4568
        %v6329 = vpack.c.b16 %v4609, %v4569
        %v6330 = vpack.c.b16 %v4610, %v4570
        %v6331 = vpack.c.b16 %v4611, %v4571
        %v6332 = vpack.c.b16 %v4612, %v4572
        %v6333 = vpack.c.b16 %v4613, %v4573
        %v6334 = vpack.c.b16 %v4614, %v4574
        %v6335 = vpack.c.b16 %v4615, %v4575
        %v6336 = vpack.c.b16 %v4616, %v4576
        %v6337 = vpack.c.b16 %v4617, %v4577
        %v6338 = vpack.c.b16 %v4618, %v4578
        %v6339 = vpack.c.b16 %v4619, %v4579
        %v6340 = vpack.c.b16 %v4620, %v4580
        %v6341 = vpack.c.b16 %v4621, %v4581
        %v6342 = vpack.c.b16 %v4622, %v4582
        %v6343 = vpack.c.b16 %v4623, %v4583
        %v6344 = vpack.c.b16 %v4624, %v4584
        %v6345 = vpack.c.b16 %v4625, %v4585
        %v6346 = vpack.c.b16 %v4626, %v4586
        %v6347 = vpack.c.b16 %v4627, %v4587
        %v6348 = vpack.c.b16 %v4628, %v4588
        %v6349 = vpack.c.b16 %v4629, %v4589
        %v6350 = vpack.c.b16 %v4670, %v4630
        %v6351 = vpack.c.b16 %v4671, %v4631
        %v6352 = vpack.c.b16 %v4672, %v4632
        %v6353 = vpack.c.b16 %v4673, %v4633
        %v6354 = vpack.c.b16 %v4674, %v4634
        %v6355 = vpack.c.b16 %v4675, %v4635
        %v6356 = vpack.c.b16 %v4676, %v4636
        %v6357 = vpack.c.b16 %v4677, %v4637
        %v6358 = vpack.c.b16 %v4678, %v4638
        %v6359 = vpack.c.b16 %v4679, %v4639
        %v6360 = vpack.c.b16 %v4680, %v4640
        %v6361 = vpack.c.b16 %v4681, %v4641
        %v6362 = vpack.c.b16 %v4682, %v4642
        %v6363 = vpack.c.b16 %v4683, %v4643
        %v6364 = vpack.c.b16 %v4684, %v4644
        %v6365 = vpack.c.b16 %v4685, %v4645
        %v6366 = vpack.c.b16 %v4686, %v4646
        %v6367 = vpack.c.b16 %v4687, %v4647
        %v6368 = vpack.c.b16 %v4688, %v4648
        %v6369 = vpack.c.b16 %v4689, %v4649
        %v6370 = vpack.c.b16 %v4690, %v4650
        %v6371 = vpack.c.b16 %v4691, %v4651
        %v6372 = vpack.c.b16 %v4692, %v4652
        %v6373 = vpack.c.b16 %v4693, %v4653
        %v6374 = vpack.c.b16 %v4694, %v4654
        %v6375 = vpack.c.b16 %v4695, %v4655
        %v6376 = vpack.c.b16 %v4696, %v4656
        %v6377 = vpack.c.b16 %v4697, %v4657
        %v6378 = vpack.c.b16 %v4698, %v4658
        %v6379 = vpack.c.b16 %v4699, %v4659
        %v6380 = vpack.c.b16 %v4700, %v4660
        %v6381 = vpack.c.b16 %v4701, %v4661
        %v6382 = vpack.c.b16 %v4702, %v4662
        %v6383 = vpack.c.b16 %v4703, %v4663
        %v6384 = vpack.c.b16 %v4704, %v4664
        %v6385 = vpack.c.b16 %v4705, %v4665
        %v6386 = vpack.c.b16 %v4706, %v4666
        %v6387 = vpack.c.b16 %v4707, %v4667
        %v6388 = vpack.c.b16 %v4708, %v4668
        %v6389 = vpack.c.b16 %v4709, %v4669
        %v6390 = vpack.c.b16 %v4750, %v4710
        %v6391 = vpack.c.b16 %v4751, %v4711
        %v6392 = vpack.c.b16 %v4752, %v4712
        %v6393 = vpack.c.b16 %v4753, %v4713
        %v6394 = vpack.c.b16 %v4754, %v4714
        %v6395 = vpack.c.b16 %v4755, %v4715
        %v6396 = vpack.c.b16 %v4756, %v4716
        %v6397 = vpack.c.b16 %v4757, %v4717
        %v6398 = vpack.c.b16 %v4758, %v4718
        %v6399 = vpack.c.b16 %v4759, %v4719
        %v6400 = vpack.c.b16 %v4760, %v4720
        %v6401 = vpack.c.b16 %v4761, %v4721
        %v6402 = vpack.c.b16 %v4762, %v4722
        %v6403 = vpack.c.b16 %v4763, %v4723
        %v6404 = vpack.c.b16 %v4764, %v4724
        %v6405 = vpack.c.b16 %v4765, %v4725
        %v6406 = vpack.c.b16 %v4766, %v4726
        %v6407 = vpack.c.b16 %v4767, %v4727
        %v6408 = vpack.c.b16 %v4768, %v4728
        %v6409 = vpack.c.b16 %v4769, %v4729
        %v6410 = vpack.c.b16 %v4770, %v4730
        %v6411 = vpack.c.b16 %v4771, %v4731
        %v6412 = vpack.c.b16 %v4772, %v4732
        %v6413 = vpack.c.b16 %v4773, %v4733
        %v6414 = vpack.c.b16 %v4774, %v4734
        %v6415 = vpack.c.b16 %v4775, %v4735
        %v6416 = vpack.c.b16 %v4776, %v4736
        %v6417 = vpack.c.b16 %v4777, %v4737
        %v6418 = vpack.c.b16 %v4778, %v4738
        %v6419 = vpack.c.b16 %v4779, %v4739
        %v6420 = vpack.c.b16 %v4780, %v4740
        %v6421 = vpack.c.b16 %v4781, %v4741
        %v6422 = vpack.c.b16 %v4782, %v4742
        %v6423 = vpack.c.b16 %v4783, %v4743
        %v6424 = vpack.c.b16 %v4784, %v4744
        %v6425 = vpack.c.b16 %v4785, %v4745
        %v6426 = vpack.c.b16 %v4786, %v4746
        %v6427 = vpack.c.b16 %v4787, %v4747
        %v6428 = vpack.c.b16 %v4788, %v4748
        %v6429 = vpack.c.b16 %v4789, %v4749
        %v6430 = vpack.c.b16 %v4830, %v4790
        %v6431 = vpack.c.b16 %v4831, %v4791
        %v6432 = vpack.c.b16 %v4832, %v4792
        %v6433 = vpack.c.b16 %v4833, %v4793
        %v6434 = vpack.c.b16 %v4834, %v4794
        %v6435 = vpack.c.b16 %v4835, %v4795
        %v6436 = vpack.c.b16 %v4836, %v4796
        %v6437 = vpack.c.b16 %v4837, %v4797
        %v6438 = vpack.c.b16 %v4838, %v4798
        %v6439 = vpack.c.b16 %v4839, %v4799
        %v6440 = vpack.c.b16 %v4840, %v4800
        %v6441 = vpack.c.b16 %v4841, %v4801
        %v6442 = vpack.c.b16 %v4842, %v4802
        %v6443 = vpack.c.b16 %v4843, %v4803
        %v6444 = vpack.c.b16 %v4844, %v4804
        %v6445 = vpack.c.b16 %v4845, %v4805
        %v6446 = vpack.c.b16 %v4846, %v4806
        %v6447 = vpack.c.b16 %v4847, %v4807
        %v6448 = vpack.c.b16 %v4848, %v4808
        %v6449 = vpack.c.b16 %v4849, %v4809
        %v6450 = vpack.c.b16 %v4850, %v4810
        %v6451 = vpack.c.b16 %v4851, %v4811
        %v6452 = vpack.c.b16 %v4852, %v4812
        %v6453 = vpack.c.b16 %v4853, %v4813
        %v6454 = vpack.c.b16 %v4854, %v4814
        %v6455 = vpack.c.b16 %v4855, %v4815
        %v6456 = vpack.c.b16 %v4856, %v4816
        %v6457 = vpack.c.b16 %v4857, %v4817
        %v6458 = vpack.c.b16 %v4858, %v4818
        %v6459 = vpack.c.b16 %v4859, %v4819
        %v6460 = vpack.c.b16 %v4860, %v4820
        %v6461 = vpack.c.b16 %v4861, %v4821
        %v6462 = vpack.c.b16 %v4862, %v4822
        %v6463 = vpack.c.b16 %v4863, %v4823
        %v6464 = vpack.c.b16 %v4864, %v4824
        %v6465 = vpack.c.b16 %v4865, %v4825
        %v6466 = vpack.c.b16 %v4866, %v4826
        %v6467 = vpack.c.b16 %v4867, %v4827
        %v6468 = vpack.c.b16 %v4868, %v4828
        %v6469 = vpack.c.b16 %v4869, %v4829
        %v6470 = vpack.c.b16 %v4910, %v4870
        %v6471 = vpack.c.b16 %v4911, %v4871
        %v6472 = vpack.c.b16 %v4912, %v4872
        %v6473 = vpack.c.b16 %v4913, %v4873
        %v6474 = vpack.c.b16 %v4914, %v4874
        %v6475 = vpack.c.b16 %v4915, %v4875
        %v6476 = vpack.c.b16 %v4916, %v4876
        %v6477 = vpack.c.b16 %v4917, %v4877
        %v6478 = vpack.c.b16 %v4918, %v4878
        %v6479 = vpack.c.b16 %v4919, %v4879
        %v6480 = vpack.c.b16 %v4920, %v4880
        %v6481 = vpack.c.b16 %v4921, %v4881
        %v6482 = vpack.c.b16 %v4922, %v4882
        %v6483 = vpack.c.b16 %v4923, %v4883
        %v6484 = vpack.c.b16 %v4924, %v4884
        %v6485 = vpack.c.b16 %v4925, %v4885
        %v6486 = vpack.c.b16 %v4926, %v4886
        %v6487 = vpack.c.b16 %v4927, %v4887
        %v6488 = vpack.c.b16 %v4928, %v4888
        %v6489 = vpack.c.b16 %v4929, %v4889
        %v6490 = vpack.c.b16 %v4930, %v4890
        %v6491 = vpack.c.b16 %v4931, %v4891
        %v6492 = vpack.c.b16 %v4932, %v4892
        %v6493 = vpack.c.b16 %v4933, %v4893
        %v6494 = vpack.c.b16 %v4934, %v4894
        %v6495 = vpack.c.b16 %v4935, %v4895
        %v6496 = vpack.c.b16 %v4936, %v4896
        %v6497 = vpack.c.b16 %v4937, %v4897
        %v6498 = vpack.c.b16 %v4938, %v4898
        %v6499 = vpack.c.b16 %v4939, %v4899
        %v6500 = vpack.c.b16 %v4940, %v4900
        %v6501 = vpack.c.b16 %v4941, %v4901
        %v6502 = vpack.c.b16 %v4942, %v4902
        %v6503 = vpack.c.b16 %v4943, %v4903
        %v6504 = vpack.c.b16 %v4944, %v4904
        %v6505 = vpack.c.b16 %v4945, %v4905
        %v6506 = vpack.c.b16 %v4946, %v4906
        %v6507 = vpack.c.b16 %v4947, %v4907
        %v6508 = vpack.c.b16 %v4948, %v4908
        %v6509 = vpack.c.b16 %v4949, %v4909
        %v6510 = vpack.c.b16 %v4990, %v4950
        %v6511 = vpack.c.b16 %v4991, %v4951
        %v6512 = vpack.c.b16 %v4992, %v4952
        %v6513 = vpack.c.b16 %v4993, %v4953
        %v6514 = vpack.c.b16 %v4994, %v4954
        %v6515 = vpack.c.b16 %v4995, %v4955
        %v6516 = vpack.c.b16 %v4996, %v4956
        %v6517 = vpack.c.b16 %v4997, %v4957
        %v6518 = vpack.c.b16 %v4998, %v4958
        %v6519 = vpack.c.b16 %v4999, %v4959
        %v6520 = vpack.c.b16 %v5000, %v4960
        %v6521 = vpack.c.b16 %v5001, %v4961
        %v6522 = vpack.c.b16 %v5002, %v4962
        %v6523 = vpack.c.b16 %v5003, %v4963
        %v6524 = vpack.c.b16 %v5004, %v4964
        %v6525 = vpack.c.b16 %v5005, %v4965
        %v6526 = vpack.c.b16 %v5006, %v4966
        %v6527 = vpack.c.b16 %v5007, %v4967
        %v6528 = vpack.c.b16 %v5008, %v4968
        %v6529 = vpack.c.b16 %v5009, %v4969
        %v6530 = vpack.c.b16 %v5010, %v4970
        %v6531 = vpack.c.b16 %v5011, %v4971
        %v6532 = vpack.c.b16 %v5012, %v4972
        %v6533 = vpack.c.b16 %v5013, %v4973
        %v6534 = vpack.c.b16 %v5014, %v4974
        %v6535 = vpack.c.b16 %v5015, %v4975
        %v6536 = vpack.c.b16 %v5016, %v4976
        %v6537 = vpack.c.b16 %v5017, %v4977
        %v6538 = vpack.c.b16 %v5018, %v4978
        %v6539 = vpack.c.b16 %v5019, %v4979
        %v6540 = vpack.c.b16 %v5020, %v4980
        %v6541 = vpack.c.b16 %v5021, %v4981
        %v6542 = vpack.c.b16 %v5022, %v4982
        %v6543 = vpack.c.b16 %v5023, %v4983
        %v6544 = vpack.c.b16 %v5024, %v4984
        %v6545 = vpack.c.b16 %v5025, %v4985
        %v6546 = vpack.c.b16 %v5026, %v4986
        %v6547 = vpack.c.b16 %v5027, %v4987
        %v6548 = vpack.c.b16 %v5028, %v4988
        %v6549 = vpack.c.b16 %v5029, %v4989
        %v6550 = vpack.c.b16 %v5070, %v5030
        %v6551 = vpack.c.b16 %v5071, %v5031
        %v6552 = vpack.c.b16 %v5072, %v5032
        %v6553 = vpack.c.b16 %v5073, %v5033
        %v6554 = vpack.c.b16 %v5074, %v5034
        %v6555 = vpack.c.b16 %v5075, %v5035
        %v6556 = vpack.c.b16 %v5076, %v5036
        %v6557 = vpack.c.b16 %v5077, %v5037
        %v6558 = vpack.c.b16 %v5078, %v5038
        %v6559 = vpack.c.b16 %v5079, %v5039
        %v6560 = vpack.c.b16 %v5080, %v5040
        %v6561 = vpack.c.b16 %v5081, %v5041
        %v6562 = vpack.c.b16 %v5082, %v5042
        %v6563 = vpack.c.b16 %v5083, %v5043
        %v6564 = vpack.c.b16 %v5084, %v5044
        %v6565 = vpack.c.b16 %v5085, %v5045
        %v6566 = vpack.c.b16 %v5086, %v5046
        %v6567 = vpack.c.b16 %v5087, %v5047
        %v6568 = vpack.c.b16 %v5088, %v5048
        %v6569 = vpack.c.b16 %v5089, %v5049
        %v6570 = vpack.c.b16 %v5090, %v5050
        %v6571 = vpack.c.b16 %v5091, %v5051
        %v6572 = vpack.c.b16 %v5092, %v5052
        %v6573 = vpack.c.b16 %v5093, %v5053
        %v6574 = vpack.c.b16 %v5094, %v5054
        %v6575 = vpack.c.b16 %v5095, %v5055
        %v6576 = vpack.c.b16 %v5096, %v5056
        %v6577 = vpack.c.b16 %v5097, %v5057
        %v6578 = vpack.c.b16 %v5098, %v5058
        %v6579 = vpack.c.b16 %v5099, %v5059
        %v6580 = vpack.c.b16 %v5100, %v5060
        %v6581 = vpack.c.b16 %v5101, %v5061
        %v6582 = vpack.c.b16 %v5102, %v5062
        %v6583 = vpack.c.b16 %v5103, %v5063
        %v6584 = vpack.c.b16 %v5104, %v5064
        %v6585 = vpack.c.b16 %v5105, %v5065
        %v6586 = vpack.c.b16 %v5106, %v5066
        %v6587 = vpack.c.b16 %v5107, %v5067
        %v6588 = vpack.c.b16 %v5108, %v5068
        %v6589 = vpack.c.b16 %v5109, %v5069
        %v6590 = vpack.c.b16 %v5150, %v5110
        %v6591 = vpack.c.b16 %v5151, %v5111
        %v6592 = vpack.c.b16 %v5152, %v5112
        %v6593 = vpack.c.b16 %v5153, %v5113
        %v6594 = vpack.c.b16 %v5154, %v5114
        %v6595 = vpack.c.b16 %v5155, %v5115
        %v6596 = vpack.c.b16 %v5156, %v5116
        %v6597 = vpack.c.b16 %v5157, %v5117
        %v6598 = vpack.c.b16 %v5158, %v5118
        %v6599 = vpack.c.b16 %v5159, %v5119
        %v6600 = vpack.c.b16 %v5160, %v5120
        %v6601 = vpack.c.b16 %v5161, %v5121
        %v6602 = vpack.c.b16 %v5162, %v5122
        %v6603 = vpack.c.b16 %v5163, %v5123
        %v6604 = vpack.c.b16 %v5164, %v5124
        %v6605 = vpack.c.b16 %v5165, %v5125
        %v6606 = vpack.c.b16 %v5166, %v5126
        %v6607 = vpack.c.b16 %v5167, %v5127
        %v6608 = vpack.c.b16 %v5168, %v5128
        %v6609 = vpack.c.b16 %v5169, %v5129
        %v6610 = vpack.c.b16 %v5170, %v5130
        %v6611 = vpack.c.b16 %v5171, %v5131
        %v6612 = vpack.c.b16 %v5172, %v5132
        %v6613 = vpack.c.b16 %v5173, %v5133
        %v6614 = vpack.c.b16 %v5174, %v5134
        %v6615 = vpack.c.b16 %v5175, %v5135
        %v6616 = vpack.c.b16 %v5176, %v5136
        %v6617 = vpack.c.b16 %v5177, %v5137
        %v6618 = vpack.c.b16 %v5178, %v5138
        %v6619 = vpack.c.b16 %v5179, %v5139
        %v6620 = vpack.c.b16 %v5180, %v5140
        %v6621 = vpack.c.b16 %v5181, %v5141
        %v6622 = vpack.c.b16 %v5182, %v5142
        %v6623 = vpack.c.b16 %v5183, %v5143
        %v6624 = vpack.c.b16 %v5184, %v5144
        %v6625 = vpack.c.b16 %v5185, %v5145
        %v6626 = vpack.c.b16 %v5186, %v5146
        %v6627 = vpack.c.b16 %v5187, %v5147
        %v6628 = vpack.c.b16 %v5188, %v5148
        %v6629 = vpack.c.b16 %v5189, %v5149
        %v6630 = vpack.c.b16 %v5230, %v5190
        %v6631 = vpack.c.b16 %v5231, %v5191
        %v6632 = vpack.c.b16 %v5232, %v5192
        %v6633 = vpack.c.b16 %v5233, %v5193
        %v6634 = vpack.c.b16 %v5234, %v5194
        %v6635 = vpack.c.b16 %v5235, %v5195
        %v6636 = vpack.c.b16 %v5236, %v5196
        %v6637 = vpack.c.b16 %v5237, %v5197
        %v6638 = vpack.c.b16 %v5238, %v5198
        %v6639 = vpack.c.b16 %v5239, %v5199
        %v6640 = vpack.c.b16 %v5240, %v5200
        %v6641 = vpack.c.b16 %v5241, %v5201
        %v6642 = vpack.c.b16 %v5242, %v5202
        %v6643 = vpack.c.b16 %v5243, %v5203
        %v6644 = vpack.c.b16 %v5244, %v5204
        %v6645 = vpack.c.b16 %v5245, %v5205
        %v6646 = vpack.c.b16 %v5246, %v5206
        %v6647 = vpack.c.b16 %v5247, %v5207
        %v6648 = vpack.c.b16 %v5248, %v5208
        %v6649 = vpack.c.b16 %v5249, %v5209
        %v6650 = vpack.c.b16 %v5250, %v5210
        %v6651 = vpack.c.b16 %v5251, %v5211
        %v6652 = vpack.c.b16 %v5252, %v5212
        %v6653 = vpack.c.b16 %v5253, %v5213
        %v6654 = vpack.c.b16 %v5254, %v5214
        %v6655 = vpack.c.b16 %v5255, %v5215
        %v6656 = vpack.c.b16 %v5256, %v5216
        %v6657 = vpack.c.b16 %v5257, %v5217
        %v6658 = vpack.c.b16 %v5258, %v5218
        %v6659 = vpack.c.b16 %v5259, %v5219
        %v6660 = vpack.c.b16 %v5260, %v5220
        %v6661 = vpack.c.b16 %v5261, %v5221
        %v6662 = vpack.c.b16 %v5262, %v5222
        %v6663 = vpack.c.b16 %v5263, %v5223
        %v6664 = vpack.c.b16 %v5264, %v5224
        %v6665 = vpack.c.b16 %v5265, %v5225
        %v6666 = vpack.c.b16 %v5266, %v5226
        %v6667 = vpack.c.b16 %v5267, %v5227
        %v6668 = vpack.c.b16 %v5268, %v5228
        %v6669 = vpack.c.b16 %v5269, %v5229
        %v6670 = vpack.c.b16 %v5310, %v5270
        %v6671 = vpack.c.b16 %v5311, %v5271
        %v6672 = vpack.c.b16 %v5312, %v5272
        %v6673 = vpack.c.b16 %v5313, %v5273
        %v6674 = vpack.c.b16 %v5314, %v5274
        %v6675 = vpack.c.b16 %v5315, %v5275
        %v6676 = vpack.c.b16 %v5316, %v5276
        %v6677 = vpack.c.b16 %v5317, %v5277
        %v6678 = vpack.c.b16 %v5318, %v5278
        %v6679 = vpack.c.b16 %v5319, %v5279
        %v6680 = vpack.c.b16 %v5320, %v5280
        %v6681 = vpack.c.b16 %v5321, %v5281
        %v6682 = vpack.c.b16 %v5322, %v5282
        %v6683 = vpack.c.b16 %v5323, %v5283
        %v6684 = vpack.c.b16 %v5324, %v5284
        %v6685 = vpack.c.b16 %v5325, %v5285
        %v6686 = vpack.c.b16 %v5326, %v5286
        %v6687 = vpack.c.b16 %v5327, %v5287
        %v6688 = vpack.c.b16 %v5328, %v5288
        %v6689 = vpack.c.b16 %v5329, %v5289
        %v6690 = vpack.c.b16 %v5330, %v5290
        %v6691 = vpack.c.b16 %v5331, %v5291
        %v6692 = vpack.c.b16 %v5332, %v5292
        %v6693 = vpack.c.b16 %v5333, %v5293
        %v6694 = vpack.c.b16 %v5334, %v5294
        %v6695 = vpack.c.b16 %v5335, %v5295
        %v6696 = vpack.c.b16 %v5336, %v5296
        %v6697 = vpack.c.b16 %v5337, %v5297
        %v6698 = vpack.c.b16 %v5338, %v5298
        %v6699 = vpack.c.b16 %v5339, %v5299
        %v6700 = vpack.c.b16 %v5340, %v5300
        %v6701 = vpack.c.b16 %v5341, %v5301
        %v6702 = vpack.c.b16 %v5342, %v5302
        %v6703 = vpack.c.b16 %v5343, %v5303
        %v6704 = vpack.c.b16 %v5344, %v5304
        %v6705 = vpack.c.b16 %v5345, %v5305
        %v6706 = vpack.c.b16 %v5346, %v5306
        %v6707 = vpack.c.b16 %v5347, %v5307
        %v6708 = vpack.c.b16 %v5348, %v5308
        %v6709 = vpack.c.b16 %v5349, %v5309
        %v6710 = vpack.c.b16 %v5390, %v5350
        %v6711 = vpack.c.b16 %v5391, %v5351
        %v6712 = vpack.c.b16 %v5392, %v5352
        %v6713 = vpack.c.b16 %v5393, %v5353
        %v6714 = vpack.c.b16 %v5394, %v5354
        %v6715 = vpack.c.b16 %v5395, %v5355
        %v6716 = vpack.c.b16 %v5396, %v5356
        %v6717 = vpack.c.b16 %v5397, %v5357
        %v6718 = vpack.c.b16 %v5398, %v5358
        %v6719 = vpack.c.b16 %v5399, %v5359
        %v6720 = vpack.c.b16 %v5400, %v5360
        %v6721 = vpack.c.b16 %v5401, %v5361
        %v6722 = vpack.c.b16 %v5402, %v5362
        %v6723 = vpack.c.b16 %v5403, %v5363
        %v6724 = vpack.c.b16 %v5404, %v5364
        %v6725 = vpack.c.b16 %v5405, %v5365
        %v6726 = vpack.c.b16 %v5406, %v5366
        %v6727 = vpack.c.b16 %v5407, %v5367
        %v6728 = vpack.c.b16 %v5408, %v5368
        %v6729 = vpack.c.b16 %v5409, %v5369
        %v6730 = vpack.c.b16 %v5410, %v5370
        %v6731 = vpack.c.b16 %v5411, %v5371
        %v6732 = vpack.c.b16 %v5412, %v5372
        %v6733 = vpack.c.b16 %v5413, %v5373
        %v6734 = vpack.c.b16 %v5414, %v5374
        %v6735 = vpack.c.b16 %v5415, %v5375
        %v6736 = vpack.c.b16 %v5416, %v5376
        %v6737 = vpack.c.b16 %v5417, %v5377
        %v6738 = vpack.c.b16 %v5418, %v5378
        %v6739 = vpack.c.b16 %v5419, %v5379
        %v6740 = vpack.c.b16 %v5420, %v5380
        %v6741 = vpack.c.b16 %v5421, %v5381
        %v6742 = vpack.c.b16 %v5422, %v5382
        %v6743 = vpack.c.b16 %v5423, %v5383
        %v6744 = vpack.c.b16 %v5424, %v5384
        %v6745 = vpack.c.b16 %v5425, %v5385
        %v6746 = vpack.c.b16 %v5426, %v5386
        %v6747 = vpack.c.b16 %v5427, %v5387
        %v6748 = vpack.c.b16 %v5428, %v5388
        %v6749 = vpack.c.b16 %v5429, %v5389
        %v6750 = vpack.c.b16 %v5470, %v5430
        %v6751 = vpack.c.b16 %v5471, %v5431
        %v6752 = vpack.c.b16 %v5472, %v5432
        %v6753 = vpack.c.b16 %v5473, %v5433
        %v6754 = vpack.c.b16 %v5474, %v5434
        %v6755 = vpack.c.b16 %v5475, %v5435
        %v6756 = vpack.c.b16 %v5476, %v5436
        %v6757 = vpack.c.b16 %v5477, %v5437
        %v6758 = vpack.c.b16 %v5478, %v5438
        %v6759 = vpack.c.b16 %v5479, %v5439
        %v6760 = vpack.c.b16 %v5480, %v5440
        %v6761 = vpack.c.b16 %v5481, %v5441
        %v6762 = vpack.c.b16 %v5482, %v5442
        %v6763 = vpack.c.b16 %v5483, %v5443
        %v6764 = vpack.c.b16 %v5484, %v5444
        %v6765 = vpack.c.b16 %v5485, %v5445
        %v6766 = vpack.c.b16 %v5486, %v5446
        %v6767 = vpack.c.b16 %v5487, %v5447
        %v6768 = vpack.c.b16 %v5488, %v5448
        %v6769 = vpack.c.b16 %v5489, %v5449
        %v6770 = vpack.c.b16 %v5490, %v5450
        %v6771 = vpack.c.b16 %v5491, %v5451
        %v6772 = vpack.c.b16 %v5492, %v5452
        %v6773 = vpack.c.b16 %v5493, %v5453
        %v6774 = vpack.c.b16 %v5494, %v5454
        %v6775 = vpack.c.b16 %v5495, %v5455
        %v6776 = vpack.c.b16 %v5496, %v5456
        %v6777 = vpack.c.b16 %v5497, %v5457
        %v6778 = vpack.c.b16 %v5498, %v5458
        %v6779 = vpack.c.b16 %v5499, %v5459
        %v6780 = vpack.c.b16 %v5500, %v5460
        %v6781 = vpack.c.b16 %v5501, %v5461
        %v6782 = vpack.c.b16 %v5502, %v5462
        %v6783 = vpack.c.b16 %v5503, %v5463
        %v6784 = vpack.c.b16 %v5504, %v5464
        %v6785 = vpack.c.b16 %v5505, %v5465
        %v6786 = vpack.c.b16 %v5506, %v5466
        %v6787 = vpack.c.b16 %v5507, %v5467
        %v6788 = vpack.c.b16 %v5508, %v5468
        %v6789 = vpack.c.b16 %v5509, %v5469
        %8070 = vmatpush.bf16.msra.mxu0 %v5790
        %8071 = vmatpush.bf16.msra.mxu0 %v5750
        %8072 = vmatpush.bf16.msra.mxu0 %v5710
        %8073 = vmatpush.bf16.msra.mxu0 %v5670
        %8074 = vmatpush.bf16.msra.mxu0 %v5630
        %8075 = vmatpush.bf16.msra.mxu0 %v5590
        %8076 = vmatpush.bf16.msra.mxu0 %v5550
        %8077 = vmatpush.bf16.msra.mxu0 %v5510
        %8078 = vmatmul.bf16.gmra.mxu0 %v1662
        %v8079 = vpop.f32.mrf.mxu0
        %v8080 = vadd.f32 %v1580, %v8079
        %v8081 = vpop.f32.mrf.mxu0
        %8082 = vdwg.mxu0
        %8083 = vmatpush.bf16.msra.mxu0 %v6110
        %8084 = vmatpush.bf16.msra.mxu0 %v6070
        %8085 = vmatpush.bf16.msra.mxu0 %v6030
        %8086 = vmatpush.bf16.msra.mxu0 %v5990
        %8087 = vmatpush.bf16.msra.mxu0 %v5950
        %8088 = vmatpush.bf16.msra.mxu0 %v5910
        %8089 = vmatpush.bf16.msra.mxu0 %v5870
        %8090 = vmatpush.bf16.msra.mxu0 %v5830
        %8091 = vmatmul.bf16.gmra.mxu0 %v1663
        %v8092 = vpop.f32.mrf.mxu0
        %v8093 = vadd.f32 %v8080, %v8092
        %v8094 = vpop.f32.mrf.mxu0
        %8095 = vdwg.mxu0
        %8096 = vmatpush.bf16.msra.mxu0 %v6430
        %8097 = vmatpush.bf16.msra.mxu0 %v6390
        %8098 = vmatpush.bf16.msra.mxu0 %v6350
        %8099 = vmatpush.bf16.msra.mxu0 %v6310
        %8100 = vmatpush.bf16.msra.mxu0 %v6270
        %8101 = vmatpush.bf16.msra.mxu0 %v6230
        %8102 = vmatpush.bf16.msra.mxu0 %v6190
        %8103 = vmatpush.bf16.msra.mxu0 %v6150
        %8104 = vmatmul.bf16.gmra.mxu0 %v1664
        %v8105 = vpop.f32.mrf.mxu0
        %v8106 = vadd.f32 %v8093, %v8105
        %v8107 = vpop.f32.mrf.mxu0
        %8108 = vdwg.mxu0
        %8109 = vmatpush.bf16.msra.mxu0 %v6750
        %8110 = vmatpush.bf16.msra.mxu0 %v6710
        %8111 = vmatpush.bf16.msra.mxu0 %v6670
        %8112 = vmatpush.bf16.msra.mxu0 %v6630
        %8113 = vmatpush.bf16.msra.mxu0 %v6590
        %8114 = vmatpush.bf16.msra.mxu0 %v6550
        %8115 = vmatpush.bf16.msra.mxu0 %v6510
        %8116 = vmatpush.bf16.msra.mxu0 %v6470
        %8117 = vmatmul.bf16.gmra.mxu0 %v1665
        %v8118 = vpop.f32.mrf.mxu0
        %v8119 = vadd.f32 %v8106, %v8118
        %v8120 = vpop.f32.mrf.mxu0
        %8121 = vdwg.mxu0
        %8122 = vmatpush.bf16.msra.mxu0 %v5791
        %8123 = vmatpush.bf16.msra.mxu0 %v5751
        %8124 = vmatpush.bf16.msra.mxu0 %v5711
        %8125 = vmatpush.bf16.msra.mxu0 %v5671
        %8126 = vmatpush.bf16.msra.mxu0 %v5631
        %8127 = vmatpush.bf16.msra.mxu0 %v5591
        %8128 = vmatpush.bf16.msra.mxu0 %v5551
        %8129 = vmatpush.bf16.msra.mxu0 %v5511
        %8130 = vmatmul.bf16.gmra.mxu0 %v1662
        %v8131 = vpop.f32.mrf.mxu0
        %v8132 = vadd.f32 %v1581, %v8131
        %v8133 = vpop.f32.mrf.mxu0
        %8134 = vdwg.mxu0
        %8135 = vmatpush.bf16.msra.mxu0 %v6111
        %8136 = vmatpush.bf16.msra.mxu0 %v6071
        %8137 = vmatpush.bf16.msra.mxu0 %v6031
        %8138 = vmatpush.bf16.msra.mxu0 %v5991
        %8139 = vmatpush.bf16.msra.mxu0 %v5951
        %8140 = vmatpush.bf16.msra.mxu0 %v5911
        %8141 = vmatpush.bf16.msra.mxu0 %v5871
        %8142 = vmatpush.bf16.msra.mxu0 %v5831
        %8143 = vmatmul.bf16.gmra.mxu0 %v1663
        %v8144 = vpop.f32.mrf.mxu0
        %v8145 = vadd.f32 %v8132, %v8144
        %v8146 = vpop.f32.mrf.mxu0
        %8147 = vdwg.mxu0
        %8148 = vmatpush.bf16.msra.mxu0 %v6431
        %8149 = vmatpush.bf16.msra.mxu0 %v6391
        %8150 = vmatpush.bf16.msra.mxu0 %v6351
        %8151 = vmatpush.bf16.msra.mxu0 %v6311
        %8152 = vmatpush.bf16.msra.mxu0 %v6271
        %8153 = vmatpush.bf16.msra.mxu0 %v6231
        %8154 = vmatpush.bf16.msra.mxu0 %v6191
        %8155 = vmatpush.bf16.msra.mxu0 %v6151
        %8156 = vmatmul.bf16.gmra.mxu0 %v1664
        %v8157 = vpop.f32.mrf.mxu0
        %v8158 = vadd.f32 %v8145, %v8157
        %v8159 = vpop.f32.mrf.mxu0
        %8160 = vdwg.mxu0
        %8161 = vmatpush.bf16.msra.mxu0 %v6751
        %8162 = vmatpush.bf16.msra.mxu0 %v6711
        %8163 = vmatpush.bf16.msra.mxu0 %v6671
        %8164 = vmatpush.bf16.msra.mxu0 %v6631
        %8165 = vmatpush.bf16.msra.mxu0 %v6591
        %8166 = vmatpush.bf16.msra.mxu0 %v6551
        %8167 = vmatpush.bf16.msra.mxu0 %v6511
        %8168 = vmatpush.bf16.msra.mxu0 %v6471
        %8169 = vmatmul.bf16.gmra.mxu0 %v1665
        %v8170 = vpop.f32.mrf.mxu0
        %v8171 = vadd.f32 %v8158, %v8170
        %v8172 = vpop.f32.mrf.mxu0
        %8173 = vdwg.mxu0
        %8174 = vmatpush.bf16.msra.mxu0 %v5792
        %8175 = vmatpush.bf16.msra.mxu0 %v5752
        %8176 = vmatpush.bf16.msra.mxu0 %v5712
        %8177 = vmatpush.bf16.msra.mxu0 %v5672
        %8178 = vmatpush.bf16.msra.mxu0 %v5632
        %8179 = vmatpush.bf16.msra.mxu0 %v5592
        %8180 = vmatpush.bf16.msra.mxu0 %v5552
        %8181 = vmatpush.bf16.msra.mxu0 %v5512
        %8182 = vmatmul.bf16.gmra.mxu0 %v1662
        %v8183 = vpop.f32.mrf.mxu0
        %v8184 = vadd.f32 %v1582, %v8183
        %v8185 = vpop.f32.mrf.mxu0
        %8186 = vdwg.mxu0
        %8187 = vmatpush.bf16.msra.mxu0 %v6112
        %8188 = vmatpush.bf16.msra.mxu0 %v6072
        %8189 = vmatpush.bf16.msra.mxu0 %v6032
        %8190 = vmatpush.bf16.msra.mxu0 %v5992
        %8191 = vmatpush.bf16.msra.mxu0 %v5952
        %8192 = vmatpush.bf16.msra.mxu0 %v5912
        %8193 = vmatpush.bf16.msra.mxu0 %v5872
        %8194 = vmatpush.bf16.msra.mxu0 %v5832
        %8195 = vmatmul.bf16.gmra.mxu0 %v1663
        %v8196 = vpop.f32.mrf.mxu0
        %v8197 = vadd.f32 %v8184, %v8196
        %v8198 = vpop.f32.mrf.mxu0
        %8199 = vdwg.mxu0
        %8200 = vmatpush.bf16.msra.mxu0 %v6432
        %8201 = vmatpush.bf16.msra.mxu0 %v6392
        %8202 = vmatpush.bf16.msra.mxu0 %v6352
        %8203 = vmatpush.bf16.msra.mxu0 %v6312
        %8204 = vmatpush.bf16.msra.mxu0 %v6272
        %8205 = vmatpush.bf16.msra.mxu0 %v6232
        %8206 = vmatpush.bf16.msra.mxu0 %v6192
        %8207 = vmatpush.bf16.msra.mxu0 %v6152
        %8208 = vmatmul.bf16.gmra.mxu0 %v1664
        %v8209 = vpop.f32.mrf.mxu0
        %v8210 = vadd.f32 %v8197, %v8209
        %v8211 = vpop.f32.mrf.mxu0
        %8212 = vdwg.mxu0
        %8213 = vmatpush.bf16.msra.mxu0 %v6752
        %8214 = vmatpush.bf16.msra.mxu0 %v6712
        %8215 = vmatpush.bf16.msra.mxu0 %v6672
        %8216 = vmatpush.bf16.msra.mxu0 %v6632
        %8217 = vmatpush.bf16.msra.mxu0 %v6592
        %8218 = vmatpush.bf16.msra.mxu0 %v6552
        %8219 = vmatpush.bf16.msra.mxu0 %v6512
        %8220 = vmatpush.bf16.msra.mxu0 %v6472
        %8221 = vmatmul.bf16.gmra.mxu0 %v1665
        %v8222 = vpop.f32.mrf.mxu0
        %v8223 = vadd.f32 %v8210, %v8222
        %v8224 = vpop.f32.mrf.mxu0
        %8225 = vdwg.mxu0
        %8226 = vmatpush.bf16.msra.mxu0 %v5793
        %8227 = vmatpush.bf16.msra.mxu0 %v5753
        %8228 = vmatpush.bf16.msra.mxu0 %v5713
        %8229 = vmatpush.bf16.msra.mxu0 %v5673
        %8230 = vmatpush.bf16.msra.mxu0 %v5633
        %8231 = vmatpush.bf16.msra.mxu0 %v5593
        %8232 = vmatpush.bf16.msra.mxu0 %v5553
        %8233 = vmatpush.bf16.msra.mxu0 %v5513
        %8234 = vmatmul.bf16.gmra.mxu0 %v1662
        %v8235 = vpop.f32.mrf.mxu0
        %v8236 = vadd.f32 %v1583, %v8235
        %v8237 = vpop.f32.mrf.mxu0
        %8238 = vdwg.mxu0
        %8239 = vmatpush.bf16.msra.mxu0 %v6113
        %8240 = vmatpush.bf16.msra.mxu0 %v6073
        %8241 = vmatpush.bf16.msra.mxu0 %v6033
        %8242 = vmatpush.bf16.msra.mxu0 %v5993
        %8243 = vmatpush.bf16.msra.mxu0 %v5953
        %8244 = vmatpush.bf16.msra.mxu0 %v5913
        %8245 = vmatpush.bf16.msra.mxu0 %v5873
        %8246 = vmatpush.bf16.msra.mxu0 %v5833
        %8247 = vmatmul.bf16.gmra.mxu0 %v1663
        %v8248 = vpop.f32.mrf.mxu0
        %v8249 = vadd.f32 %v8236, %v8248
        %v8250 = vpop.f32.mrf.mxu0
        %8251 = vdwg.mxu0
        %8252 = vmatpush.bf16.msra.mxu0 %v6433
        %8253 = vmatpush.bf16.msra.mxu0 %v6393
        %8254 = vmatpush.bf16.msra.mxu0 %v6353
        %8255 = vmatpush.bf16.msra.mxu0 %v6313
        %8256 = vmatpush.bf16.msra.mxu0 %v6273
        %8257 = vmatpush.bf16.msra.mxu0 %v6233
        %8258 = vmatpush.bf16.msra.mxu0 %v6193
        %8259 = vmatpush.bf16.msra.mxu0 %v6153
        %8260 = vmatmul.bf16.gmra.mxu0 %v1664
        %v8261 = vpop.f32.mrf.mxu0
        %v8262 = vadd.f32 %v8249, %v8261
        %v8263 = vpop.f32.mrf.mxu0
        %8264 = vdwg.mxu0
        %8265 = vmatpush.bf16.msra.mxu0 %v6753
        %8266 = vmatpush.bf16.msra.mxu0 %v6713
        %8267 = vmatpush.bf16.msra.mxu0 %v6673
        %8268 = vmatpush.bf16.msra.mxu0 %v6633
        %8269 = vmatpush.bf16.msra.mxu0 %v6593
        %8270 = vmatpush.bf16.msra.mxu0 %v6553
        %8271 = vmatpush.bf16.msra.mxu0 %v6513
        %8272 = vmatpush.bf16.msra.mxu0 %v6473
        %8273 = vmatmul.bf16.gmra.mxu0 %v1665
        %v8274 = vpop.f32.mrf.mxu0
        %v8275 = vadd.f32 %v8262, %v8274
        %v8276 = vpop.f32.mrf.mxu0
        %8277 = vdwg.mxu0
        %8278 = vmatpush.bf16.msra.mxu0 %v5794
        %8279 = vmatpush.bf16.msra.mxu0 %v5754
        %8280 = vmatpush.bf16.msra.mxu0 %v5714
        %8281 = vmatpush.bf16.msra.mxu0 %v5674
        %8282 = vmatpush.bf16.msra.mxu0 %v5634
        %8283 = vmatpush.bf16.msra.mxu0 %v5594
        %8284 = vmatpush.bf16.msra.mxu0 %v5554
        %8285 = vmatpush.bf16.msra.mxu0 %v5514
        %8286 = vmatmul.bf16.gmra.mxu0 %v1662
        %v8287 = vpop.f32.mrf.mxu0
        %v8288 = vadd.f32 %v1584, %v8287
        %v8289 = vpop.f32.mrf.mxu0
        %8290 = vdwg.mxu0
        %8291 = vmatpush.bf16.msra.mxu0 %v6114
        %8292 = vmatpush.bf16.msra.mxu0 %v6074
        %8293 = vmatpush.bf16.msra.mxu0 %v6034
        %8294 = vmatpush.bf16.msra.mxu0 %v5994
        %8295 = vmatpush.bf16.msra.mxu0 %v5954
        %8296 = vmatpush.bf16.msra.mxu0 %v5914
        %8297 = vmatpush.bf16.msra.mxu0 %v5874
        %8298 = vmatpush.bf16.msra.mxu0 %v5834
        %8299 = vmatmul.bf16.gmra.mxu0 %v1663
        %v8300 = vpop.f32.mrf.mxu0
        %v8301 = vadd.f32 %v8288, %v8300
        %v8302 = vpop.f32.mrf.mxu0
        %8303 = vdwg.mxu0
        %8304 = vmatpush.bf16.msra.mxu0 %v6434
        %8305 = vmatpush.bf16.msra.mxu0 %v6394
        %8306 = vmatpush.bf16.msra.mxu0 %v6354
        %8307 = vmatpush.bf16.msra.mxu0 %v6314
        %8308 = vmatpush.bf16.msra.mxu0 %v6274
        %8309 = vmatpush.bf16.msra.mxu0 %v6234
        %8310 = vmatpush.bf16.msra.mxu0 %v6194
        %8311 = vmatpush.bf16.msra.mxu0 %v6154
        %8312 = vmatmul.bf16.gmra.mxu0 %v1664
        %v8313 = vpop.f32.mrf.mxu0
        %v8314 = vadd.f32 %v8301, %v8313
        %v8315 = vpop.f32.mrf.mxu0
        %8316 = vdwg.mxu0
        %8317 = vmatpush.bf16.msra.mxu0 %v6754
        %8318 = vmatpush.bf16.msra.mxu0 %v6714
        %8319 = vmatpush.bf16.msra.mxu0 %v6674
        %8320 = vmatpush.bf16.msra.mxu0 %v6634
        %8321 = vmatpush.bf16.msra.mxu0 %v6594
        %8322 = vmatpush.bf16.msra.mxu0 %v6554
        %8323 = vmatpush.bf16.msra.mxu0 %v6514
        %8324 = vmatpush.bf16.msra.mxu0 %v6474
        %8325 = vmatmul.bf16.gmra.mxu0 %v1665
        %v8326 = vpop.f32.mrf.mxu0
        %v8327 = vadd.f32 %v8314, %v8326
        %v8328 = vpop.f32.mrf.mxu0
        %8329 = vdwg.mxu0
        %8330 = vmatpush.bf16.msra.mxu0 %v5795
        %8331 = vmatpush.bf16.msra.mxu0 %v5755
        %8332 = vmatpush.bf16.msra.mxu0 %v5715
        %8333 = vmatpush.bf16.msra.mxu0 %v5675
        %8334 = vmatpush.bf16.msra.mxu0 %v5635
        %8335 = vmatpush.bf16.msra.mxu0 %v5595
        %8336 = vmatpush.bf16.msra.mxu0 %v5555
        %8337 = vmatpush.bf16.msra.mxu0 %v5515
        %8338 = vmatmul.bf16.gmra.mxu0 %v1662
        %v8339 = vpop.f32.mrf.mxu0
        %v8340 = vadd.f32 %v1585, %v8339
        %v8341 = vpop.f32.mrf.mxu0
        %8342 = vdwg.mxu0
        %8343 = vmatpush.bf16.msra.mxu0 %v6115
        %8344 = vmatpush.bf16.msra.mxu0 %v6075
        %8345 = vmatpush.bf16.msra.mxu0 %v6035
        %8346 = vmatpush.bf16.msra.mxu0 %v5995
        %8347 = vmatpush.bf16.msra.mxu0 %v5955
        %8348 = vmatpush.bf16.msra.mxu0 %v5915
        %8349 = vmatpush.bf16.msra.mxu0 %v5875
        %8350 = vmatpush.bf16.msra.mxu0 %v5835
        %8351 = vmatmul.bf16.gmra.mxu0 %v1663
        %v8352 = vpop.f32.mrf.mxu0
        %v8353 = vadd.f32 %v8340, %v8352
        %v8354 = vpop.f32.mrf.mxu0
        %8355 = vdwg.mxu0
        %8356 = vmatpush.bf16.msra.mxu0 %v6435
        %8357 = vmatpush.bf16.msra.mxu0 %v6395
        %8358 = vmatpush.bf16.msra.mxu0 %v6355
        %8359 = vmatpush.bf16.msra.mxu0 %v6315
        %8360 = vmatpush.bf16.msra.mxu0 %v6275
        %8361 = vmatpush.bf16.msra.mxu0 %v6235
        %8362 = vmatpush.bf16.msra.mxu0 %v6195
        %8363 = vmatpush.bf16.msra.mxu0 %v6155
        %8364 = vmatmul.bf16.gmra.mxu0 %v1664
        %v8365 = vpop.f32.mrf.mxu0
        %v8366 = vadd.f32 %v8353, %v8365
        %v8367 = vpop.f32.mrf.mxu0
        %8368 = vdwg.mxu0
        %8369 = vmatpush.bf16.msra.mxu0 %v6755
        %8370 = vmatpush.bf16.msra.mxu0 %v6715
        %8371 = vmatpush.bf16.msra.mxu0 %v6675
        %8372 = vmatpush.bf16.msra.mxu0 %v6635
        %8373 = vmatpush.bf16.msra.mxu0 %v6595
        %8374 = vmatpush.bf16.msra.mxu0 %v6555
        %8375 = vmatpush.bf16.msra.mxu0 %v6515
        %8376 = vmatpush.bf16.msra.mxu0 %v6475
        %8377 = vmatmul.bf16.gmra.mxu0 %v1665
        %v8378 = vpop.f32.mrf.mxu0
        %v8379 = vadd.f32 %v8366, %v8378
        %v8380 = vpop.f32.mrf.mxu0
        %8381 = vdwg.mxu0
        %8382 = vmatpush.bf16.msra.mxu0 %v5796
        %8383 = vmatpush.bf16.msra.mxu0 %v5756
        %8384 = vmatpush.bf16.msra.mxu0 %v5716
        %8385 = vmatpush.bf16.msra.mxu0 %v5676
        %8386 = vmatpush.bf16.msra.mxu0 %v5636
        %8387 = vmatpush.bf16.msra.mxu0 %v5596
        %8388 = vmatpush.bf16.msra.mxu0 %v5556
        %8389 = vmatpush.bf16.msra.mxu0 %v5516
        %8390 = vmatmul.bf16.gmra.mxu0 %v1662
        %v8391 = vpop.f32.mrf.mxu0
        %v8392 = vadd.f32 %v1586, %v8391
        %v8393 = vpop.f32.mrf.mxu0
        %8394 = vdwg.mxu0
        %8395 = vmatpush.bf16.msra.mxu0 %v6116
        %8396 = vmatpush.bf16.msra.mxu0 %v6076
        %8397 = vmatpush.bf16.msra.mxu0 %v6036
        %8398 = vmatpush.bf16.msra.mxu0 %v5996
        %8399 = vmatpush.bf16.msra.mxu0 %v5956
        %8400 = vmatpush.bf16.msra.mxu0 %v5916
        %8401 = vmatpush.bf16.msra.mxu0 %v5876
        %8402 = vmatpush.bf16.msra.mxu0 %v5836
        %8403 = vmatmul.bf16.gmra.mxu0 %v1663
        %v8404 = vpop.f32.mrf.mxu0
        %v8405 = vadd.f32 %v8392, %v8404
        %v8406 = vpop.f32.mrf.mxu0
        %8407 = vdwg.mxu0
        %8408 = vmatpush.bf16.msra.mxu0 %v6436
        %8409 = vmatpush.bf16.msra.mxu0 %v6396
        %8410 = vmatpush.bf16.msra.mxu0 %v6356
        %8411 = vmatpush.bf16.msra.mxu0 %v6316
        %8412 = vmatpush.bf16.msra.mxu0 %v6276
        %8413 = vmatpush.bf16.msra.mxu0 %v6236
        %8414 = vmatpush.bf16.msra.mxu0 %v6196
        %8415 = vmatpush.bf16.msra.mxu0 %v6156
        %8416 = vmatmul.bf16.gmra.mxu0 %v1664
        %v8417 = vpop.f32.mrf.mxu0
        %v8418 = vadd.f32 %v8405, %v8417
        %v8419 = vpop.f32.mrf.mxu0
        %8420 = vdwg.mxu0
        %8421 = vmatpush.bf16.msra.mxu0 %v6756
        %8422 = vmatpush.bf16.msra.mxu0 %v6716
        %8423 = vmatpush.bf16.msra.mxu0 %v6676
        %8424 = vmatpush.bf16.msra.mxu0 %v6636
        %8425 = vmatpush.bf16.msra.mxu0 %v6596
        %8426 = vmatpush.bf16.msra.mxu0 %v6556
        %8427 = vmatpush.bf16.msra.mxu0 %v6516
        %8428 = vmatpush.bf16.msra.mxu0 %v6476
        %8429 = vmatmul.bf16.gmra.mxu0 %v1665
        %v8430 = vpop.f32.mrf.mxu0
        %v8431 = vadd.f32 %v8418, %v8430
        %v8432 = vpop.f32.mrf.mxu0
        %8433 = vdwg.mxu0
        %8434 = vmatpush.bf16.msra.mxu0 %v5797
        %8435 = vmatpush.bf16.msra.mxu0 %v5757
        %8436 = vmatpush.bf16.msra.mxu0 %v5717
        %8437 = vmatpush.bf16.msra.mxu0 %v5677
        %8438 = vmatpush.bf16.msra.mxu0 %v5637
        %8439 = vmatpush.bf16.msra.mxu0 %v5597
        %8440 = vmatpush.bf16.msra.mxu0 %v5557
        %8441 = vmatpush.bf16.msra.mxu0 %v5517
        %8442 = vmatmul.bf16.gmra.mxu0 %v1662
        %v8443 = vpop.f32.mrf.mxu0
        %v8444 = vadd.f32 %v1587, %v8443
        %v8445 = vpop.f32.mrf.mxu0
        %8446 = vdwg.mxu0
        %8447 = vmatpush.bf16.msra.mxu0 %v6117
        %8448 = vmatpush.bf16.msra.mxu0 %v6077
        %8449 = vmatpush.bf16.msra.mxu0 %v6037
        %8450 = vmatpush.bf16.msra.mxu0 %v5997
        %8451 = vmatpush.bf16.msra.mxu0 %v5957
        %8452 = vmatpush.bf16.msra.mxu0 %v5917
        %8453 = vmatpush.bf16.msra.mxu0 %v5877
        %8454 = vmatpush.bf16.msra.mxu0 %v5837
        %8455 = vmatmul.bf16.gmra.mxu0 %v1663
        %v8456 = vpop.f32.mrf.mxu0
        %v8457 = vadd.f32 %v8444, %v8456
        %v8458 = vpop.f32.mrf.mxu0
        %8459 = vdwg.mxu0
        %8460 = vmatpush.bf16.msra.mxu0 %v6437
        %8461 = vmatpush.bf16.msra.mxu0 %v6397
        %8462 = vmatpush.bf16.msra.mxu0 %v6357
        %8463 = vmatpush.bf16.msra.mxu0 %v6317
        %8464 = vmatpush.bf16.msra.mxu0 %v6277
        %8465 = vmatpush.bf16.msra.mxu0 %v6237
        %8466 = vmatpush.bf16.msra.mxu0 %v6197
        %8467 = vmatpush.bf16.msra.mxu0 %v6157
        %8468 = vmatmul.bf16.gmra.mxu0 %v1664
        %v8469 = vpop.f32.mrf.mxu0
        %v8470 = vadd.f32 %v8457, %v8469
        %v8471 = vpop.f32.mrf.mxu0
        %8472 = vdwg.mxu0
        %8473 = vmatpush.bf16.msra.mxu0 %v6757
        %8474 = vmatpush.bf16.msra.mxu0 %v6717
        %8475 = vmatpush.bf16.msra.mxu0 %v6677
        %8476 = vmatpush.bf16.msra.mxu0 %v6637
        %8477 = vmatpush.bf16.msra.mxu0 %v6597
        %8478 = vmatpush.bf16.msra.mxu0 %v6557
        %8479 = vmatpush.bf16.msra.mxu0 %v6517
        %8480 = vmatpush.bf16.msra.mxu0 %v6477
        %8481 = vmatmul.bf16.gmra.mxu0 %v1665
        %v8482 = vpop.f32.mrf.mxu0
        %v8483 = vadd.f32 %v8470, %v8482
        %v8484 = vpop.f32.mrf.mxu0
        %8485 = vdwg.mxu0
        %8486 = vmatpush.bf16.msra.mxu0 %v5798
        %8487 = vmatpush.bf16.msra.mxu0 %v5758
        %8488 = vmatpush.bf16.msra.mxu0 %v5718
        %8489 = vmatpush.bf16.msra.mxu0 %v5678
        %8490 = vmatpush.bf16.msra.mxu0 %v5638
        %8491 = vmatpush.bf16.msra.mxu0 %v5598
        %8492 = vmatpush.bf16.msra.mxu0 %v5558
        %8493 = vmatpush.bf16.msra.mxu0 %v5518
        %8494 = vmatmul.bf16.gmra.mxu0 %v1662
        %v8495 = vpop.f32.mrf.mxu0
        %v8496 = vadd.f32 %v1588, %v8495
        %v8497 = vpop.f32.mrf.mxu0
        %8498 = vdwg.mxu0
        %8499 = vmatpush.bf16.msra.mxu0 %v6118
        %8500 = vmatpush.bf16.msra.mxu0 %v6078
        %8501 = vmatpush.bf16.msra.mxu0 %v6038
        %8502 = vmatpush.bf16.msra.mxu0 %v5998
        %8503 = vmatpush.bf16.msra.mxu0 %v5958
        %8504 = vmatpush.bf16.msra.mxu0 %v5918
        %8505 = vmatpush.bf16.msra.mxu0 %v5878
        %8506 = vmatpush.bf16.msra.mxu0 %v5838
        %8507 = vmatmul.bf16.gmra.mxu0 %v1663
        %v8508 = vpop.f32.mrf.mxu0
        %v8509 = vadd.f32 %v8496, %v8508
        %v8510 = vpop.f32.mrf.mxu0
        %8511 = vdwg.mxu0
        %8512 = vmatpush.bf16.msra.mxu0 %v6438
        %8513 = vmatpush.bf16.msra.mxu0 %v6398
        %8514 = vmatpush.bf16.msra.mxu0 %v6358
        %8515 = vmatpush.bf16.msra.mxu0 %v6318
        %8516 = vmatpush.bf16.msra.mxu0 %v6278
        %8517 = vmatpush.bf16.msra.mxu0 %v6238
        %8518 = vmatpush.bf16.msra.mxu0 %v6198
        %8519 = vmatpush.bf16.msra.mxu0 %v6158
        %8520 = vmatmul.bf16.gmra.mxu0 %v1664
        %v8521 = vpop.f32.mrf.mxu0
        %v8522 = vadd.f32 %v8509, %v8521
        %v8523 = vpop.f32.mrf.mxu0
        %8524 = vdwg.mxu0
        %8525 = vmatpush.bf16.msra.mxu0 %v6758
        %8526 = vmatpush.bf16.msra.mxu0 %v6718
        %8527 = vmatpush.bf16.msra.mxu0 %v6678
        %8528 = vmatpush.bf16.msra.mxu0 %v6638
        %8529 = vmatpush.bf16.msra.mxu0 %v6598
        %8530 = vmatpush.bf16.msra.mxu0 %v6558
        %8531 = vmatpush.bf16.msra.mxu0 %v6518
        %8532 = vmatpush.bf16.msra.mxu0 %v6478
        %8533 = vmatmul.bf16.gmra.mxu0 %v1665
        %v8534 = vpop.f32.mrf.mxu0
        %v8535 = vadd.f32 %v8522, %v8534
        %v8536 = vpop.f32.mrf.mxu0
        %8537 = vdwg.mxu0
        %8538 = vmatpush.bf16.msra.mxu0 %v5799
        %8539 = vmatpush.bf16.msra.mxu0 %v5759
        %8540 = vmatpush.bf16.msra.mxu0 %v5719
        %8541 = vmatpush.bf16.msra.mxu0 %v5679
        %8542 = vmatpush.bf16.msra.mxu0 %v5639
        %8543 = vmatpush.bf16.msra.mxu0 %v5599
        %8544 = vmatpush.bf16.msra.mxu0 %v5559
        %8545 = vmatpush.bf16.msra.mxu0 %v5519
        %8546 = vmatmul.bf16.gmra.mxu0 %v1662
        %v8547 = vpop.f32.mrf.mxu0
        %v8548 = vadd.f32 %v1589, %v8547
        %v8549 = vpop.f32.mrf.mxu0
        %8550 = vdwg.mxu0
        %8551 = vmatpush.bf16.msra.mxu0 %v6119
        %8552 = vmatpush.bf16.msra.mxu0 %v6079
        %8553 = vmatpush.bf16.msra.mxu0 %v6039
        %8554 = vmatpush.bf16.msra.mxu0 %v5999
        %8555 = vmatpush.bf16.msra.mxu0 %v5959
        %8556 = vmatpush.bf16.msra.mxu0 %v5919
        %8557 = vmatpush.bf16.msra.mxu0 %v5879
        %8558 = vmatpush.bf16.msra.mxu0 %v5839
        %8559 = vmatmul.bf16.gmra.mxu0 %v1663
        %v8560 = vpop.f32.mrf.mxu0
        %v8561 = vadd.f32 %v8548, %v8560
        %v8562 = vpop.f32.mrf.mxu0
        %8563 = vdwg.mxu0
        %8564 = vmatpush.bf16.msra.mxu0 %v6439
        %8565 = vmatpush.bf16.msra.mxu0 %v6399
        %8566 = vmatpush.bf16.msra.mxu0 %v6359
        %8567 = vmatpush.bf16.msra.mxu0 %v6319
        %8568 = vmatpush.bf16.msra.mxu0 %v6279
        %8569 = vmatpush.bf16.msra.mxu0 %v6239
        %8570 = vmatpush.bf16.msra.mxu0 %v6199
        %8571 = vmatpush.bf16.msra.mxu0 %v6159
        %8572 = vmatmul.bf16.gmra.mxu0 %v1664
        %v8573 = vpop.f32.mrf.mxu0
        %v8574 = vadd.f32 %v8561, %v8573
        %v8575 = vpop.f32.mrf.mxu0
        %8576 = vdwg.mxu0
        %8577 = vmatpush.bf16.msra.mxu0 %v6759
        %8578 = vmatpush.bf16.msra.mxu0 %v6719
        %8579 = vmatpush.bf16.msra.mxu0 %v6679
        %8580 = vmatpush.bf16.msra.mxu0 %v6639
        %8581 = vmatpush.bf16.msra.mxu0 %v6599
        %8582 = vmatpush.bf16.msra.mxu0 %v6559
        %8583 = vmatpush.bf16.msra.mxu0 %v6519
        %8584 = vmatpush.bf16.msra.mxu0 %v6479
        %8585 = vmatmul.bf16.gmra.mxu0 %v1665
        %v8586 = vpop.f32.mrf.mxu0
        %v8587 = vadd.f32 %v8574, %v8586
        %v8588 = vpop.f32.mrf.mxu0
        %8589 = vdwg.mxu0
        %8590 = vmatpush.bf16.msra.mxu0 %v5800
        %8591 = vmatpush.bf16.msra.mxu0 %v5760
        %8592 = vmatpush.bf16.msra.mxu0 %v5720
        %8593 = vmatpush.bf16.msra.mxu0 %v5680
        %8594 = vmatpush.bf16.msra.mxu0 %v5640
        %8595 = vmatpush.bf16.msra.mxu0 %v5600
        %8596 = vmatpush.bf16.msra.mxu0 %v5560
        %8597 = vmatpush.bf16.msra.mxu0 %v5520
        %8598 = vmatmul.bf16.gmra.mxu0 %v1662
        %v8599 = vpop.f32.mrf.mxu0
        %v8600 = vadd.f32 %v1590, %v8599
        %v8601 = vpop.f32.mrf.mxu0
        %8602 = vdwg.mxu0
        %8603 = vmatpush.bf16.msra.mxu0 %v6120
        %8604 = vmatpush.bf16.msra.mxu0 %v6080
        %8605 = vmatpush.bf16.msra.mxu0 %v6040
        %8606 = vmatpush.bf16.msra.mxu0 %v6000
        %8607 = vmatpush.bf16.msra.mxu0 %v5960
        %8608 = vmatpush.bf16.msra.mxu0 %v5920
        %8609 = vmatpush.bf16.msra.mxu0 %v5880
        %8610 = vmatpush.bf16.msra.mxu0 %v5840
        %8611 = vmatmul.bf16.gmra.mxu0 %v1663
        %v8612 = vpop.f32.mrf.mxu0
        %v8613 = vadd.f32 %v8600, %v8612
        %v8614 = vpop.f32.mrf.mxu0
        %8615 = vdwg.mxu0
        %8616 = vmatpush.bf16.msra.mxu0 %v6440
        %8617 = vmatpush.bf16.msra.mxu0 %v6400
        %8618 = vmatpush.bf16.msra.mxu0 %v6360
        %8619 = vmatpush.bf16.msra.mxu0 %v6320
        %8620 = vmatpush.bf16.msra.mxu0 %v6280
        %8621 = vmatpush.bf16.msra.mxu0 %v6240
        %8622 = vmatpush.bf16.msra.mxu0 %v6200
        %8623 = vmatpush.bf16.msra.mxu0 %v6160
        %8624 = vmatmul.bf16.gmra.mxu0 %v1664
        %v8625 = vpop.f32.mrf.mxu0
        %v8626 = vadd.f32 %v8613, %v8625
        %v8627 = vpop.f32.mrf.mxu0
        %8628 = vdwg.mxu0
        %8629 = vmatpush.bf16.msra.mxu0 %v6760
        %8630 = vmatpush.bf16.msra.mxu0 %v6720
        %8631 = vmatpush.bf16.msra.mxu0 %v6680
        %8632 = vmatpush.bf16.msra.mxu0 %v6640
        %8633 = vmatpush.bf16.msra.mxu0 %v6600
        %8634 = vmatpush.bf16.msra.mxu0 %v6560
        %8635 = vmatpush.bf16.msra.mxu0 %v6520
        %8636 = vmatpush.bf16.msra.mxu0 %v6480
        %8637 = vmatmul.bf16.gmra.mxu0 %v1665
        %v8638 = vpop.f32.mrf.mxu0
        %v8639 = vadd.f32 %v8626, %v8638
        %v8640 = vpop.f32.mrf.mxu0
        %8641 = vdwg.mxu0
        %8642 = vmatpush.bf16.msra.mxu0 %v5801
        %8643 = vmatpush.bf16.msra.mxu0 %v5761
        %8644 = vmatpush.bf16.msra.mxu0 %v5721
        %8645 = vmatpush.bf16.msra.mxu0 %v5681
        %8646 = vmatpush.bf16.msra.mxu0 %v5641
        %8647 = vmatpush.bf16.msra.mxu0 %v5601
        %8648 = vmatpush.bf16.msra.mxu0 %v5561
        %8649 = vmatpush.bf16.msra.mxu0 %v5521
        %8650 = vmatmul.bf16.gmra.mxu0 %v1662
        %v8651 = vpop.f32.mrf.mxu0
        %v8652 = vadd.f32 %v1591, %v8651
        %v8653 = vpop.f32.mrf.mxu0
        %8654 = vdwg.mxu0
        %8655 = vmatpush.bf16.msra.mxu0 %v6121
        %8656 = vmatpush.bf16.msra.mxu0 %v6081
        %8657 = vmatpush.bf16.msra.mxu0 %v6041
        %8658 = vmatpush.bf16.msra.mxu0 %v6001
        %8659 = vmatpush.bf16.msra.mxu0 %v5961
        %8660 = vmatpush.bf16.msra.mxu0 %v5921
        %8661 = vmatpush.bf16.msra.mxu0 %v5881
        %8662 = vmatpush.bf16.msra.mxu0 %v5841
        %8663 = vmatmul.bf16.gmra.mxu0 %v1663
        %v8664 = vpop.f32.mrf.mxu0
        %v8665 = vadd.f32 %v8652, %v8664
        %v8666 = vpop.f32.mrf.mxu0
        %8667 = vdwg.mxu0
        %8668 = vmatpush.bf16.msra.mxu0 %v6441
        %8669 = vmatpush.bf16.msra.mxu0 %v6401
        %8670 = vmatpush.bf16.msra.mxu0 %v6361
        %8671 = vmatpush.bf16.msra.mxu0 %v6321
        %8672 = vmatpush.bf16.msra.mxu0 %v6281
        %8673 = vmatpush.bf16.msra.mxu0 %v6241
        %8674 = vmatpush.bf16.msra.mxu0 %v6201
        %8675 = vmatpush.bf16.msra.mxu0 %v6161
        %8676 = vmatmul.bf16.gmra.mxu0 %v1664
        %v8677 = vpop.f32.mrf.mxu0
        %v8678 = vadd.f32 %v8665, %v8677
        %v8679 = vpop.f32.mrf.mxu0
        %8680 = vdwg.mxu0
        %8681 = vmatpush.bf16.msra.mxu0 %v6761
        %8682 = vmatpush.bf16.msra.mxu0 %v6721
        %8683 = vmatpush.bf16.msra.mxu0 %v6681
        %8684 = vmatpush.bf16.msra.mxu0 %v6641
        %8685 = vmatpush.bf16.msra.mxu0 %v6601
        %8686 = vmatpush.bf16.msra.mxu0 %v6561
        %8687 = vmatpush.bf16.msra.mxu0 %v6521
        %8688 = vmatpush.bf16.msra.mxu0 %v6481
        %8689 = vmatmul.bf16.gmra.mxu0 %v1665
        %v8690 = vpop.f32.mrf.mxu0
        %v8691 = vadd.f32 %v8678, %v8690
        %v8692 = vpop.f32.mrf.mxu0
        %8693 = vdwg.mxu0
        %8694 = vmatpush.bf16.msra.mxu0 %v5802
        %8695 = vmatpush.bf16.msra.mxu0 %v5762
        %8696 = vmatpush.bf16.msra.mxu0 %v5722
        %8697 = vmatpush.bf16.msra.mxu0 %v5682
        %8698 = vmatpush.bf16.msra.mxu0 %v5642
        %8699 = vmatpush.bf16.msra.mxu0 %v5602
        %8700 = vmatpush.bf16.msra.mxu0 %v5562
        %8701 = vmatpush.bf16.msra.mxu0 %v5522
        %8702 = vmatmul.bf16.gmra.mxu0 %v1662
        %v8703 = vpop.f32.mrf.mxu0
        %v8704 = vadd.f32 %v1592, %v8703
        %v8705 = vpop.f32.mrf.mxu0
        %8706 = vdwg.mxu0
        %8707 = vmatpush.bf16.msra.mxu0 %v6122
        %8708 = vmatpush.bf16.msra.mxu0 %v6082
        %8709 = vmatpush.bf16.msra.mxu0 %v6042
        %8710 = vmatpush.bf16.msra.mxu0 %v6002
        %8711 = vmatpush.bf16.msra.mxu0 %v5962
        %8712 = vmatpush.bf16.msra.mxu0 %v5922
        %8713 = vmatpush.bf16.msra.mxu0 %v5882
        %8714 = vmatpush.bf16.msra.mxu0 %v5842
        %8715 = vmatmul.bf16.gmra.mxu0 %v1663
        %v8716 = vpop.f32.mrf.mxu0
        %v8717 = vadd.f32 %v8704, %v8716
        %v8718 = vpop.f32.mrf.mxu0
        %8719 = vdwg.mxu0
        %8720 = vmatpush.bf16.msra.mxu0 %v6442
        %8721 = vmatpush.bf16.msra.mxu0 %v6402
        %8722 = vmatpush.bf16.msra.mxu0 %v6362
        %8723 = vmatpush.bf16.msra.mxu0 %v6322
        %8724 = vmatpush.bf16.msra.mxu0 %v6282
        %8725 = vmatpush.bf16.msra.mxu0 %v6242
        %8726 = vmatpush.bf16.msra.mxu0 %v6202
        %8727 = vmatpush.bf16.msra.mxu0 %v6162
        %8728 = vmatmul.bf16.gmra.mxu0 %v1664
        %v8729 = vpop.f32.mrf.mxu0
        %v8730 = vadd.f32 %v8717, %v8729
        %v8731 = vpop.f32.mrf.mxu0
        %8732 = vdwg.mxu0
        %8733 = vmatpush.bf16.msra.mxu0 %v6762
        %8734 = vmatpush.bf16.msra.mxu0 %v6722
        %8735 = vmatpush.bf16.msra.mxu0 %v6682
        %8736 = vmatpush.bf16.msra.mxu0 %v6642
        %8737 = vmatpush.bf16.msra.mxu0 %v6602
        %8738 = vmatpush.bf16.msra.mxu0 %v6562
        %8739 = vmatpush.bf16.msra.mxu0 %v6522
        %8740 = vmatpush.bf16.msra.mxu0 %v6482
        %8741 = vmatmul.bf16.gmra.mxu0 %v1665
        %v8742 = vpop.f32.mrf.mxu0
        %v8743 = vadd.f32 %v8730, %v8742
        %v8744 = vpop.f32.mrf.mxu0
        %8745 = vdwg.mxu0
        %8746 = vmatpush.bf16.msra.mxu0 %v5803
        %8747 = vmatpush.bf16.msra.mxu0 %v5763
        %8748 = vmatpush.bf16.msra.mxu0 %v5723
        %8749 = vmatpush.bf16.msra.mxu0 %v5683
        %8750 = vmatpush.bf16.msra.mxu0 %v5643
        %8751 = vmatpush.bf16.msra.mxu0 %v5603
        %8752 = vmatpush.bf16.msra.mxu0 %v5563
        %8753 = vmatpush.bf16.msra.mxu0 %v5523
        %8754 = vmatmul.bf16.gmra.mxu0 %v1662
        %v8755 = vpop.f32.mrf.mxu0
        %v8756 = vadd.f32 %v1593, %v8755
        %v8757 = vpop.f32.mrf.mxu0
        %8758 = vdwg.mxu0
        %8759 = vmatpush.bf16.msra.mxu0 %v6123
        %8760 = vmatpush.bf16.msra.mxu0 %v6083
        %8761 = vmatpush.bf16.msra.mxu0 %v6043
        %8762 = vmatpush.bf16.msra.mxu0 %v6003
        %8763 = vmatpush.bf16.msra.mxu0 %v5963
        %8764 = vmatpush.bf16.msra.mxu0 %v5923
        %8765 = vmatpush.bf16.msra.mxu0 %v5883
        %8766 = vmatpush.bf16.msra.mxu0 %v5843
        %8767 = vmatmul.bf16.gmra.mxu0 %v1663
        %v8768 = vpop.f32.mrf.mxu0
        %v8769 = vadd.f32 %v8756, %v8768
        %v8770 = vpop.f32.mrf.mxu0
        %8771 = vdwg.mxu0
        %8772 = vmatpush.bf16.msra.mxu0 %v6443
        %8773 = vmatpush.bf16.msra.mxu0 %v6403
        %8774 = vmatpush.bf16.msra.mxu0 %v6363
        %8775 = vmatpush.bf16.msra.mxu0 %v6323
        %8776 = vmatpush.bf16.msra.mxu0 %v6283
        %8777 = vmatpush.bf16.msra.mxu0 %v6243
        %8778 = vmatpush.bf16.msra.mxu0 %v6203
        %8779 = vmatpush.bf16.msra.mxu0 %v6163
        %8780 = vmatmul.bf16.gmra.mxu0 %v1664
        %v8781 = vpop.f32.mrf.mxu0
        %v8782 = vadd.f32 %v8769, %v8781
        %v8783 = vpop.f32.mrf.mxu0
        %8784 = vdwg.mxu0
        %8785 = vmatpush.bf16.msra.mxu0 %v6763
        %8786 = vmatpush.bf16.msra.mxu0 %v6723
        %8787 = vmatpush.bf16.msra.mxu0 %v6683
        %8788 = vmatpush.bf16.msra.mxu0 %v6643
        %8789 = vmatpush.bf16.msra.mxu0 %v6603
        %8790 = vmatpush.bf16.msra.mxu0 %v6563
        %8791 = vmatpush.bf16.msra.mxu0 %v6523
        %8792 = vmatpush.bf16.msra.mxu0 %v6483
        %8793 = vmatmul.bf16.gmra.mxu0 %v1665
        %v8794 = vpop.f32.mrf.mxu0
        %v8795 = vadd.f32 %v8782, %v8794
        %v8796 = vpop.f32.mrf.mxu0
        %8797 = vdwg.mxu0
        %8798 = vmatpush.bf16.msra.mxu0 %v5804
        %8799 = vmatpush.bf16.msra.mxu0 %v5764
        %8800 = vmatpush.bf16.msra.mxu0 %v5724
        %8801 = vmatpush.bf16.msra.mxu0 %v5684
        %8802 = vmatpush.bf16.msra.mxu0 %v5644
        %8803 = vmatpush.bf16.msra.mxu0 %v5604
        %8804 = vmatpush.bf16.msra.mxu0 %v5564
        %8805 = vmatpush.bf16.msra.mxu0 %v5524
        %8806 = vmatmul.bf16.gmra.mxu0 %v1662
        %v8807 = vpop.f32.mrf.mxu0
        %v8808 = vadd.f32 %v1594, %v8807
        %v8809 = vpop.f32.mrf.mxu0
        %8810 = vdwg.mxu0
        %8811 = vmatpush.bf16.msra.mxu0 %v6124
        %8812 = vmatpush.bf16.msra.mxu0 %v6084
        %8813 = vmatpush.bf16.msra.mxu0 %v6044
        %8814 = vmatpush.bf16.msra.mxu0 %v6004
        %8815 = vmatpush.bf16.msra.mxu0 %v5964
        %8816 = vmatpush.bf16.msra.mxu0 %v5924
        %8817 = vmatpush.bf16.msra.mxu0 %v5884
        %8818 = vmatpush.bf16.msra.mxu0 %v5844
        %8819 = vmatmul.bf16.gmra.mxu0 %v1663
        %v8820 = vpop.f32.mrf.mxu0
        %v8821 = vadd.f32 %v8808, %v8820
        %v8822 = vpop.f32.mrf.mxu0
        %8823 = vdwg.mxu0
        %8824 = vmatpush.bf16.msra.mxu0 %v6444
        %8825 = vmatpush.bf16.msra.mxu0 %v6404
        %8826 = vmatpush.bf16.msra.mxu0 %v6364
        %8827 = vmatpush.bf16.msra.mxu0 %v6324
        %8828 = vmatpush.bf16.msra.mxu0 %v6284
        %8829 = vmatpush.bf16.msra.mxu0 %v6244
        %8830 = vmatpush.bf16.msra.mxu0 %v6204
        %8831 = vmatpush.bf16.msra.mxu0 %v6164
        %8832 = vmatmul.bf16.gmra.mxu0 %v1664
        %v8833 = vpop.f32.mrf.mxu0
        %v8834 = vadd.f32 %v8821, %v8833
        %v8835 = vpop.f32.mrf.mxu0
        %8836 = vdwg.mxu0
        %8837 = vmatpush.bf16.msra.mxu0 %v6764
        %8838 = vmatpush.bf16.msra.mxu0 %v6724
        %8839 = vmatpush.bf16.msra.mxu0 %v6684
        %8840 = vmatpush.bf16.msra.mxu0 %v6644
        %8841 = vmatpush.bf16.msra.mxu0 %v6604
        %8842 = vmatpush.bf16.msra.mxu0 %v6564
        %8843 = vmatpush.bf16.msra.mxu0 %v6524
        %8844 = vmatpush.bf16.msra.mxu0 %v6484
        %8845 = vmatmul.bf16.gmra.mxu0 %v1665
        %v8846 = vpop.f32.mrf.mxu0
        %v8847 = vadd.f32 %v8834, %v8846
        %v8848 = vpop.f32.mrf.mxu0
        %8849 = vdwg.mxu0
        %8850 = vmatpush.bf16.msra.mxu0 %v5805
        %8851 = vmatpush.bf16.msra.mxu0 %v5765
        %8852 = vmatpush.bf16.msra.mxu0 %v5725
        %8853 = vmatpush.bf16.msra.mxu0 %v5685
        %8854 = vmatpush.bf16.msra.mxu0 %v5645
        %8855 = vmatpush.bf16.msra.mxu0 %v5605
        %8856 = vmatpush.bf16.msra.mxu0 %v5565
        %8857 = vmatpush.bf16.msra.mxu0 %v5525
        %8858 = vmatmul.bf16.gmra.mxu0 %v1662
        %v8859 = vpop.f32.mrf.mxu0
        %v8860 = vadd.f32 %v1595, %v8859
        %v8861 = vpop.f32.mrf.mxu0
        %8862 = vdwg.mxu0
        %8863 = vmatpush.bf16.msra.mxu0 %v6125
        %8864 = vmatpush.bf16.msra.mxu0 %v6085
        %8865 = vmatpush.bf16.msra.mxu0 %v6045
        %8866 = vmatpush.bf16.msra.mxu0 %v6005
        %8867 = vmatpush.bf16.msra.mxu0 %v5965
        %8868 = vmatpush.bf16.msra.mxu0 %v5925
        %8869 = vmatpush.bf16.msra.mxu0 %v5885
        %8870 = vmatpush.bf16.msra.mxu0 %v5845
        %8871 = vmatmul.bf16.gmra.mxu0 %v1663
        %v8872 = vpop.f32.mrf.mxu0
        %v8873 = vadd.f32 %v8860, %v8872
        %v8874 = vpop.f32.mrf.mxu0
        %8875 = vdwg.mxu0
        %8876 = vmatpush.bf16.msra.mxu0 %v6445
        %8877 = vmatpush.bf16.msra.mxu0 %v6405
        %8878 = vmatpush.bf16.msra.mxu0 %v6365
        %8879 = vmatpush.bf16.msra.mxu0 %v6325
        %8880 = vmatpush.bf16.msra.mxu0 %v6285
        %8881 = vmatpush.bf16.msra.mxu0 %v6245
        %8882 = vmatpush.bf16.msra.mxu0 %v6205
        %8883 = vmatpush.bf16.msra.mxu0 %v6165
        %8884 = vmatmul.bf16.gmra.mxu0 %v1664
        %v8885 = vpop.f32.mrf.mxu0
        %v8886 = vadd.f32 %v8873, %v8885
        %v8887 = vpop.f32.mrf.mxu0
        %8888 = vdwg.mxu0
        %8889 = vmatpush.bf16.msra.mxu0 %v6765
        %8890 = vmatpush.bf16.msra.mxu0 %v6725
        %8891 = vmatpush.bf16.msra.mxu0 %v6685
        %8892 = vmatpush.bf16.msra.mxu0 %v6645
        %8893 = vmatpush.bf16.msra.mxu0 %v6605
        %8894 = vmatpush.bf16.msra.mxu0 %v6565
        %8895 = vmatpush.bf16.msra.mxu0 %v6525
        %8896 = vmatpush.bf16.msra.mxu0 %v6485
        %8897 = vmatmul.bf16.gmra.mxu0 %v1665
        %v8898 = vpop.f32.mrf.mxu0
        %v8899 = vadd.f32 %v8886, %v8898
        %v8900 = vpop.f32.mrf.mxu0
        %8901 = vdwg.mxu0
        %8902 = vmatpush.bf16.msra.mxu0 %v5806
        %8903 = vmatpush.bf16.msra.mxu0 %v5766
        %8904 = vmatpush.bf16.msra.mxu0 %v5726
        %8905 = vmatpush.bf16.msra.mxu0 %v5686
        %8906 = vmatpush.bf16.msra.mxu0 %v5646
        %8907 = vmatpush.bf16.msra.mxu0 %v5606
        %8908 = vmatpush.bf16.msra.mxu0 %v5566
        %8909 = vmatpush.bf16.msra.mxu0 %v5526
        %8910 = vmatmul.bf16.gmra.mxu0 %v1662
        %v8911 = vpop.f32.mrf.mxu0
        %v8912 = vadd.f32 %v1596, %v8911
        %v8913 = vpop.f32.mrf.mxu0
        %8914 = vdwg.mxu0
        %8915 = vmatpush.bf16.msra.mxu0 %v6126
        %8916 = vmatpush.bf16.msra.mxu0 %v6086
        %8917 = vmatpush.bf16.msra.mxu0 %v6046
        %8918 = vmatpush.bf16.msra.mxu0 %v6006
        %8919 = vmatpush.bf16.msra.mxu0 %v5966
        %8920 = vmatpush.bf16.msra.mxu0 %v5926
        %8921 = vmatpush.bf16.msra.mxu0 %v5886
        %8922 = vmatpush.bf16.msra.mxu0 %v5846
        %8923 = vmatmul.bf16.gmra.mxu0 %v1663
        %v8924 = vpop.f32.mrf.mxu0
        %v8925 = vadd.f32 %v8912, %v8924
        %v8926 = vpop.f32.mrf.mxu0
        %8927 = vdwg.mxu0
        %8928 = vmatpush.bf16.msra.mxu0 %v6446
        %8929 = vmatpush.bf16.msra.mxu0 %v6406
        %8930 = vmatpush.bf16.msra.mxu0 %v6366
        %8931 = vmatpush.bf16.msra.mxu0 %v6326
        %8932 = vmatpush.bf16.msra.mxu0 %v6286
        %8933 = vmatpush.bf16.msra.mxu0 %v6246
        %8934 = vmatpush.bf16.msra.mxu0 %v6206
        %8935 = vmatpush.bf16.msra.mxu0 %v6166
        %8936 = vmatmul.bf16.gmra.mxu0 %v1664
        %v8937 = vpop.f32.mrf.mxu0
        %v8938 = vadd.f32 %v8925, %v8937
        %v8939 = vpop.f32.mrf.mxu0
        %8940 = vdwg.mxu0
        %8941 = vmatpush.bf16.msra.mxu0 %v6766
        %8942 = vmatpush.bf16.msra.mxu0 %v6726
        %8943 = vmatpush.bf16.msra.mxu0 %v6686
        %8944 = vmatpush.bf16.msra.mxu0 %v6646
        %8945 = vmatpush.bf16.msra.mxu0 %v6606
        %8946 = vmatpush.bf16.msra.mxu0 %v6566
        %8947 = vmatpush.bf16.msra.mxu0 %v6526
        %8948 = vmatpush.bf16.msra.mxu0 %v6486
        %8949 = vmatmul.bf16.gmra.mxu0 %v1665
        %v8950 = vpop.f32.mrf.mxu0
        %v8951 = vadd.f32 %v8938, %v8950
        %v8952 = vpop.f32.mrf.mxu0
        %8953 = vdwg.mxu0
        %8954 = vmatpush.bf16.msra.mxu0 %v5807
        %8955 = vmatpush.bf16.msra.mxu0 %v5767
        %8956 = vmatpush.bf16.msra.mxu0 %v5727
        %8957 = vmatpush.bf16.msra.mxu0 %v5687
        %8958 = vmatpush.bf16.msra.mxu0 %v5647
        %8959 = vmatpush.bf16.msra.mxu0 %v5607
        %8960 = vmatpush.bf16.msra.mxu0 %v5567
        %8961 = vmatpush.bf16.msra.mxu0 %v5527
        %8962 = vmatmul.bf16.gmra.mxu0 %v1662
        %v8963 = vpop.f32.mrf.mxu0
        %v8964 = vadd.f32 %v1597, %v8963
        %v8965 = vpop.f32.mrf.mxu0
        %8966 = vdwg.mxu0
        %8967 = vmatpush.bf16.msra.mxu0 %v6127
        %8968 = vmatpush.bf16.msra.mxu0 %v6087
        %8969 = vmatpush.bf16.msra.mxu0 %v6047
        %8970 = vmatpush.bf16.msra.mxu0 %v6007
        %8971 = vmatpush.bf16.msra.mxu0 %v5967
        %8972 = vmatpush.bf16.msra.mxu0 %v5927
        %8973 = vmatpush.bf16.msra.mxu0 %v5887
        %8974 = vmatpush.bf16.msra.mxu0 %v5847
        %8975 = vmatmul.bf16.gmra.mxu0 %v1663
        %v8976 = vpop.f32.mrf.mxu0
        %v8977 = vadd.f32 %v8964, %v8976
        %v8978 = vpop.f32.mrf.mxu0
        %8979 = vdwg.mxu0
        %8980 = vmatpush.bf16.msra.mxu0 %v6447
        %8981 = vmatpush.bf16.msra.mxu0 %v6407
        %8982 = vmatpush.bf16.msra.mxu0 %v6367
        %8983 = vmatpush.bf16.msra.mxu0 %v6327
        %8984 = vmatpush.bf16.msra.mxu0 %v6287
        %8985 = vmatpush.bf16.msra.mxu0 %v6247
        %8986 = vmatpush.bf16.msra.mxu0 %v6207
        %8987 = vmatpush.bf16.msra.mxu0 %v6167
        %8988 = vmatmul.bf16.gmra.mxu0 %v1664
        %v8989 = vpop.f32.mrf.mxu0
        %v8990 = vadd.f32 %v8977, %v8989
        %v8991 = vpop.f32.mrf.mxu0
        %8992 = vdwg.mxu0
        %8993 = vmatpush.bf16.msra.mxu0 %v6767
        %8994 = vmatpush.bf16.msra.mxu0 %v6727
        %8995 = vmatpush.bf16.msra.mxu0 %v6687
        %8996 = vmatpush.bf16.msra.mxu0 %v6647
        %8997 = vmatpush.bf16.msra.mxu0 %v6607
        %8998 = vmatpush.bf16.msra.mxu0 %v6567
        %8999 = vmatpush.bf16.msra.mxu0 %v6527
        %9000 = vmatpush.bf16.msra.mxu0 %v6487
        %9001 = vmatmul.bf16.gmra.mxu0 %v1665
        %v9002 = vpop.f32.mrf.mxu0
        %v9003 = vadd.f32 %v8990, %v9002
        %v9004 = vpop.f32.mrf.mxu0
        %9005 = vdwg.mxu0
        %9006 = vmatpush.bf16.msra.mxu0 %v5808
        %9007 = vmatpush.bf16.msra.mxu0 %v5768
        %9008 = vmatpush.bf16.msra.mxu0 %v5728
        %9009 = vmatpush.bf16.msra.mxu0 %v5688
        %9010 = vmatpush.bf16.msra.mxu0 %v5648
        %9011 = vmatpush.bf16.msra.mxu0 %v5608
        %9012 = vmatpush.bf16.msra.mxu0 %v5568
        %9013 = vmatpush.bf16.msra.mxu0 %v5528
        %9014 = vmatmul.bf16.gmra.mxu0 %v1662
        %v9015 = vpop.f32.mrf.mxu0
        %v9016 = vadd.f32 %v1598, %v9015
        %v9017 = vpop.f32.mrf.mxu0
        %9018 = vdwg.mxu0
        %9019 = vmatpush.bf16.msra.mxu0 %v6128
        %9020 = vmatpush.bf16.msra.mxu0 %v6088
        %9021 = vmatpush.bf16.msra.mxu0 %v6048
        %9022 = vmatpush.bf16.msra.mxu0 %v6008
        %9023 = vmatpush.bf16.msra.mxu0 %v5968
        %9024 = vmatpush.bf16.msra.mxu0 %v5928
        %9025 = vmatpush.bf16.msra.mxu0 %v5888
        %9026 = vmatpush.bf16.msra.mxu0 %v5848
        %9027 = vmatmul.bf16.gmra.mxu0 %v1663
        %v9028 = vpop.f32.mrf.mxu0
        %v9029 = vadd.f32 %v9016, %v9028
        %v9030 = vpop.f32.mrf.mxu0
        %9031 = vdwg.mxu0
        %9032 = vmatpush.bf16.msra.mxu0 %v6448
        %9033 = vmatpush.bf16.msra.mxu0 %v6408
        %9034 = vmatpush.bf16.msra.mxu0 %v6368
        %9035 = vmatpush.bf16.msra.mxu0 %v6328
        %9036 = vmatpush.bf16.msra.mxu0 %v6288
        %9037 = vmatpush.bf16.msra.mxu0 %v6248
        %9038 = vmatpush.bf16.msra.mxu0 %v6208
        %9039 = vmatpush.bf16.msra.mxu0 %v6168
        %9040 = vmatmul.bf16.gmra.mxu0 %v1664
        %v9041 = vpop.f32.mrf.mxu0
        %v9042 = vadd.f32 %v9029, %v9041
        %v9043 = vpop.f32.mrf.mxu0
        %9044 = vdwg.mxu0
        %9045 = vmatpush.bf16.msra.mxu0 %v6768
        %9046 = vmatpush.bf16.msra.mxu0 %v6728
        %9047 = vmatpush.bf16.msra.mxu0 %v6688
        %9048 = vmatpush.bf16.msra.mxu0 %v6648
        %9049 = vmatpush.bf16.msra.mxu0 %v6608
        %9050 = vmatpush.bf16.msra.mxu0 %v6568
        %9051 = vmatpush.bf16.msra.mxu0 %v6528
        %9052 = vmatpush.bf16.msra.mxu0 %v6488
        %9053 = vmatmul.bf16.gmra.mxu0 %v1665
        %v9054 = vpop.f32.mrf.mxu0
        %v9055 = vadd.f32 %v9042, %v9054
        %v9056 = vpop.f32.mrf.mxu0
        %9057 = vdwg.mxu0
        %9058 = vmatpush.bf16.msra.mxu0 %v5809
        %9059 = vmatpush.bf16.msra.mxu0 %v5769
        %9060 = vmatpush.bf16.msra.mxu0 %v5729
        %9061 = vmatpush.bf16.msra.mxu0 %v5689
        %9062 = vmatpush.bf16.msra.mxu0 %v5649
        %9063 = vmatpush.bf16.msra.mxu0 %v5609
        %9064 = vmatpush.bf16.msra.mxu0 %v5569
        %9065 = vmatpush.bf16.msra.mxu0 %v5529
        %9066 = vmatmul.bf16.gmra.mxu0 %v1662
        %v9067 = vpop.f32.mrf.mxu0
        %v9068 = vadd.f32 %v1599, %v9067
        %v9069 = vpop.f32.mrf.mxu0
        %9070 = vdwg.mxu0
        %9071 = vmatpush.bf16.msra.mxu0 %v6129
        %9072 = vmatpush.bf16.msra.mxu0 %v6089
        %9073 = vmatpush.bf16.msra.mxu0 %v6049
        %9074 = vmatpush.bf16.msra.mxu0 %v6009
        %9075 = vmatpush.bf16.msra.mxu0 %v5969
        %9076 = vmatpush.bf16.msra.mxu0 %v5929
        %9077 = vmatpush.bf16.msra.mxu0 %v5889
        %9078 = vmatpush.bf16.msra.mxu0 %v5849
        %9079 = vmatmul.bf16.gmra.mxu0 %v1663
        %v9080 = vpop.f32.mrf.mxu0
        %v9081 = vadd.f32 %v9068, %v9080
        %v9082 = vpop.f32.mrf.mxu0
        %9083 = vdwg.mxu0
        %9084 = vmatpush.bf16.msra.mxu0 %v6449
        %9085 = vmatpush.bf16.msra.mxu0 %v6409
        %9086 = vmatpush.bf16.msra.mxu0 %v6369
        %9087 = vmatpush.bf16.msra.mxu0 %v6329
        %9088 = vmatpush.bf16.msra.mxu0 %v6289
        %9089 = vmatpush.bf16.msra.mxu0 %v6249
        %9090 = vmatpush.bf16.msra.mxu0 %v6209
        %9091 = vmatpush.bf16.msra.mxu0 %v6169
        %9092 = vmatmul.bf16.gmra.mxu0 %v1664
        %v9093 = vpop.f32.mrf.mxu0
        %v9094 = vadd.f32 %v9081, %v9093
        %v9095 = vpop.f32.mrf.mxu0
        %9096 = vdwg.mxu0
        %9097 = vmatpush.bf16.msra.mxu0 %v6769
        %9098 = vmatpush.bf16.msra.mxu0 %v6729
        %9099 = vmatpush.bf16.msra.mxu0 %v6689
        %9100 = vmatpush.bf16.msra.mxu0 %v6649
        %9101 = vmatpush.bf16.msra.mxu0 %v6609
        %9102 = vmatpush.bf16.msra.mxu0 %v6569
        %9103 = vmatpush.bf16.msra.mxu0 %v6529
        %9104 = vmatpush.bf16.msra.mxu0 %v6489
        %9105 = vmatmul.bf16.gmra.mxu0 %v1665
        %v9106 = vpop.f32.mrf.mxu0
        %v9107 = vadd.f32 %v9094, %v9106
        %v9108 = vpop.f32.mrf.mxu0
        %9109 = vdwg.mxu0
        %9110 = vmatpush.bf16.msra.mxu0 %v5810
        %9111 = vmatpush.bf16.msra.mxu0 %v5770
        %9112 = vmatpush.bf16.msra.mxu0 %v5730
        %9113 = vmatpush.bf16.msra.mxu0 %v5690
        %9114 = vmatpush.bf16.msra.mxu0 %v5650
        %9115 = vmatpush.bf16.msra.mxu0 %v5610
        %9116 = vmatpush.bf16.msra.mxu0 %v5570
        %9117 = vmatpush.bf16.msra.mxu0 %v5530
        %9118 = vmatmul.bf16.gmra.mxu0 %v1662
        %v9119 = vpop.f32.mrf.mxu0
        %v9120 = vadd.f32 %v1600, %v9119
        %v9121 = vpop.f32.mrf.mxu0
        %9122 = vdwg.mxu0
        %9123 = vmatpush.bf16.msra.mxu0 %v6130
        %9124 = vmatpush.bf16.msra.mxu0 %v6090
        %9125 = vmatpush.bf16.msra.mxu0 %v6050
        %9126 = vmatpush.bf16.msra.mxu0 %v6010
        %9127 = vmatpush.bf16.msra.mxu0 %v5970
        %9128 = vmatpush.bf16.msra.mxu0 %v5930
        %9129 = vmatpush.bf16.msra.mxu0 %v5890
        %9130 = vmatpush.bf16.msra.mxu0 %v5850
        %9131 = vmatmul.bf16.gmra.mxu0 %v1663
        %v9132 = vpop.f32.mrf.mxu0
        %v9133 = vadd.f32 %v9120, %v9132
        %v9134 = vpop.f32.mrf.mxu0
        %9135 = vdwg.mxu0
        %9136 = vmatpush.bf16.msra.mxu0 %v6450
        %9137 = vmatpush.bf16.msra.mxu0 %v6410
        %9138 = vmatpush.bf16.msra.mxu0 %v6370
        %9139 = vmatpush.bf16.msra.mxu0 %v6330
        %9140 = vmatpush.bf16.msra.mxu0 %v6290
        %9141 = vmatpush.bf16.msra.mxu0 %v6250
        %9142 = vmatpush.bf16.msra.mxu0 %v6210
        %9143 = vmatpush.bf16.msra.mxu0 %v6170
        %9144 = vmatmul.bf16.gmra.mxu0 %v1664
        %v9145 = vpop.f32.mrf.mxu0
        %v9146 = vadd.f32 %v9133, %v9145
        %v9147 = vpop.f32.mrf.mxu0
        %9148 = vdwg.mxu0
        %9149 = vmatpush.bf16.msra.mxu0 %v6770
        %9150 = vmatpush.bf16.msra.mxu0 %v6730
        %9151 = vmatpush.bf16.msra.mxu0 %v6690
        %9152 = vmatpush.bf16.msra.mxu0 %v6650
        %9153 = vmatpush.bf16.msra.mxu0 %v6610
        %9154 = vmatpush.bf16.msra.mxu0 %v6570
        %9155 = vmatpush.bf16.msra.mxu0 %v6530
        %9156 = vmatpush.bf16.msra.mxu0 %v6490
        %9157 = vmatmul.bf16.gmra.mxu0 %v1665
        %v9158 = vpop.f32.mrf.mxu0
        %v9159 = vadd.f32 %v9146, %v9158
        %v9160 = vpop.f32.mrf.mxu0
        %9161 = vdwg.mxu0
        %9162 = vmatpush.bf16.msra.mxu0 %v5811
        %9163 = vmatpush.bf16.msra.mxu0 %v5771
        %9164 = vmatpush.bf16.msra.mxu0 %v5731
        %9165 = vmatpush.bf16.msra.mxu0 %v5691
        %9166 = vmatpush.bf16.msra.mxu0 %v5651
        %9167 = vmatpush.bf16.msra.mxu0 %v5611
        %9168 = vmatpush.bf16.msra.mxu0 %v5571
        %9169 = vmatpush.bf16.msra.mxu0 %v5531
        %9170 = vmatmul.bf16.gmra.mxu0 %v1662
        %v9171 = vpop.f32.mrf.mxu0
        %v9172 = vadd.f32 %v1601, %v9171
        %v9173 = vpop.f32.mrf.mxu0
        %9174 = vdwg.mxu0
        %9175 = vmatpush.bf16.msra.mxu0 %v6131
        %9176 = vmatpush.bf16.msra.mxu0 %v6091
        %9177 = vmatpush.bf16.msra.mxu0 %v6051
        %9178 = vmatpush.bf16.msra.mxu0 %v6011
        %9179 = vmatpush.bf16.msra.mxu0 %v5971
        %9180 = vmatpush.bf16.msra.mxu0 %v5931
        %9181 = vmatpush.bf16.msra.mxu0 %v5891
        %9182 = vmatpush.bf16.msra.mxu0 %v5851
        %9183 = vmatmul.bf16.gmra.mxu0 %v1663
        %v9184 = vpop.f32.mrf.mxu0
        %v9185 = vadd.f32 %v9172, %v9184
        %v9186 = vpop.f32.mrf.mxu0
        %9187 = vdwg.mxu0
        %9188 = vmatpush.bf16.msra.mxu0 %v6451
        %9189 = vmatpush.bf16.msra.mxu0 %v6411
        %9190 = vmatpush.bf16.msra.mxu0 %v6371
        %9191 = vmatpush.bf16.msra.mxu0 %v6331
        %9192 = vmatpush.bf16.msra.mxu0 %v6291
        %9193 = vmatpush.bf16.msra.mxu0 %v6251
        %9194 = vmatpush.bf16.msra.mxu0 %v6211
        %9195 = vmatpush.bf16.msra.mxu0 %v6171
        %9196 = vmatmul.bf16.gmra.mxu0 %v1664
        %v9197 = vpop.f32.mrf.mxu0
        %v9198 = vadd.f32 %v9185, %v9197
        %v9199 = vpop.f32.mrf.mxu0
        %9200 = vdwg.mxu0
        %9201 = vmatpush.bf16.msra.mxu0 %v6771
        %9202 = vmatpush.bf16.msra.mxu0 %v6731
        %9203 = vmatpush.bf16.msra.mxu0 %v6691
        %9204 = vmatpush.bf16.msra.mxu0 %v6651
        %9205 = vmatpush.bf16.msra.mxu0 %v6611
        %9206 = vmatpush.bf16.msra.mxu0 %v6571
        %9207 = vmatpush.bf16.msra.mxu0 %v6531
        %9208 = vmatpush.bf16.msra.mxu0 %v6491
        %9209 = vmatmul.bf16.gmra.mxu0 %v1665
        %v9210 = vpop.f32.mrf.mxu0
        %v9211 = vadd.f32 %v9198, %v9210
        %v9212 = vpop.f32.mrf.mxu0
        %9213 = vdwg.mxu0
        %9214 = vmatpush.bf16.msra.mxu0 %v5812
        %9215 = vmatpush.bf16.msra.mxu0 %v5772
        %9216 = vmatpush.bf16.msra.mxu0 %v5732
        %9217 = vmatpush.bf16.msra.mxu0 %v5692
        %9218 = vmatpush.bf16.msra.mxu0 %v5652
        %9219 = vmatpush.bf16.msra.mxu0 %v5612
        %9220 = vmatpush.bf16.msra.mxu0 %v5572
        %9221 = vmatpush.bf16.msra.mxu0 %v5532
        %9222 = vmatmul.bf16.gmra.mxu0 %v1662
        %v9223 = vpop.f32.mrf.mxu0
        %v9224 = vadd.f32 %v1602, %v9223
        %v9225 = vpop.f32.mrf.mxu0
        %9226 = vdwg.mxu0
        %9227 = vmatpush.bf16.msra.mxu0 %v6132
        %9228 = vmatpush.bf16.msra.mxu0 %v6092
        %9229 = vmatpush.bf16.msra.mxu0 %v6052
        %9230 = vmatpush.bf16.msra.mxu0 %v6012
        %9231 = vmatpush.bf16.msra.mxu0 %v5972
        %9232 = vmatpush.bf16.msra.mxu0 %v5932
        %9233 = vmatpush.bf16.msra.mxu0 %v5892
        %9234 = vmatpush.bf16.msra.mxu0 %v5852
        %9235 = vmatmul.bf16.gmra.mxu0 %v1663
        %v9236 = vpop.f32.mrf.mxu0
        %v9237 = vadd.f32 %v9224, %v9236
        %v9238 = vpop.f32.mrf.mxu0
        %9239 = vdwg.mxu0
        %9240 = vmatpush.bf16.msra.mxu0 %v6452
        %9241 = vmatpush.bf16.msra.mxu0 %v6412
        %9242 = vmatpush.bf16.msra.mxu0 %v6372
        %9243 = vmatpush.bf16.msra.mxu0 %v6332
        %9244 = vmatpush.bf16.msra.mxu0 %v6292
        %9245 = vmatpush.bf16.msra.mxu0 %v6252
        %9246 = vmatpush.bf16.msra.mxu0 %v6212
        %9247 = vmatpush.bf16.msra.mxu0 %v6172
        %9248 = vmatmul.bf16.gmra.mxu0 %v1664
        %v9249 = vpop.f32.mrf.mxu0
        %v9250 = vadd.f32 %v9237, %v9249
        %v9251 = vpop.f32.mrf.mxu0
        %9252 = vdwg.mxu0
        %9253 = vmatpush.bf16.msra.mxu0 %v6772
        %9254 = vmatpush.bf16.msra.mxu0 %v6732
        %9255 = vmatpush.bf16.msra.mxu0 %v6692
        %9256 = vmatpush.bf16.msra.mxu0 %v6652
        %9257 = vmatpush.bf16.msra.mxu0 %v6612
        %9258 = vmatpush.bf16.msra.mxu0 %v6572
        %9259 = vmatpush.bf16.msra.mxu0 %v6532
        %9260 = vmatpush.bf16.msra.mxu0 %v6492
        %9261 = vmatmul.bf16.gmra.mxu0 %v1665
        %v9262 = vpop.f32.mrf.mxu0
        %v9263 = vadd.f32 %v9250, %v9262
        %v9264 = vpop.f32.mrf.mxu0
        %9265 = vdwg.mxu0
        %9266 = vmatpush.bf16.msra.mxu0 %v5813
        %9267 = vmatpush.bf16.msra.mxu0 %v5773
        %9268 = vmatpush.bf16.msra.mxu0 %v5733
        %9269 = vmatpush.bf16.msra.mxu0 %v5693
        %9270 = vmatpush.bf16.msra.mxu0 %v5653
        %9271 = vmatpush.bf16.msra.mxu0 %v5613
        %9272 = vmatpush.bf16.msra.mxu0 %v5573
        %9273 = vmatpush.bf16.msra.mxu0 %v5533
        %9274 = vmatmul.bf16.gmra.mxu0 %v1662
        %v9275 = vpop.f32.mrf.mxu0
        %v9276 = vadd.f32 %v1603, %v9275
        %v9277 = vpop.f32.mrf.mxu0
        %9278 = vdwg.mxu0
        %9279 = vmatpush.bf16.msra.mxu0 %v6133
        %9280 = vmatpush.bf16.msra.mxu0 %v6093
        %9281 = vmatpush.bf16.msra.mxu0 %v6053
        %9282 = vmatpush.bf16.msra.mxu0 %v6013
        %9283 = vmatpush.bf16.msra.mxu0 %v5973
        %9284 = vmatpush.bf16.msra.mxu0 %v5933
        %9285 = vmatpush.bf16.msra.mxu0 %v5893
        %9286 = vmatpush.bf16.msra.mxu0 %v5853
        %9287 = vmatmul.bf16.gmra.mxu0 %v1663
        %v9288 = vpop.f32.mrf.mxu0
        %v9289 = vadd.f32 %v9276, %v9288
        %v9290 = vpop.f32.mrf.mxu0
        %9291 = vdwg.mxu0
        %9292 = vmatpush.bf16.msra.mxu0 %v6453
        %9293 = vmatpush.bf16.msra.mxu0 %v6413
        %9294 = vmatpush.bf16.msra.mxu0 %v6373
        %9295 = vmatpush.bf16.msra.mxu0 %v6333
        %9296 = vmatpush.bf16.msra.mxu0 %v6293
        %9297 = vmatpush.bf16.msra.mxu0 %v6253
        %9298 = vmatpush.bf16.msra.mxu0 %v6213
        %9299 = vmatpush.bf16.msra.mxu0 %v6173
        %9300 = vmatmul.bf16.gmra.mxu0 %v1664
        %v9301 = vpop.f32.mrf.mxu0
        %v9302 = vadd.f32 %v9289, %v9301
        %v9303 = vpop.f32.mrf.mxu0
        %9304 = vdwg.mxu0
        %9305 = vmatpush.bf16.msra.mxu0 %v6773
        %9306 = vmatpush.bf16.msra.mxu0 %v6733
        %9307 = vmatpush.bf16.msra.mxu0 %v6693
        %9308 = vmatpush.bf16.msra.mxu0 %v6653
        %9309 = vmatpush.bf16.msra.mxu0 %v6613
        %9310 = vmatpush.bf16.msra.mxu0 %v6573
        %9311 = vmatpush.bf16.msra.mxu0 %v6533
        %9312 = vmatpush.bf16.msra.mxu0 %v6493
        %9313 = vmatmul.bf16.gmra.mxu0 %v1665
        %v9314 = vpop.f32.mrf.mxu0
        %v9315 = vadd.f32 %v9302, %v9314
        %v9316 = vpop.f32.mrf.mxu0
        %9317 = vdwg.mxu0
        %9318 = vmatpush.bf16.msra.mxu0 %v5814
        %9319 = vmatpush.bf16.msra.mxu0 %v5774
        %9320 = vmatpush.bf16.msra.mxu0 %v5734
        %9321 = vmatpush.bf16.msra.mxu0 %v5694
        %9322 = vmatpush.bf16.msra.mxu0 %v5654
        %9323 = vmatpush.bf16.msra.mxu0 %v5614
        %9324 = vmatpush.bf16.msra.mxu0 %v5574
        %9325 = vmatpush.bf16.msra.mxu0 %v5534
        %9326 = vmatmul.bf16.gmra.mxu0 %v1662
        %v9327 = vpop.f32.mrf.mxu0
        %v9328 = vadd.f32 %v1604, %v9327
        %v9329 = vpop.f32.mrf.mxu0
        %9330 = vdwg.mxu0
        %9331 = vmatpush.bf16.msra.mxu0 %v6134
        %9332 = vmatpush.bf16.msra.mxu0 %v6094
        %9333 = vmatpush.bf16.msra.mxu0 %v6054
        %9334 = vmatpush.bf16.msra.mxu0 %v6014
        %9335 = vmatpush.bf16.msra.mxu0 %v5974
        %9336 = vmatpush.bf16.msra.mxu0 %v5934
        %9337 = vmatpush.bf16.msra.mxu0 %v5894
        %9338 = vmatpush.bf16.msra.mxu0 %v5854
        %9339 = vmatmul.bf16.gmra.mxu0 %v1663
        %v9340 = vpop.f32.mrf.mxu0
        %v9341 = vadd.f32 %v9328, %v9340
        %v9342 = vpop.f32.mrf.mxu0
        %9343 = vdwg.mxu0
        %9344 = vmatpush.bf16.msra.mxu0 %v6454
        %9345 = vmatpush.bf16.msra.mxu0 %v6414
        %9346 = vmatpush.bf16.msra.mxu0 %v6374
        %9347 = vmatpush.bf16.msra.mxu0 %v6334
        %9348 = vmatpush.bf16.msra.mxu0 %v6294
        %9349 = vmatpush.bf16.msra.mxu0 %v6254
        %9350 = vmatpush.bf16.msra.mxu0 %v6214
        %9351 = vmatpush.bf16.msra.mxu0 %v6174
        %9352 = vmatmul.bf16.gmra.mxu0 %v1664
        %v9353 = vpop.f32.mrf.mxu0
        %v9354 = vadd.f32 %v9341, %v9353
        %v9355 = vpop.f32.mrf.mxu0
        %9356 = vdwg.mxu0
        %9357 = vmatpush.bf16.msra.mxu0 %v6774
        %9358 = vmatpush.bf16.msra.mxu0 %v6734
        %9359 = vmatpush.bf16.msra.mxu0 %v6694
        %9360 = vmatpush.bf16.msra.mxu0 %v6654
        %9361 = vmatpush.bf16.msra.mxu0 %v6614
        %9362 = vmatpush.bf16.msra.mxu0 %v6574
        %9363 = vmatpush.bf16.msra.mxu0 %v6534
        %9364 = vmatpush.bf16.msra.mxu0 %v6494
        %9365 = vmatmul.bf16.gmra.mxu0 %v1665
        %v9366 = vpop.f32.mrf.mxu0
        %v9367 = vadd.f32 %v9354, %v9366
        %v9368 = vpop.f32.mrf.mxu0
        %9369 = vdwg.mxu0
        %9370 = vmatpush.bf16.msra.mxu0 %v5815
        %9371 = vmatpush.bf16.msra.mxu0 %v5775
        %9372 = vmatpush.bf16.msra.mxu0 %v5735
        %9373 = vmatpush.bf16.msra.mxu0 %v5695
        %9374 = vmatpush.bf16.msra.mxu0 %v5655
        %9375 = vmatpush.bf16.msra.mxu0 %v5615
        %9376 = vmatpush.bf16.msra.mxu0 %v5575
        %9377 = vmatpush.bf16.msra.mxu0 %v5535
        %9378 = vmatmul.bf16.gmra.mxu0 %v1662
        %v9379 = vpop.f32.mrf.mxu0
        %v9380 = vadd.f32 %v1605, %v9379
        %v9381 = vpop.f32.mrf.mxu0
        %9382 = vdwg.mxu0
        %9383 = vmatpush.bf16.msra.mxu0 %v6135
        %9384 = vmatpush.bf16.msra.mxu0 %v6095
        %9385 = vmatpush.bf16.msra.mxu0 %v6055
        %9386 = vmatpush.bf16.msra.mxu0 %v6015
        %9387 = vmatpush.bf16.msra.mxu0 %v5975
        %9388 = vmatpush.bf16.msra.mxu0 %v5935
        %9389 = vmatpush.bf16.msra.mxu0 %v5895
        %9390 = vmatpush.bf16.msra.mxu0 %v5855
        %9391 = vmatmul.bf16.gmra.mxu0 %v1663
        %v9392 = vpop.f32.mrf.mxu0
        %v9393 = vadd.f32 %v9380, %v9392
        %v9394 = vpop.f32.mrf.mxu0
        %9395 = vdwg.mxu0
        %9396 = vmatpush.bf16.msra.mxu0 %v6455
        %9397 = vmatpush.bf16.msra.mxu0 %v6415
        %9398 = vmatpush.bf16.msra.mxu0 %v6375
        %9399 = vmatpush.bf16.msra.mxu0 %v6335
        %9400 = vmatpush.bf16.msra.mxu0 %v6295
        %9401 = vmatpush.bf16.msra.mxu0 %v6255
        %9402 = vmatpush.bf16.msra.mxu0 %v6215
        %9403 = vmatpush.bf16.msra.mxu0 %v6175
        %9404 = vmatmul.bf16.gmra.mxu0 %v1664
        %v9405 = vpop.f32.mrf.mxu0
        %v9406 = vadd.f32 %v9393, %v9405
        %v9407 = vpop.f32.mrf.mxu0
        %9408 = vdwg.mxu0
        %9409 = vmatpush.bf16.msra.mxu0 %v6775
        %9410 = vmatpush.bf16.msra.mxu0 %v6735
        %9411 = vmatpush.bf16.msra.mxu0 %v6695
        %9412 = vmatpush.bf16.msra.mxu0 %v6655
        %9413 = vmatpush.bf16.msra.mxu0 %v6615
        %9414 = vmatpush.bf16.msra.mxu0 %v6575
        %9415 = vmatpush.bf16.msra.mxu0 %v6535
        %9416 = vmatpush.bf16.msra.mxu0 %v6495
        %9417 = vmatmul.bf16.gmra.mxu0 %v1665
        %v9418 = vpop.f32.mrf.mxu0
        %v9419 = vadd.f32 %v9406, %v9418
        %v9420 = vpop.f32.mrf.mxu0
        %9421 = vdwg.mxu0
        %9422 = vmatpush.bf16.msra.mxu0 %v5816
        %9423 = vmatpush.bf16.msra.mxu0 %v5776
        %9424 = vmatpush.bf16.msra.mxu0 %v5736
        %9425 = vmatpush.bf16.msra.mxu0 %v5696
        %9426 = vmatpush.bf16.msra.mxu0 %v5656
        %9427 = vmatpush.bf16.msra.mxu0 %v5616
        %9428 = vmatpush.bf16.msra.mxu0 %v5576
        %9429 = vmatpush.bf16.msra.mxu0 %v5536
        %9430 = vmatmul.bf16.gmra.mxu0 %v1662
        %v9431 = vpop.f32.mrf.mxu0
        %v9432 = vadd.f32 %v1606, %v9431
        %v9433 = vpop.f32.mrf.mxu0
        %9434 = vdwg.mxu0
        %9435 = vmatpush.bf16.msra.mxu0 %v6136
        %9436 = vmatpush.bf16.msra.mxu0 %v6096
        %9437 = vmatpush.bf16.msra.mxu0 %v6056
        %9438 = vmatpush.bf16.msra.mxu0 %v6016
        %9439 = vmatpush.bf16.msra.mxu0 %v5976
        %9440 = vmatpush.bf16.msra.mxu0 %v5936
        %9441 = vmatpush.bf16.msra.mxu0 %v5896
        %9442 = vmatpush.bf16.msra.mxu0 %v5856
        %9443 = vmatmul.bf16.gmra.mxu0 %v1663
        %v9444 = vpop.f32.mrf.mxu0
        %v9445 = vadd.f32 %v9432, %v9444
        %v9446 = vpop.f32.mrf.mxu0
        %9447 = vdwg.mxu0
        %9448 = vmatpush.bf16.msra.mxu0 %v6456
        %9449 = vmatpush.bf16.msra.mxu0 %v6416
        %9450 = vmatpush.bf16.msra.mxu0 %v6376
        %9451 = vmatpush.bf16.msra.mxu0 %v6336
        %9452 = vmatpush.bf16.msra.mxu0 %v6296
        %9453 = vmatpush.bf16.msra.mxu0 %v6256
        %9454 = vmatpush.bf16.msra.mxu0 %v6216
        %9455 = vmatpush.bf16.msra.mxu0 %v6176
        %9456 = vmatmul.bf16.gmra.mxu0 %v1664
        %v9457 = vpop.f32.mrf.mxu0
        %v9458 = vadd.f32 %v9445, %v9457
        %v9459 = vpop.f32.mrf.mxu0
        %9460 = vdwg.mxu0
        %9461 = vmatpush.bf16.msra.mxu0 %v6776
        %9462 = vmatpush.bf16.msra.mxu0 %v6736
        %9463 = vmatpush.bf16.msra.mxu0 %v6696
        %9464 = vmatpush.bf16.msra.mxu0 %v6656
        %9465 = vmatpush.bf16.msra.mxu0 %v6616
        %9466 = vmatpush.bf16.msra.mxu0 %v6576
        %9467 = vmatpush.bf16.msra.mxu0 %v6536
        %9468 = vmatpush.bf16.msra.mxu0 %v6496
        %9469 = vmatmul.bf16.gmra.mxu0 %v1665
        %v9470 = vpop.f32.mrf.mxu0
        %v9471 = vadd.f32 %v9458, %v9470
        %v9472 = vpop.f32.mrf.mxu0
        %9473 = vdwg.mxu0
        %9474 = vmatpush.bf16.msra.mxu0 %v5817
        %9475 = vmatpush.bf16.msra.mxu0 %v5777
        %9476 = vmatpush.bf16.msra.mxu0 %v5737
        %9477 = vmatpush.bf16.msra.mxu0 %v5697
        %9478 = vmatpush.bf16.msra.mxu0 %v5657
        %9479 = vmatpush.bf16.msra.mxu0 %v5617
        %9480 = vmatpush.bf16.msra.mxu0 %v5577
        %9481 = vmatpush.bf16.msra.mxu0 %v5537
        %9482 = vmatmul.bf16.gmra.mxu0 %v1662
        %v9483 = vpop.f32.mrf.mxu0
        %v9484 = vadd.f32 %v1607, %v9483
        %v9485 = vpop.f32.mrf.mxu0
        %9486 = vdwg.mxu0
        %9487 = vmatpush.bf16.msra.mxu0 %v6137
        %9488 = vmatpush.bf16.msra.mxu0 %v6097
        %9489 = vmatpush.bf16.msra.mxu0 %v6057
        %9490 = vmatpush.bf16.msra.mxu0 %v6017
        %9491 = vmatpush.bf16.msra.mxu0 %v5977
        %9492 = vmatpush.bf16.msra.mxu0 %v5937
        %9493 = vmatpush.bf16.msra.mxu0 %v5897
        %9494 = vmatpush.bf16.msra.mxu0 %v5857
        %9495 = vmatmul.bf16.gmra.mxu0 %v1663
        %v9496 = vpop.f32.mrf.mxu0
        %v9497 = vadd.f32 %v9484, %v9496
        %v9498 = vpop.f32.mrf.mxu0
        %9499 = vdwg.mxu0
        %9500 = vmatpush.bf16.msra.mxu0 %v6457
        %9501 = vmatpush.bf16.msra.mxu0 %v6417
        %9502 = vmatpush.bf16.msra.mxu0 %v6377
        %9503 = vmatpush.bf16.msra.mxu0 %v6337
        %9504 = vmatpush.bf16.msra.mxu0 %v6297
        %9505 = vmatpush.bf16.msra.mxu0 %v6257
        %9506 = vmatpush.bf16.msra.mxu0 %v6217
        %9507 = vmatpush.bf16.msra.mxu0 %v6177
        %9508 = vmatmul.bf16.gmra.mxu0 %v1664
        %v9509 = vpop.f32.mrf.mxu0
        %v9510 = vadd.f32 %v9497, %v9509
        %v9511 = vpop.f32.mrf.mxu0
        %9512 = vdwg.mxu0
        %9513 = vmatpush.bf16.msra.mxu0 %v6777
        %9514 = vmatpush.bf16.msra.mxu0 %v6737
        %9515 = vmatpush.bf16.msra.mxu0 %v6697
        %9516 = vmatpush.bf16.msra.mxu0 %v6657
        %9517 = vmatpush.bf16.msra.mxu0 %v6617
        %9518 = vmatpush.bf16.msra.mxu0 %v6577
        %9519 = vmatpush.bf16.msra.mxu0 %v6537
        %9520 = vmatpush.bf16.msra.mxu0 %v6497
        %9521 = vmatmul.bf16.gmra.mxu0 %v1665
        %v9522 = vpop.f32.mrf.mxu0
        %v9523 = vadd.f32 %v9510, %v9522
        %v9524 = vpop.f32.mrf.mxu0
        %9525 = vdwg.mxu0
        %9526 = vmatpush.bf16.msra.mxu0 %v5818
        %9527 = vmatpush.bf16.msra.mxu0 %v5778
        %9528 = vmatpush.bf16.msra.mxu0 %v5738
        %9529 = vmatpush.bf16.msra.mxu0 %v5698
        %9530 = vmatpush.bf16.msra.mxu0 %v5658
        %9531 = vmatpush.bf16.msra.mxu0 %v5618
        %9532 = vmatpush.bf16.msra.mxu0 %v5578
        %9533 = vmatpush.bf16.msra.mxu0 %v5538
        %9534 = vmatmul.bf16.gmra.mxu0 %v1662
        %v9535 = vpop.f32.mrf.mxu0
        %v9536 = vadd.f32 %v1608, %v9535
        %v9537 = vpop.f32.mrf.mxu0
        %9538 = vdwg.mxu0
        %9539 = vmatpush.bf16.msra.mxu0 %v6138
        %9540 = vmatpush.bf16.msra.mxu0 %v6098
        %9541 = vmatpush.bf16.msra.mxu0 %v6058
        %9542 = vmatpush.bf16.msra.mxu0 %v6018
        %9543 = vmatpush.bf16.msra.mxu0 %v5978
        %9544 = vmatpush.bf16.msra.mxu0 %v5938
        %9545 = vmatpush.bf16.msra.mxu0 %v5898
        %9546 = vmatpush.bf16.msra.mxu0 %v5858
        %9547 = vmatmul.bf16.gmra.mxu0 %v1663
        %v9548 = vpop.f32.mrf.mxu0
        %v9549 = vadd.f32 %v9536, %v9548
        %v9550 = vpop.f32.mrf.mxu0
        %9551 = vdwg.mxu0
        %9552 = vmatpush.bf16.msra.mxu0 %v6458
        %9553 = vmatpush.bf16.msra.mxu0 %v6418
        %9554 = vmatpush.bf16.msra.mxu0 %v6378
        %9555 = vmatpush.bf16.msra.mxu0 %v6338
        %9556 = vmatpush.bf16.msra.mxu0 %v6298
        %9557 = vmatpush.bf16.msra.mxu0 %v6258
        %9558 = vmatpush.bf16.msra.mxu0 %v6218
        %9559 = vmatpush.bf16.msra.mxu0 %v6178
        %9560 = vmatmul.bf16.gmra.mxu0 %v1664
        %v9561 = vpop.f32.mrf.mxu0
        %v9562 = vadd.f32 %v9549, %v9561
        %v9563 = vpop.f32.mrf.mxu0
        %9564 = vdwg.mxu0
        %9565 = vmatpush.bf16.msra.mxu0 %v6778
        %9566 = vmatpush.bf16.msra.mxu0 %v6738
        %9567 = vmatpush.bf16.msra.mxu0 %v6698
        %9568 = vmatpush.bf16.msra.mxu0 %v6658
        %9569 = vmatpush.bf16.msra.mxu0 %v6618
        %9570 = vmatpush.bf16.msra.mxu0 %v6578
        %9571 = vmatpush.bf16.msra.mxu0 %v6538
        %9572 = vmatpush.bf16.msra.mxu0 %v6498
        %9573 = vmatmul.bf16.gmra.mxu0 %v1665
        %v9574 = vpop.f32.mrf.mxu0
        %v9575 = vadd.f32 %v9562, %v9574
        %v9576 = vpop.f32.mrf.mxu0
        %9577 = vdwg.mxu0
        %9578 = vmatpush.bf16.msra.mxu0 %v5819
        %9579 = vmatpush.bf16.msra.mxu0 %v5779
        %9580 = vmatpush.bf16.msra.mxu0 %v5739
        %9581 = vmatpush.bf16.msra.mxu0 %v5699
        %9582 = vmatpush.bf16.msra.mxu0 %v5659
        %9583 = vmatpush.bf16.msra.mxu0 %v5619
        %9584 = vmatpush.bf16.msra.mxu0 %v5579
        %9585 = vmatpush.bf16.msra.mxu0 %v5539
        %9586 = vmatmul.bf16.gmra.mxu0 %v1662
        %v9587 = vpop.f32.mrf.mxu0
        %v9588 = vadd.f32 %v1609, %v9587
        %v9589 = vpop.f32.mrf.mxu0
        %9590 = vdwg.mxu0
        %9591 = vmatpush.bf16.msra.mxu0 %v6139
        %9592 = vmatpush.bf16.msra.mxu0 %v6099
        %9593 = vmatpush.bf16.msra.mxu0 %v6059
        %9594 = vmatpush.bf16.msra.mxu0 %v6019
        %9595 = vmatpush.bf16.msra.mxu0 %v5979
        %9596 = vmatpush.bf16.msra.mxu0 %v5939
        %9597 = vmatpush.bf16.msra.mxu0 %v5899
        %9598 = vmatpush.bf16.msra.mxu0 %v5859
        %9599 = vmatmul.bf16.gmra.mxu0 %v1663
        %v9600 = vpop.f32.mrf.mxu0
        %v9601 = vadd.f32 %v9588, %v9600
        %v9602 = vpop.f32.mrf.mxu0
        %9603 = vdwg.mxu0
        %9604 = vmatpush.bf16.msra.mxu0 %v6459
        %9605 = vmatpush.bf16.msra.mxu0 %v6419
        %9606 = vmatpush.bf16.msra.mxu0 %v6379
        %9607 = vmatpush.bf16.msra.mxu0 %v6339
        %9608 = vmatpush.bf16.msra.mxu0 %v6299
        %9609 = vmatpush.bf16.msra.mxu0 %v6259
        %9610 = vmatpush.bf16.msra.mxu0 %v6219
        %9611 = vmatpush.bf16.msra.mxu0 %v6179
        %9612 = vmatmul.bf16.gmra.mxu0 %v1664
        %v9613 = vpop.f32.mrf.mxu0
        %v9614 = vadd.f32 %v9601, %v9613
        %v9615 = vpop.f32.mrf.mxu0
        %9616 = vdwg.mxu0
        %9617 = vmatpush.bf16.msra.mxu0 %v6779
        %9618 = vmatpush.bf16.msra.mxu0 %v6739
        %9619 = vmatpush.bf16.msra.mxu0 %v6699
        %9620 = vmatpush.bf16.msra.mxu0 %v6659
        %9621 = vmatpush.bf16.msra.mxu0 %v6619
        %9622 = vmatpush.bf16.msra.mxu0 %v6579
        %9623 = vmatpush.bf16.msra.mxu0 %v6539
        %9624 = vmatpush.bf16.msra.mxu0 %v6499
        %9625 = vmatmul.bf16.gmra.mxu0 %v1665
        %v9626 = vpop.f32.mrf.mxu0
        %v9627 = vadd.f32 %v9614, %v9626
        %v9628 = vpop.f32.mrf.mxu0
        %9629 = vdwg.mxu0
        %9630 = vmatpush.bf16.msra.mxu0 %v5820
        %9631 = vmatpush.bf16.msra.mxu0 %v5780
        %9632 = vmatpush.bf16.msra.mxu0 %v5740
        %9633 = vmatpush.bf16.msra.mxu0 %v5700
        %9634 = vmatpush.bf16.msra.mxu0 %v5660
        %9635 = vmatpush.bf16.msra.mxu0 %v5620
        %9636 = vmatpush.bf16.msra.mxu0 %v5580
        %9637 = vmatpush.bf16.msra.mxu0 %v5540
        %9638 = vmatmul.bf16.gmra.mxu0 %v1662
        %v9639 = vpop.f32.mrf.mxu0
        %v9640 = vadd.f32 %v1610, %v9639
        %v9641 = vpop.f32.mrf.mxu0
        %9642 = vdwg.mxu0
        %9643 = vmatpush.bf16.msra.mxu0 %v6140
        %9644 = vmatpush.bf16.msra.mxu0 %v6100
        %9645 = vmatpush.bf16.msra.mxu0 %v6060
        %9646 = vmatpush.bf16.msra.mxu0 %v6020
        %9647 = vmatpush.bf16.msra.mxu0 %v5980
        %9648 = vmatpush.bf16.msra.mxu0 %v5940
        %9649 = vmatpush.bf16.msra.mxu0 %v5900
        %9650 = vmatpush.bf16.msra.mxu0 %v5860
        %9651 = vmatmul.bf16.gmra.mxu0 %v1663
        %v9652 = vpop.f32.mrf.mxu0
        %v9653 = vadd.f32 %v9640, %v9652
        %v9654 = vpop.f32.mrf.mxu0
        %9655 = vdwg.mxu0
        %9656 = vmatpush.bf16.msra.mxu0 %v6460
        %9657 = vmatpush.bf16.msra.mxu0 %v6420
        %9658 = vmatpush.bf16.msra.mxu0 %v6380
        %9659 = vmatpush.bf16.msra.mxu0 %v6340
        %9660 = vmatpush.bf16.msra.mxu0 %v6300
        %9661 = vmatpush.bf16.msra.mxu0 %v6260
        %9662 = vmatpush.bf16.msra.mxu0 %v6220
        %9663 = vmatpush.bf16.msra.mxu0 %v6180
        %9664 = vmatmul.bf16.gmra.mxu0 %v1664
        %v9665 = vpop.f32.mrf.mxu0
        %v9666 = vadd.f32 %v9653, %v9665
        %v9667 = vpop.f32.mrf.mxu0
        %9668 = vdwg.mxu0
        %9669 = vmatpush.bf16.msra.mxu0 %v6780
        %9670 = vmatpush.bf16.msra.mxu0 %v6740
        %9671 = vmatpush.bf16.msra.mxu0 %v6700
        %9672 = vmatpush.bf16.msra.mxu0 %v6660
        %9673 = vmatpush.bf16.msra.mxu0 %v6620
        %9674 = vmatpush.bf16.msra.mxu0 %v6580
        %9675 = vmatpush.bf16.msra.mxu0 %v6540
        %9676 = vmatpush.bf16.msra.mxu0 %v6500
        %9677 = vmatmul.bf16.gmra.mxu0 %v1665
        %v9678 = vpop.f32.mrf.mxu0
        %v9679 = vadd.f32 %v9666, %v9678
        %v9680 = vpop.f32.mrf.mxu0
        %9681 = vdwg.mxu0
        %9682 = vmatpush.bf16.msra.mxu0 %v5821
        %9683 = vmatpush.bf16.msra.mxu0 %v5781
        %9684 = vmatpush.bf16.msra.mxu0 %v5741
        %9685 = vmatpush.bf16.msra.mxu0 %v5701
        %9686 = vmatpush.bf16.msra.mxu0 %v5661
        %9687 = vmatpush.bf16.msra.mxu0 %v5621
        %9688 = vmatpush.bf16.msra.mxu0 %v5581
        %9689 = vmatpush.bf16.msra.mxu0 %v5541
        %9690 = vmatmul.bf16.gmra.mxu0 %v1662
        %v9691 = vpop.f32.mrf.mxu0
        %v9692 = vadd.f32 %v1611, %v9691
        %v9693 = vpop.f32.mrf.mxu0
        %9694 = vdwg.mxu0
        %9695 = vmatpush.bf16.msra.mxu0 %v6141
        %9696 = vmatpush.bf16.msra.mxu0 %v6101
        %9697 = vmatpush.bf16.msra.mxu0 %v6061
        %9698 = vmatpush.bf16.msra.mxu0 %v6021
        %9699 = vmatpush.bf16.msra.mxu0 %v5981
        %9700 = vmatpush.bf16.msra.mxu0 %v5941
        %9701 = vmatpush.bf16.msra.mxu0 %v5901
        %9702 = vmatpush.bf16.msra.mxu0 %v5861
        %9703 = vmatmul.bf16.gmra.mxu0 %v1663
        %v9704 = vpop.f32.mrf.mxu0
        %v9705 = vadd.f32 %v9692, %v9704
        %v9706 = vpop.f32.mrf.mxu0
        %9707 = vdwg.mxu0
        %9708 = vmatpush.bf16.msra.mxu0 %v6461
        %9709 = vmatpush.bf16.msra.mxu0 %v6421
        %9710 = vmatpush.bf16.msra.mxu0 %v6381
        %9711 = vmatpush.bf16.msra.mxu0 %v6341
        %9712 = vmatpush.bf16.msra.mxu0 %v6301
        %9713 = vmatpush.bf16.msra.mxu0 %v6261
        %9714 = vmatpush.bf16.msra.mxu0 %v6221
        %9715 = vmatpush.bf16.msra.mxu0 %v6181
        %9716 = vmatmul.bf16.gmra.mxu0 %v1664
        %v9717 = vpop.f32.mrf.mxu0
        %v9718 = vadd.f32 %v9705, %v9717
        %v9719 = vpop.f32.mrf.mxu0
        %9720 = vdwg.mxu0
        %9721 = vmatpush.bf16.msra.mxu0 %v6781
        %9722 = vmatpush.bf16.msra.mxu0 %v6741
        %9723 = vmatpush.bf16.msra.mxu0 %v6701
        %9724 = vmatpush.bf16.msra.mxu0 %v6661
        %9725 = vmatpush.bf16.msra.mxu0 %v6621
        %9726 = vmatpush.bf16.msra.mxu0 %v6581
        %9727 = vmatpush.bf16.msra.mxu0 %v6541
        %9728 = vmatpush.bf16.msra.mxu0 %v6501
        %9729 = vmatmul.bf16.gmra.mxu0 %v1665
        %v9730 = vpop.f32.mrf.mxu0
        %v9731 = vadd.f32 %v9718, %v9730
        %v9732 = vpop.f32.mrf.mxu0
        %9733 = vdwg.mxu0
        %9734 = vmatpush.bf16.msra.mxu0 %v5822
        %9735 = vmatpush.bf16.msra.mxu0 %v5782
        %9736 = vmatpush.bf16.msra.mxu0 %v5742
        %9737 = vmatpush.bf16.msra.mxu0 %v5702
        %9738 = vmatpush.bf16.msra.mxu0 %v5662
        %9739 = vmatpush.bf16.msra.mxu0 %v5622
        %9740 = vmatpush.bf16.msra.mxu0 %v5582
        %9741 = vmatpush.bf16.msra.mxu0 %v5542
        %9742 = vmatmul.bf16.gmra.mxu0 %v1662
        %v9743 = vpop.f32.mrf.mxu0
        %v9744 = vadd.f32 %v1612, %v9743
        %v9745 = vpop.f32.mrf.mxu0
        %9746 = vdwg.mxu0
        %9747 = vmatpush.bf16.msra.mxu0 %v6142
        %9748 = vmatpush.bf16.msra.mxu0 %v6102
        %9749 = vmatpush.bf16.msra.mxu0 %v6062
        %9750 = vmatpush.bf16.msra.mxu0 %v6022
        %9751 = vmatpush.bf16.msra.mxu0 %v5982
        %9752 = vmatpush.bf16.msra.mxu0 %v5942
        %9753 = vmatpush.bf16.msra.mxu0 %v5902
        %9754 = vmatpush.bf16.msra.mxu0 %v5862
        %9755 = vmatmul.bf16.gmra.mxu0 %v1663
        %v9756 = vpop.f32.mrf.mxu0
        %v9757 = vadd.f32 %v9744, %v9756
        %v9758 = vpop.f32.mrf.mxu0
        %9759 = vdwg.mxu0
        %9760 = vmatpush.bf16.msra.mxu0 %v6462
        %9761 = vmatpush.bf16.msra.mxu0 %v6422
        %9762 = vmatpush.bf16.msra.mxu0 %v6382
        %9763 = vmatpush.bf16.msra.mxu0 %v6342
        %9764 = vmatpush.bf16.msra.mxu0 %v6302
        %9765 = vmatpush.bf16.msra.mxu0 %v6262
        %9766 = vmatpush.bf16.msra.mxu0 %v6222
        %9767 = vmatpush.bf16.msra.mxu0 %v6182
        %9768 = vmatmul.bf16.gmra.mxu0 %v1664
        %v9769 = vpop.f32.mrf.mxu0
        %v9770 = vadd.f32 %v9757, %v9769
        %v9771 = vpop.f32.mrf.mxu0
        %9772 = vdwg.mxu0
        %9773 = vmatpush.bf16.msra.mxu0 %v6782
        %9774 = vmatpush.bf16.msra.mxu0 %v6742
        %9775 = vmatpush.bf16.msra.mxu0 %v6702
        %9776 = vmatpush.bf16.msra.mxu0 %v6662
        %9777 = vmatpush.bf16.msra.mxu0 %v6622
        %9778 = vmatpush.bf16.msra.mxu0 %v6582
        %9779 = vmatpush.bf16.msra.mxu0 %v6542
        %9780 = vmatpush.bf16.msra.mxu0 %v6502
        %9781 = vmatmul.bf16.gmra.mxu0 %v1665
        %v9782 = vpop.f32.mrf.mxu0
        %v9783 = vadd.f32 %v9770, %v9782
        %v9784 = vpop.f32.mrf.mxu0
        %9785 = vdwg.mxu0
        %9786 = vmatpush.bf16.msra.mxu0 %v5823
        %9787 = vmatpush.bf16.msra.mxu0 %v5783
        %9788 = vmatpush.bf16.msra.mxu0 %v5743
        %9789 = vmatpush.bf16.msra.mxu0 %v5703
        %9790 = vmatpush.bf16.msra.mxu0 %v5663
        %9791 = vmatpush.bf16.msra.mxu0 %v5623
        %9792 = vmatpush.bf16.msra.mxu0 %v5583
        %9793 = vmatpush.bf16.msra.mxu0 %v5543
        %9794 = vmatmul.bf16.gmra.mxu0 %v1662
        %v9795 = vpop.f32.mrf.mxu0
        %v9796 = vadd.f32 %v1613, %v9795
        %v9797 = vpop.f32.mrf.mxu0
        %9798 = vdwg.mxu0
        %9799 = vmatpush.bf16.msra.mxu0 %v6143
        %9800 = vmatpush.bf16.msra.mxu0 %v6103
        %9801 = vmatpush.bf16.msra.mxu0 %v6063
        %9802 = vmatpush.bf16.msra.mxu0 %v6023
        %9803 = vmatpush.bf16.msra.mxu0 %v5983
        %9804 = vmatpush.bf16.msra.mxu0 %v5943
        %9805 = vmatpush.bf16.msra.mxu0 %v5903
        %9806 = vmatpush.bf16.msra.mxu0 %v5863
        %9807 = vmatmul.bf16.gmra.mxu0 %v1663
        %v9808 = vpop.f32.mrf.mxu0
        %v9809 = vadd.f32 %v9796, %v9808
        %v9810 = vpop.f32.mrf.mxu0
        %9811 = vdwg.mxu0
        %9812 = vmatpush.bf16.msra.mxu0 %v6463
        %9813 = vmatpush.bf16.msra.mxu0 %v6423
        %9814 = vmatpush.bf16.msra.mxu0 %v6383
        %9815 = vmatpush.bf16.msra.mxu0 %v6343
        %9816 = vmatpush.bf16.msra.mxu0 %v6303
        %9817 = vmatpush.bf16.msra.mxu0 %v6263
        %9818 = vmatpush.bf16.msra.mxu0 %v6223
        %9819 = vmatpush.bf16.msra.mxu0 %v6183
        %9820 = vmatmul.bf16.gmra.mxu0 %v1664
        %v9821 = vpop.f32.mrf.mxu0
        %v9822 = vadd.f32 %v9809, %v9821
        %v9823 = vpop.f32.mrf.mxu0
        %9824 = vdwg.mxu0
        %9825 = vmatpush.bf16.msra.mxu0 %v6783
        %9826 = vmatpush.bf16.msra.mxu0 %v6743
        %9827 = vmatpush.bf16.msra.mxu0 %v6703
        %9828 = vmatpush.bf16.msra.mxu0 %v6663
        %9829 = vmatpush.bf16.msra.mxu0 %v6623
        %9830 = vmatpush.bf16.msra.mxu0 %v6583
        %9831 = vmatpush.bf16.msra.mxu0 %v6543
        %9832 = vmatpush.bf16.msra.mxu0 %v6503
        %9833 = vmatmul.bf16.gmra.mxu0 %v1665
        %v9834 = vpop.f32.mrf.mxu0
        %v9835 = vadd.f32 %v9822, %v9834
        %v9836 = vpop.f32.mrf.mxu0
        %9837 = vdwg.mxu0
        %9838 = vmatpush.bf16.msra.mxu0 %v5824
        %9839 = vmatpush.bf16.msra.mxu0 %v5784
        %9840 = vmatpush.bf16.msra.mxu0 %v5744
        %9841 = vmatpush.bf16.msra.mxu0 %v5704
        %9842 = vmatpush.bf16.msra.mxu0 %v5664
        %9843 = vmatpush.bf16.msra.mxu0 %v5624
        %9844 = vmatpush.bf16.msra.mxu0 %v5584
        %9845 = vmatpush.bf16.msra.mxu0 %v5544
        %9846 = vmatmul.bf16.gmra.mxu0 %v1662
        %v9847 = vpop.f32.mrf.mxu0
        %v9848 = vadd.f32 %v1614, %v9847
        %v9849 = vpop.f32.mrf.mxu0
        %9850 = vdwg.mxu0
        %9851 = vmatpush.bf16.msra.mxu0 %v6144
        %9852 = vmatpush.bf16.msra.mxu0 %v6104
        %9853 = vmatpush.bf16.msra.mxu0 %v6064
        %9854 = vmatpush.bf16.msra.mxu0 %v6024
        %9855 = vmatpush.bf16.msra.mxu0 %v5984
        %9856 = vmatpush.bf16.msra.mxu0 %v5944
        %9857 = vmatpush.bf16.msra.mxu0 %v5904
        %9858 = vmatpush.bf16.msra.mxu0 %v5864
        %9859 = vmatmul.bf16.gmra.mxu0 %v1663
        %v9860 = vpop.f32.mrf.mxu0
        %v9861 = vadd.f32 %v9848, %v9860
        %v9862 = vpop.f32.mrf.mxu0
        %9863 = vdwg.mxu0
        %9864 = vmatpush.bf16.msra.mxu0 %v6464
        %9865 = vmatpush.bf16.msra.mxu0 %v6424
        %9866 = vmatpush.bf16.msra.mxu0 %v6384
        %9867 = vmatpush.bf16.msra.mxu0 %v6344
        %9868 = vmatpush.bf16.msra.mxu0 %v6304
        %9869 = vmatpush.bf16.msra.mxu0 %v6264
        %9870 = vmatpush.bf16.msra.mxu0 %v6224
        %9871 = vmatpush.bf16.msra.mxu0 %v6184
        %9872 = vmatmul.bf16.gmra.mxu0 %v1664
        %v9873 = vpop.f32.mrf.mxu0
        %v9874 = vadd.f32 %v9861, %v9873
        %v9875 = vpop.f32.mrf.mxu0
        %9876 = vdwg.mxu0
        %9877 = vmatpush.bf16.msra.mxu0 %v6784
        %9878 = vmatpush.bf16.msra.mxu0 %v6744
        %9879 = vmatpush.bf16.msra.mxu0 %v6704
        %9880 = vmatpush.bf16.msra.mxu0 %v6664
        %9881 = vmatpush.bf16.msra.mxu0 %v6624
        %9882 = vmatpush.bf16.msra.mxu0 %v6584
        %9883 = vmatpush.bf16.msra.mxu0 %v6544
        %9884 = vmatpush.bf16.msra.mxu0 %v6504
        %9885 = vmatmul.bf16.gmra.mxu0 %v1665
        %v9886 = vpop.f32.mrf.mxu0
        %v9887 = vadd.f32 %v9874, %v9886
        %v9888 = vpop.f32.mrf.mxu0
        %9889 = vdwg.mxu0
        %9890 = vmatpush.bf16.msra.mxu0 %v5825
        %9891 = vmatpush.bf16.msra.mxu0 %v5785
        %9892 = vmatpush.bf16.msra.mxu0 %v5745
        %9893 = vmatpush.bf16.msra.mxu0 %v5705
        %9894 = vmatpush.bf16.msra.mxu0 %v5665
        %9895 = vmatpush.bf16.msra.mxu0 %v5625
        %9896 = vmatpush.bf16.msra.mxu0 %v5585
        %9897 = vmatpush.bf16.msra.mxu0 %v5545
        %9898 = vmatmul.bf16.gmra.mxu0 %v1662
        %v9899 = vpop.f32.mrf.mxu0
        %v9900 = vadd.f32 %v1615, %v9899
        %v9901 = vpop.f32.mrf.mxu0
        %9902 = vdwg.mxu0
        %9903 = vmatpush.bf16.msra.mxu0 %v6145
        %9904 = vmatpush.bf16.msra.mxu0 %v6105
        %9905 = vmatpush.bf16.msra.mxu0 %v6065
        %9906 = vmatpush.bf16.msra.mxu0 %v6025
        %9907 = vmatpush.bf16.msra.mxu0 %v5985
        %9908 = vmatpush.bf16.msra.mxu0 %v5945
        %9909 = vmatpush.bf16.msra.mxu0 %v5905
        %9910 = vmatpush.bf16.msra.mxu0 %v5865
        %9911 = vmatmul.bf16.gmra.mxu0 %v1663
        %v9912 = vpop.f32.mrf.mxu0
        %v9913 = vadd.f32 %v9900, %v9912
        %v9914 = vpop.f32.mrf.mxu0
        %9915 = vdwg.mxu0
        %9916 = vmatpush.bf16.msra.mxu0 %v6465
        %9917 = vmatpush.bf16.msra.mxu0 %v6425
        %9918 = vmatpush.bf16.msra.mxu0 %v6385
        %9919 = vmatpush.bf16.msra.mxu0 %v6345
        %9920 = vmatpush.bf16.msra.mxu0 %v6305
        %9921 = vmatpush.bf16.msra.mxu0 %v6265
        %9922 = vmatpush.bf16.msra.mxu0 %v6225
        %9923 = vmatpush.bf16.msra.mxu0 %v6185
        %9924 = vmatmul.bf16.gmra.mxu0 %v1664
        %v9925 = vpop.f32.mrf.mxu0
        %v9926 = vadd.f32 %v9913, %v9925
        %v9927 = vpop.f32.mrf.mxu0
        %9928 = vdwg.mxu0
        %9929 = vmatpush.bf16.msra.mxu0 %v6785
        %9930 = vmatpush.bf16.msra.mxu0 %v6745
        %9931 = vmatpush.bf16.msra.mxu0 %v6705
        %9932 = vmatpush.bf16.msra.mxu0 %v6665
        %9933 = vmatpush.bf16.msra.mxu0 %v6625
        %9934 = vmatpush.bf16.msra.mxu0 %v6585
        %9935 = vmatpush.bf16.msra.mxu0 %v6545
        %9936 = vmatpush.bf16.msra.mxu0 %v6505
        %9937 = vmatmul.bf16.gmra.mxu0 %v1665
        %v9938 = vpop.f32.mrf.mxu0
        %v9939 = vadd.f32 %v9926, %v9938
        %v9940 = vpop.f32.mrf.mxu0
        %9941 = vdwg.mxu0
        %9942 = vmatpush.bf16.msra.mxu0 %v5826
        %9943 = vmatpush.bf16.msra.mxu0 %v5786
        %9944 = vmatpush.bf16.msra.mxu0 %v5746
        %9945 = vmatpush.bf16.msra.mxu0 %v5706
        %9946 = vmatpush.bf16.msra.mxu0 %v5666
        %9947 = vmatpush.bf16.msra.mxu0 %v5626
        %9948 = vmatpush.bf16.msra.mxu0 %v5586
        %9949 = vmatpush.bf16.msra.mxu0 %v5546
        %9950 = vmatmul.bf16.gmra.mxu0 %v1662
        %v9951 = vpop.f32.mrf.mxu0
        %v9952 = vadd.f32 %v1616, %v9951
        %v9953 = vpop.f32.mrf.mxu0
        %9954 = vdwg.mxu0
        %9955 = vmatpush.bf16.msra.mxu0 %v6146
        %9956 = vmatpush.bf16.msra.mxu0 %v6106
        %9957 = vmatpush.bf16.msra.mxu0 %v6066
        %9958 = vmatpush.bf16.msra.mxu0 %v6026
        %9959 = vmatpush.bf16.msra.mxu0 %v5986
        %9960 = vmatpush.bf16.msra.mxu0 %v5946
        %9961 = vmatpush.bf16.msra.mxu0 %v5906
        %9962 = vmatpush.bf16.msra.mxu0 %v5866
        %9963 = vmatmul.bf16.gmra.mxu0 %v1663
        %v9964 = vpop.f32.mrf.mxu0
        %v9965 = vadd.f32 %v9952, %v9964
        %v9966 = vpop.f32.mrf.mxu0
        %9967 = vdwg.mxu0
        %9968 = vmatpush.bf16.msra.mxu0 %v6466
        %9969 = vmatpush.bf16.msra.mxu0 %v6426
        %9970 = vmatpush.bf16.msra.mxu0 %v6386
        %9971 = vmatpush.bf16.msra.mxu0 %v6346
        %9972 = vmatpush.bf16.msra.mxu0 %v6306
        %9973 = vmatpush.bf16.msra.mxu0 %v6266
        %9974 = vmatpush.bf16.msra.mxu0 %v6226
        %9975 = vmatpush.bf16.msra.mxu0 %v6186
        %9976 = vmatmul.bf16.gmra.mxu0 %v1664
        %v9977 = vpop.f32.mrf.mxu0
        %v9978 = vadd.f32 %v9965, %v9977
        %v9979 = vpop.f32.mrf.mxu0
        %9980 = vdwg.mxu0
        %9981 = vmatpush.bf16.msra.mxu0 %v6786
        %9982 = vmatpush.bf16.msra.mxu0 %v6746
        %9983 = vmatpush.bf16.msra.mxu0 %v6706
        %9984 = vmatpush.bf16.msra.mxu0 %v6666
        %9985 = vmatpush.bf16.msra.mxu0 %v6626
        %9986 = vmatpush.bf16.msra.mxu0 %v6586
        %9987 = vmatpush.bf16.msra.mxu0 %v6546
        %9988 = vmatpush.bf16.msra.mxu0 %v6506
        %9989 = vmatmul.bf16.gmra.mxu0 %v1665
        %v9990 = vpop.f32.mrf.mxu0
        %v9991 = vadd.f32 %v9978, %v9990
        %v9992 = vpop.f32.mrf.mxu0
        %9993 = vdwg.mxu0
        %9994 = vmatpush.bf16.msra.mxu0 %v5827
        %9995 = vmatpush.bf16.msra.mxu0 %v5787
        %9996 = vmatpush.bf16.msra.mxu0 %v5747
        %9997 = vmatpush.bf16.msra.mxu0 %v5707
        %9998 = vmatpush.bf16.msra.mxu0 %v5667
        %9999 = vmatpush.bf16.msra.mxu0 %v5627
        %10000 = vmatpush.bf16.msra.mxu0 %v5587
        %10001 = vmatpush.bf16.msra.mxu0 %v5547
        %10002 = vmatmul.bf16.gmra.mxu0 %v1662
        %v10003 = vpop.f32.mrf.mxu0
        %v10004 = vadd.f32 %v1617, %v10003
        %v10005 = vpop.f32.mrf.mxu0
        %10006 = vdwg.mxu0
        %10007 = vmatpush.bf16.msra.mxu0 %v6147
        %10008 = vmatpush.bf16.msra.mxu0 %v6107
        %10009 = vmatpush.bf16.msra.mxu0 %v6067
        %10010 = vmatpush.bf16.msra.mxu0 %v6027
        %10011 = vmatpush.bf16.msra.mxu0 %v5987
        %10012 = vmatpush.bf16.msra.mxu0 %v5947
        %10013 = vmatpush.bf16.msra.mxu0 %v5907
        %10014 = vmatpush.bf16.msra.mxu0 %v5867
        %10015 = vmatmul.bf16.gmra.mxu0 %v1663
        %v10016 = vpop.f32.mrf.mxu0
        %v10017 = vadd.f32 %v10004, %v10016
        %v10018 = vpop.f32.mrf.mxu0
        %10019 = vdwg.mxu0
        %10020 = vmatpush.bf16.msra.mxu0 %v6467
        %10021 = vmatpush.bf16.msra.mxu0 %v6427
        %10022 = vmatpush.bf16.msra.mxu0 %v6387
        %10023 = vmatpush.bf16.msra.mxu0 %v6347
        %10024 = vmatpush.bf16.msra.mxu0 %v6307
        %10025 = vmatpush.bf16.msra.mxu0 %v6267
        %10026 = vmatpush.bf16.msra.mxu0 %v6227
        %10027 = vmatpush.bf16.msra.mxu0 %v6187
        %10028 = vmatmul.bf16.gmra.mxu0 %v1664
        %v10029 = vpop.f32.mrf.mxu0
        %v10030 = vadd.f32 %v10017, %v10029
        %v10031 = vpop.f32.mrf.mxu0
        %10032 = vdwg.mxu0
        %10033 = vmatpush.bf16.msra.mxu0 %v6787
        %10034 = vmatpush.bf16.msra.mxu0 %v6747
        %10035 = vmatpush.bf16.msra.mxu0 %v6707
        %10036 = vmatpush.bf16.msra.mxu0 %v6667
        %10037 = vmatpush.bf16.msra.mxu0 %v6627
        %10038 = vmatpush.bf16.msra.mxu0 %v6587
        %10039 = vmatpush.bf16.msra.mxu0 %v6547
        %10040 = vmatpush.bf16.msra.mxu0 %v6507
        %10041 = vmatmul.bf16.gmra.mxu0 %v1665
        %v10042 = vpop.f32.mrf.mxu0
        %v10043 = vadd.f32 %v10030, %v10042
        %v10044 = vpop.f32.mrf.mxu0
        %10045 = vdwg.mxu0
        %10046 = vmatpush.bf16.msra.mxu0 %v5828
        %10047 = vmatpush.bf16.msra.mxu0 %v5788
        %10048 = vmatpush.bf16.msra.mxu0 %v5748
        %10049 = vmatpush.bf16.msra.mxu0 %v5708
        %10050 = vmatpush.bf16.msra.mxu0 %v5668
        %10051 = vmatpush.bf16.msra.mxu0 %v5628
        %10052 = vmatpush.bf16.msra.mxu0 %v5588
        %10053 = vmatpush.bf16.msra.mxu0 %v5548
        %10054 = vmatmul.bf16.gmra.mxu0 %v1662
        %v10055 = vpop.f32.mrf.mxu0
        %v10056 = vadd.f32 %v1618, %v10055
        %v10057 = vpop.f32.mrf.mxu0
        %10058 = vdwg.mxu0
        %10059 = vmatpush.bf16.msra.mxu0 %v6148
        %10060 = vmatpush.bf16.msra.mxu0 %v6108
        %10061 = vmatpush.bf16.msra.mxu0 %v6068
        %10062 = vmatpush.bf16.msra.mxu0 %v6028
        %10063 = vmatpush.bf16.msra.mxu0 %v5988
        %10064 = vmatpush.bf16.msra.mxu0 %v5948
        %10065 = vmatpush.bf16.msra.mxu0 %v5908
        %10066 = vmatpush.bf16.msra.mxu0 %v5868
        %10067 = vmatmul.bf16.gmra.mxu0 %v1663
        %v10068 = vpop.f32.mrf.mxu0
        %v10069 = vadd.f32 %v10056, %v10068
        %v10070 = vpop.f32.mrf.mxu0
        %10071 = vdwg.mxu0
        %10072 = vmatpush.bf16.msra.mxu0 %v6468
        %10073 = vmatpush.bf16.msra.mxu0 %v6428
        %10074 = vmatpush.bf16.msra.mxu0 %v6388
        %10075 = vmatpush.bf16.msra.mxu0 %v6348
        %10076 = vmatpush.bf16.msra.mxu0 %v6308
        %10077 = vmatpush.bf16.msra.mxu0 %v6268
        %10078 = vmatpush.bf16.msra.mxu0 %v6228
        %10079 = vmatpush.bf16.msra.mxu0 %v6188
        %10080 = vmatmul.bf16.gmra.mxu0 %v1664
        %v10081 = vpop.f32.mrf.mxu0
        %v10082 = vadd.f32 %v10069, %v10081
        %v10083 = vpop.f32.mrf.mxu0
        %10084 = vdwg.mxu0
        %10085 = vmatpush.bf16.msra.mxu0 %v6788
        %10086 = vmatpush.bf16.msra.mxu0 %v6748
        %10087 = vmatpush.bf16.msra.mxu0 %v6708
        %10088 = vmatpush.bf16.msra.mxu0 %v6668
        %10089 = vmatpush.bf16.msra.mxu0 %v6628
        %10090 = vmatpush.bf16.msra.mxu0 %v6588
        %10091 = vmatpush.bf16.msra.mxu0 %v6548
        %10092 = vmatpush.bf16.msra.mxu0 %v6508
        %10093 = vmatmul.bf16.gmra.mxu0 %v1665
        %v10094 = vpop.f32.mrf.mxu0
        %v10095 = vadd.f32 %v10082, %v10094
        %v10096 = vpop.f32.mrf.mxu0
        %10097 = vdwg.mxu0
        %10098 = vmatpush.bf16.msra.mxu0 %v5829
        %10099 = vmatpush.bf16.msra.mxu0 %v5789
        %10100 = vmatpush.bf16.msra.mxu0 %v5749
        %10101 = vmatpush.bf16.msra.mxu0 %v5709
        %10102 = vmatpush.bf16.msra.mxu0 %v5669
        %10103 = vmatpush.bf16.msra.mxu0 %v5629
        %10104 = vmatpush.bf16.msra.mxu0 %v5589
        %10105 = vmatpush.bf16.msra.mxu0 %v5549
        %10106 = vmatmul.bf16.gmra.mxu0 %v1662
        %v10107 = vpop.f32.mrf.mxu0
        %v10108 = vadd.f32 %v1619, %v10107
        %v10109 = vpop.f32.mrf.mxu0
        %10110 = vdwg.mxu0
        %10111 = vmatpush.bf16.msra.mxu0 %v6149
        %10112 = vmatpush.bf16.msra.mxu0 %v6109
        %10113 = vmatpush.bf16.msra.mxu0 %v6069
        %10114 = vmatpush.bf16.msra.mxu0 %v6029
        %10115 = vmatpush.bf16.msra.mxu0 %v5989
        %10116 = vmatpush.bf16.msra.mxu0 %v5949
        %10117 = vmatpush.bf16.msra.mxu0 %v5909
        %10118 = vmatpush.bf16.msra.mxu0 %v5869
        %10119 = vmatmul.bf16.gmra.mxu0 %v1663
        %v10120 = vpop.f32.mrf.mxu0
        %v10121 = vadd.f32 %v10108, %v10120
        %v10122 = vpop.f32.mrf.mxu0
        %10123 = vdwg.mxu0
        %10124 = vmatpush.bf16.msra.mxu0 %v6469
        %10125 = vmatpush.bf16.msra.mxu0 %v6429
        %10126 = vmatpush.bf16.msra.mxu0 %v6389
        %10127 = vmatpush.bf16.msra.mxu0 %v6349
        %10128 = vmatpush.bf16.msra.mxu0 %v6309
        %10129 = vmatpush.bf16.msra.mxu0 %v6269
        %10130 = vmatpush.bf16.msra.mxu0 %v6229
        %10131 = vmatpush.bf16.msra.mxu0 %v6189
        %10132 = vmatmul.bf16.gmra.mxu0 %v1664
        %v10133 = vpop.f32.mrf.mxu0
        %v10134 = vadd.f32 %v10121, %v10133
        %v10135 = vpop.f32.mrf.mxu0
        %10136 = vdwg.mxu0
        %10137 = vmatpush.bf16.msra.mxu0 %v6789
        %10138 = vmatpush.bf16.msra.mxu0 %v6749
        %10139 = vmatpush.bf16.msra.mxu0 %v6709
        %10140 = vmatpush.bf16.msra.mxu0 %v6669
        %10141 = vmatpush.bf16.msra.mxu0 %v6629
        %10142 = vmatpush.bf16.msra.mxu0 %v6589
        %10143 = vmatpush.bf16.msra.mxu0 %v6549
        %10144 = vmatpush.bf16.msra.mxu0 %v6509
        %10145 = vmatmul.bf16.gmra.mxu0 %v1665
        %v10146 = vpop.f32.mrf.mxu0
        %v10147 = vadd.f32 %v10134, %v10146
        %v10148 = vpop.f32.mrf.mxu0
        %10149 = vdwg.mxu0
        %v10150 = vld [vmem:[%s4] sm:$0xff]
        %10152 = vset.pattern.permute.xlu0 0
        %10153 = vperm.xlu0 %10152, %v10150
        %v10154 = vpop.permute.xlu0 %10153
        %v10156 = vperm.slane %v8119, 0
        %v10157 = vperm.slane %v8171, 0
        %v10158 = vperm.slane %v8223, 0
        %v10159 = vperm.slane %v8275, 0
        %v10160 = vperm.slane %v8327, 0
        %v10161 = vperm.slane %v8379, 0
        %v10162 = vperm.slane %v8431, 0
        %v10163 = vperm.slane %v8483, 0
        %v10164 = vperm.slane %v8535, 0
        %v10165 = vperm.slane %v8587, 0
        %v10166 = vperm.slane %v8639, 0
        %v10167 = vperm.slane %v8691, 0
        %v10168 = vperm.slane %v8743, 0
        %v10169 = vperm.slane %v8795, 0
        %v10170 = vperm.slane %v8847, 0
        %v10171 = vperm.slane %v8899, 0
        %v10172 = vperm.slane %v8951, 0
        %v10173 = vperm.slane %v9003, 0
        %v10174 = vperm.slane %v9055, 0
        %v10175 = vperm.slane %v9107, 0
        %v10176 = vperm.slane %v9159, 0
        %v10177 = vperm.slane %v9211, 0
        %v10178 = vperm.slane %v9263, 0
        %v10179 = vperm.slane %v9315, 0
        %v10180 = vperm.slane %v9367, 0
        %v10181 = vperm.slane %v9419, 0
        %v10182 = vperm.slane %v9471, 0
        %v10183 = vperm.slane %v9523, 0
        %v10184 = vperm.slane %v9575, 0
        %v10185 = vperm.slane %v9627, 0
        %v10186 = vperm.slane %v9679, 0
        %v10187 = vperm.slane %v9731, 0
        %v10188 = vperm.slane %v9783, 0
        %v10189 = vperm.slane %v9835, 0
        %v10190 = vperm.slane %v9887, 0
        %v10191 = vperm.slane %v9939, 0
        %v10192 = vperm.slane %v9991, 0
        %v10193 = vperm.slane %v10043, 0
        %v10194 = vperm.slane %v10095, 0
        %v10195 = vperm.slane %v10147, 0
        %v10196 = vld [vmem:[%s3] sm:$0xff]
        %10198 = vset.pattern.permute.xlu0 0
        %10199 = vperm.xlu0 %10198, %v10196
        %v10200 = vpop.permute.xlu0 %10199
        %v10202 = vmul.f32 %v10156, %v10200
        %v10203 = vmul.f32 %v10157, %v10200
        %v10204 = vmul.f32 %v10158, %v10200
        %v10205 = vmul.f32 %v10159, %v10200
        %v10206 = vmul.f32 %v10160, %v10200
        %v10207 = vmul.f32 %v10161, %v10200
        %v10208 = vmul.f32 %v10162, %v10200
        %v10209 = vmul.f32 %v10163, %v10200
        %v10210 = vmul.f32 %v10164, %v10200
        %v10211 = vmul.f32 %v10165, %v10200
        %v10212 = vmul.f32 %v10166, %v10200
        %v10213 = vmul.f32 %v10167, %v10200
        %v10214 = vmul.f32 %v10168, %v10200
        %v10215 = vmul.f32 %v10169, %v10200
        %v10216 = vmul.f32 %v10170, %v10200
        %v10217 = vmul.f32 %v10171, %v10200
        %v10218 = vmul.f32 %v10172, %v10200
        %v10219 = vmul.f32 %v10173, %v10200
        %v10220 = vmul.f32 %v10174, %v10200
        %v10221 = vmul.f32 %v10175, %v10200
        %v10222 = vmul.f32 %v10176, %v10200
        %v10223 = vmul.f32 %v10177, %v10200
        %v10224 = vmul.f32 %v10178, %v10200
        %v10225 = vmul.f32 %v10179, %v10200
        %v10226 = vmul.f32 %v10180, %v10200
        %v10227 = vmul.f32 %v10181, %v10200
        %v10228 = vmul.f32 %v10182, %v10200
        %v10229 = vmul.f32 %v10183, %v10200
        %v10230 = vmul.f32 %v10184, %v10200
        %v10231 = vmul.f32 %v10185, %v10200
        %v10232 = vmul.f32 %v10186, %v10200
        %v10233 = vmul.f32 %v10187, %v10200
        %v10234 = vmul.f32 %v10188, %v10200
        %v10235 = vmul.f32 %v10189, %v10200
        %v10236 = vmul.f32 %v10190, %v10200
        %v10237 = vmul.f32 %v10191, %v10200
        %v10238 = vmul.f32 %v10192, %v10200
        %v10239 = vmul.f32 %v10193, %v10200
        %v10240 = vmul.f32 %v10194, %v10200
        %v10241 = vmul.f32 %v10195, %v10200
        %v10242 = vadd.f32 %v10154, %v10202
        %v10243 = vadd.f32 %v10154, %v10203
        %v10244 = vadd.f32 %v10154, %v10204
        %v10245 = vadd.f32 %v10154, %v10205
        %v10246 = vadd.f32 %v10154, %v10206
        %v10247 = vadd.f32 %v10154, %v10207
        %v10248 = vadd.f32 %v10154, %v10208
        %v10249 = vadd.f32 %v10154, %v10209
        %v10250 = vadd.f32 %v10154, %v10210
        %v10251 = vadd.f32 %v10154, %v10211
        %v10252 = vadd.f32 %v10154, %v10212
        %v10253 = vadd.f32 %v10154, %v10213
        %v10254 = vadd.f32 %v10154, %v10214
        %v10255 = vadd.f32 %v10154, %v10215
        %v10256 = vadd.f32 %v10154, %v10216
        %v10257 = vadd.f32 %v10154, %v10217
        %v10258 = vadd.f32 %v10154, %v10218
        %v10259 = vadd.f32 %v10154, %v10219
        %v10260 = vadd.f32 %v10154, %v10220
        %v10261 = vadd.f32 %v10154, %v10221
        %v10262 = vadd.f32 %v10154, %v10222
        %v10263 = vadd.f32 %v10154, %v10223
        %v10264 = vadd.f32 %v10154, %v10224
        %v10265 = vadd.f32 %v10154, %v10225
        %v10266 = vadd.f32 %v10154, %v10226
        %v10267 = vadd.f32 %v10154, %v10227
        %v10268 = vadd.f32 %v10154, %v10228
        %v10269 = vadd.f32 %v10154, %v10229
        %v10270 = vadd.f32 %v10154, %v10230
        %v10271 = vadd.f32 %v10154, %v10231
        %v10272 = vadd.f32 %v10154, %v10232
        %v10273 = vadd.f32 %v10154, %v10233
        %v10274 = vadd.f32 %v10154, %v10234
        %v10275 = vadd.f32 %v10154, %v10235
        %v10276 = vadd.f32 %v10154, %v10236
        %v10277 = vadd.f32 %v10154, %v10237
        %v10278 = vadd.f32 %v10154, %v10238
        %v10279 = vadd.f32 %v10154, %v10239
        %v10280 = vadd.f32 %v10154, %v10240
        %v10281 = vadd.f32 %v10154, %v10241
        %v10282 = vperm.slane %v8119, 1
        %v10283 = vperm.slane %v8171, 1
        %v10284 = vperm.slane %v8223, 1
        %v10285 = vperm.slane %v8275, 1
        %v10286 = vperm.slane %v8327, 1
        %v10287 = vperm.slane %v8379, 1
        %v10288 = vperm.slane %v8431, 1
        %v10289 = vperm.slane %v8483, 1
        %v10290 = vperm.slane %v8535, 1
        %v10291 = vperm.slane %v8587, 1
        %v10292 = vperm.slane %v8639, 1
        %v10293 = vperm.slane %v8691, 1
        %v10294 = vperm.slane %v8743, 1
        %v10295 = vperm.slane %v8795, 1
        %v10296 = vperm.slane %v8847, 1
        %v10297 = vperm.slane %v8899, 1
        %v10298 = vperm.slane %v8951, 1
        %v10299 = vperm.slane %v9003, 1
        %v10300 = vperm.slane %v9055, 1
        %v10301 = vperm.slane %v9107, 1
        %v10302 = vperm.slane %v9159, 1
        %v10303 = vperm.slane %v9211, 1
        %v10304 = vperm.slane %v9263, 1
        %v10305 = vperm.slane %v9315, 1
        %v10306 = vperm.slane %v9367, 1
        %v10307 = vperm.slane %v9419, 1
        %v10308 = vperm.slane %v9471, 1
        %v10309 = vperm.slane %v9523, 1
        %v10310 = vperm.slane %v9575, 1
        %v10311 = vperm.slane %v9627, 1
        %v10312 = vperm.slane %v9679, 1
        %v10313 = vperm.slane %v9731, 1
        %v10314 = vperm.slane %v9783, 1
        %v10315 = vperm.slane %v9835, 1
        %v10316 = vperm.slane %v9887, 1
        %v10317 = vperm.slane %v9939, 1
        %v10318 = vperm.slane %v9991, 1
        %v10319 = vperm.slane %v10043, 1
        %v10320 = vperm.slane %v10095, 1
        %v10321 = vperm.slane %v10147, 1
        %10322 = vset.pattern.permute.xlu0 1
        %10323 = vperm.xlu0 %10322, %v10196
        %v10324 = vpop.permute.xlu0 %10323
        %v10326 = vmul.f32 %v10282, %v10324
        %v10327 = vmul.f32 %v10283, %v10324
        %v10328 = vmul.f32 %v10284, %v10324
        %v10329 = vmul.f32 %v10285, %v10324
        %v10330 = vmul.f32 %v10286, %v10324
        %v10331 = vmul.f32 %v10287, %v10324
        %v10332 = vmul.f32 %v10288, %v10324
        %v10333 = vmul.f32 %v10289, %v10324
        %v10334 = vmul.f32 %v10290, %v10324
        %v10335 = vmul.f32 %v10291, %v10324
        %v10336 = vmul.f32 %v10292, %v10324
        %v10337 = vmul.f32 %v10293, %v10324
        %v10338 = vmul.f32 %v10294, %v10324
        %v10339 = vmul.f32 %v10295, %v10324
        %v10340 = vmul.f32 %v10296, %v10324
        %v10341 = vmul.f32 %v10297, %v10324
        %v10342 = vmul.f32 %v10298, %v10324
        %v10343 = vmul.f32 %v10299, %v10324
        %v10344 = vmul.f32 %v10300, %v10324
        %v10345 = vmul.f32 %v10301, %v10324
        %v10346 = vmul.f32 %v10302, %v10324
        %v10347 = vmul.f32 %v10303, %v10324
        %v10348 = vmul.f32 %v10304, %v10324
        %v10349 = vmul.f32 %v10305, %v10324
        %v10350 = vmul.f32 %v10306, %v10324
        %v10351 = vmul.f32 %v10307, %v10324
        %v10352 = vmul.f32 %v10308, %v10324
        %v10353 = vmul.f32 %v10309, %v10324
        %v10354 = vmul.f32 %v10310, %v10324
        %v10355 = vmul.f32 %v10311, %v10324
        %v10356 = vmul.f32 %v10312, %v10324
        %v10357 = vmul.f32 %v10313, %v10324
        %v10358 = vmul.f32 %v10314, %v10324
        %v10359 = vmul.f32 %v10315, %v10324
        %v10360 = vmul.f32 %v10316, %v10324
        %v10361 = vmul.f32 %v10317, %v10324
        %v10362 = vmul.f32 %v10318, %v10324
        %v10363 = vmul.f32 %v10319, %v10324
        %v10364 = vmul.f32 %v10320, %v10324
        %v10365 = vmul.f32 %v10321, %v10324
        %v10366 = vadd.f32 %v10242, %v10326
        %v10367 = vadd.f32 %v10243, %v10327
        %v10368 = vadd.f32 %v10244, %v10328
        %v10369 = vadd.f32 %v10245, %v10329
        %v10370 = vadd.f32 %v10246, %v10330
        %v10371 = vadd.f32 %v10247, %v10331
        %v10372 = vadd.f32 %v10248, %v10332
        %v10373 = vadd.f32 %v10249, %v10333
        %v10374 = vadd.f32 %v10250, %v10334
        %v10375 = vadd.f32 %v10251, %v10335
        %v10376 = vadd.f32 %v10252, %v10336
        %v10377 = vadd.f32 %v10253, %v10337
        %v10378 = vadd.f32 %v10254, %v10338
        %v10379 = vadd.f32 %v10255, %v10339
        %v10380 = vadd.f32 %v10256, %v10340
        %v10381 = vadd.f32 %v10257, %v10341
        %v10382 = vadd.f32 %v10258, %v10342
        %v10383 = vadd.f32 %v10259, %v10343
        %v10384 = vadd.f32 %v10260, %v10344
        %v10385 = vadd.f32 %v10261, %v10345
        %v10386 = vadd.f32 %v10262, %v10346
        %v10387 = vadd.f32 %v10263, %v10347
        %v10388 = vadd.f32 %v10264, %v10348
        %v10389 = vadd.f32 %v10265, %v10349
        %v10390 = vadd.f32 %v10266, %v10350
        %v10391 = vadd.f32 %v10267, %v10351
        %v10392 = vadd.f32 %v10268, %v10352
        %v10393 = vadd.f32 %v10269, %v10353
        %v10394 = vadd.f32 %v10270, %v10354
        %v10395 = vadd.f32 %v10271, %v10355
        %v10396 = vadd.f32 %v10272, %v10356
        %v10397 = vadd.f32 %v10273, %v10357
        %v10398 = vadd.f32 %v10274, %v10358
        %v10399 = vadd.f32 %v10275, %v10359
        %v10400 = vadd.f32 %v10276, %v10360
        %v10401 = vadd.f32 %v10277, %v10361
        %v10402 = vadd.f32 %v10278, %v10362
        %v10403 = vadd.f32 %v10279, %v10363
        %v10404 = vadd.f32 %v10280, %v10364
        %v10405 = vadd.f32 %v10281, %v10365
        %vm10406 = vcmp.ge.f32.partialorder %v10366, 0.0
        %vm10407 = vcmp.ge.f32.partialorder %v10367, 0.0
        %vm10408 = vcmp.ge.f32.partialorder %v10368, 0.0
        %vm10409 = vcmp.ge.f32.partialorder %v10369, 0.0
        %vm10410 = vcmp.ge.f32.partialorder %v10370, 0.0
        %vm10411 = vcmp.ge.f32.partialorder %v10371, 0.0
        %vm10412 = vcmp.ge.f32.partialorder %v10372, 0.0
        %vm10413 = vcmp.ge.f32.partialorder %v10373, 0.0
        %vm10414 = vcmp.ge.f32.partialorder %v10374, 0.0
        %vm10415 = vcmp.ge.f32.partialorder %v10375, 0.0
        %vm10416 = vcmp.ge.f32.partialorder %v10376, 0.0
        %vm10417 = vcmp.ge.f32.partialorder %v10377, 0.0
        %vm10418 = vcmp.ge.f32.partialorder %v10378, 0.0
        %vm10419 = vcmp.ge.f32.partialorder %v10379, 0.0
        %vm10420 = vcmp.ge.f32.partialorder %v10380, 0.0
        %vm10421 = vcmp.ge.f32.partialorder %v10381, 0.0
        %vm10422 = vcmp.ge.f32.partialorder %v10382, 0.0
        %vm10423 = vcmp.ge.f32.partialorder %v10383, 0.0
        %vm10424 = vcmp.ge.f32.partialorder %v10384, 0.0
        %vm10425 = vcmp.ge.f32.partialorder %v10385, 0.0
        %vm10426 = vcmp.ge.f32.partialorder %v10386, 0.0
        %vm10427 = vcmp.ge.f32.partialorder %v10387, 0.0
        %vm10428 = vcmp.ge.f32.partialorder %v10388, 0.0
        %vm10429 = vcmp.ge.f32.partialorder %v10389, 0.0
        %vm10430 = vcmp.ge.f32.partialorder %v10390, 0.0
        %vm10431 = vcmp.ge.f32.partialorder %v10391, 0.0
        %vm10432 = vcmp.ge.f32.partialorder %v10392, 0.0
        %vm10433 = vcmp.ge.f32.partialorder %v10393, 0.0
        %vm10434 = vcmp.ge.f32.partialorder %v10394, 0.0
        %vm10435 = vcmp.ge.f32.partialorder %v10395, 0.0
        %vm10436 = vcmp.ge.f32.partialorder %v10396, 0.0
        %vm10437 = vcmp.ge.f32.partialorder %v10397, 0.0
        %vm10438 = vcmp.ge.f32.partialorder %v10398, 0.0
        %vm10439 = vcmp.ge.f32.partialorder %v10399, 0.0
        %vm10440 = vcmp.ge.f32.partialorder %v10400, 0.0
        %vm10441 = vcmp.ge.f32.partialorder %v10401, 0.0
        %vm10442 = vcmp.ge.f32.partialorder %v10402, 0.0
        %vm10443 = vcmp.ge.f32.partialorder %v10403, 0.0
        %vm10444 = vcmp.ge.f32.partialorder %v10404, 0.0
        %vm10445 = vcmp.ge.f32.partialorder %v10405, 0.0
        %v10446 = vmul.f32 %v10366, 0.3
        %v10447 = vmul.f32 %v10367, 0.3
        %v10448 = vmul.f32 %v10368, 0.3
        %v10449 = vmul.f32 %v10369, 0.3
        %v10450 = vmul.f32 %v10370, 0.3
        %v10451 = vmul.f32 %v10371, 0.3
        %v10452 = vmul.f32 %v10372, 0.3
        %v10453 = vmul.f32 %v10373, 0.3
        %v10454 = vmul.f32 %v10374, 0.3
        %v10455 = vmul.f32 %v10375, 0.3
        %v10456 = vmul.f32 %v10376, 0.3
        %v10457 = vmul.f32 %v10377, 0.3
        %v10458 = vmul.f32 %v10378, 0.3
        %v10459 = vmul.f32 %v10379, 0.3
        %v10460 = vmul.f32 %v10380, 0.3
        %v10461 = vmul.f32 %v10381, 0.3
        %v10462 = vmul.f32 %v10382, 0.3
        %v10463 = vmul.f32 %v10383, 0.3
        %v10464 = vmul.f32 %v10384, 0.3
        %v10465 = vmul.f32 %v10385, 0.3
        %v10466 = vmul.f32 %v10386, 0.3
        %v10467 = vmul.f32 %v10387, 0.3
        %v10468 = vmul.f32 %v10388, 0.3
        %v10469 = vmul.f32 %v10389, 0.3
        %v10470 = vmul.f32 %v10390, 0.3
        %v10471 = vmul.f32 %v10391, 0.3
        %v10472 = vmul.f32 %v10392, 0.3
        %v10473 = vmul.f32 %v10393, 0.3
        %v10474 = vmul.f32 %v10394, 0.3
        %v10475 = vmul.f32 %v10395, 0.3
        %v10476 = vmul.f32 %v10396, 0.3
        %v10477 = vmul.f32 %v10397, 0.3
        %v10478 = vmul.f32 %v10398, 0.3
        %v10479 = vmul.f32 %v10399, 0.3
        %v10480 = vmul.f32 %v10400, 0.3
        %v10481 = vmul.f32 %v10401, 0.3
        %v10482 = vmul.f32 %v10402, 0.3
        %v10483 = vmul.f32 %v10403, 0.3
        %v10484 = vmul.f32 %v10404, 0.3
        %v10485 = vmul.f32 %v10405, 0.3
        %v10486 = vsel %vm10406, %v10366, %v10446
        %v10487 = vsel %vm10407, %v10367, %v10447
        %v10488 = vsel %vm10408, %v10368, %v10448
        %v10489 = vsel %vm10409, %v10369, %v10449
        %v10490 = vsel %vm10410, %v10370, %v10450
        %v10491 = vsel %vm10411, %v10371, %v10451
        %v10492 = vsel %vm10412, %v10372, %v10452
        %v10493 = vsel %vm10413, %v10373, %v10453
        %v10494 = vsel %vm10414, %v10374, %v10454
        %v10495 = vsel %vm10415, %v10375, %v10455
        %v10496 = vsel %vm10416, %v10376, %v10456
        %v10497 = vsel %vm10417, %v10377, %v10457
        %v10498 = vsel %vm10418, %v10378, %v10458
        %v10499 = vsel %vm10419, %v10379, %v10459
        %v10500 = vsel %vm10420, %v10380, %v10460
        %v10501 = vsel %vm10421, %v10381, %v10461
        %v10502 = vsel %vm10422, %v10382, %v10462
        %v10503 = vsel %vm10423, %v10383, %v10463
        %v10504 = vsel %vm10424, %v10384, %v10464
        %v10505 = vsel %vm10425, %v10385, %v10465
        %v10506 = vsel %vm10426, %v10386, %v10466
        %v10507 = vsel %vm10427, %v10387, %v10467
        %v10508 = vsel %vm10428, %v10388, %v10468
        %v10509 = vsel %vm10429, %v10389, %v10469
        %v10510 = vsel %vm10430, %v10390, %v10470
        %v10511 = vsel %vm10431, %v10391, %v10471
        %v10512 = vsel %vm10432, %v10392, %v10472
        %v10513 = vsel %vm10433, %v10393, %v10473
        %v10514 = vsel %vm10434, %v10394, %v10474
        %v10515 = vsel %vm10435, %v10395, %v10475
        %v10516 = vsel %vm10436, %v10396, %v10476
        %v10517 = vsel %vm10437, %v10397, %v10477
        %v10518 = vsel %vm10438, %v10398, %v10478
        %v10519 = vsel %vm10439, %v10399, %v10479
        %v10520 = vsel %vm10440, %v10400, %v10480
        %v10521 = vsel %vm10441, %v10401, %v10481
        %v10522 = vsel %vm10442, %v10402, %v10482
        %v10523 = vsel %vm10443, %v10403, %v10483
        %v10524 = vsel %vm10444, %v10404, %v10484
        %v10525 = vsel %vm10445, %v10405, %v10485
        %10526 = vst [vmem:[%s287] sm:$0xff] %v10486
        %10527 = vst [vmem:[%s287 + $0x8] sm:$0xff] %v10487
        %10528 = vst [vmem:[%s287 + $0x10] sm:$0xff] %v10488
        %10529 = vst [vmem:[%s287 + $0x18] sm:$0xff] %v10489
        %10530 = vst [vmem:[%s287 + $0x20] sm:$0xff] %v10490
        %10531 = vst [vmem:[%s287 + $0x28] sm:$0xff] %v10491
        %10532 = vst [vmem:[%s287 + $0x30] sm:$0xff] %v10492
        %10533 = vst [vmem:[%s287 + $0x38] sm:$0xff] %v10493
        %10534 = vst [vmem:[%s287 + $0x40] sm:$0xff] %v10494
        %10535 = vst [vmem:[%s287 + $0x48] sm:$0xff] %v10495
        %10536 = vst [vmem:[%s287 + $0x50] sm:$0xff] %v10496
        %10537 = vst [vmem:[%s287 + $0x58] sm:$0xff] %v10497
        %10538 = vst [vmem:[%s287 + $0x60] sm:$0xff] %v10498
        %10539 = vst [vmem:[%s287 + $0x68] sm:$0xff] %v10499
        %10540 = vst [vmem:[%s287 + $0x70] sm:$0xff] %v10500
        %10541 = vst [vmem:[%s287 + $0x78] sm:$0xff] %v10501
        %10542 = vst [vmem:[%s287 + $0x80] sm:$0xff] %v10502
        %10543 = vst [vmem:[%s287 + $0x88] sm:$0xff] %v10503
        %10544 = vst [vmem:[%s287 + $0x90] sm:$0xff] %v10504
        %10545 = vst [vmem:[%s287 + $0x98] sm:$0xff] %v10505
        %10546 = vst [vmem:[%s287 + $0xa0] sm:$0xff] %v10506
        %10547 = vst [vmem:[%s287 + $0xa8] sm:$0xff] %v10507
        %10548 = vst [vmem:[%s287 + $0xb0] sm:$0xff] %v10508
        %10549 = vst [vmem:[%s287 + $0xb8] sm:$0xff] %v10509
        %10550 = vst [vmem:[%s287 + $0xc0] sm:$0xff] %v10510
        %10551 = vst [vmem:[%s287 + $0xc8] sm:$0xff] %v10511
        %10552 = vst [vmem:[%s287 + $0xd0] sm:$0xff] %v10512
        %10553 = vst [vmem:[%s287 + $0xd8] sm:$0xff] %v10513
        %10554 = vst [vmem:[%s287 + $0xe0] sm:$0xff] %v10514
        %10555 = vst [vmem:[%s287 + $0xe8] sm:$0xff] %v10515
        %10556 = vst [vmem:[%s287 + $0xf0] sm:$0xff] %v10516
        %10557 = vst [vmem:[%s287 + $0xf8] sm:$0xff] %v10517
        %10558 = vst [vmem:[%s287 + $0x100] sm:$0xff] %v10518
        %10559 = vst [vmem:[%s287 + $0x108] sm:$0xff] %v10519
        %10560 = vst [vmem:[%s287 + $0x110] sm:$0xff] %v10520
        %10561 = vst [vmem:[%s287 + $0x118] sm:$0xff] %v10521
        %10562 = vst [vmem:[%s287 + $0x120] sm:$0xff] %v10522
        %10563 = vst [vmem:[%s287 + $0x128] sm:$0xff] %v10523
        %10564 = vst [vmem:[%s287 + $0x130] sm:$0xff] %v10524
        %10565 = vst [vmem:[%s287 + $0x138] sm:$0xff] %v10525
        %s10566 = smul.u32 40, %s22
        %p10567 = scmp.lt.s32.totalorder %s10566, 759
        %s10568 = scalar_select %p10567, %s10566, 759
        %s10569 = smul.addr %s10568, 8
        %s10570 = scalar_lea.vmem %s5, %s10569
        // Predicated region
        $region49: #{decoder_forward.3} parent=39 // pred_check
          %p10571 = pneg %p155
        $region50: #{decoder_forward.3} parent=39 // pred_check_branch
          %10573 = sbr.rel (%p10571) target = $region52
        $region51: #{decoder_forward.3} parent=39 // pred_region
          %s10574 = smul.u32 40, %s22
        $region52: #{decoder_forward.3} parent=39 // pred_fallthru
          _
      $region40: #{decoder_forward.3} parent=5 // pred_fallthru
        _
      %p10575 = scmp.le.s32.totalorder 2, %s17
      // Predicated region
      $region53: #{decoder_forward.3} parent=5 // pred_check
        %p10576 = pneg %p10575
      $region54: #{decoder_forward.3} parent=5 // pred_check_branch
        %10578 = sbr.rel (%p10576) target = $region56
      $region55: #{decoder_forward.3} parent=5 // pred_region
        %s10579 = ssub.s32 %s17, 2
        // Predicated region
        $region57: #{decoder_forward.3} parent=55 // pred_check
          %p10580 = pneg %p161
        $region58: #{decoder_forward.3} parent=55 // pred_check_branch
          %10582 = sbr.rel (%p10580) target = $region60
        $region59: #{decoder_forward.3} parent=55 // pred_region
          %s10583 = smul.u32 40, %s23
          %p10584 = scmp.lt.s32.totalorder %s10583, 759
          %s10585 = scalar_select %p10584, %s10583, 759
          %s10586 = smul.addr %s10585, 8
          %s10587 = scalar_lea.vmem %s5, %s10586
        $region60: #{decoder_forward.3} parent=55 // pred_fallthru
          _
      $region56: #{decoder_forward.3} parent=5 // pred_fallthru
        _
    $region6: #{decoder_forward.3} parent=1 // loop_footer
      %s21 = sadd.s32 1, %s17
    $region7: #{decoder_forward.3} parent=1 // loop_footer_branch
      %16 = sbr.rel target = $region3
    $region8: #{decoder_forward.3} parent=1 // loop_exit
      _
    %10588 = vsyncpa [#allocation3], 1
    %s10589 = scalar_lea.sflag [#allocation3], 1
    %10590 = vsyncpa %s10589, 1
    %10591 = vsyncpa [#allocation5], 1
    %s10592 = scalar_lea.sflag [#allocation5], 1
    %10593 = vsyncpa %s10592, 1

</llo_original>
